<compile_context>
chip_gen: v5e
topology: v5e:2x2
jax: 0.10.0
libtpu: 0.0.40
codegen_flags: <defaults>
</compile_context>

<pallas_src>
import math
from functools import partial

import jax
import jax.numpy as jnp
from jax import lax
from jax.experimental import pallas as pl
from jax.experimental.pallas import tpu as pltpu

BF16 = jnp.bfloat16
ROW_TILE_CAP = 512
_VMEM_LIMIT = 64 * 1024 * 1024

_PPARAMS1 = pltpu.CompilerParams(dimension_semantics=("parallel",),
                                 vmem_limit_bytes=_VMEM_LIMIT)
_PPARAMS2 = pltpu.CompilerParams(dimension_semantics=("parallel", "parallel"),
                                 vmem_limit_bytes=_VMEM_LIMIT)


def _row_tile(m, cap=ROW_TILE_CAP):
    t = min(cap, m)
    return max(8, ((t + 7) // 8) * 8)


# ---------------------------------------------------------------------------
# Kernel 1: fused linear (+ optional bias, + optional activation)
# ---------------------------------------------------------------------------
def _linear_kernel(x_ref, w_ref, *refs, activation, has_bias):
    o_ref = refs[-1]
    y = jnp.dot(x_ref[...], w_ref[...], preferred_element_type=jnp.float32)
    if has_bias:
        y = y + refs[0][...].astype(jnp.float32)
    if activation == "relu":
        y = jnp.maximum(y, 0.0)
    elif activation == "sigmoid":
        y = jax.nn.sigmoid(y)
    o_ref[...] = y.astype(o_ref.dtype)


def pallas_linear(x, w, b=None, activation=None, out_dtype=BF16):
    *lead, K = x.shape
    N = w.shape[1]
    x2 = x.reshape(-1, K)
    M = x2.shape[0]
    tm = _row_tile(M)
    args = [x2, w]
    in_specs = [pl.BlockSpec((tm, K), lambda i: (i, 0)),
                pl.BlockSpec((K, N), lambda i: (0, 0))]
    if b is not None:
        args.append(b.reshape(1, N))
        in_specs.append(pl.BlockSpec((1, N), lambda i: (0, 0)))
    out = pl.pallas_call(
        partial(_linear_kernel, activation=activation, has_bias=b is not None),
        out_shape=jax.ShapeDtypeStruct((M, N), out_dtype),
        grid=(pl.cdiv(M, tm),),
        in_specs=in_specs,
        out_specs=pl.BlockSpec((tm, N), lambda i: (i, 0)),
        compiler_params=_PPARAMS1,
    )(*args)
    return out.reshape(*lead, N)


# ---------------------------------------------------------------------------
# Kernel 2: layernorm (plain) over the feature axis
# ---------------------------------------------------------------------------
def _layernorm_kernel(x_ref, g_ref, b_ref, o_ref, *, eps):
    x = x_ref[...].astype(jnp.float32)
    mu = jnp.mean(x, axis=-1, keepdims=True)
    xc = x - mu
    var = jnp.mean(xc * xc, axis=-1, keepdims=True)
    y = xc * lax.rsqrt(var + eps) * g_ref[...].astype(jnp.float32) \
        + b_ref[...].astype(jnp.float32)
    o_ref[...] = y.astype(o_ref.dtype)


def pallas_layernorm(x, gamma, beta, eps=1e-5, out_dtype=BF16):
    *lead, D = x.shape
    x2 = x.reshape(-1, D)
    M = x2.shape[0]
    tm = _row_tile(M)
    out = pl.pallas_call(
        partial(_layernorm_kernel, eps=eps),
        out_shape=jax.ShapeDtypeStruct((M, D), out_dtype),
        grid=(pl.cdiv(M, tm),),
        in_specs=[pl.BlockSpec((tm, D), lambda i: (i, 0)),
                  pl.BlockSpec((1, D), lambda i: (0, 0)),
                  pl.BlockSpec((1, D), lambda i: (0, 0))],
        out_specs=pl.BlockSpec((tm, D), lambda i: (i, 0)),
        compiler_params=_PPARAMS1,
    )(x2, gamma.reshape(1, D), beta.reshape(1, D))
    return out.reshape(*lead, D)


# ---------------------------------------------------------------------------
# Kernel 3: fused layernorm + linear (+ bias, + activation / sigmoid-tail gate)
# ---------------------------------------------------------------------------
def _ln_linear_kernel(x_ref, g_ref, bln_ref, w_ref, *refs,
                      eps, activation, sigmoid_from, has_bias):
    o_ref = refs[-1]
    x = x_ref[...].astype(jnp.float32)
    mu = jnp.mean(x, axis=-1, keepdims=True)
    xc = x - mu
    var = jnp.mean(xc * xc, axis=-1, keepdims=True)
    xn = xc * lax.rsqrt(var + eps) * g_ref[...].astype(jnp.float32) \
        + bln_ref[...].astype(jnp.float32)
    y = jnp.dot(xn.astype(BF16), w_ref[...], preferred_element_type=jnp.float32)
    if has_bias:
        y = y + refs[0][...].astype(jnp.float32)
    if activation == "relu":
        y = jnp.maximum(y, 0.0)
    elif activation == "sigmoid":
        y = jax.nn.sigmoid(y)
    if sigmoid_from is not None:
        col = lax.broadcasted_iota(jnp.int32, y.shape, 1)
        y = jnp.where(col >= sigmoid_from, jax.nn.sigmoid(y), y)
    o_ref[...] = y.astype(o_ref.dtype)


def pallas_ln_linear(x, gamma, beta, w, b=None, activation=None,
                     sigmoid_from=None, eps=1e-5, out_dtype=BF16):
    *lead, D = x.shape
    N = w.shape[1]
    x2 = x.reshape(-1, D)
    M = x2.shape[0]
    tm = _row_tile(M)
    args = [x2, gamma.reshape(1, D), beta.reshape(1, D), w]
    in_specs = [pl.BlockSpec((tm, D), lambda i: (i, 0)),
                pl.BlockSpec((1, D), lambda i: (0, 0)),
                pl.BlockSpec((1, D), lambda i: (0, 0)),
                pl.BlockSpec((D, N), lambda i: (0, 0))]
    if b is not None:
        args.append(b.reshape(1, N))
        in_specs.append(pl.BlockSpec((1, N), lambda i: (0, 0)))
    out = pl.pallas_call(
        partial(_ln_linear_kernel, eps=eps, activation=activation,
                sigmoid_from=sigmoid_from, has_bias=b is not None),
        out_shape=jax.ShapeDtypeStruct((M, N), out_dtype),
        grid=(pl.cdiv(M, tm),),
        in_specs=in_specs,
        out_specs=pl.BlockSpec((tm, N), lambda i: (i, 0)),
        compiler_params=_PPARAMS1,
    )(*args)
    return out.reshape(*lead, N)


# ---------------------------------------------------------------------------
# Kernel 4: gated linear  ( (gate * x) @ W + b )
# ---------------------------------------------------------------------------
def _gated_linear_kernel(x_ref, g_ref, w_ref, b_ref, o_ref):
    x = x_ref[...].astype(jnp.float32) * g_ref[...].astype(jnp.float32)
    y = jnp.dot(x.astype(BF16), w_ref[...], preferred_element_type=jnp.float32) \
        + b_ref[...].astype(jnp.float32)
    o_ref[...] = y.astype(o_ref.dtype)


def pallas_gated_linear(x, gate, w, b, out_dtype=BF16):
    *lead, K = x.shape
    N = w.shape[1]
    x2 = x.reshape(-1, K)
    g2 = gate.reshape(-1, K)
    M = x2.shape[0]
    tm = _row_tile(M)
    out = pl.pallas_call(
        _gated_linear_kernel,
        out_shape=jax.ShapeDtypeStruct((M, N), out_dtype),
        grid=(pl.cdiv(M, tm),),
        in_specs=[pl.BlockSpec((tm, K), lambda i: (i, 0)),
                  pl.BlockSpec((tm, K), lambda i: (i, 0)),
                  pl.BlockSpec((K, N), lambda i: (0, 0)),
                  pl.BlockSpec((1, N), lambda i: (0, 0))],
        out_specs=pl.BlockSpec((tm, N), lambda i: (i, 0)),
        compiler_params=_PPARAMS1,
    )(x2, g2, w, b.reshape(1, N))
    return out.reshape(*lead, N)


# ---------------------------------------------------------------------------
# Kernel 5: template embedding without materializing concat(t2d, left, right)
#   templ[b,i,j] = t2d[b,i,j] @ w_t2d + (t1d[b,i] @ w_left) + (t1d[b,j] @ w_right) + b
# ---------------------------------------------------------------------------
def _emb_kernel(t2d_ref, left_ref, right_ref, w_ref, b_ref, o_ref):
    x = t2d_ref[0, 0]                                            # (L, d_t2d)
    y = jnp.dot(x, w_ref[...], preferred_element_type=jnp.float32)
    y = (y + left_ref[0, 0].astype(jnp.float32)
           + right_ref[0, 0].astype(jnp.float32)
           + b_ref[...].astype(jnp.float32))
    o_ref[0, 0] = y.astype(o_ref.dtype)


def pallas_templ_emb(t2d, left_p, right_p, w_t2d, b):
    BT, L, _, d_t2d = t2d.shape
    d_out = w_t2d.shape[1]
    return pl.pallas_call(
        _emb_kernel,
        out_shape=jax.ShapeDtypeStruct((BT, L, L, d_out), BF16),
        grid=(BT, L),
        in_specs=[pl.BlockSpec((1, 1, L, d_t2d), lambda bt, i: (bt, i, 0, 0)),
                  pl.BlockSpec((1, 1, 1, d_out), lambda bt, i: (bt, i, 0, 0)),
                  pl.BlockSpec((1, 1, L, d_out), lambda bt, i: (bt, 0, 0, 0)),
                  pl.BlockSpec((d_t2d, d_out), lambda bt, i: (0, 0)),
                  pl.BlockSpec((1, d_out), lambda bt, i: (0, 0))],
        out_specs=pl.BlockSpec((1, 1, L, d_out), lambda bt, i: (bt, i, 0, 0)),
        compiler_params=_PPARAMS2,
    )(t2d, left_p, right_p, w_t2d, b.reshape(1, d_out))


# ---------------------------------------------------------------------------
# Kernel 6: fused cdist + RBF + mask + emb_rbf(relu) + proj_rbf  (row tiled over i)
# ---------------------------------------------------------------------------
D_MIN, D_MAX, D_COUNT = 2.0, 22.0, 36
D_SIGMA = (D_MAX - D_MIN) / D_COUNT


def _rbf_proj_kernel(xi_ref, xall_ref, mask_ref, mu_ref,
                     w1_ref, b1_ref, w2_ref, b2_ref, o_ref):
    xi = xi_ref[0, 0].astype(jnp.float32)                        # (1, 3)
    xa = xall_ref[0].astype(jnp.float32)                         # (L, 3)
    diff = xa - xi
    d = jnp.sqrt(jnp.sum(diff * diff, axis=-1, keepdims=True))   # (L, 1) cdist row
    r = jnp.exp(-jnp.square((d - mu_ref[...]) / D_SIGMA))        # (L, 36)
    r = r * mask_ref[0, 0].astype(jnp.float32)                   # (L, 1) mask
    h = jnp.dot(r.astype(BF16), w1_ref[...],
                preferred_element_type=jnp.float32) + b1_ref[...].astype(jnp.float32)
    h = jnp.maximum(h, 0.0)
    y = jnp.dot(h.astype(BF16), w2_ref[...],
                preferred_element_type=jnp.float32) + b2_ref[...].astype(jnp.float32)
    o_ref[0, 0] = y.astype(o_ref.dtype)


def pallas_rbf_proj(xyz, mask, w1, b1, w2, b2):
    BT, L, _ = xyz.shape
    dh = w1.shape[1]
    d_out = w2.shape[1]
    mu = jnp.linspace(D_MIN, D_MAX, D_COUNT, dtype=jnp.float32).reshape(1, D_COUNT)
    xyz4 = xyz.reshape(BT, L, 1, 3)
    mask4 = mask.reshape(BT, L, L, 1).astype(BF16)
    return pl.pallas_call(
        _rbf_proj_kernel,
        out_shape=jax.ShapeDtypeStruct((BT, L, L, d_out), BF16),
        grid=(BT, L),
        in_specs=[pl.BlockSpec((1, 1, 1, 3), lambda bt, i: (bt, i, 0, 0)),
                  pl.BlockSpec((1, L, 3), lambda bt, i: (bt, 0, 0)),
                  pl.BlockSpec((1, 1, L, 1), lambda bt, i: (bt, i, 0, 0)),
                  pl.BlockSpec((1, D_COUNT), lambda bt, i: (0, 0)),
                  pl.BlockSpec((D_COUNT, dh), lambda bt, i: (0, 0)),
                  pl.BlockSpec((1, dh), lambda bt, i: (0, 0)),
                  pl.BlockSpec((dh, d_out), lambda bt, i: (0, 0)),
                  pl.BlockSpec((1, d_out), lambda bt, i: (0, 0))],
        out_specs=pl.BlockSpec((1, 1, L, d_out), lambda bt, i: (bt, i, 0, 0)),
        compiler_params=_PPARAMS2,
    )(xyz4, xyz.astype(jnp.float32), mask4, mu, w1, b1.reshape(1, dh),
      w2, b2.reshape(1, d_out))


# ---------------------------------------------------------------------------
# Kernel 7: fused single-query multi-head cross attention
#   queries: (Nb, Dq); keys/values (lane-dense): (Nb, T*Dk); out: (Nb, Dout)
#   K/V via one block-diagonal matmul each; head reductions via 0/1 matrices.
# ---------------------------------------------------------------------------
def _cross_attn_kernel(xq_ref, xkv_ref, wq_ref, wkbd_ref, wvbd_ref,
                       seg_ref, hexp_ref, wo_ref, bo_ref, o_ref,
                       *, n_head, d_hidden, n_key, scaling):
    HD = n_head * d_hidden
    q = jnp.dot(xq_ref[...], wq_ref[...],
                preferred_element_type=jnp.float32) * scaling        # (tm, HD)
    k = jnp.dot(xkv_ref[...], wkbd_ref[...],
                preferred_element_type=jnp.float32)                  # (tm, T*HD)
    v = jnp.dot(xkv_ref[...], wvbd_ref[...],
                preferred_element_type=jnp.float32)                  # (tm, T*HD)

    # per-key, per-head logits: intra-head reduction on the MXU via 0/1 segment matrix
    logits = []
    for t in range(n_key):
        kt = k[:, t * HD:(t + 1) * HD]
        logits.append(jnp.dot(q * kt, seg_ref[...],
                              preferred_element_type=jnp.float32))   # (tm, n_head)
    m = logits[0]
    for t in range(1, n_key):
        m = jnp.maximum(m, logits[t])
    exps = [jnp.exp(l - m) for l in logits]
    den = exps[0]
    for t in range(1, n_key):
        den = den + exps[t]
    inv = 1.0 / den

    acc = None
    for t in range(n_key):
        w_t = jnp.dot(exps[t] * inv, hexp_ref[...],
                      preferred_element_type=jnp.float32)            # (tm, HD)
        vt = v[:, t * HD:(t + 1) * HD]
        acc = w_t * vt if acc is None else acc + w_t * vt

    out = jnp.dot(acc.astype(BF16), wo_ref[...],
                  preferred_element_type=jnp.float32) + bo_ref[...].astype(jnp.float32)
    o_ref[...] = out.astype(o_ref.dtype)


def pallas_cross_attn(xq, xkv, p, n_head, d_hidden):
    Nb, Dq = xq.shape
    _, T, Dk = xkv.shape
    HD = n_head * d_hidden
    Dout = p["wo"].shape[1]
    xkv2 = xkv.reshape(Nb, T * Dk)                                    # lane-dense kv
    tm = _row_tile(Nb)
    wk_bd = jnp.kron(jnp.eye(T, dtype=p["wk"].dtype), p["wk"])        # (T*Dk, T*HD)
    wv_bd = jnp.kron(jnp.eye(T, dtype=p["wv"].dtype), p["wv"])
    seg = (jnp.arange(HD)[:, None] // d_hidden ==
           jnp.arange(n_head)[None, :]).astype(jnp.float32)           # (HD, n_head)
    hexp = seg.T                                                      # (n_head, HD)
    out = pl.pallas_call(
        partial(_cross_attn_kernel, n_head=n_head, d_hidden=d_hidden,
                n_key=T, scaling=1.0 / math.sqrt(d_hidden)),
        out_shape=jax.ShapeDtypeStruct((Nb, Dout), jnp.float32),
        grid=(pl.cdiv(Nb, tm),),
        in_specs=[pl.BlockSpec((tm, Dq), lambda i: (i, 0)),
                  pl.BlockSpec((tm, T * Dk), lambda i: (i, 0)),
                  pl.BlockSpec((Dq, HD), lambda i: (0, 0)),
                  pl.BlockSpec((T * Dk, T * HD), lambda i: (0, 0)),
                  pl.BlockSpec((T * Dk, T * HD), lambda i: (0, 0)),
                  pl.BlockSpec((HD, n_head), lambda i: (0, 0)),
                  pl.BlockSpec((n_head, HD), lambda i: (0, 0)),
                  pl.BlockSpec((HD, Dout), lambda i: (0, 0)),
                  pl.BlockSpec((1, Dout), lambda i: (0, 0))],
        out_specs=pl.BlockSpec((tm, Dout), lambda i: (i, 0)),
        compiler_params=_PPARAMS1,
    )(xq, xkv2, p["wq"], wk_bd, wv_bd, seg, hexp, p["wo"], p["bo"].reshape(1, Dout))
    return out


# ---------------------------------------------------------------------------
# PairStr2Pair / BiasedAxialAttention / FeedForward (RF2-NA reference, eval mode)
# ---------------------------------------------------------------------------
def biased_axial_attention(p, pair, bias, is_row, n_head, d_hidden):
    O, L = pair.shape[:2]
    HD = n_head * d_hidden
    if is_row:
        pair = jnp.transpose(pair, (0, 2, 1, 3))
        bias = jnp.transpose(bias, (0, 2, 1, 3))

    # fused layernorm + [q | k | v | gate] projection (lane-dense N = 4*HD)
    w_qkvg = jnp.concatenate([p["wq"], p["wk"], p["wv"], p["wg"]], axis=1)
    b_qkvg = jnp.concatenate([jnp.zeros((3 * HD,), BF16), p["bg"]], axis=0)
    qkvg = pallas_ln_linear(pair, p["norm_pair_g"], p["norm_pair_b"],
                            w_qkvg, b_qkvg, sigmoid_from=3 * HD)
    q = qkvg[..., :HD].reshape(O, L, L, n_head, d_hidden)
    k = qkvg[..., HD:2 * HD].reshape(O, L, L, n_head, d_hidden)
    v = qkvg[..., 2 * HD:3 * HD].reshape(O, L, L, n_head, d_hidden)
    gate = qkvg[..., 3 * HD:]

    # fused layernorm + bias projection
    b = pallas_ln_linear(bias, p["norm_bias_g"], p["norm_bias_b"], p["wb"])  # (O,L,L,h)

    # tiny tied-attention core (plain-JAX glue); 1/sqrt(d) and 1/L folded into one scale
    scale = (1.0 / math.sqrt(d_hidden)) / L
    attn = jnp.einsum("bnihk,bnjhk->bijh", q, k,
                      preferred_element_type=jnp.float32) * scale
    attn = attn + b.astype(jnp.float32)
    attn = jax.nn.softmax(attn, axis=-2)
    out = jnp.einsum("bijh,bnjhd->bnihd", attn, v).reshape(O, L, L, HD).astype(BF16)

    out = pallas_gated_linear(out, gate, p["wo"], p["bo"])
    if is_row:
        out = jnp.transpose(out, (0, 2, 1, 3))
    return out


def pair_str2pair(p, pair, xyz, mask, n_head, d_hidden):
    # fused RBF(cdist)*mask + emb_rbf(relu) + proj_rbf (per-block weights)
    rbf_p = pallas_rbf_proj(xyz, mask, p["emb_rbf_w"], p["emb_rbf_b"],
                            p["proj_rbf_w"], p["proj_rbf_b"])
    pair = pair + biased_axial_attention(p["row"], pair, rbf_p, True, n_head, d_hidden)
    pair = pair + biased_axial_attention(p["col"], pair, rbf_p, False, n_head, d_hidden)
    # feed-forward: layernorm fused into first linear
    x = pallas_ln_linear(pair, p["ff_norm_g"], p["ff_norm_b"],
                         p["ff_w1"], p["ff_b1"], activation="relu")
    x = pallas_linear(x, p["ff_w2"], p["ff_b2"])
    return pair + x


# ---------------------------------------------------------------------------
# Templ_emb forward
# ---------------------------------------------------------------------------
def templ_emb_forward(params, t1d, t2d, alpha_t, xyz_t, mask_t, pair, state,
                      n_head=4, d_hidden=16):
    B, T, L, d_t1d = t1d.shape
    d_t2d = t2d.shape[-1]
    d_templ = params["emb_w"].shape[1]

    pp = jax.tree_util.tree_map(lambda a: a.astype(BF16), params)
    t1d_b = t1d.astype(BF16)
    t2d_b = t2d.reshape(B * T, L, L, d_t2d).astype(BF16)

    # _get_templ_emb without the (…, 2*d_t1d+d_t2d) concat tensor:
    # split emb_w rows to match cat(t2d, left, right)
    w_emb = pp["emb_w"]
    w_t2d = w_emb[:d_t2d]
    w_lr = jnp.concatenate([w_emb[d_t2d:d_t2d + d_t1d],
                            w_emb[d_t2d + d_t1d:]], axis=1)            # (d_t1d, 2*d_templ)
    lr = pallas_linear(t1d_b, w_lr)                                    # (B,T,L,2*d_templ)
    left_p = lr[..., :d_templ].reshape(B * T, L, 1, d_templ)
    right_p = lr[..., d_templ:].reshape(B * T, 1, L, d_templ)
    templ = pallas_templ_emb(t2d_b, left_p, right_p, w_t2d, pp["emb_b"])

    # TemplatePairStack (RBF projection fused per block)
    xyz_bt = xyz_t.reshape(B * T, L, 3)
    mask_bt = mask_t.reshape(B * T, L, L)
    for blk in pp["stack_blocks"]:
        templ = pair_str2pair(blk, templ, xyz_bt, mask_bt, n_head, d_hidden)
    templ = pallas_layernorm(templ, pp["stack_norm_g"], pp["stack_norm_b"])
    templ = templ.reshape(B, T, L, L, d_templ)

    # proj_t1d on cat(t1d, alpha_t)
    t1d_cat = jnp.concatenate([t1d_b, alpha_t.astype(BF16)], axis=-1)
    t1d_p = pallas_linear(t1d_cat, pp["proj_t1d_w"], pp["proj_t1d_b"])

    # attn_tor: state queries attend over templates per residue
    d_state = state.shape[-1]
    state_q = state.astype(BF16).reshape(B * L, d_state)
    t1d_kv = jnp.transpose(t1d_p, (0, 2, 1, 3)).reshape(B * L, T, d_templ)
    out = pallas_cross_attn(state_q, t1d_kv, pp["attn_tor"], n_head, d_hidden)
    state_out = state + out.reshape(B, L, d_state)

    # attn: pair queries attend over templates per residue-pair
    d_pair = pair.shape[-1]
    pair_q = pair.astype(BF16).reshape(B * L * L, d_pair)
    templ_kv = jnp.transpose(templ, (0, 2, 3, 1, 4)).reshape(B * L * L, T, d_templ)
    out2 = pallas_cross_attn(pair_q, templ_kv, pp["attn"], n_head, d_hidden)
    pair_out = pair + out2.reshape(B, L, L, d_pair)
    return pair_out, state_out


# ---------------------------------------------------------------------------
# Deterministic synthetic parameters
# ---------------------------------------------------------------------------
def make_params(key, d_t1d, d_t2d, d_tor, d_pair, d_state,
                n_block, d_templ, n_head, d_hidden, d_rbf=36):
    keys = iter(jax.random.split(key, 256))

    def w(din, dout):
        return jax.random.normal(next(keys), (din, dout), jnp.float32) / math.sqrt(din)

    def zeros(d):
        return jnp.zeros((d,), jnp.float32)

    def ones(d):
        return jnp.ones((d,), jnp.float32)

    HD = n_head * d_hidden

    def axial(d_pr, d_bias):
        return dict(norm_pair_g=ones(d_pr), norm_pair_b=zeros(d_pr),
                    norm_bias_g=ones(d_bias), norm_bias_b=zeros(d_bias),
                    wq=w(d_pr, HD), wk=w(d_pr, HD), wv=w(d_pr, HD),
                    wb=w(d_bias, n_head),
                    wg=w(d_pr, HD), bg=zeros(HD),
                    wo=w(HD, d_pr), bo=zeros(d_pr))

    def block():
        return dict(emb_rbf_w=w(d_rbf, d_hidden), emb_rbf_b=zeros(d_hidden),
                    proj_rbf_w=w(d_hidden, d_templ), proj_rbf_b=zeros(d_templ),
                    row=axial(d_templ, d_templ), col=axial(d_templ, d_templ),
                    ff_norm_g=ones(d_templ), ff_norm_b=zeros(d_templ),
                    ff_w1=w(d_templ, 2 * d_templ), ff_b1=zeros(2 * d_templ),
                    ff_w2=w(2 * d_templ, d_templ), ff_b2=zeros(d_templ))

    def attn(dq, dk, dout):
        return dict(wq=w(dq, HD), wk=w(dk, HD), wv=w(dk, HD),
                    wo=w(HD, dout), bo=zeros(dout))

    return dict(
        emb_w=w(d_t1d * 2 + d_t2d, d_templ), emb_b=zeros(d_templ),
        proj_t1d_w=w(d_t1d + d_tor, d_templ), proj_t1d_b=zeros(d_templ),
        stack_blocks=[block() for _ in range(n_block)],
        stack_norm_g=ones(d_templ), stack_norm_b=zeros(d_templ),
        attn=attn(d_pair, d_templ, d_pair),
        attn_tor=attn(d_state, d_templ, d_state),
    )


if __name__ == "__main__":
    # synthetic stand-ins for chemical constants
    NAATOKENS = 32
    NTOTALDOFS = 10
    d_t1d = NAATOKENS - 1 + 1
    d_t2d = 43 + 1
    d_tor = 3 * NTOTALDOFS
    d_pair, d_state = 128, 32
    n_block, d_templ, n_head, d_hidden = 2, 64, 4, 16
    B, T, L = 1, 2, 8

    key = jax.random.PRNGKey(0)
    k_par, k_in = jax.random.split(key)
    params = make_params(k_par, d_t1d, d_t2d, d_tor, d_pair, d_state,
                         n_block, d_templ, n_head, d_hidden)

    ks = jax.random.split(k_in, 7)
    t1d = jax.random.normal(ks[0], (B, T, L, d_t1d), jnp.float32)
    t2d = jax.random.normal(ks[1], (B, T, L, L, d_t2d), jnp.float32)
    alpha_t = jax.random.normal(ks[2], (B, T, L, d_tor), jnp.float32)
    xyz_t = 5.0 * jax.random.normal(ks[3], (B, T, L, 3), jnp.float32)
    mask_t = (jax.random.uniform(ks[4], (B, T, L, L)) > 0.2).astype(jnp.float32)
    pair = jax.random.normal(ks[5], (B, L, L, d_pair), jnp.float32)
    state = jax.random.normal(ks[6], (B, L, d_state), jnp.float32)

    fwd = jax.jit(partial(templ_emb_forward, n_head=n_head, d_hidden=d_hidden))
    pair_out, state_out = fwd(params, t1d, t2d, alpha_t, xyz_t, mask_t, pair, state)
    jax.block_until_ready((pair_out, state_out))

    assert pair_out.shape == (B, L, L, d_pair)
    assert state_out.shape == (B, L, d_state)
    assert bool(jnp.isfinite(pair_out).all()) and bool(jnp.isfinite(state_out).all())
    print("KERNEL_OK")
</pallas_src>

<mosaic_0001>
module attributes {stable_mosaic.version = 11 : i64} {
  func.func @_emb_kernel(%arg0: i32, %arg1: i32, %arg2: memref<1x1x8x44xbf16, #tpu.memory_space<vmem>>, %arg3: memref<1x1x1x64xbf16, #tpu.memory_space<vmem>>, %arg4: memref<1x1x8x64xbf16, #tpu.memory_space<vmem>>, %arg5: memref<44x64xbf16, #tpu.memory_space<vmem>>, %arg6: memref<1x64xbf16, #tpu.memory_space<vmem>>, %arg7: memref<1x1x8x64xbf16, #tpu.memory_space<vmem>>) attributes {dimension_semantics = [#tpu.dimension_semantics<parallel>, #tpu.dimension_semantics<parallel>], iteration_bounds = array<i64: 2, 8>, scalar_prefetch = 0 : i64, scratch_operands = 0 : i64, tpu.core_type = #tpu.core_type<tc>, window_params = [{transform_indices = @transform_0, window_bounds = array<i64: 1, 1, 8, 44>}, {transform_indices = @transform_1, window_bounds = array<i64: 1, 1, 1, 64>}, {transform_indices = @transform_2, window_bounds = array<i64: 1, 1, 8, 64>}, {pipeline_mode = #tpu.pipeline_mode<synchronous>, transform_indices = @transform_3, window_bounds = array<i64: 44, 64>}, {pipeline_mode = #tpu.pipeline_mode<synchronous>, transform_indices = @transform_4, window_bounds = array<i64: 1, 64>}, {transform_indices = @transform_5, window_bounds = array<i64: 1, 1, 8, 64>}]} {
    %c0 = arith.constant 0 : index
    %c0_0 = arith.constant 0 : index
    %c0_1 = arith.constant 0 : index
    %c0_2 = arith.constant 0 : index
    %0 = vector.load %arg2[%c0, %c0_0, %c0_1, %c0_2] : memref<1x1x8x44xbf16, #tpu.memory_space<vmem>>, vector<1x1x8x44xbf16>
    %1 = vector.shape_cast %0 : vector<1x1x8x44xbf16> to vector<8x44xbf16>
    %c0_3 = arith.constant 0 : index
    %c0_4 = arith.constant 0 : index
    %2 = vector.load %arg5[%c0_3, %c0_4] : memref<44x64xbf16, #tpu.memory_space<vmem>>, vector<44x64xbf16>
    %cst = arith.constant dense<0.000000e+00> : vector<8x64xf32>
    %3 = tpu.matmul %1, %2, %cst {dimension_numbers = #tpu.dot_dimension_numbers<[1], [0], [0], [1], [0, 0, 1, 1], [], []>} : vector<8x44xbf16>, vector<44x64xbf16>, vector<8x64xf32> -> vector<8x64xf32>
    %c0_5 = arith.constant 0 : index
    %c0_6 = arith.constant 0 : index
    %c0_7 = arith.constant 0 : index
    %c0_8 = arith.constant 0 : index
    %4 = vector.load %arg3[%c0_5, %c0_6, %c0_7, %c0_8] : memref<1x1x1x64xbf16, #tpu.memory_space<vmem>>, vector<1x1x1x64xbf16>
    %5 = vector.shape_cast %4 : vector<1x1x1x64xbf16> to vector<1x64xbf16>
    %6 = arith.extf %5 : vector<1x64xbf16> to vector<1x64xf32>
    %7 = vector.broadcast %6 : vector<1x64xf32> to vector<8x64xf32>
    %8 = arith.addf %3, %7 : vector<8x64xf32>
    %c0_9 = arith.constant 0 : index
    %c0_10 = arith.constant 0 : index
    %c0_11 = arith.constant 0 : index
    %c0_12 = arith.constant 0 : index
    %9 = vector.load %arg4[%c0_9, %c0_10, %c0_11, %c0_12] : memref<1x1x8x64xbf16, #tpu.memory_space<vmem>>, vector<1x1x8x64xbf16>
    %10 = vector.shape_cast %9 : vector<1x1x8x64xbf16> to vector<8x64xbf16>
    %11 = arith.extf %10 : vector<8x64xbf16> to vector<8x64xf32>
    %12 = arith.addf %8, %11 : vector<8x64xf32>
    %c0_13 = arith.constant 0 : index
    %c0_14 = arith.constant 0 : index
    %13 = vector.load %arg6[%c0_13, %c0_14] : memref<1x64xbf16, #tpu.memory_space<vmem>>, vector<1x64xbf16>
    %14 = arith.extf %13 : vector<1x64xbf16> to vector<1x64xf32>
    %15 = vector.broadcast %14 : vector<1x64xf32> to vector<8x64xf32>
    %16 = arith.addf %12, %15 : vector<8x64xf32>
    %17 = arith.truncf %16 : vector<8x64xf32> to vector<8x64xbf16>
    %c0_15 = arith.constant 0 : index
    %c0_16 = arith.constant 0 : index
    %c0_17 = arith.constant 0 : index
    %c0_18 = arith.constant 0 : index
    %18 = vector.load %arg7[%c0_15, %c0_16, %c0_17, %c0_18] : memref<1x1x8x64xbf16, #tpu.memory_space<vmem>>, vector<1x1x8x64xbf16>
    %19 = vector.shape_cast %18 : vector<1x1x8x64xbf16> to vector<8x64xbf16>
    %20 = vector.shape_cast %17 : vector<8x64xbf16> to vector<1x1x8x64xbf16>
    tpu.vector_store %arg7[%c0_15, %c0_16, %c0_17, %c0_18], %20 {strides = array<i32>} : memref<1x1x8x64xbf16, #tpu.memory_space<vmem>>, vector<1x1x8x64xbf16>,
    return
  }
  func.func @transform_0(%arg0: i32, %arg1: i32) -> (i32, i32, i32, i32) {
    %c0_i32 = arith.constant 0 : i32
    %c0_i32_0 = arith.constant 0 : i32
    %c0_i32_1 = arith.constant 0 : i32
    return %arg0, %arg1, %c0_i32, %c0_i32_0 : i32, i32, i32, i32
  }
  func.func @transform_1(%arg0: i32, %arg1: i32) -> (i32, i32, i32, i32) {
    %c0_i32 = arith.constant 0 : i32
    %c0_i32_0 = arith.constant 0 : i32
    %c0_i32_1 = arith.constant 0 : i32
    return %arg0, %arg1, %c0_i32, %c0_i32_0 : i32, i32, i32, i32
  }
  func.func @transform_2(%arg0: i32, %arg1: i32) -> (i32, i32, i32, i32) {
    %c0_i32 = arith.constant 0 : i32
    %c0_i32_0 = arith.constant 0 : i32
    %c0_i32_1 = arith.constant 0 : i32
    %c0_i32_2 = arith.constant 0 : i32
    return %arg0, %c0_i32, %c0_i32_0, %c0_i32_1 : i32, i32, i32, i32
  }
  func.func @transform_3(%arg0: i32, %arg1: i32) -> (i32, i32) {
    %c0_i32 = arith.constant 0 : i32
    %c0_i32_0 = arith.constant 0 : i32
    %c0_i32_1 = arith.constant 0 : i32
    return %c0_i32, %c0_i32_0 : i32, i32
  }
  func.func @transform_4(%arg0: i32, %arg1: i32) -> (i32, i32) {
    %c0_i32 = arith.constant 0 : i32
    %c0_i32_0 = arith.constant 0 : i32
    %c0_i32_1 = arith.constant 0 : i32
    return %c0_i32, %c0_i32_0 : i32, i32
  }
  func.func @transform_5(%arg0: i32, %arg1: i32) -> (i32, i32, i32, i32) {
    %c0_i32 = arith.constant 0 : i32
    %c0_i32_0 = arith.constant 0 : i32
    %c0_i32_1 = arith.constant 0 : i32
    return %arg0, %arg1, %c0_i32, %c0_i32_0 : i32, i32, i32, i32
  }
}

module attributes {stable_mosaic.version = 11 : i64} {
  func.func @_linear_kernel(%arg0: i32, %arg1: memref<16x32xbf16, #tpu.memory_space<vmem>>, %arg2: memref<32x128xbf16, #tpu.memory_space<vmem>>, %arg3: memref<16x128xbf16, #tpu.memory_space<vmem>>) attributes {dimension_semantics = [#tpu.dimension_semantics<parallel>], iteration_bounds = array<i64: 1>, scalar_prefetch = 0 : i64, scratch_operands = 0 : i64, tpu.core_type = #tpu.core_type<tc>, window_params = [{transform_indices = @transform_0, window_bounds = array<i64: 16, 32>}, {pipeline_mode = #tpu.pipeline_mode<synchronous>, transform_indices = @transform_1, window_bounds = array<i64: 32, 128>}, {transform_indices = @transform_2, window_bounds = array<i64: 16, 128>}]} {
    %c0 = arith.constant 0 : index
    %c0_0 = arith.constant 0 : index
    %0 = vector.load %arg1[%c0, %c0_0] : memref<16x32xbf16, #tpu.memory_space<vmem>>, vector<16x32xbf16>
    %c0_1 = arith.constant 0 : index
    %c0_2 = arith.constant 0 : index
    %1 = vector.load %arg2[%c0_1, %c0_2] : memref<32x128xbf16, #tpu.memory_space<vmem>>, vector<32x128xbf16>
    %cst = arith.constant dense<0.000000e+00> : vector<16x128xf32>
    %2 = tpu.matmul %0, %1, %cst {dimension_numbers = #tpu.dot_dimension_numbers<[1], [0], [0], [1], [0, 0, 1, 1], [], []>} : vector<16x32xbf16>, vector<32x128xbf16>, vector<16x128xf32> -> vector<16x128xf32>
    %3 = arith.truncf %2 : vector<16x128xf32> to vector<16x128xbf16>
    %c0_3 = arith.constant 0 : index
    %c0_4 = arith.constant 0 : index
    %4 = vector.load %arg3[%c0_3, %c0_4] : memref<16x128xbf16, #tpu.memory_space<vmem>>, vector<16x128xbf16>
    tpu.vector_store %arg3[%c0_3, %c0_4], %3 {strides = array<i32>} : memref<16x128xbf16, #tpu.memory_space<vmem>>, vector<16x128xbf16>,
    return
  }
  func.func @transform_0(%arg0: i32) -> (i32, i32) {
    %c0_i32 = arith.constant 0 : i32
    %c0_i32_0 = arith.constant 0 : i32
    return %arg0, %c0_i32 : i32, i32
  }
  func.func @transform_1(%arg0: i32) -> (i32, i32) {
    %c0_i32 = arith.constant 0 : i32
    %c0_i32_0 = arith.constant 0 : i32
    %c0_i32_1 = arith.constant 0 : i32
    return %c0_i32, %c0_i32_0 : i32, i32
  }
  func.func @transform_2(%arg0: i32) -> (i32, i32) {
    %c0_i32 = arith.constant 0 : i32
    %c0_i32_0 = arith.constant 0 : i32
    return %arg0, %c0_i32 : i32, i32
  }
}

module attributes {stable_mosaic.version = 11 : i64} {
  func.func @_ln_linear_kernel(%arg0: i32, %arg1: memref<128x64xbf16, #tpu.memory_space<vmem>>, %arg2: memref<1x64xbf16, #tpu.memory_space<vmem>>, %arg3: memref<1x64xbf16, #tpu.memory_space<vmem>>, %arg4: memref<64x256xbf16, #tpu.memory_space<vmem>>, %arg5: memref<1x256xbf16, #tpu.memory_space<vmem>>, %arg6: memref<128x256xbf16, #tpu.memory_space<vmem>>) attributes {dimension_semantics = [#tpu.dimension_semantics<parallel>], iteration_bounds = array<i64: 1>, scalar_prefetch = 0 : i64, scratch_operands = 0 : i64, tpu.core_type = #tpu.core_type<tc>, window_params = [{transform_indices = @transform_0, window_bounds = array<i64: 128, 64>}, {pipeline_mode = #tpu.pipeline_mode<synchronous>, transform_indices = @transform_1, window_bounds = array<i64: 1, 64>}, {pipeline_mode = #tpu.pipeline_mode<synchronous>, transform_indices = @transform_2, window_bounds = array<i64: 1, 64>}, {pipeline_mode = #tpu.pipeline_mode<synchronous>, transform_indices = @transform_3, window_bounds = array<i64: 64, 256>}, {pipeline_mode = #tpu.pipeline_mode<synchronous>, transform_indices = @transform_4, window_bounds = array<i64: 1, 256>}, {transform_indices = @transform_5, window_bounds = array<i64: 128, 256>}]} {
    %c0 = arith.constant 0 : index
    %c0_0 = arith.constant 0 : index
    %0 = vector.load %arg1[%c0, %c0_0] : memref<128x64xbf16, #tpu.memory_space<vmem>>, vector<128x64xbf16>
    %1 = arith.extf %0 : vector<128x64xbf16> to vector<128x64xf32>
    %cst = arith.constant dense<0.000000e+00> : vector<128xf32>
    %2 = vector.multi_reduction <add>, %1, %cst [1] : vector<128x64xf32> to vector<128xf32>
    %3 = vector.shape_cast %2 : vector<128xf32> to vector<128x1xf32>
    %cst_1 = arith.constant 6.400000e+01 : f32
    %4 = vector.broadcast %cst_1 : f32 to vector<128x1xf32>
    %5 = arith.divf %3, %4 : vector<128x1xf32>
    %6 = vector.broadcast %5 : vector<128x1xf32> to vector<128x64xf32>
    %7 = arith.subf %1, %6 : vector<128x64xf32>
    %8 = arith.mulf %7, %7 : vector<128x64xf32>
    %cst_2 = arith.constant dense<0.000000e+00> : vector<128xf32>
    %9 = vector.multi_reduction <add>, %8, %cst_2 [1] : vector<128x64xf32> to vector<128xf32>
    %10 = vector.shape_cast %9 : vector<128xf32> to vector<128x1xf32>
    %cst_3 = arith.constant 6.400000e+01 : f32
    %11 = vector.broadcast %cst_3 : f32 to vector<128x1xf32>
    %12 = arith.divf %10, %11 : vector<128x1xf32>
    %cst_4 = arith.constant 9.99999974E-6 : f32
    %13 = vector.broadcast %cst_4 : f32 to vector<128x1xf32>
    %14 = arith.addf %12, %13 : vector<128x1xf32>
    %15 = math.rsqrt %14 : vector<128x1xf32>
    %16 = vector.broadcast %15 : vector<128x1xf32> to vector<128x64xf32>
    %17 = arith.mulf %7, %16 : vector<128x64xf32>
    %c0_5 = arith.constant 0 : index
    %c0_6 = arith.constant 0 : index
    %18 = vector.load %arg2[%c0_5, %c0_6] : memref<1x64xbf16, #tpu.memory_space<vmem>>, vector<1x64xbf16>
    %19 = arith.extf %18 : vector<1x64xbf16> to vector<1x64xf32>
    %20 = vector.broadcast %19 : vector<1x64xf32> to vector<128x64xf32>
    %21 = arith.mulf %17, %20 : vector<128x64xf32>
    %c0_7 = arith.constant 0 : index
    %c0_8 = arith.constant 0 : index
    %22 = vector.load %arg3[%c0_7, %c0_8] : memref<1x64xbf16, #tpu.memory_space<vmem>>, vector<1x64xbf16>
    %23 = arith.extf %22 : vector<1x64xbf16> to vector<1x64xf32>
    %24 = vector.broadcast %23 : vector<1x64xf32> to vector<128x64xf32>
    %25 = arith.addf %21, %24 : vector<128x64xf32>
    %26 = arith.truncf %25 : vector<128x64xf32> to vector<128x64xbf16>
    %c0_9 = arith.constant 0 : index
    %c0_10 = arith.constant 0 : index
    %27 = vector.load %arg4[%c0_9, %c0_10] : memref<64x256xbf16, #tpu.memory_space<vmem>>, vector<64x256xbf16>
    %cst_11 = arith.constant dense<0.000000e+00> : vector<128x256xf32>
    %28 = tpu.matmul %26, %27, %cst_11 {dimension_numbers = #tpu.dot_dimension_numbers<[1], [0], [0], [1], [0, 0, 1, 1], [], []>} : vector<128x64xbf16>, vector<64x256xbf16>, vector<128x256xf32> -> vector<128x256xf32>
    %c0_12 = arith.constant 0 : index
    %c0_13 = arith.constant 0 : index
    %29 = vector.load %arg5[%c0_12, %c0_13] : memref<1x256xbf16, #tpu.memory_space<vmem>>, vector<1x256xbf16>
    %30 = arith.extf %29 : vector<1x256xbf16> to vector<1x256xf32>
    %31 = vector.broadcast %30 : vector<1x256xf32> to vector<128x256xf32>
    %32 = arith.addf %28, %31 : vector<128x256xf32>
    %33 = tpu.iota {dimensions = array<i32: 1>} : vector<128x256xi32>
    %c192_i32 = arith.constant 192 : i32
    %34 = vector.broadcast %c192_i32 : i32 to vector<128x256xi32>
    %35 = arith.cmpi sge, %33, %34 : vector<128x256xi32>
    %36 = arith.negf %32 : vector<128x256xf32>
    %37 = math.exp %36 : vector<128x256xf32>
    %cst_14 = arith.constant 1.000000e+00 : f32
    %38 = vector.broadcast %cst_14 : f32 to vector<128x256xf32>
    %39 = arith.addf %38, %37 : vector<128x256xf32>
    %40 = arith.divf %38, %39 : vector<128x256xf32>
    %41 = arith.select %35, %40, %32 : vector<128x256xi1>, vector<128x256xf32>
    %42 = arith.truncf %41 : vector<128x256xf32> to vector<128x256xbf16>
    %c0_15 = arith.constant 0 : index
    %c0_16 = arith.constant 0 : index
    %43 = vector.load %arg6[%c0_15, %c0_16] : memref<128x256xbf16, #tpu.memory_space<vmem>>, vector<128x256xbf16>
    tpu.vector_store %arg6[%c0_15, %c0_16], %42 {strides = array<i32>} : memref<128x256xbf16, #tpu.memory_space<vmem>>, vector<128x256xbf16>,
    return
  }
  func.func @transform_0(%arg0: i32) -> (i32, i32) {
    %c0_i32 = arith.constant 0 : i32
    %c0_i32_0 = arith.constant 0 : i32
    return %arg0, %c0_i32 : i32, i32
  }
  func.func @transform_1(%arg0: i32) -> (i32, i32) {
    %c0_i32 = arith.constant 0 : i32
    %c0_i32_0 = arith.constant 0 : i32
    %c0_i32_1 = arith.constant 0 : i32
    return %c0_i32, %c0_i32_0 : i32, i32
  }
  func.func @transform_2(%arg0: i32) -> (i32, i32) {
    %c0_i32 = arith.constant 0 : i32
    %c0_i32_0 = arith.constant 0 : i32
    %c0_i32_1 = arith.constant 0 : i32
    return %c0_i32, %c0_i32_0 : i32, i32
  }
  func.func @transform_3(%arg0: i32) -> (i32, i32) {
    %c0_i32 = arith.constant 0 : i32
    %c0_i32_0 = arith.constant 0 : i32
    %c0_i32_1 = arith.constant 0 : i32
    return %c0_i32, %c0_i32_0 : i32, i32
  }
  func.func @transform_4(%arg0: i32) -> (i32, i32) {
    %c0_i32 = arith.constant 0 : i32
    %c0_i32_0 = arith.constant 0 : i32
    %c0_i32_1 = arith.constant 0 : i32
    return %c0_i32, %c0_i32_0 : i32, i32
  }
  func.func @transform_5(%arg0: i32) -> (i32, i32) {
    %c0_i32 = arith.constant 0 : i32
    %c0_i32_0 = arith.constant 0 : i32
    return %arg0, %c0_i32 : i32, i32
  }
}

module attributes {stable_mosaic.version = 11 : i64} {
  func.func @_rbf_proj_kernel(%arg0: i32, %arg1: i32, %arg2: memref<1x1x1x3xf32, #tpu.memory_space<vmem>>, %arg3: memref<1x8x3xf32, #tpu.memory_space<vmem>>, %arg4: memref<1x1x8x1xbf16, #tpu.memory_space<vmem>>, %arg5: memref<1x36xf32, #tpu.memory_space<vmem>>, %arg6: memref<36x16xbf16, #tpu.memory_space<vmem>>, %arg7: memref<1x16xbf16, #tpu.memory_space<vmem>>, %arg8: memref<16x64xbf16, #tpu.memory_space<vmem>>, %arg9: memref<1x64xbf16, #tpu.memory_space<vmem>>, %arg10: memref<1x1x8x64xbf16, #tpu.memory_space<vmem>>) attributes {dimension_semantics = [#tpu.dimension_semantics<parallel>, #tpu.dimension_semantics<parallel>], iteration_bounds = array<i64: 2, 8>, scalar_prefetch = 0 : i64, scratch_operands = 0 : i64, tpu.core_type = #tpu.core_type<tc>, window_params = [{transform_indices = @transform_0, window_bounds = array<i64: 1, 1, 1, 3>}, {transform_indices = @transform_1, window_bounds = array<i64: 1, 8, 3>}, {transform_indices = @transform_2, window_bounds = array<i64: 1, 1, 8, 1>}, {pipeline_mode = #tpu.pipeline_mode<synchronous>, transform_indices = @transform_3, window_bounds = array<i64: 1, 36>}, {pipeline_mode = #tpu.pipeline_mode<synchronous>, transform_indices = @transform_4, window_bounds = array<i64: 36, 16>}, {pipeline_mode = #tpu.pipeline_mode<synchronous>, transform_indices = @transform_5, window_bounds = array<i64: 1, 16>}, {pipeline_mode = #tpu.pipeline_mode<synchronous>, transform_indices = @transform_6, window_bounds = array<i64: 16, 64>}, {pipeline_mode = #tpu.pipeline_mode<synchronous>, transform_indices = @transform_7, window_bounds = array<i64: 1, 64>}, {transform_indices = @transform_8, window_bounds = array<i64: 1, 1, 8, 64>}]} {
    %c0 = arith.constant 0 : index
    %c0_0 = arith.constant 0 : index
    %c0_1 = arith.constant 0 : index
    %c0_2 = arith.constant 0 : index
    %0 = vector.load %arg2[%c0, %c0_0, %c0_1, %c0_2] : memref<1x1x1x3xf32, #tpu.memory_space<vmem>>, vector<1x1x1x3xf32>
    %1 = vector.shape_cast %0 : vector<1x1x1x3xf32> to vector<1x3xf32>
    %c0_3 = arith.constant 0 : index
    %c0_4 = arith.constant 0 : index
    %c0_5 = arith.constant 0 : index
    %2 = vector.load %arg3[%c0_3, %c0_4, %c0_5] : memref<1x8x3xf32, #tpu.memory_space<vmem>>, vector<1x8x3xf32>
    %3 = vector.shape_cast %2 : vector<1x8x3xf32> to vector<8x3xf32>
    %4 = vector.broadcast %1 : vector<1x3xf32> to vector<8x3xf32>
    %5 = arith.subf %3, %4 : vector<8x3xf32>
    %6 = arith.mulf %5, %5 : vector<8x3xf32>
    %cst = arith.constant dense<0.000000e+00> : vector<8xf32>
    %7 = vector.multi_reduction <add>, %6, %cst [1] : vector<8x3xf32> to vector<8xf32>
    %8 = vector.shape_cast %7 : vector<8xf32> to vector<8x1xf32>
    %9 = math.sqrt %8 : vector<8x1xf32>
    %c0_6 = arith.constant 0 : index
    %c0_7 = arith.constant 0 : index
    %10 = vector.load %arg5[%c0_6, %c0_7] : memref<1x36xf32, #tpu.memory_space<vmem>>, vector<1x36xf32>
    %11 = vector.broadcast %9 : vector<8x1xf32> to vector<8x36xf32>
    %12 = vector.broadcast %10 : vector<1x36xf32> to vector<8x36xf32>
    %13 = arith.subf %11, %12 : vector<8x36xf32>
    %cst_8 = arith.constant 0.555555582 : f32
    %14 = vector.broadcast %cst_8 : f32 to vector<8x36xf32>
    %15 = arith.divf %13, %14 : vector<8x36xf32>
    %16 = arith.mulf %15, %15 : vector<8x36xf32>
    %cst_9 = arith.constant 0.000000e+00 : f32
    %17 = vector.broadcast %cst_9 : f32 to vector<8x36xf32>
    %18 = arith.subf %17, %16 : vector<8x36xf32>
    %19 = math.exp %18 : vector<8x36xf32>
    %c0_10 = arith.constant 0 : index
    %c0_11 = arith.constant 0 : index
    %c0_12 = arith.constant 0 : index
    %c0_13 = arith.constant 0 : index
    %20 = vector.load %arg4[%c0_10, %c0_11, %c0_12, %c0_13] : memref<1x1x8x1xbf16, #tpu.memory_space<vmem>>, vector<1x1x8x1xbf16>
    %21 = vector.shape_cast %20 : vector<1x1x8x1xbf16> to vector<8x1xbf16>
    %22 = arith.extf %21 : vector<8x1xbf16> to vector<8x1xf32>
    %23 = vector.broadcast %22 : vector<8x1xf32> to vector<8x36xf32>
    %24 = arith.mulf %19, %23 : vector<8x36xf32>
    %25 = arith.truncf %24 : vector<8x36xf32> to vector<8x36xbf16>
    %c0_14 = arith.constant 0 : index
    %c0_15 = arith.constant 0 : index
    %26 = vector.load %arg6[%c0_14, %c0_15] : memref<36x16xbf16, #tpu.memory_space<vmem>>, vector<36x16xbf16>
    %cst_16 = arith.constant dense<0.000000e+00> : vector<8x16xf32>
    %27 = tpu.matmul %25, %26, %cst_16 {dimension_numbers = #tpu.dot_dimension_numbers<[1], [0], [0], [1], [0, 0, 1, 1], [], []>} : vector<8x36xbf16>, vector<36x16xbf16>, vector<8x16xf32> -> vector<8x16xf32>
    %c0_17 = arith.constant 0 : index
    %c0_18 = arith.constant 0 : index
    %28 = vector.load %arg7[%c0_17, %c0_18] : memref<1x16xbf16, #tpu.memory_space<vmem>>, vector<1x16xbf16>
    %29 = arith.extf %28 : vector<1x16xbf16> to vector<1x16xf32>
    %30 = vector.broadcast %29 : vector<1x16xf32> to vector<8x16xf32>
    %31 = arith.addf %27, %30 : vector<8x16xf32>
    %cst_19 = arith.constant 0.000000e+00 : f32
    %32 = vector.broadcast %cst_19 : f32 to vector<8x16xf32>
    %33 = arith.maximumf %31, %32 : vector<8x16xf32>
    %34 = arith.truncf %33 : vector<8x16xf32> to vector<8x16xbf16>
    %c0_20 = arith.constant 0 : index
    %c0_21 = arith.constant 0 : index
    %35 = vector.load %arg8[%c0_20, %c0_21] : memref<16x64xbf16, #tpu.memory_space<vmem>>, vector<16x64xbf16>
    %cst_22 = arith.constant dense<0.000000e+00> : vector<8x64xf32>
    %36 = tpu.matmul %34, %35, %cst_22 {dimension_numbers = #tpu.dot_dimension_numbers<[1], [0], [0], [1], [0, 0, 1, 1], [], []>} : vector<8x16xbf16>, vector<16x64xbf16>, vector<8x64xf32> -> vector<8x64xf32>
    %c0_23 = arith.constant 0 : index
    %c0_24 = arith.constant 0 : index
    %37 = vector.load %arg9[%c0_23, %c0_24] : memref<1x64xbf16, #tpu.memory_space<vmem>>, vector<1x64xbf16>
    %38 = arith.extf %37 : vector<1x64xbf16> to vector<1x64xf32>
    %39 = vector.broadcast %38 : vector<1x64xf32> to vector<8x64xf32>
    %40 = arith.addf %36, %39 : vector<8x64xf32>
    %41 = arith.truncf %40 : vector<8x64xf32> to vector<8x64xbf16>
    %c0_25 = arith.constant 0 : index
    %c0_26 = arith.constant 0 : index
    %c0_27 = arith.constant 0 : index
    %c0_28 = arith.constant 0 : index
    %42 = vector.load %arg10[%c0_25, %c0_26, %c0_27, %c0_28] : memref<1x1x8x64xbf16, #tpu.memory_space<vmem>>, vector<1x1x8x64xbf16>
    %43 = vector.shape_cast %42 : vector<1x1x8x64xbf16> to vector<8x64xbf16>
    %44 = vector.shape_cast %41 : vector<8x64xbf16> to vector<1x1x8x64xbf16>
    tpu.vector_store %arg10[%c0_25, %c0_26, %c0_27, %c0_28], %44 {strides = array<i32>} : memref<1x1x8x64xbf16, #tpu.memory_space<vmem>>, vector<1x1x8x64xbf16>,
    return
  }
  func.func @transform_0(%arg0: i32, %arg1: i32) -> (i32, i32, i32, i32) {
    %c0_i32 = arith.constant 0 : i32
    %c0_i32_0 = arith.constant 0 : i32
    %c0_i32_1 = arith.constant 0 : i32
    return %arg0, %arg1, %c0_i32, %c0_i32_0 : i32, i32, i32, i32
  }
  func.func @transform_1(%arg0: i32, %arg1: i32) -> (i32, i32, i32) {
    %c0_i32 = arith.constant 0 : i32
    %c0_i32_0 = arith.constant 0 : i32
    %c0_i32_1 = arith.constant 0 : i32
    return %arg0, %c0_i32, %c0_i32_0 : i32, i32, i32
  }
  func.func @transform_2(%arg0: i32, %arg1: i32) -> (i32, i32, i32, i32) {
    %c0_i32 = arith.constant 0 : i32
    %c0_i32_0 = arith.constant 0 : i32
    %c0_i32_1 = arith.constant 0 : i32
    return %arg0, %arg1, %c0_i32, %c0_i32_0 : i32, i32, i32, i32
  }
  func.func @transform_3(%arg0: i32, %arg1: i32) -> (i32, i32) {
    %c0_i32 = arith.constant 0 : i32
    %c0_i32_0 = arith.constant 0 : i32
    %c0_i32_1 = arith.constant 0 : i32
    return %c0_i32, %c0_i32_0 : i32, i32
  }
  func.func @transform_4(%arg0: i32, %arg1: i32) -> (i32, i32) {
    %c0_i32 = arith.constant 0 : i32
    %c0_i32_0 = arith.constant 0 : i32
    %c0_i32_1 = arith.constant 0 : i32
    return %c0_i32, %c0_i32_0 : i32, i32
  }
  func.func @transform_5(%arg0: i32, %arg1: i32) -> (i32, i32) {
    %c0_i32 = arith.constant 0 : i32
    %c0_i32_0 = arith.constant 0 : i32
    %c0_i32_1 = arith.constant 0 : i32
    return %c0_i32, %c0_i32_0 : i32, i32
  }
  func.func @transform_6(%arg0: i32, %arg1: i32) -> (i32, i32) {
    %c0_i32 = arith.constant 0 : i32
    %c0_i32_0 = arith.constant 0 : i32
    %c0_i32_1 = arith.constant 0 : i32
    return %c0_i32, %c0_i32_0 : i32, i32
  }
  func.func @transform_7(%arg0: i32, %arg1: i32) -> (i32, i32) {
    %c0_i32 = arith.constant 0 : i32
    %c0_i32_0 = arith.constant 0 : i32
    %c0_i32_1 = arith.constant 0 : i32
    return %c0_i32, %c0_i32_0 : i32, i32
  }
  func.func @transform_8(%arg0: i32, %arg1: i32) -> (i32, i32, i32, i32) {
    %c0_i32 = arith.constant 0 : i32
    %c0_i32_0 = arith.constant 0 : i32
    %c0_i32_1 = arith.constant 0 : i32
    return %arg0, %arg1, %c0_i32, %c0_i32_0 : i32, i32, i32, i32
  }
}

module attributes {stable_mosaic.version = 11 : i64} {
  func.func @_ln_linear_kernel(%arg0: i32, %arg1: memref<128x64xbf16, #tpu.memory_space<vmem>>, %arg2: memref<1x64xbf16, #tpu.memory_space<vmem>>, %arg3: memref<1x64xbf16, #tpu.memory_space<vmem>>, %arg4: memref<64x4xbf16, #tpu.memory_space<vmem>>, %arg5: memref<128x4xbf16, #tpu.memory_space<vmem>>) attributes {dimension_semantics = [#tpu.dimension_semantics<parallel>], iteration_bounds = array<i64: 1>, scalar_prefetch = 0 : i64, scratch_operands = 0 : i64, tpu.core_type = #tpu.core_type<tc>, window_params = [{transform_indices = @transform_0, window_bounds = array<i64: 128, 64>}, {pipeline_mode = #tpu.pipeline_mode<synchronous>, transform_indices = @transform_1, window_bounds = array<i64: 1, 64>}, {pipeline_mode = #tpu.pipeline_mode<synchronous>, transform_indices = @transform_2, window_bounds = array<i64: 1, 64>}, {pipeline_mode = #tpu.pipeline_mode<synchronous>, transform_indices = @transform_3, window_bounds = array<i64: 64, 4>}, {transform_indices = @transform_4, window_bounds = array<i64: 128, 4>}]} {
    %c0 = arith.constant 0 : index
    %c0_0 = arith.constant 0 : index
    %0 = vector.load %arg1[%c0, %c0_0] : memref<128x64xbf16, #tpu.memory_space<vmem>>, vector<128x64xbf16>
    %1 = arith.extf %0 : vector<128x64xbf16> to vector<128x64xf32>
    %cst = arith.constant dense<0.000000e+00> : vector<128xf32>
    %2 = vector.multi_reduction <add>, %1, %cst [1] : vector<128x64xf32> to vector<128xf32>
    %3 = vector.shape_cast %2 : vector<128xf32> to vector<128x1xf32>
    %cst_1 = arith.constant 6.400000e+01 : f32
    %4 = vector.broadcast %cst_1 : f32 to vector<128x1xf32>
    %5 = arith.divf %3, %4 : vector<128x1xf32>
    %6 = vector.broadcast %5 : vector<128x1xf32> to vector<128x64xf32>
    %7 = arith.subf %1, %6 : vector<128x64xf32>
    %8 = arith.mulf %7, %7 : vector<128x64xf32>
    %cst_2 = arith.constant dense<0.000000e+00> : vector<128xf32>
    %9 = vector.multi_reduction <add>, %8, %cst_2 [1] : vector<128x64xf32> to vector<128xf32>
    %10 = vector.shape_cast %9 : vector<128xf32> to vector<128x1xf32>
    %cst_3 = arith.constant 6.400000e+01 : f32
    %11 = vector.broadcast %cst_3 : f32 to vector<128x1xf32>
    %12 = arith.divf %10, %11 : vector<128x1xf32>
    %cst_4 = arith.constant 9.99999974E-6 : f32
    %13 = vector.broadcast %cst_4 : f32 to vector<128x1xf32>
    %14 = arith.addf %12, %13 : vector<128x1xf32>
    %15 = math.rsqrt %14 : vector<128x1xf32>
    %16 = vector.broadcast %15 : vector<128x1xf32> to vector<128x64xf32>
    %17 = arith.mulf %7, %16 : vector<128x64xf32>
    %c0_5 = arith.constant 0 : index
    %c0_6 = arith.constant 0 : index
    %18 = vector.load %arg2[%c0_5, %c0_6] : memref<1x64xbf16, #tpu.memory_space<vmem>>, vector<1x64xbf16>
    %19 = arith.extf %18 : vector<1x64xbf16> to vector<1x64xf32>
    %20 = vector.broadcast %19 : vector<1x64xf32> to vector<128x64xf32>
    %21 = arith.mulf %17, %20 : vector<128x64xf32>
    %c0_7 = arith.constant 0 : index
    %c0_8 = arith.constant 0 : index
    %22 = vector.load %arg3[%c0_7, %c0_8] : memref<1x64xbf16, #tpu.memory_space<vmem>>, vector<1x64xbf16>
    %23 = arith.extf %22 : vector<1x64xbf16> to vector<1x64xf32>
    %24 = vector.broadcast %23 : vector<1x64xf32> to vector<128x64xf32>
    %25 = arith.addf %21, %24 : vector<128x64xf32>
    %26 = arith.truncf %25 : vector<128x64xf32> to vector<128x64xbf16>
    %c0_9 = arith.constant 0 : index
    %c0_10 = arith.constant 0 : index
    %27 = vector.load %arg4[%c0_9, %c0_10] : memref<64x4xbf16, #tpu.memory_space<vmem>>, vector<64x4xbf16>
    %cst_11 = arith.constant dense<0.000000e+00> : vector<128x4xf32>
    %28 = tpu.matmul %26, %27, %cst_11 {dimension_numbers = #tpu.dot_dimension_numbers<[1], [0], [0], [1], [0, 0, 1, 1], [], []>} : vector<128x64xbf16>, vector<64x4xbf16>, vector<128x4xf32> -> vector<128x4xf32>
    %29 = arith.truncf %28 : vector<128x4xf32> to vector<128x4xbf16>
    %c0_12 = arith.constant 0 : index
    %c0_13 = arith.constant 0 : index
    %30 = vector.load %arg5[%c0_12, %c0_13] : memref<128x4xbf16, #tpu.memory_space<vmem>>, vector<128x4xbf16>
    tpu.vector_store %arg5[%c0_12, %c0_13], %29 {strides = array<i32>} : memref<128x4xbf16, #tpu.memory_space<vmem>>, vector<128x4xbf16>,
    return
  }
  func.func @transform_0(%arg0: i32) -> (i32, i32) {
    %c0_i32 = arith.constant 0 : i32
    %c0_i32_0 = arith.constant 0 : i32
    return %arg0, %c0_i32 : i32, i32
  }
  func.func @transform_1(%arg0: i32) -> (i32, i32) {
    %c0_i32 = arith.constant 0 : i32
    %c0_i32_0 = arith.constant 0 : i32
    %c0_i32_1 = arith.constant 0 : i32
    return %c0_i32, %c0_i32_0 : i32, i32
  }
  func.func @transform_2(%arg0: i32) -> (i32, i32) {
    %c0_i32 = arith.constant 0 : i32
    %c0_i32_0 = arith.constant 0 : i32
    %c0_i32_1 = arith.constant 0 : i32
    return %c0_i32, %c0_i32_0 : i32, i32
  }
  func.func @transform_3(%arg0: i32) -> (i32, i32) {
    %c0_i32 = arith.constant 0 : i32
    %c0_i32_0 = arith.constant 0 : i32
    %c0_i32_1 = arith.constant 0 : i32
    return %c0_i32, %c0_i32_0 : i32, i32
  }
  func.func @transform_4(%arg0: i32) -> (i32, i32) {
    %c0_i32 = arith.constant 0 : i32
    %c0_i32_0 = arith.constant 0 : i32
    return %arg0, %c0_i32 : i32, i32
  }
}

module attributes {stable_mosaic.version = 11 : i64} {
  func.func @_gated_linear_kernel(%arg0: i32, %arg1: memref<128x64xbf16, #tpu.memory_space<vmem>>, %arg2: memref<128x64xbf16, #tpu.memory_space<vmem>>, %arg3: memref<64x64xbf16, #tpu.memory_space<vmem>>, %arg4: memref<1x64xbf16, #tpu.memory_space<vmem>>, %arg5: memref<128x64xbf16, #tpu.memory_space<vmem>>) attributes {dimension_semantics = [#tpu.dimension_semantics<parallel>], iteration_bounds = array<i64: 1>, scalar_prefetch = 0 : i64, scratch_operands = 0 : i64, tpu.core_type = #tpu.core_type<tc>, window_params = [{transform_indices = @transform_0, window_bounds = array<i64: 128, 64>}, {transform_indices = @transform_1, window_bounds = array<i64: 128, 64>}, {pipeline_mode = #tpu.pipeline_mode<synchronous>, transform_indices = @transform_2, window_bounds = array<i64: 64, 64>}, {pipeline_mode = #tpu.pipeline_mode<synchronous>, transform_indices = @transform_3, window_bounds = array<i64: 1, 64>}, {transform_indices = @transform_4, window_bounds = array<i64: 128, 64>}]} {
    %c0 = arith.constant 0 : index
    %c0_0 = arith.constant 0 : index
    %0 = vector.load %arg1[%c0, %c0_0] : memref<128x64xbf16, #tpu.memory_space<vmem>>, vector<128x64xbf16>
    %1 = arith.extf %0 : vector<128x64xbf16> to vector<128x64xf32>
    %c0_1 = arith.constant 0 : index
    %c0_2 = arith.constant 0 : index
    %2 = vector.load %arg2[%c0_1, %c0_2] : memref<128x64xbf16, #tpu.memory_space<vmem>>, vector<128x64xbf16>
    %3 = arith.extf %2 : vector<128x64xbf16> to vector<128x64xf32>
    %4 = arith.mulf %1, %3 : vector<128x64xf32>
    %5 = arith.truncf %4 : vector<128x64xf32> to vector<128x64xbf16>
    %c0_3 = arith.constant 0 : index
    %c0_4 = arith.constant 0 : index
    %6 = vector.load %arg3[%c0_3, %c0_4] : memref<64x64xbf16, #tpu.memory_space<vmem>>, vector<64x64xbf16>
    %cst = arith.constant dense<0.000000e+00> : vector<128x64xf32>
    %7 = tpu.matmul %5, %6, %cst {dimension_numbers = #tpu.dot_dimension_numbers<[1], [0], [0], [1], [0, 0, 1, 1], [], []>} : vector<128x64xbf16>, vector<64x64xbf16>, vector<128x64xf32> -> vector<128x64xf32>
    %c0_5 = arith.constant 0 : index
    %c0_6 = arith.constant 0 : index
    %8 = vector.load %arg4[%c0_5, %c0_6] : memref<1x64xbf16, #tpu.memory_space<vmem>>, vector<1x64xbf16>
    %9 = arith.extf %8 : vector<1x64xbf16> to vector<1x64xf32>
    %10 = vector.broadcast %9 : vector<1x64xf32> to vector<128x64xf32>
    %11 = arith.addf %7, %10 : vector<128x64xf32>
    %12 = arith.truncf %11 : vector<128x64xf32> to vector<128x64xbf16>
    %c0_7 = arith.constant 0 : index
    %c0_8 = arith.constant 0 : index
    %13 = vector.load %arg5[%c0_7, %c0_8] : memref<128x64xbf16, #tpu.memory_space<vmem>>, vector<128x64xbf16>
    tpu.vector_store %arg5[%c0_7, %c0_8], %12 {strides = array<i32>} : memref<128x64xbf16, #tpu.memory_space<vmem>>, vector<128x64xbf16>,
    return
  }
  func.func @transform_0(%arg0: i32) -> (i32, i32) {
    %c0_i32 = arith.constant 0 : i32
    %c0_i32_0 = arith.constant 0 : i32
    return %arg0, %c0_i32 : i32, i32
  }
  func.func @transform_1(%arg0: i32) -> (i32, i32) {
    %c0_i32 = arith.constant 0 : i32
    %c0_i32_0 = arith.constant 0 : i32
    return %arg0, %c0_i32 : i32, i32
  }
  func.func @transform_2(%arg0: i32) -> (i32, i32) {
    %c0_i32 = arith.constant 0 : i32
    %c0_i32_0 = arith.constant 0 : i32
    %c0_i32_1 = arith.constant 0 : i32
    return %c0_i32, %c0_i32_0 : i32, i32
  }
  func.func @transform_3(%arg0: i32) -> (i32, i32) {
    %c0_i32 = arith.constant 0 : i32
    %c0_i32_0 = arith.constant 0 : i32
    %c0_i32_1 = arith.constant 0 : i32
    return %c0_i32, %c0_i32_0 : i32, i32
  }
  func.func @transform_4(%arg0: i32) -> (i32, i32) {
    %c0_i32 = arith.constant 0 : i32
    %c0_i32_0 = arith.constant 0 : i32
    return %arg0, %c0_i32 : i32, i32
  }
}

module attributes {stable_mosaic.version = 11 : i64} {
  func.func @_ln_linear_kernel(%arg0: i32, %arg1: memref<128x64xbf16, #tpu.memory_space<vmem>>, %arg2: memref<1x64xbf16, #tpu.memory_space<vmem>>, %arg3: memref<1x64xbf16, #tpu.memory_space<vmem>>, %arg4: memref<64x128xbf16, #tpu.memory_space<vmem>>, %arg5: memref<1x128xbf16, #tpu.memory_space<vmem>>, %arg6: memref<128x128xbf16, #tpu.memory_space<vmem>>) attributes {dimension_semantics = [#tpu.dimension_semantics<parallel>], iteration_bounds = array<i64: 1>, scalar_prefetch = 0 : i64, scratch_operands = 0 : i64, tpu.core_type = #tpu.core_type<tc>, window_params = [{transform_indices = @transform_0, window_bounds = array<i64: 128, 64>}, {pipeline_mode = #tpu.pipeline_mode<synchronous>, transform_indices = @transform_1, window_bounds = array<i64: 1, 64>}, {pipeline_mode = #tpu.pipeline_mode<synchronous>, transform_indices = @transform_2, window_bounds = array<i64: 1, 64>}, {pipeline_mode = #tpu.pipeline_mode<synchronous>, transform_indices = @transform_3, window_bounds = array<i64: 64, 128>}, {pipeline_mode = #tpu.pipeline_mode<synchronous>, transform_indices = @transform_4, window_bounds = array<i64: 1, 128>}, {transform_indices = @transform_5, window_bounds = array<i64: 128, 128>}]} {
    %c0 = arith.constant 0 : index
    %c0_0 = arith.constant 0 : index
    %0 = vector.load %arg1[%c0, %c0_0] : memref<128x64xbf16, #tpu.memory_space<vmem>>, vector<128x64xbf16>
    %1 = arith.extf %0 : vector<128x64xbf16> to vector<128x64xf32>
    %cst = arith.constant dense<0.000000e+00> : vector<128xf32>
    %2 = vector.multi_reduction <add>, %1, %cst [1] : vector<128x64xf32> to vector<128xf32>
    %3 = vector.shape_cast %2 : vector<128xf32> to vector<128x1xf32>
    %cst_1 = arith.constant 6.400000e+01 : f32
    %4 = vector.broadcast %cst_1 : f32 to vector<128x1xf32>
    %5 = arith.divf %3, %4 : vector<128x1xf32>
    %6 = vector.broadcast %5 : vector<128x1xf32> to vector<128x64xf32>
    %7 = arith.subf %1, %6 : vector<128x64xf32>
    %8 = arith.mulf %7, %7 : vector<128x64xf32>
    %cst_2 = arith.constant dense<0.000000e+00> : vector<128xf32>
    %9 = vector.multi_reduction <add>, %8, %cst_2 [1] : vector<128x64xf32> to vector<128xf32>
    %10 = vector.shape_cast %9 : vector<128xf32> to vector<128x1xf32>
    %cst_3 = arith.constant 6.400000e+01 : f32
    %11 = vector.broadcast %cst_3 : f32 to vector<128x1xf32>
    %12 = arith.divf %10, %11 : vector<128x1xf32>
    %cst_4 = arith.constant 9.99999974E-6 : f32
    %13 = vector.broadcast %cst_4 : f32 to vector<128x1xf32>
    %14 = arith.addf %12, %13 : vector<128x1xf32>
    %15 = math.rsqrt %14 : vector<128x1xf32>
    %16 = vector.broadcast %15 : vector<128x1xf32> to vector<128x64xf32>
    %17 = arith.mulf %7, %16 : vector<128x64xf32>
    %c0_5 = arith.constant 0 : index
    %c0_6 = arith.constant 0 : index
    %18 = vector.load %arg2[%c0_5, %c0_6] : memref<1x64xbf16, #tpu.memory_space<vmem>>, vector<1x64xbf16>
    %19 = arith.extf %18 : vector<1x64xbf16> to vector<1x64xf32>
    %20 = vector.broadcast %19 : vector<1x64xf32> to vector<128x64xf32>
    %21 = arith.mulf %17, %20 : vector<128x64xf32>
    %c0_7 = arith.constant 0 : index
    %c0_8 = arith.constant 0 : index
    %22 = vector.load %arg3[%c0_7, %c0_8] : memref<1x64xbf16, #tpu.memory_space<vmem>>, vector<1x64xbf16>
    %23 = arith.extf %22 : vector<1x64xbf16> to vector<1x64xf32>
    %24 = vector.broadcast %23 : vector<1x64xf32> to vector<128x64xf32>
    %25 = arith.addf %21, %24 : vector<128x64xf32>
    %26 = arith.truncf %25 : vector<128x64xf32> to vector<128x64xbf16>
    %c0_9 = arith.constant 0 : index
    %c0_10 = arith.constant 0 : index
    %27 = vector.load %arg4[%c0_9, %c0_10] : memref<64x128xbf16, #tpu.memory_space<vmem>>, vector<64x128xbf16>
    %cst_11 = arith.constant dense<0.000000e+00> : vector<128x128xf32>
    %28 = tpu.matmul %26, %27, %cst_11 {dimension_numbers = #tpu.dot_dimension_numbers<[1], [0], [0], [1], [0, 0, 1, 1], [], []>} : vector<128x64xbf16>, vector<64x128xbf16>, vector<128x128xf32> -> vector<128x128xf32>
    %c0_12 = arith.constant 0 : index
    %c0_13 = arith.constant 0 : index
    %29 = vector.load %arg5[%c0_12, %c0_13] : memref<1x128xbf16, #tpu.memory_space<vmem>>, vector<1x128xbf16>
    %30 = arith.extf %29 : vector<1x128xbf16> to vector<1x128xf32>
    %31 = vector.broadcast %30 : vector<1x128xf32> to vector<128x128xf32>
    %32 = arith.addf %28, %31 : vector<128x128xf32>
    %cst_14 = arith.constant 0.000000e+00 : f32
    %33 = vector.broadcast %cst_14 : f32 to vector<128x128xf32>
    %34 = arith.maximumf %32, %33 : vector<128x128xf32>
    %35 = arith.truncf %34 : vector<128x128xf32> to vector<128x128xbf16>
    %c0_15 = arith.constant 0 : index
    %c0_16 = arith.constant 0 : index
    %36 = vector.load %arg6[%c0_15, %c0_16] : memref<128x128xbf16, #tpu.memory_space<vmem>>, vector<128x128xbf16>
    tpu.vector_store %arg6[%c0_15, %c0_16], %35 {strides = array<i32>} : memref<128x128xbf16, #tpu.memory_space<vmem>>, vector<128x128xbf16>,
    return
  }
  func.func @transform_0(%arg0: i32) -> (i32, i32) {
    %c0_i32 = arith.constant 0 : i32
    %c0_i32_0 = arith.constant 0 : i32
    return %arg0, %c0_i32 : i32, i32
  }
  func.func @transform_1(%arg0: i32) -> (i32, i32) {
    %c0_i32 = arith.constant 0 : i32
    %c0_i32_0 = arith.constant 0 : i32
    %c0_i32_1 = arith.constant 0 : i32
    return %c0_i32, %c0_i32_0 : i32, i32
  }
  func.func @transform_2(%arg0: i32) -> (i32, i32) {
    %c0_i32 = arith.constant 0 : i32
    %c0_i32_0 = arith.constant 0 : i32
    %c0_i32_1 = arith.constant 0 : i32
    return %c0_i32, %c0_i32_0 : i32, i32
  }
  func.func @transform_3(%arg0: i32) -> (i32, i32) {
    %c0_i32 = arith.constant 0 : i32
    %c0_i32_0 = arith.constant 0 : i32
    %c0_i32_1 = arith.constant 0 : i32
    return %c0_i32, %c0_i32_0 : i32, i32
  }
  func.func @transform_4(%arg0: i32) -> (i32, i32) {
    %c0_i32 = arith.constant 0 : i32
    %c0_i32_0 = arith.constant 0 : i32
    %c0_i32_1 = arith.constant 0 : i32
    return %c0_i32, %c0_i32_0 : i32, i32
  }
  func.func @transform_5(%arg0: i32) -> (i32, i32) {
    %c0_i32 = arith.constant 0 : i32
    %c0_i32_0 = arith.constant 0 : i32
    return %arg0, %c0_i32 : i32, i32
  }
}

module attributes {stable_mosaic.version = 11 : i64} {
  func.func @_linear_kernel(%arg0: i32, %arg1: memref<128x128xbf16, #tpu.memory_space<vmem>>, %arg2: memref<128x64xbf16, #tpu.memory_space<vmem>>, %arg3: memref<1x64xbf16, #tpu.memory_space<vmem>>, %arg4: memref<128x64xbf16, #tpu.memory_space<vmem>>) attributes {dimension_semantics = [#tpu.dimension_semantics<parallel>], iteration_bounds = array<i64: 1>, scalar_prefetch = 0 : i64, scratch_operands = 0 : i64, tpu.core_type = #tpu.core_type<tc>, window_params = [{transform_indices = @transform_0, window_bounds = array<i64: 128, 128>}, {pipeline_mode = #tpu.pipeline_mode<synchronous>, transform_indices = @transform_1, window_bounds = array<i64: 128, 64>}, {pipeline_mode = #tpu.pipeline_mode<synchronous>, transform_indices = @transform_2, window_bounds = array<i64: 1, 64>}, {transform_indices = @transform_3, window_bounds = array<i64: 128, 64>}]} {
    %c0 = arith.constant 0 : index
    %c0_0 = arith.constant 0 : index
    %0 = vector.load %arg1[%c0, %c0_0] : memref<128x128xbf16, #tpu.memory_space<vmem>>, vector<128x128xbf16>
    %c0_1 = arith.constant 0 : index
    %c0_2 = arith.constant 0 : index
    %1 = vector.load %arg2[%c0_1, %c0_2] : memref<128x64xbf16, #tpu.memory_space<vmem>>, vector<128x64xbf16>
    %cst = arith.constant dense<0.000000e+00> : vector<128x64xf32>
    %2 = tpu.matmul %0, %1, %cst {dimension_numbers = #tpu.dot_dimension_numbers<[1], [0], [0], [1], [0, 0, 1, 1], [], []>} : vector<128x128xbf16>, vector<128x64xbf16>, vector<128x64xf32> -> vector<128x64xf32>
    %c0_3 = arith.constant 0 : index
    %c0_4 = arith.constant 0 : index
    %3 = vector.load %arg3[%c0_3, %c0_4] : memref<1x64xbf16, #tpu.memory_space<vmem>>, vector<1x64xbf16>
    %4 = arith.extf %3 : vector<1x64xbf16> to vector<1x64xf32>
    %5 = vector.broadcast %4 : vector<1x64xf32> to vector<128x64xf32>
    %6 = arith.addf %2, %5 : vector<128x64xf32>
    %7 = arith.truncf %6 : vector<128x64xf32> to vector<128x64xbf16>
    %c0_5 = arith.constant 0 : index
    %c0_6 = arith.constant 0 : index
    %8 = vector.load %arg4[%c0_5, %c0_6] : memref<128x64xbf16, #tpu.memory_space<vmem>>, vector<128x64xbf16>
    tpu.vector_store %arg4[%c0_5, %c0_6], %7 {strides = array<i32>} : memref<128x64xbf16, #tpu.memory_space<vmem>>, vector<128x64xbf16>,
    return
  }
  func.func @transform_0(%arg0: i32) -> (i32, i32) {
    %c0_i32 = arith.constant 0 : i32
    %c0_i32_0 = arith.constant 0 : i32
    return %arg0, %c0_i32 : i32, i32
  }
  func.func @transform_1(%arg0: i32) -> (i32, i32) {
    %c0_i32 = arith.constant 0 : i32
    %c0_i32_0 = arith.constant 0 : i32
    %c0_i32_1 = arith.constant 0 : i32
    return %c0_i32, %c0_i32_0 : i32, i32
  }
  func.func @transform_2(%arg0: i32) -> (i32, i32) {
    %c0_i32 = arith.constant 0 : i32
    %c0_i32_0 = arith.constant 0 : i32
    %c0_i32_1 = arith.constant 0 : i32
    return %c0_i32, %c0_i32_0 : i32, i32
  }
  func.func @transform_3(%arg0: i32) -> (i32, i32) {
    %c0_i32 = arith.constant 0 : i32
    %c0_i32_0 = arith.constant 0 : i32
    return %arg0, %c0_i32 : i32, i32
  }
}

module attributes {stable_mosaic.version = 11 : i64} {
  func.func @_layernorm_kernel(%arg0: i32, %arg1: memref<128x64xbf16, #tpu.memory_space<vmem>>, %arg2: memref<1x64xbf16, #tpu.memory_space<vmem>>, %arg3: memref<1x64xbf16, #tpu.memory_space<vmem>>, %arg4: memref<128x64xbf16, #tpu.memory_space<vmem>>) attributes {dimension_semantics = [#tpu.dimension_semantics<parallel>], iteration_bounds = array<i64: 1>, scalar_prefetch = 0 : i64, scratch_operands = 0 : i64, tpu.core_type = #tpu.core_type<tc>, window_params = [{transform_indices = @transform_0, window_bounds = array<i64: 128, 64>}, {pipeline_mode = #tpu.pipeline_mode<synchronous>, transform_indices = @transform_1, window_bounds = array<i64: 1, 64>}, {pipeline_mode = #tpu.pipeline_mode<synchronous>, transform_indices = @transform_2, window_bounds = array<i64: 1, 64>}, {transform_indices = @transform_3, window_bounds = array<i64: 128, 64>}]} {
    %c0 = arith.constant 0 : index
    %c0_0 = arith.constant 0 : index
    %0 = vector.load %arg1[%c0, %c0_0] : memref<128x64xbf16, #tpu.memory_space<vmem>>, vector<128x64xbf16>
    %1 = arith.extf %0 : vector<128x64xbf16> to vector<128x64xf32>
    %cst = arith.constant dense<0.000000e+00> : vector<128xf32>
    %2 = vector.multi_reduction <add>, %1, %cst [1] : vector<128x64xf32> to vector<128xf32>
    %3 = vector.shape_cast %2 : vector<128xf32> to vector<128x1xf32>
    %cst_1 = arith.constant 6.400000e+01 : f32
    %4 = vector.broadcast %cst_1 : f32 to vector<128x1xf32>
    %5 = arith.divf %3, %4 : vector<128x1xf32>
    %6 = vector.broadcast %5 : vector<128x1xf32> to vector<128x64xf32>
    %7 = arith.subf %1, %6 : vector<128x64xf32>
    %8 = arith.mulf %7, %7 : vector<128x64xf32>
    %cst_2 = arith.constant dense<0.000000e+00> : vector<128xf32>
    %9 = vector.multi_reduction <add>, %8, %cst_2 [1] : vector<128x64xf32> to vector<128xf32>
    %10 = vector.shape_cast %9 : vector<128xf32> to vector<128x1xf32>
    %cst_3 = arith.constant 6.400000e+01 : f32
    %11 = vector.broadcast %cst_3 : f32 to vector<128x1xf32>
    %12 = arith.divf %10, %11 : vector<128x1xf32>
    %cst_4 = arith.constant 9.99999974E-6 : f32
    %13 = vector.broadcast %cst_4 : f32 to vector<128x1xf32>
    %14 = arith.addf %12, %13 : vector<128x1xf32>
    %15 = math.rsqrt %14 : vector<128x1xf32>
    %16 = vector.broadcast %15 : vector<128x1xf32> to vector<128x64xf32>
    %17 = arith.mulf %7, %16 : vector<128x64xf32>
    %c0_5 = arith.constant 0 : index
    %c0_6 = arith.constant 0 : index
    %18 = vector.load %arg2[%c0_5, %c0_6] : memref<1x64xbf16, #tpu.memory_space<vmem>>, vector<1x64xbf16>
    %19 = arith.extf %18 : vector<1x64xbf16> to vector<1x64xf32>
    %20 = vector.broadcast %19 : vector<1x64xf32> to vector<128x64xf32>
    %21 = arith.mulf %17, %20 : vector<128x64xf32>
    %c0_7 = arith.constant 0 : index
    %c0_8 = arith.constant 0 : index
    %22 = vector.load %arg3[%c0_7, %c0_8] : memref<1x64xbf16, #tpu.memory_space<vmem>>, vector<1x64xbf16>
    %23 = arith.extf %22 : vector<1x64xbf16> to vector<1x64xf32>
    %24 = vector.broadcast %23 : vector<1x64xf32> to vector<128x64xf32>
    %25 = arith.addf %21, %24 : vector<128x64xf32>
    %26 = arith.truncf %25 : vector<128x64xf32> to vector<128x64xbf16>
    %c0_9 = arith.constant 0 : index
    %c0_10 = arith.constant 0 : index
    %27 = vector.load %arg4[%c0_9, %c0_10] : memref<128x64xbf16, #tpu.memory_space<vmem>>, vector<128x64xbf16>
    tpu.vector_store %arg4[%c0_9, %c0_10], %26 {strides = array<i32>} : memref<128x64xbf16, #tpu.memory_space<vmem>>, vector<128x64xbf16>,
    return
  }
  func.func @transform_0(%arg0: i32) -> (i32, i32) {
    %c0_i32 = arith.constant 0 : i32
    %c0_i32_0 = arith.constant 0 : i32
    return %arg0, %c0_i32 : i32, i32
  }
  func.func @transform_1(%arg0: i32) -> (i32, i32) {
    %c0_i32 = arith.constant 0 : i32
    %c0_i32_0 = arith.constant 0 : i32
    %c0_i32_1 = arith.constant 0 : i32
    return %c0_i32, %c0_i32_0 : i32, i32
  }
  func.func @transform_2(%arg0: i32) -> (i32, i32) {
    %c0_i32 = arith.constant 0 : i32
    %c0_i32_0 = arith.constant 0 : i32
    %c0_i32_1 = arith.constant 0 : i32
    return %c0_i32, %c0_i32_0 : i32, i32
  }
  func.func @transform_3(%arg0: i32) -> (i32, i32) {
    %c0_i32 = arith.constant 0 : i32
    %c0_i32_0 = arith.constant 0 : i32
    return %arg0, %c0_i32 : i32, i32
  }
}

module attributes {stable_mosaic.version = 11 : i64} {
  func.func @_cross_attn_kernel(%arg0: i32, %arg1: memref<64x128xbf16, #tpu.memory_space<vmem>>, %arg2: memref<64x128xbf16, #tpu.memory_space<vmem>>, %arg3: memref<128x64xbf16, #tpu.memory_space<vmem>>, %arg4: memref<128x128xbf16, #tpu.memory_space<vmem>>, %arg5: memref<128x128xbf16, #tpu.memory_space<vmem>>, %arg6: memref<64x4xf32, #tpu.memory_space<vmem>>, %arg7: memref<4x64xf32, #tpu.memory_space<vmem>>, %arg8: memref<64x128xbf16, #tpu.memory_space<vmem>>, %arg9: memref<1x128xbf16, #tpu.memory_space<vmem>>, %arg10: memref<64x128xf32, #tpu.memory_space<vmem>>) attributes {dimension_semantics = [#tpu.dimension_semantics<parallel>], iteration_bounds = array<i64: 1>, scalar_prefetch = 0 : i64, scratch_operands = 0 : i64, tpu.core_type = #tpu.core_type<tc>, window_params = [{transform_indices = @transform_0, window_bounds = array<i64: 64, 128>}, {transform_indices = @transform_1, window_bounds = array<i64: 64, 128>}, {pipeline_mode = #tpu.pipeline_mode<synchronous>, transform_indices = @transform_2, window_bounds = array<i64: 128, 64>}, {pipeline_mode = #tpu.pipeline_mode<synchronous>, transform_indices = @transform_3, window_bounds = array<i64: 128, 128>}, {pipeline_mode = #tpu.pipeline_mode<synchronous>, transform_indices = @transform_4, window_bounds = array<i64: 128, 128>}, {pipeline_mode = #tpu.pipeline_mode<synchronous>, transform_indices = @transform_5, window_bounds = array<i64: 64, 4>}, {pipeline_mode = #tpu.pipeline_mode<synchronous>, transform_indices = @transform_6, window_bounds = array<i64: 4, 64>}, {pipeline_mode = #tpu.pipeline_mode<synchronous>, transform_indices = @transform_7, window_bounds = array<i64: 64, 128>}, {pipeline_mode = #tpu.pipeline_mode<synchronous>, transform_indices = @transform_8, window_bounds = array<i64: 1, 128>}, {transform_indices = @transform_9, window_bounds = array<i64: 64, 128>}]} {
    %c0 = arith.constant 0 : index
    %c0_0 = arith.constant 0 : index
    %0 = vector.load %arg1[%c0, %c0_0] : memref<64x128xbf16, #tpu.memory_space<vmem>>, vector<64x128xbf16>
    %c0_1 = arith.constant 0 : index
    %c0_2 = arith.constant 0 : index
    %1 = vector.load %arg3[%c0_1, %c0_2] : memref<128x64xbf16, #tpu.memory_space<vmem>>, vector<128x64xbf16>
    %cst = arith.constant dense<0.000000e+00> : vector<64x64xf32>
    %2 = tpu.matmul %0, %1, %cst {dimension_numbers = #tpu.dot_dimension_numbers<[1], [0], [0], [1], [0, 0, 1, 1], [], []>} : vector<64x128xbf16>, vector<128x64xbf16>, vector<64x64xf32> -> vector<64x64xf32>
    %cst_3 = arith.constant 2.500000e-01 : f32
    %3 = vector.broadcast %cst_3 : f32 to vector<64x64xf32>
    %4 = arith.mulf %2, %3 : vector<64x64xf32>
    %c0_4 = arith.constant 0 : index
    %c0_5 = arith.constant 0 : index
    %5 = vector.load %arg2[%c0_4, %c0_5] : memref<64x128xbf16, #tpu.memory_space<vmem>>, vector<64x128xbf16>
    %c0_6 = arith.constant 0 : index
    %c0_7 = arith.constant 0 : index
    %6 = vector.load %arg4[%c0_6, %c0_7] : memref<128x128xbf16, #tpu.memory_space<vmem>>, vector<128x128xbf16>
    %cst_8 = arith.constant dense<0.000000e+00> : vector<64x128xf32>
    %7 = tpu.matmul %5, %6, %cst_8 {dimension_numbers = #tpu.dot_dimension_numbers<[1], [0], [0], [1], [0, 0, 1, 1], [], []>} : vector<64x128xbf16>, vector<128x128xbf16>, vector<64x128xf32> -> vector<64x128xf32>
    %c0_9 = arith.constant 0 : index
    %c0_10 = arith.constant 0 : index
    %8 = vector.load %arg2[%c0_9, %c0_10] : memref<64x128xbf16, #tpu.memory_space<vmem>>, vector<64x128xbf16>
    %c0_11 = arith.constant 0 : index
    %c0_12 = arith.constant 0 : index
    %9 = vector.load %arg5[%c0_11, %c0_12] : memref<128x128xbf16, #tpu.memory_space<vmem>>, vector<128x128xbf16>
    %cst_13 = arith.constant dense<0.000000e+00> : vector<64x128xf32>
    %10 = tpu.matmul %8, %9, %cst_13 {dimension_numbers = #tpu.dot_dimension_numbers<[1], [0], [0], [1], [0, 0, 1, 1], [], []>} : vector<64x128xbf16>, vector<128x128xbf16>, vector<64x128xf32> -> vector<64x128xf32>
    %11 = vector.extract_strided_slice %7 {offsets = [0, 0], sizes = [64, 64], strides = [1, 1]} : vector<64x128xf32> to vector<64x64xf32>
    %12 = arith.mulf %4, %11 : vector<64x64xf32>
    %c0_14 = arith.constant 0 : index
    %c0_15 = arith.constant 0 : index
    %13 = vector.load %arg6[%c0_14, %c0_15] : memref<64x4xf32, #tpu.memory_space<vmem>>, vector<64x4xf32>
    %cst_16 = arith.constant dense<0.000000e+00> : vector<64x4xf32>
    %14 = tpu.matmul %12, %13, %cst_16 {dimension_numbers = #tpu.dot_dimension_numbers<[1], [0], [0], [1], [0, 0, 1, 1], [], []>} : vector<64x64xf32>, vector<64x4xf32>, vector<64x4xf32> -> vector<64x4xf32>
    %15 = vector.extract_strided_slice %7 {offsets = [0, 64], sizes = [64, 64], strides = [1, 1]} : vector<64x128xf32> to vector<64x64xf32>
    %16 = arith.mulf %4, %15 : vector<64x64xf32>
    %c0_17 = arith.constant 0 : index
    %c0_18 = arith.constant 0 : index
    %17 = vector.load %arg6[%c0_17, %c0_18] : memref<64x4xf32, #tpu.memory_space<vmem>>, vector<64x4xf32>
    %cst_19 = arith.constant dense<0.000000e+00> : vector<64x4xf32>
    %18 = tpu.matmul %16, %17, %cst_19 {dimension_numbers = #tpu.dot_dimension_numbers<[1], [0], [0], [1], [0, 0, 1, 1], [], []>} : vector<64x64xf32>, vector<64x4xf32>, vector<64x4xf32> -> vector<64x4xf32>
    %19 = arith.maximumf %14, %18 : vector<64x4xf32>
    %20 = arith.subf %14, %19 : vector<64x4xf32>
    %21 = math.exp %20 : vector<64x4xf32>
    %22 = arith.subf %18, %19 : vector<64x4xf32>
    %23 = math.exp %22 : vector<64x4xf32>
    %24 = arith.addf %21, %23 : vector<64x4xf32>
    %cst_20 = arith.constant 1.000000e+00 : f32
    %25 = vector.broadcast %cst_20 : f32 to vector<64x4xf32>
    %26 = arith.divf %25, %24 : vector<64x4xf32>
    %27 = arith.mulf %21, %26 : vector<64x4xf32>
    %c0_21 = arith.constant 0 : index
    %c0_22 = arith.constant 0 : index
    %28 = vector.load %arg7[%c0_21, %c0_22] : memref<4x64xf32, #tpu.memory_space<vmem>>, vector<4x64xf32>
    %cst_23 = arith.constant dense<0.000000e+00> : vector<64x64xf32>
    %29 = tpu.matmul %27, %28, %cst_23 {dimension_numbers = #tpu.dot_dimension_numbers<[1], [0], [0], [1], [0, 0, 1, 1], [], []>} : vector<64x4xf32>, vector<4x64xf32>, vector<64x64xf32> -> vector<64x64xf32>
    %30 = vector.extract_strided_slice %10 {offsets = [0, 0], sizes = [64, 64], strides = [1, 1]} : vector<64x128xf32> to vector<64x64xf32>
    %31 = arith.mulf %29, %30 : vector<64x64xf32>
    %32 = arith.mulf %23, %26 : vector<64x4xf32>
    %c0_24 = arith.constant 0 : index
    %c0_25 = arith.constant 0 : index
    %33 = vector.load %arg7[%c0_24, %c0_25] : memref<4x64xf32, #tpu.memory_space<vmem>>, vector<4x64xf32>
    %cst_26 = arith.constant dense<0.000000e+00> : vector<64x64xf32>
    %34 = tpu.matmul %32, %33, %cst_26 {dimension_numbers = #tpu.dot_dimension_numbers<[1], [0], [0], [1], [0, 0, 1, 1], [], []>} : vector<64x4xf32>, vector<4x64xf32>, vector<64x64xf32> -> vector<64x64xf32>
    %35 = vector.extract_strided_slice %10 {offsets = [0, 64], sizes = [64, 64], strides = [1, 1]} : vector<64x128xf32> to vector<64x64xf32>
    %36 = arith.mulf %34, %35 : vector<64x64xf32>
    %37 = arith.addf %31, %36 : vector<64x64xf32>
    %38 = arith.truncf %37 : vector<64x64xf32> to vector<64x64xbf16>
    %c0_27 = arith.constant 0 : index
    %c0_28 = arith.constant 0 : index
    %39 = vector.load %arg8[%c0_27, %c0_28] : memref<64x128xbf16, #tpu.memory_space<vmem>>, vector<64x128xbf16>
    %cst_29 = arith.constant dense<0.000000e+00> : vector<64x128xf32>
    %40 = tpu.matmul %38, %39, %cst_29 {dimension_numbers = #tpu.dot_dimension_numbers<[1], [0], [0], [1], [0, 0, 1, 1], [], []>} : vector<64x64xbf16>, vector<64x128xbf16>, vector<64x128xf32> -> vector<64x128xf32>
    %c0_30 = arith.constant 0 : index
    %c0_31 = arith.constant 0 : index
    %41 = vector.load %arg9[%c0_30, %c0_31] : memref<1x128xbf16, #tpu.memory_space<vmem>>, vector<1x128xbf16>
    %42 = arith.extf %41 : vector<1x128xbf16> to vector<1x128xf32>
    %43 = vector.broadcast %42 : vector<1x128xf32> to vector<64x128xf32>
    %44 = arith.addf %40, %43 : vector<64x128xf32>
    %c0_32 = arith.constant 0 : index
    %c0_33 = arith.constant 0 : index
    %45 = vector.load %arg10[%c0_32, %c0_33] : memref<64x128xf32, #tpu.memory_space<vmem>>, vector<64x128xf32>
    tpu.vector_store %arg10[%c0_32, %c0_33], %44 {strides = array<i32>} : memref<64x128xf32, #tpu.memory_space<vmem>>, vector<64x128xf32>,
    return
  }
  func.func @transform_0(%arg0: i32) -> (i32, i32) {
    %c0_i32 = arith.constant 0 : i32
    %c0_i32_0 = arith.constant 0 : i32
    return %arg0, %c0_i32 : i32, i32
  }
  func.func @transform_1(%arg0: i32) -> (i32, i32) {
    %c0_i32 = arith.constant 0 : i32
    %c0_i32_0 = arith.constant 0 : i32
    return %arg0, %c0_i32 : i32, i32
  }
  func.func @transform_2(%arg0: i32) -> (i32, i32) {
    %c0_i32 = arith.constant 0 : i32
    %c0_i32_0 = arith.constant 0 : i32
    %c0_i32_1 = arith.constant 0 : i32
    return %c0_i32, %c0_i32_0 : i32, i32
  }
  func.func @transform_3(%arg0: i32) -> (i32, i32) {
    %c0_i32 = arith.constant 0 : i32
    %c0_i32_0 = arith.constant 0 : i32
    %c0_i32_1 = arith.constant 0 : i32
    return %c0_i32, %c0_i32_0 : i32, i32
  }
  func.func @transform_4(%arg0: i32) -> (i32, i32) {
    %c0_i32 = arith.constant 0 : i32
    %c0_i32_0 = arith.constant 0 : i32
    %c0_i32_1 = arith.constant 0 : i32
    return %c0_i32, %c0_i32_0 : i32, i32
  }
  func.func @transform_5(%arg0: i32) -> (i32, i32) {
    %c0_i32 = arith.constant 0 : i32
    %c0_i32_0 = arith.constant 0 : i32
    %c0_i32_1 = arith.constant 0 : i32
    return %c0_i32, %c0_i32_0 : i32, i32
  }
  func.func @transform_6(%arg0: i32) -> (i32, i32) {
    %c0_i32 = arith.constant 0 : i32
    %c0_i32_0 = arith.constant 0 : i32
    %c0_i32_1 = arith.constant 0 : i32
    return %c0_i32, %c0_i32_0 : i32, i32
  }
  func.func @transform_7(%arg0: i32) -> (i32, i32) {
    %c0_i32 = arith.constant 0 : i32
    %c0_i32_0 = arith.constant 0 : i32
    %c0_i32_1 = arith.constant 0 : i32
    return %c0_i32, %c0_i32_0 : i32, i32
  }
  func.func @transform_8(%arg0: i32) -> (i32, i32) {
    %c0_i32 = arith.constant 0 : i32
    %c0_i32_0 = arith.constant 0 : i32
    %c0_i32_1 = arith.constant 0 : i32
    return %c0_i32, %c0_i32_0 : i32, i32
  }
  func.func @transform_9(%arg0: i32) -> (i32, i32) {
    %c0_i32 = arith.constant 0 : i32
    %c0_i32_0 = arith.constant 0 : i32
    return %arg0, %c0_i32 : i32, i32
  }
}

module attributes {stable_mosaic.version = 11 : i64} {
  func.func @_linear_kernel(%arg0: i32, %arg1: memref<16x62xbf16, #tpu.memory_space<vmem>>, %arg2: memref<62x64xbf16, #tpu.memory_space<vmem>>, %arg3: memref<1x64xbf16, #tpu.memory_space<vmem>>, %arg4: memref<16x64xbf16, #tpu.memory_space<vmem>>) attributes {dimension_semantics = [#tpu.dimension_semantics<parallel>], iteration_bounds = array<i64: 1>, scalar_prefetch = 0 : i64, scratch_operands = 0 : i64, tpu.core_type = #tpu.core_type<tc>, window_params = [{transform_indices = @transform_0, window_bounds = array<i64: 16, 62>}, {pipeline_mode = #tpu.pipeline_mode<synchronous>, transform_indices = @transform_1, window_bounds = array<i64: 62, 64>}, {pipeline_mode = #tpu.pipeline_mode<synchronous>, transform_indices = @transform_2, window_bounds = array<i64: 1, 64>}, {transform_indices = @transform_3, window_bounds = array<i64: 16, 64>}]} {
    %c0 = arith.constant 0 : index
    %c0_0 = arith.constant 0 : index
    %0 = vector.load %arg1[%c0, %c0_0] : memref<16x62xbf16, #tpu.memory_space<vmem>>, vector<16x62xbf16>
    %c0_1 = arith.constant 0 : index
    %c0_2 = arith.constant 0 : index
    %1 = vector.load %arg2[%c0_1, %c0_2] : memref<62x64xbf16, #tpu.memory_space<vmem>>, vector<62x64xbf16>
    %cst = arith.constant dense<0.000000e+00> : vector<16x64xf32>
    %2 = tpu.matmul %0, %1, %cst {dimension_numbers = #tpu.dot_dimension_numbers<[1], [0], [0], [1], [0, 0, 1, 1], [], []>} : vector<16x62xbf16>, vector<62x64xbf16>, vector<16x64xf32> -> vector<16x64xf32>
    %c0_3 = arith.constant 0 : index
    %c0_4 = arith.constant 0 : index
    %3 = vector.load %arg3[%c0_3, %c0_4] : memref<1x64xbf16, #tpu.memory_space<vmem>>, vector<1x64xbf16>
    %4 = arith.extf %3 : vector<1x64xbf16> to vector<1x64xf32>
    %5 = vector.broadcast %4 : vector<1x64xf32> to vector<16x64xf32>
    %6 = arith.addf %2, %5 : vector<16x64xf32>
    %7 = arith.truncf %6 : vector<16x64xf32> to vector<16x64xbf16>
    %c0_5 = arith.constant 0 : index
    %c0_6 = arith.constant 0 : index
    %8 = vector.load %arg4[%c0_5, %c0_6] : memref<16x64xbf16, #tpu.memory_space<vmem>>, vector<16x64xbf16>
    tpu.vector_store %arg4[%c0_5, %c0_6], %7 {strides = array<i32>} : memref<16x64xbf16, #tpu.memory_space<vmem>>, vector<16x64xbf16>,
    return
  }
  func.func @transform_0(%arg0: i32) -> (i32, i32) {
    %c0_i32 = arith.constant 0 : i32
    %c0_i32_0 = arith.constant 0 : i32
    return %arg0, %c0_i32 : i32, i32
  }
  func.func @transform_1(%arg0: i32) -> (i32, i32) {
    %c0_i32 = arith.constant 0 : i32
    %c0_i32_0 = arith.constant 0 : i32
    %c0_i32_1 = arith.constant 0 : i32
    return %c0_i32, %c0_i32_0 : i32, i32
  }
  func.func @transform_2(%arg0: i32) -> (i32, i32) {
    %c0_i32 = arith.constant 0 : i32
    %c0_i32_0 = arith.constant 0 : i32
    %c0_i32_1 = arith.constant 0 : i32
    return %c0_i32, %c0_i32_0 : i32, i32
  }
  func.func @transform_3(%arg0: i32) -> (i32, i32) {
    %c0_i32 = arith.constant 0 : i32
    %c0_i32_0 = arith.constant 0 : i32
    return %arg0, %c0_i32 : i32, i32
  }
}

module attributes {stable_mosaic.version = 11 : i64} {
  func.func @_cross_attn_kernel(%arg0: i32, %arg1: memref<8x32xbf16, #tpu.memory_space<vmem>>, %arg2: memref<8x128xbf16, #tpu.memory_space<vmem>>, %arg3: memref<32x64xbf16, #tpu.memory_space<vmem>>, %arg4: memref<128x128xbf16, #tpu.memory_space<vmem>>, %arg5: memref<128x128xbf16, #tpu.memory_space<vmem>>, %arg6: memref<64x4xf32, #tpu.memory_space<vmem>>, %arg7: memref<4x64xf32, #tpu.memory_space<vmem>>, %arg8: memref<64x32xbf16, #tpu.memory_space<vmem>>, %arg9: memref<1x32xbf16, #tpu.memory_space<vmem>>, %arg10: memref<8x32xf32, #tpu.memory_space<vmem>>) attributes {dimension_semantics = [#tpu.dimension_semantics<parallel>], iteration_bounds = array<i64: 1>, scalar_prefetch = 0 : i64, scratch_operands = 0 : i64, tpu.core_type = #tpu.core_type<tc>, window_params = [{transform_indices = @transform_0, window_bounds = array<i64: 8, 32>}, {transform_indices = @transform_1, window_bounds = array<i64: 8, 128>}, {pipeline_mode = #tpu.pipeline_mode<synchronous>, transform_indices = @transform_2, window_bounds = array<i64: 32, 64>}, {pipeline_mode = #tpu.pipeline_mode<synchronous>, transform_indices = @transform_3, window_bounds = array<i64: 128, 128>}, {pipeline_mode = #tpu.pipeline_mode<synchronous>, transform_indices = @transform_4, window_bounds = array<i64: 128, 128>}, {pipeline_mode = #tpu.pipeline_mode<synchronous>, transform_indices = @transform_5, window_bounds = array<i64: 64, 4>}, {pipeline_mode = #tpu.pipeline_mode<synchronous>, transform_indices = @transform_6, window_bounds = array<i64: 4, 64>}, {pipeline_mode = #tpu.pipeline_mode<synchronous>, transform_indices = @transform_7, window_bounds = array<i64: 64, 32>}, {pipeline_mode = #tpu.pipeline_mode<synchronous>, transform_indices = @transform_8, window_bounds = array<i64: 1, 32>}, {transform_indices = @transform_9, window_bounds = array<i64: 8, 32>}]} {
    %c0 = arith.constant 0 : index
    %c0_0 = arith.constant 0 : index
    %0 = vector.load %arg1[%c0, %c0_0] : memref<8x32xbf16, #tpu.memory_space<vmem>>, vector<8x32xbf16>
    %c0_1 = arith.constant 0 : index
    %c0_2 = arith.constant 0 : index
    %1 = vector.load %arg3[%c0_1, %c0_2] : memref<32x64xbf16, #tpu.memory_space<vmem>>, vector<32x64xbf16>
    %cst = arith.constant dense<0.000000e+00> : vector<8x64xf32>
    %2 = tpu.matmul %0, %1, %cst {dimension_numbers = #tpu.dot_dimension_numbers<[1], [0], [0], [1], [0, 0, 1, 1], [], []>} : vector<8x32xbf16>, vector<32x64xbf16>, vector<8x64xf32> -> vector<8x64xf32>
    %cst_3 = arith.constant 2.500000e-01 : f32
    %3 = vector.broadcast %cst_3 : f32 to vector<8x64xf32>
    %4 = arith.mulf %2, %3 : vector<8x64xf32>
    %c0_4 = arith.constant 0 : index
    %c0_5 = arith.constant 0 : index
    %5 = vector.load %arg2[%c0_4, %c0_5] : memref<8x128xbf16, #tpu.memory_space<vmem>>, vector<8x128xbf16>
    %c0_6 = arith.constant 0 : index
    %c0_7 = arith.constant 0 : index
    %6 = vector.load %arg4[%c0_6, %c0_7] : memref<128x128xbf16, #tpu.memory_space<vmem>>, vector<128x128xbf16>
    %cst_8 = arith.constant dense<0.000000e+00> : vector<8x128xf32>
    %7 = tpu.matmul %5, %6, %cst_8 {dimension_numbers = #tpu.dot_dimension_numbers<[1], [0], [0], [1], [0, 0, 1, 1], [], []>} : vector<8x128xbf16>, vector<128x128xbf16>, vector<8x128xf32> -> vector<8x128xf32>
    %c0_9 = arith.constant 0 : index
    %c0_10 = arith.constant 0 : index
    %8 = vector.load %arg2[%c0_9, %c0_10] : memref<8x128xbf16, #tpu.memory_space<vmem>>, vector<8x128xbf16>
    %c0_11 = arith.constant 0 : index
    %c0_12 = arith.constant 0 : index
    %9 = vector.load %arg5[%c0_11, %c0_12] : memref<128x128xbf16, #tpu.memory_space<vmem>>, vector<128x128xbf16>
    %cst_13 = arith.constant dense<0.000000e+00> : vector<8x128xf32>
    %10 = tpu.matmul %8, %9, %cst_13 {dimension_numbers = #tpu.dot_dimension_numbers<[1], [0], [0], [1], [0, 0, 1, 1], [], []>} : vector<8x128xbf16>, vector<128x128xbf16>, vector<8x128xf32> -> vector<8x128xf32>
    %11 = vector.extract_strided_slice %7 {offsets = [0, 0], sizes = [8, 64], strides = [1, 1]} : vector<8x128xf32> to vector<8x64xf32>
    %12 = arith.mulf %4, %11 : vector<8x64xf32>
    %c0_14 = arith.constant 0 : index
    %c0_15 = arith.constant 0 : index
    %13 = vector.load %arg6[%c0_14, %c0_15] : memref<64x4xf32, #tpu.memory_space<vmem>>, vector<64x4xf32>
    %cst_16 = arith.constant dense<0.000000e+00> : vector<8x4xf32>
    %14 = tpu.matmul %12, %13, %cst_16 {dimension_numbers = #tpu.dot_dimension_numbers<[1], [0], [0], [1], [0, 0, 1, 1], [], []>} : vector<8x64xf32>, vector<64x4xf32>, vector<8x4xf32> -> vector<8x4xf32>
    %15 = vector.extract_strided_slice %7 {offsets = [0, 64], sizes = [8, 64], strides = [1, 1]} : vector<8x128xf32> to vector<8x64xf32>
    %16 = arith.mulf %4, %15 : vector<8x64xf32>
    %c0_17 = arith.constant 0 : index
    %c0_18 = arith.constant 0 : index
    %17 = vector.load %arg6[%c0_17, %c0_18] : memref<64x4xf32, #tpu.memory_space<vmem>>, vector<64x4xf32>
    %cst_19 = arith.constant dense<0.000000e+00> : vector<8x4xf32>
    %18 = tpu.matmul %16, %17, %cst_19 {dimension_numbers = #tpu.dot_dimension_numbers<[1], [0], [0], [1], [0, 0, 1, 1], [], []>} : vector<8x64xf32>, vector<64x4xf32>, vector<8x4xf32> -> vector<8x4xf32>
    %19 = arith.maximumf %14, %18 : vector<8x4xf32>
    %20 = arith.subf %14, %19 : vector<8x4xf32>
    %21 = math.exp %20 : vector<8x4xf32>
    %22 = arith.subf %18, %19 : vector<8x4xf32>
    %23 = math.exp %22 : vector<8x4xf32>
    %24 = arith.addf %21, %23 : vector<8x4xf32>
    %cst_20 = arith.constant 1.000000e+00 : f32
    %25 = vector.broadcast %cst_20 : f32 to vector<8x4xf32>
    %26 = arith.divf %25, %24 : vector<8x4xf32>
    %27 = arith.mulf %21, %26 : vector<8x4xf32>
    %c0_21 = arith.constant 0 : index
    %c0_22 = arith.constant 0 : index
    %28 = vector.load %arg7[%c0_21, %c0_22] : memref<4x64xf32, #tpu.memory_space<vmem>>, vector<4x64xf32>
    %cst_23 = arith.constant dense<0.000000e+00> : vector<8x64xf32>
    %29 = tpu.matmul %27, %28, %cst_23 {dimension_numbers = #tpu.dot_dimension_numbers<[1], [0], [0], [1], [0, 0, 1, 1], [], []>} : vector<8x4xf32>, vector<4x64xf32>, vector<8x64xf32> -> vector<8x64xf32>
    %30 = vector.extract_strided_slice %10 {offsets = [0, 0], sizes = [8, 64], strides = [1, 1]} : vector<8x128xf32> to vector<8x64xf32>
    %31 = arith.mulf %29, %30 : vector<8x64xf32>
    %32 = arith.mulf %23, %26 : vector<8x4xf32>
    %c0_24 = arith.constant 0 : index
    %c0_25 = arith.constant 0 : index
    %33 = vector.load %arg7[%c0_24, %c0_25] : memref<4x64xf32, #tpu.memory_space<vmem>>, vector<4x64xf32>
    %cst_26 = arith.constant dense<0.000000e+00> : vector<8x64xf32>
    %34 = tpu.matmul %32, %33, %cst_26 {dimension_numbers = #tpu.dot_dimension_numbers<[1], [0], [0], [1], [0, 0, 1, 1], [], []>} : vector<8x4xf32>, vector<4x64xf32>, vector<8x64xf32> -> vector<8x64xf32>
    %35 = vector.extract_strided_slice %10 {offsets = [0, 64], sizes = [8, 64], strides = [1, 1]} : vector<8x128xf32> to vector<8x64xf32>
    %36 = arith.mulf %34, %35 : vector<8x64xf32>
    %37 = arith.addf %31, %36 : vector<8x64xf32>
    %38 = arith.truncf %37 : vector<8x64xf32> to vector<8x64xbf16>
    %c0_27 = arith.constant 0 : index
    %c0_28 = arith.constant 0 : index
    %39 = vector.load %arg8[%c0_27, %c0_28] : memref<64x32xbf16, #tpu.memory_space<vmem>>, vector<64x32xbf16>
    %cst_29 = arith.constant dense<0.000000e+00> : vector<8x32xf32>
    %40 = tpu.matmul %38, %39, %cst_29 {dimension_numbers = #tpu.dot_dimension_numbers<[1], [0], [0], [1], [0, 0, 1, 1], [], []>} : vector<8x64xbf16>, vector<64x32xbf16>, vector<8x32xf32> -> vector<8x32xf32>
    %c0_30 = arith.constant 0 : index
    %c0_31 = arith.constant 0 : index
    %41 = vector.load %arg9[%c0_30, %c0_31] : memref<1x32xbf16, #tpu.memory_space<vmem>>, vector<1x32xbf16>
    %42 = arith.extf %41 : vector<1x32xbf16> to vector<1x32xf32>
    %43 = vector.broadcast %42 : vector<1x32xf32> to vector<8x32xf32>
    %44 = arith.addf %40, %43 : vector<8x32xf32>
    %c0_32 = arith.constant 0 : index
    %c0_33 = arith.constant 0 : index
    %45 = vector.load %arg10[%c0_32, %c0_33] : memref<8x32xf32, #tpu.memory_space<vmem>>, vector<8x32xf32>
    tpu.vector_store %arg10[%c0_32, %c0_33], %44 {strides = array<i32>} : memref<8x32xf32, #tpu.memory_space<vmem>>, vector<8x32xf32>,
    return
  }
  func.func @transform_0(%arg0: i32) -> (i32, i32) {
    %c0_i32 = arith.constant 0 : i32
    %c0_i32_0 = arith.constant 0 : i32
    return %arg0, %c0_i32 : i32, i32
  }
  func.func @transform_1(%arg0: i32) -> (i32, i32) {
    %c0_i32 = arith.constant 0 : i32
    %c0_i32_0 = arith.constant 0 : i32
    return %arg0, %c0_i32 : i32, i32
  }
  func.func @transform_2(%arg0: i32) -> (i32, i32) {
    %c0_i32 = arith.constant 0 : i32
    %c0_i32_0 = arith.constant 0 : i32
    %c0_i32_1 = arith.constant 0 : i32
    return %c0_i32, %c0_i32_0 : i32, i32
  }
  func.func @transform_3(%arg0: i32) -> (i32, i32) {
    %c0_i32 = arith.constant 0 : i32
    %c0_i32_0 = arith.constant 0 : i32
    %c0_i32_1 = arith.constant 0 : i32
    return %c0_i32, %c0_i32_0 : i32, i32
  }
  func.func @transform_4(%arg0: i32) -> (i32, i32) {
    %c0_i32 = arith.constant 0 : i32
    %c0_i32_0 = arith.constant 0 : i32
    %c0_i32_1 = arith.constant 0 : i32
    return %c0_i32, %c0_i32_0 : i32, i32
  }
  func.func @transform_5(%arg0: i32) -> (i32, i32) {
    %c0_i32 = arith.constant 0 : i32
    %c0_i32_0 = arith.constant 0 : i32
    %c0_i32_1 = arith.constant 0 : i32
    return %c0_i32, %c0_i32_0 : i32, i32
  }
  func.func @transform_6(%arg0: i32) -> (i32, i32) {
    %c0_i32 = arith.constant 0 : i32
    %c0_i32_0 = arith.constant 0 : i32
    %c0_i32_1 = arith.constant 0 : i32
    return %c0_i32, %c0_i32_0 : i32, i32
  }
  func.func @transform_7(%arg0: i32) -> (i32, i32) {
    %c0_i32 = arith.constant 0 : i32
    %c0_i32_0 = arith.constant 0 : i32
    %c0_i32_1 = arith.constant 0 : i32
    return %c0_i32, %c0_i32_0 : i32, i32
  }
  func.func @transform_8(%arg0: i32) -> (i32, i32) {
    %c0_i32 = arith.constant 0 : i32
    %c0_i32_0 = arith.constant 0 : i32
    %c0_i32_1 = arith.constant 0 : i32
    return %c0_i32, %c0_i32_0 : i32, i32
  }
  func.func @transform_9(%arg0: i32) -> (i32, i32) {
    %c0_i32 = arith.constant 0 : i32
    %c0_i32_0 = arith.constant 0 : i32
    return %arg0, %c0_i32 : i32, i32
  }
}

</mosaic_0001>

<llo_original>
// kernel: templ_emb_forward.25
$region0: #{templ_emb_forward.25}
  #allocation0 [shape = 'u32[]', space=smem, size = 0x4, offset = 0x4, fixed_abs, tag = 'smem constant byte address 0x4 - core index']
  #allocation1 [shape = 'u32[72,128]{1,0:T(1,128)}', space=vmem, size = 0x9000, scoped, tag = 'internal scratch']
  %s0 = inlined_call_operand.vmem [shape: bf16[2,8,8,44], index: 0, kind: input, shape index: {}]
  %s1 = inlined_call_operand.vmem [shape: bf16[2,8,1,64], index: 1, kind: input, shape index: {}]
  %s2 = inlined_call_operand.vmem [shape: bf16[2,1,8,64], index: 2, kind: input, shape index: {}]
  %s3 = inlined_call_operand.vmem [shape: bf16[44,64], index: 3, kind: input, shape index: {}]
  %s4 = inlined_call_operand.vmem [shape: bf16[1,64], index: 4, kind: input, shape index: {}]
  %s5 = inlined_call_operand.vmem [shape: bf16[2,8,8,64], index: 5, kind: output, shape index: {}]
  %s6 = sld [smem:[#allocation0]]
  $region53: #{templ_emb_forward.25} parent=0
    _
  %s8 = ssub.s32 1, %s6
  %s9 = scalar_select 0, %s8, %s6
  loop: start=0, step=1, limit=18
  $region2: #{templ_emb_forward.25} parent=0 // loop_pre_header
    _
  $region3: #{templ_emb_forward.25} parent=0 // loop_header
    %s11 = sphi 0, %s15
    %p12 = scmp.ge.s32.totalorder %s11, 18
    %s18 = sphi 0, %s30
    %s19 = sphi 0, %s26
    %s20 = sphi 0, %s18
    %s21 = sphi 0, %s19
    %s22 = sphi 0, %s20
    %s23 = sphi 0, %s21
    %s35 = sphi 0, %s37
    %s38 = sphi 0, %s35
    %s39 = sphi 0, %s38
    %s55 = sphi 0, %s39
    %s63 = sphi 0, %s65
    %s66 = sphi 0, %s63
    %s67 = sphi 0, %s66
    %s83 = sphi 0, %s67
    %s89 = sphi 0, %s91
    %s92 = sphi 0, %s89
    %s93 = sphi 0, %s92
    %s109 = sphi 0, %s93
    %s113 = sphi 0, %s113
    %s115 = sphi 0, %s113
    %s116 = sphi 0, %s115
    %s130 = sphi 0, %s116
    %s134 = sphi 0, %s134
    %s136 = sphi 0, %s134
    %s137 = sphi 0, %s136
    %s151 = sphi 0, %s137
    %s159 = sphi 0, %s161
    %s162 = sphi 0, %s159
    %s163 = sphi 0, %s162
    %s179 = sphi 0, %s163
  $region4: #{templ_emb_forward.25} parent=0 // loop_header_branch
    %14 = sbr.rel (%p12) target = $region8
  $region5: #{templ_emb_forward.25} parent=0 // loop_body
    %s16 = ssub.s32 %s11, 1
    %s17 = ssub.s32 %s11, 2
    %s24 = sadd.s32 1, %s19
    %p25 = scmp.ge.s32.totalorder %s24, 8
    %s26 = scalar_select %p25, 0, %s24
    %s27 = sadd.s32 1, %s18
    %s28 = scalar_select %p25, %s27, %s18
    %p29 = scmp.ge.s32.totalorder %s28, 2
    %s30 = scalar_select %p29, 0, %s28
    %s31 = ssub.s32 %s18, %s30
    %s32 = ssub.s32 %s19, %s26
    %s33 = sor.u32 %s31, %s32
    %p34 = scmp.eq.s32.totalorder %s33, 0
    %s36 = sadd.s32 %s35, 1
    %s37 = scalar_select %p34, %s35, %s36
    %p40 = pneg %p34
    %p41 = scmp.eq.s32.totalorder %s11, 15
    %p42 = por %p40, %p41
    %p43 = scmp.ne.s32.totalorder %s35, %s38
    %p44 = scmp.eq.s32.totalorder %s11, 0
    %p45 = por %p43, %p44
    %p46 = scmp.ne.s32.totalorder %s35, %s38
    %p47 = scmp.eq.s32.totalorder %s16, 15
    %p48 = por %p46, %p47
    %p49 = scmp.ne.s32.totalorder %s38, %s39
    %p50 = scmp.eq.s32.totalorder %s16, 0
    %p51 = por %p49, %p50
    %p52 = scmp.ne.s32.totalorder %s38, %s39
    %p53 = scmp.eq.s32.totalorder %s17, 15
    %p54 = por %p52, %p53
    %p56 = scmp.ne.s32.totalorder %s39, %s55
    %p57 = scmp.eq.s32.totalorder %s17, 0
    %p58 = por %p56, %p57
    %s59 = ssub.s32 %s18, %s30
    %s60 = ssub.s32 %s19, %s26
    %s61 = sor.u32 %s59, %s60
    %p62 = scmp.eq.s32.totalorder %s61, 0
    %s64 = sadd.s32 %s63, 1
    %s65 = scalar_select %p62, %s63, %s64
    %p68 = pneg %p62
    %p69 = scmp.eq.s32.totalorder %s11, 15
    %p70 = por %p68, %p69
    %p71 = scmp.ne.s32.totalorder %s63, %s66
    %p72 = scmp.eq.s32.totalorder %s11, 0
    %p73 = por %p71, %p72
    %p74 = scmp.ne.s32.totalorder %s63, %s66
    %p75 = scmp.eq.s32.totalorder %s16, 15
    %p76 = por %p74, %p75
    %p77 = scmp.ne.s32.totalorder %s66, %s67
    %p78 = scmp.eq.s32.totalorder %s16, 0
    %p79 = por %p77, %p78
    %p80 = scmp.ne.s32.totalorder %s66, %s67
    %p81 = scmp.eq.s32.totalorder %s17, 15
    %p82 = por %p80, %p81
    %p84 = scmp.ne.s32.totalorder %s67, %s83
    %p85 = scmp.eq.s32.totalorder %s17, 0
    %p86 = por %p84, %p85
    %s87 = ssub.s32 %s18, %s30
    %p88 = scmp.eq.s32.totalorder %s87, 0
    %s90 = sadd.s32 %s89, 1
    %s91 = scalar_select %p88, %s89, %s90
    %p94 = pneg %p88
    %p95 = scmp.eq.s32.totalorder %s11, 15
    %p96 = por %p94, %p95
    %p97 = scmp.ne.s32.totalorder %s89, %s92
    %p98 = scmp.eq.s32.totalorder %s11, 0
    %p99 = por %p97, %p98
    %p100 = scmp.ne.s32.totalorder %s89, %s92
    %p101 = scmp.eq.s32.totalorder %s16, 15
    %p102 = por %p100, %p101
    %p103 = scmp.ne.s32.totalorder %s92, %s93
    %p104 = scmp.eq.s32.totalorder %s16, 0
    %p105 = por %p103, %p104
    %p106 = scmp.ne.s32.totalorder %s92, %s93
    %p107 = scmp.eq.s32.totalorder %s17, 15
    %p108 = por %p106, %p107
    %p110 = scmp.ne.s32.totalorder %s93, %s109
    %p111 = scmp.eq.s32.totalorder %s17, 0
    %p112 = por %p110, %p111
    %s114 = sadd.s32 %s113, 1
    %p117 = scmp.eq.s32.totalorder %s11, 15
    %p118 = scmp.ne.s32.totalorder %s113, %s115
    %p119 = scmp.eq.s32.totalorder %s11, 0
    %p120 = por %p118, %p119
    %p121 = scmp.ne.s32.totalorder %s113, %s115
    %p122 = scmp.eq.s32.totalorder %s16, 15
    %p123 = por %p121, %p122
    %p124 = scmp.ne.s32.totalorder %s115, %s116
    %p125 = scmp.eq.s32.totalorder %s16, 0
    %p126 = por %p124, %p125
    %p127 = scmp.ne.s32.totalorder %s115, %s116
    %p128 = scmp.eq.s32.totalorder %s17, 15
    %p129 = por %p127, %p128
    %p131 = scmp.ne.s32.totalorder %s116, %s130
    %p132 = scmp.eq.s32.totalorder %s17, 0
    %p133 = por %p131, %p132
    %s135 = sadd.s32 %s134, 1
    %p138 = scmp.eq.s32.totalorder %s11, 15
    %p139 = scmp.ne.s32.totalorder %s134, %s136
    %p140 = scmp.eq.s32.totalorder %s11, 0
    %p141 = por %p139, %p140
    %p142 = scmp.ne.s32.totalorder %s134, %s136
    %p143 = scmp.eq.s32.totalorder %s16, 15
    %p144 = por %p142, %p143
    %p145 = scmp.ne.s32.totalorder %s136, %s137
    %p146 = scmp.eq.s32.totalorder %s16, 0
    %p147 = por %p145, %p146
    %p148 = scmp.ne.s32.totalorder %s136, %s137
    %p149 = scmp.eq.s32.totalorder %s17, 15
    %p150 = por %p148, %p149
    %p152 = scmp.ne.s32.totalorder %s137, %s151
    %p153 = scmp.eq.s32.totalorder %s17, 0
    %p154 = por %p152, %p153
    %s155 = ssub.s32 %s18, %s30
    %s156 = ssub.s32 %s19, %s26
    %s157 = sor.u32 %s155, %s156
    %p158 = scmp.eq.s32.totalorder %s157, 0
    %s160 = sadd.s32 %s159, 1
    %s161 = scalar_select %p158, %s159, %s160
    %p164 = pneg %p158
    %p165 = scmp.eq.s32.totalorder %s11, 15
    %p166 = por %p164, %p165
    %p167 = scmp.ne.s32.totalorder %s159, %s162
    %p168 = scmp.eq.s32.totalorder %s11, 0
    %p169 = por %p167, %p168
    %p170 = scmp.ne.s32.totalorder %s159, %s162
    %p171 = scmp.eq.s32.totalorder %s16, 15
    %p172 = por %p170, %p171
    %p173 = scmp.ne.s32.totalorder %s162, %s163
    %p174 = scmp.eq.s32.totalorder %s16, 0
    %p175 = por %p173, %p174
    %p176 = scmp.ne.s32.totalorder %s162, %s163
    %p177 = scmp.eq.s32.totalorder %s17, 15
    %p178 = por %p176, %p177
    %p180 = scmp.ne.s32.totalorder %s163, %s179
    %p181 = scmp.eq.s32.totalorder %s17, 0
    %p182 = por %p180, %p181
    %p183 = scmp.le.s32.totalorder 1, %s11
    %p184 = scmp.lt.s32.totalorder %s11, 17
    %p185 = pnand %p183, %p184
    %p186 = pneg %p185
    // Predicated region
    $region9: #{templ_emb_forward.25} parent=5 // pred_check
      _
    $region10: #{templ_emb_forward.25} parent=5 // pred_check_branch
      %188 = sbr.rel (%p185) target = $region12
    $region11: #{templ_emb_forward.25} parent=5 // pred_region
      %s189 = ssub.s32 %s11, 1
      // Predicated region
      $region13: #{templ_emb_forward.25} parent=11 // pred_check
        %p190 = pneg %p126
      $region14: #{templ_emb_forward.25} parent=11 // pred_check_branch
        %192 = sbr.rel (%p190) target = $region16
      $region15: #{templ_emb_forward.25} parent=11 // pred_region
        _
      $region16: #{templ_emb_forward.25} parent=11 // pred_fallthru
        _
      // Predicated region
      $region17: #{templ_emb_forward.25} parent=11 // pred_check
        %p193 = pneg %p147
      $region18: #{templ_emb_forward.25} parent=11 // pred_check_branch
        %195 = sbr.rel (%p193) target = $region20
      $region19: #{templ_emb_forward.25} parent=11 // pred_region
        _
      $region20: #{templ_emb_forward.25} parent=11 // pred_fallthru
        _
    $region12: #{templ_emb_forward.25} parent=5 // pred_fallthru
      _
    %p196 = scmp.lt.s32.totalorder %s11, 16
    // Predicated region
    $region21: #{templ_emb_forward.25} parent=5 // pred_check
      %p197 = pneg %p196
    $region22: #{templ_emb_forward.25} parent=5 // pred_check_branch
      %199 = sbr.rel (%p197) target = $region24
    $region23: #{templ_emb_forward.25} parent=5 // pred_region
      // Predicated region
      $region25: #{templ_emb_forward.25} parent=23 // pred_check
        %p200 = pneg %p45
      $region26: #{templ_emb_forward.25} parent=23 // pred_check_branch
        %202 = sbr.rel (%p200) target = $region28
      $region27: #{templ_emb_forward.25} parent=23 // pred_region
        %p203 = scmp.lt.s32.totalorder %s18, 1
        %s204 = scalar_select %p203, %s18, 1
        %p205 = scmp.lt.s32.totalorder %s19, 7
        %s206 = scalar_select %p205, %s19, 7
        %s207 = smul.addr %s204, 8
        %s208 = sadd.s32 %s206, %s207
        %s209 = smul.addr %s208, 4
        %s210 = scalar_lea.vmem %s0, %s209
      $region28: #{templ_emb_forward.25} parent=23 // pred_fallthru
        _
      // Predicated region
      $region29: #{templ_emb_forward.25} parent=23 // pred_check
        %p211 = pneg %p73
      $region30: #{templ_emb_forward.25} parent=23 // pred_check_branch
        %213 = sbr.rel (%p211) target = $region32
      $region31: #{templ_emb_forward.25} parent=23 // pred_region
        %p214 = scmp.lt.s32.totalorder %s18, 1
        %s215 = scalar_select %p214, %s18, 1
        %p216 = scmp.lt.s32.totalorder %s19, 7
        %s217 = scalar_select %p216, %s19, 7
        %s218 = smul.addr %s215, 8
        %s219 = sadd.s32 %s217, %s218
        %s220 = scalar_lea.vmem %s1, %s219
      $region32: #{templ_emb_forward.25} parent=23 // pred_fallthru
        _
      // Predicated region
      $region33: #{templ_emb_forward.25} parent=23 // pred_check
        %p221 = pneg %p99
      $region34: #{templ_emb_forward.25} parent=23 // pred_check_branch
        %223 = sbr.rel (%p221) target = $region36
      $region35: #{templ_emb_forward.25} parent=23 // pred_region
        %p224 = scmp.lt.s32.totalorder %s18, 1
        %s225 = scalar_select %p224, %s18, 1
        %s226 = smul.addr %s225, 4
        %s227 = scalar_lea.vmem %s2, %s226
      $region36: #{templ_emb_forward.25} parent=23 // pred_fallthru
        _
    $region24: #{templ_emb_forward.25} parent=5 // pred_fallthru
      _
    %p228 = scmp.le.s32.totalorder 1, %s11
    %p229 = scmp.lt.s32.totalorder %s11, 17
    %p230 = pnand %p228, %p229
    %p231 = pneg %p230
    // Predicated region
    $region37: #{templ_emb_forward.25} parent=5 // pred_check
      _
    $region38: #{templ_emb_forward.25} parent=5 // pred_check_branch
      %233 = sbr.rel (%p230) target = $region40
    $region39: #{templ_emb_forward.25} parent=5 // pred_region
      %s234 = ssub.s32 %s11, 1
      %p235 = scmp.lt.s32.totalorder %s20, 1
      %s236 = scalar_select %p235, %s20, 1
      %p237 = scmp.lt.s32.totalorder %s21, 7
      %s238 = scalar_select %p237, %s21, 7
      %s239 = smul.addr %s236, 8
      %s240 = sadd.s32 %s238, %s239
      %s241 = smul.addr %s240, 4
      %s242 = scalar_lea.vmem %s0, %s241
      %p243 = pneg %p51
      %p244 = pneg %p48
      %p245 = scmp.lt.s32.totalorder %s20, 1
      %s246 = scalar_select %p245, %s20, 1
      %p247 = scmp.lt.s32.totalorder %s21, 7
      %s248 = scalar_select %p247, %s21, 7
      %s249 = smul.addr %s246, 8
      %s250 = sadd.s32 %s248, %s249
      %s251 = scalar_lea.vmem %s1, %s250
      %p252 = pneg %p79
      %p253 = pneg %p76
      %p254 = scmp.lt.s32.totalorder %s20, 1
      %s255 = scalar_select %p254, %s20, 1
      %s256 = smul.addr %s255, 4
      %s257 = scalar_lea.vmem %s2, %s256
      %p258 = pneg %p105
      %p259 = pneg %p102
      %p260 = pneg %p126
      %p261 = pneg %p123
      %p262 = pneg %p147
      %p263 = pneg %p144
      %p264 = pneg %p175
      %p265 = pneg %p172
      %p266 = scmp.lt.s32.totalorder %s20, 1
      %s267 = scalar_select %p266, %s20, 1
      %p268 = scmp.lt.s32.totalorder %s21, 7
      %s269 = scalar_select %p268, %s21, 7
      %s270 = smul.addr %s267, 8
      %s271 = sadd.s32 %s269, %s270
      %s272 = smul.addr %s271, 4
      %s273 = scalar_lea.vmem %s5, %s272
      %p274 = scmp.lt.s32.totalorder %s20, 1
      %s275 = scalar_select %p274, %s20, 1
      %p276 = scmp.lt.s32.totalorder %s21, 7
      %s277 = scalar_select %p276, %s21, 7
      %s278 = smul.addr %s275, 8
      %s279 = sadd.s32 %s277, %s278
      %s280 = smul.addr %s279, 4
      %s281 = scalar_lea.vmem %s0, %s280
      %p282 = scmp.lt.s32.totalorder %s20, 1
      %s283 = scalar_select %p282, %s20, 1
      %p284 = scmp.lt.s32.totalorder %s21, 7
      %s285 = scalar_select %p284, %s21, 7
      %s286 = smul.addr %s283, 8
      %s287 = sadd.s32 %s285, %s286
      %s288 = scalar_lea.vmem %s1, %s287
      %p289 = scmp.lt.s32.totalorder %s20, 1
      %s290 = scalar_select %p289, %s20, 1
      %s291 = smul.addr %s290, 4
      %s292 = scalar_lea.vmem %s2, %s291
      %p293 = scmp.lt.s32.totalorder %s20, 1
      %s294 = scalar_select %p293, %s20, 1
      %p295 = scmp.lt.s32.totalorder %s21, 7
      %s296 = scalar_select %p295, %s21, 7
      %s297 = smul.addr %s294, 8
      %s298 = sadd.s32 %s296, %s297
      %s299 = smul.addr %s298, 4
      %s300 = scalar_lea.vmem %s5, %s299
      %v302 = vld [vmem:[%s281] sm:$0xf]
      %v303 = vld [vmem:[%s3] sm:$0xf]
      %v304 = vld [vmem:[%s3 + $0x4] sm:$0xf]
      %v305 = vld [vmem:[%s3 + $0x8] sm:$0xf]
      %v306 = vld [vmem:[%s3 + $0xc] sm:$0xf]
      %v307 = vld [vmem:[%s3 + $0x10] sm:$0xf]
      %v308 = vld [vmem:[%s3 + $0x14] sm:$0x3]
      %v309 = vld [vmem:[%s288] sm:$0x1]
      %v310 = vunpack.c.l.bf16 %v309
      %v311 = vperm.slane %v310, 0
      %v318 = vunpack.c.l.b16 %v303
      %v319 = vunpack.c.l.b16 %v304
      %v320 = vunpack.c.l.b16 %v305
      %v321 = vunpack.c.l.b16 %v306
      %v322 = vunpack.c.l.b16 %v307
      %v323 = vunpack.c.l.b16 %v308
      %v324 = vpack.c.b16 %v319, %v318
      %v325 = vpack.c.b16 %v321, %v320
      %v326 = vpack.c.b16 %v323, %v322
      %vm329 = vcmask 359424
      %v331 = vsel %vm329, %v302, 0
      %vm333 = vcmask 1045504
      %v335 = vsel %vm333, %v326, 0
      %337 = vmatpush.bf16.msra.mxu0 0
      %338 = vmatpush.bf16.msra.mxu0 0
      %339 = vmatpush.bf16.msra.mxu0 0
      %340 = vmatpush.bf16.msra.mxu0 0
      %341 = vmatpush.bf16.msra.mxu0 0
      %342 = vmatpush.bf16.msra.mxu0 %v335
      %343 = vmatpush.bf16.msra.mxu0 %v325
      %344 = vmatpush.bf16.msra.mxu0 %v324
      %345 = vmatmul.bf16.gmra.mxu0 %v331
      %v346 = vpop.f32.mrf.mxu0
      %v347 = vadd.f32 %v311, %v346
      %v348 = vpop.f32.mrf.mxu0
      %349 = vdwg.mxu0
      %v350 = vld [vmem:[%s292] sm:$0xf]
      %v351 = vunpack.c.l.bf16 %v350
      %v352 = vadd.f32 %v347, %v351
      %v353 = vld [vmem:[%s4] sm:$0x1]
      %v354 = vunpack.c.l.bf16 %v353
      %v355 = vperm.slane %v354, 0
      %v356 = vadd.f32 %v352, %v355
      %v357 = vpack.c.bf16 %v356, %v356
      %vm358 = vcmask 519168
      %359 = vst.msk [vmem:[%s300] sm:$0xf] %vm358, %v357
      %p360 = scmp.lt.s32.totalorder %s20, 1
      %s361 = scalar_select %p360, %s20, 1
      %p362 = scmp.lt.s32.totalorder %s21, 7
      %s363 = scalar_select %p362, %s21, 7
      %s364 = smul.addr %s361, 8
      %s365 = sadd.s32 %s363, %s364
      %s366 = smul.addr %s365, 4
      %s367 = scalar_lea.vmem %s5, %s366
      // Predicated region
      $region41: #{templ_emb_forward.25} parent=39 // pred_check
        %p368 = pneg %p172
      $region42: #{templ_emb_forward.25} parent=39 // pred_check_branch
        %370 = sbr.rel (%p368) target = $region44
      $region43: #{templ_emb_forward.25} parent=39 // pred_region
        _
      $region44: #{templ_emb_forward.25} parent=39 // pred_fallthru
        _
    $region40: #{templ_emb_forward.25} parent=5 // pred_fallthru
      _
    %p371 = scmp.le.s32.totalorder 2, %s11
    // Predicated region
    $region45: #{templ_emb_forward.25} parent=5 // pred_check
      %p372 = pneg %p371
    $region46: #{templ_emb_forward.25} parent=5 // pred_check_branch
      %374 = sbr.rel (%p372) target = $region48
    $region47: #{templ_emb_forward.25} parent=5 // pred_region
      %s375 = ssub.s32 %s11, 2
      // Predicated region
      $region49: #{templ_emb_forward.25} parent=47 // pred_check
        %p376 = pneg %p178
      $region50: #{templ_emb_forward.25} parent=47 // pred_check_branch
        %378 = sbr.rel (%p376) target = $region52
      $region51: #{templ_emb_forward.25} parent=47 // pred_region
        %p379 = scmp.lt.s32.totalorder %s22, 1
        %s380 = scalar_select %p379, %s22, 1
        %p381 = scmp.lt.s32.totalorder %s23, 7
        %s382 = scalar_select %p381, %s23, 7
        %s383 = smul.addr %s380, 8
        %s384 = sadd.s32 %s382, %s383
        %s385 = smul.addr %s384, 4
        %s386 = scalar_lea.vmem %s5, %s385
      $region52: #{templ_emb_forward.25} parent=47 // pred_fallthru
        _
    $region48: #{templ_emb_forward.25} parent=5 // pred_fallthru
      _
  $region6: #{templ_emb_forward.25} parent=0 // loop_footer
    %s15 = sadd.s32 1, %s11
  $region7: #{templ_emb_forward.25} parent=0 // loop_footer_branch
    %10 = sbr.rel target = $region3
  $region8: #{templ_emb_forward.25} parent=0 // loop_exit
    _

// kernel: templ_emb_forward.24
$region0: #{templ_emb_forward.24}
  #allocation0 [shape = 'u32[]', space=smem, size = 0x4, offset = 0x4, fixed_abs, tag = 'smem constant byte address 0x4 - core index']
  #allocation1 [shape = 'u32[72,128]{1,0:T(1,128)}', space=vmem, size = 0x9000, scoped, tag = 'internal scratch']
  %s0 = inlined_call_operand.vmem [shape: bf16[16,32], index: 0, kind: input, shape index: {}]
  %s1 = inlined_call_operand.vmem [shape: bf16[32,128], index: 1, kind: input, shape index: {}]
  %s2 = inlined_call_operand.vmem [shape: bf16[16,128], index: 2, kind: output, shape index: {}]
  %s3 = sld [smem:[#allocation0]]
  $region18: #{templ_emb_forward.24} parent=0
    _
  %s5 = ssub.s32 1, %s3
  %s6 = scalar_select 0, %s5, %s3
  // Predicated region
  $region2: #{templ_emb_forward.24} parent=0 // pred_check
    _
  $region3: #{templ_emb_forward.24} parent=0 // pred_check_branch
    %8 = sbr.rel (0) target = $region5
  $region4: #{templ_emb_forward.24} parent=0 // pred_region
    _
  $region5: #{templ_emb_forward.24} parent=0 // pred_fallthru
    _
  // Predicated region
  $region6: #{templ_emb_forward.24} parent=0 // pred_check
    _
  $region7: #{templ_emb_forward.24} parent=0 // pred_check_branch
    %10 = sbr.rel (0) target = $region9
  $region8: #{templ_emb_forward.24} parent=0 // pred_region
    _
  $region9: #{templ_emb_forward.24} parent=0 // pred_fallthru
    _
  %v12 = vld [vmem:[%s0] sm:$0xf]
  %v13 = vld [vmem:[%s0 + $0x4] sm:$0xf]
  %v14 = vld [vmem:[%s1] sm:$0xf]
  %v15 = vld [vmem:[%s1 + $0x4] sm:$0xf]
  %v16 = vld [vmem:[%s1 + $0x8] sm:$0xf]
  %v17 = vld [vmem:[%s1 + $0xc] sm:$0xf]
  %v20 = vunpack.c.l.b16 %v12
  %v21 = vunpack.c.l.b16 %v13
  %v22 = vpack.c.b16 %v21, %v20
  %v27 = vunpack.c.l.b16 %v14
  %v28 = vunpack.c.l.b16 %v15
  %v29 = vunpack.c.l.b16 %v16
  %v30 = vunpack.c.l.b16 %v17
  %v31 = vpack.c.b16 %v28, %v27
  %v32 = vpack.c.b16 %v30, %v29
  %vm35 = vcmask 261120
  %v37 = vsel %vm35, %v22, 0
  %39 = vmatpush.bf16.msra.mxu0 0
  %40 = vmatpush.bf16.msra.mxu0 0
  %41 = vmatpush.bf16.msra.mxu0 0
  %42 = vmatpush.bf16.msra.mxu0 0
  %43 = vmatpush.bf16.msra.mxu0 0
  %44 = vmatpush.bf16.msra.mxu0 0
  %45 = vmatpush.bf16.msra.mxu0 %v32
  %46 = vmatpush.bf16.msra.mxu0 %v31
  %47 = vmatmul.bf16.gmra.mxu0 %v37
  %v48 = vpop.f32.mrf.mxu0
  %v49 = vadd.f32 0.0, %v48
  %v50 = vpop.f32.mrf.mxu0
  %v51 = vadd.f32 0.0, %v50
  %52 = vdwg.mxu0
  %v53 = vpack.c.bf16 %v49, %v49
  %v54 = vpack.c.bf16 %v51, %v51
  %55 = vst [vmem:[%s2] sm:$0xf] %v53
  %56 = vst [vmem:[%s2 + $0x4] sm:$0xf] %v54
  // Predicated region
  $region10: #{templ_emb_forward.24} parent=0 // pred_check
    _
  $region11: #{templ_emb_forward.24} parent=0 // pred_check_branch
    %58 = sbr.rel (0) target = $region13
  $region12: #{templ_emb_forward.24} parent=0 // pred_region
    _
  $region13: #{templ_emb_forward.24} parent=0 // pred_fallthru
    _
  // Predicated region
  $region14: #{templ_emb_forward.24} parent=0 // pred_check
    _
  $region15: #{templ_emb_forward.24} parent=0 // pred_check_branch
    %60 = sbr.rel (0) target = $region17
  $region16: #{templ_emb_forward.24} parent=0 // pred_region
    _
  $region17: #{templ_emb_forward.24} parent=0 // pred_fallthru
    _

// kernel: templ_emb_forward.27
$region0: #{templ_emb_forward.27}
  #allocation0 [shape = 'u32[]', space=smem, size = 0x4, offset = 0x4, fixed_abs, tag = 'smem constant byte address 0x4 - core index']
  #allocation1 [shape = 'u32[72,128]{1,0:T(1,128)}', space=vmem, size = 0x9000, scoped, tag = 'internal scratch']
  %s0 = inlined_call_operand.vmem [shape: bf16[128,64], index: 0, kind: input, shape index: {}]
  %s1 = inlined_call_operand.vmem [shape: bf16[1,64], index: 1, kind: input, shape index: {}]
  %s2 = inlined_call_operand.vmem [shape: bf16[1,64], index: 2, kind: input, shape index: {}]
  %s3 = inlined_call_operand.vmem [shape: bf16[64,256], index: 3, kind: input, shape index: {}]
  %s4 = inlined_call_operand.vmem [shape: bf16[1,256], index: 4, kind: input, shape index: {}]
  %s5 = inlined_call_operand.vmem [shape: bf16[128,256], index: 5, kind: output, shape index: {}]
  %s6 = sld [smem:[#allocation0]]
  $region30: #{templ_emb_forward.27} parent=0
    _
  %s8 = ssub.s32 1, %s6
  %s9 = scalar_select 0, %s8, %s6
  // Predicated region
  $region2: #{templ_emb_forward.27} parent=0 // pred_check
    _
  $region3: #{templ_emb_forward.27} parent=0 // pred_check_branch
    %11 = sbr.rel (0) target = $region5
  $region4: #{templ_emb_forward.27} parent=0 // pred_region
    _
  $region5: #{templ_emb_forward.27} parent=0 // pred_fallthru
    _
  // Predicated region
  $region6: #{templ_emb_forward.27} parent=0 // pred_check
    _
  $region7: #{templ_emb_forward.27} parent=0 // pred_check_branch
    %13 = sbr.rel (0) target = $region9
  $region8: #{templ_emb_forward.27} parent=0 // pred_region
    _
  $region9: #{templ_emb_forward.27} parent=0 // pred_fallthru
    _
  // Predicated region
  $region10: #{templ_emb_forward.27} parent=0 // pred_check
    _
  $region11: #{templ_emb_forward.27} parent=0 // pred_check_branch
    %15 = sbr.rel (0) target = $region13
  $region12: #{templ_emb_forward.27} parent=0 // pred_region
    _
  $region13: #{templ_emb_forward.27} parent=0 // pred_fallthru
    _
  // Predicated region
  $region14: #{templ_emb_forward.27} parent=0 // pred_check
    _
  $region15: #{templ_emb_forward.27} parent=0 // pred_check_branch
    %17 = sbr.rel (0) target = $region17
  $region16: #{templ_emb_forward.27} parent=0 // pred_region
    _
  $region17: #{templ_emb_forward.27} parent=0 // pred_fallthru
    _
  // Predicated region
  $region18: #{templ_emb_forward.27} parent=0 // pred_check
    _
  $region19: #{templ_emb_forward.27} parent=0 // pred_check_branch
    %19 = sbr.rel (0) target = $region21
  $region20: #{templ_emb_forward.27} parent=0 // pred_region
    _
  $region21: #{templ_emb_forward.27} parent=0 // pred_fallthru
    _
  %v21 = vld [vmem:[%s0] sm:$0xf]
  %v22 = vld [vmem:[%s0 + $0x4] sm:$0xf]
  %v23 = vld [vmem:[%s0 + $0x8] sm:$0xf]
  %v24 = vld [vmem:[%s0 + $0xc] sm:$0xf]
  %v25 = vld [vmem:[%s0 + $0x10] sm:$0xf]
  %v26 = vld [vmem:[%s0 + $0x14] sm:$0xf]
  %v27 = vld [vmem:[%s0 + $0x18] sm:$0xf]
  %v28 = vld [vmem:[%s0 + $0x1c] sm:$0xf]
  %v29 = vld [vmem:[%s0 + $0x20] sm:$0xf]
  %v30 = vld [vmem:[%s0 + $0x24] sm:$0xf]
  %v31 = vld [vmem:[%s0 + $0x28] sm:$0xf]
  %v32 = vld [vmem:[%s0 + $0x2c] sm:$0xf]
  %v33 = vld [vmem:[%s0 + $0x30] sm:$0xf]
  %v34 = vld [vmem:[%s0 + $0x34] sm:$0xf]
  %v35 = vld [vmem:[%s0 + $0x38] sm:$0xf]
  %v36 = vld [vmem:[%s0 + $0x3c] sm:$0xf]
  %v37 = vunpack.c.l.bf16 %v21
  %v38 = vunpack.c.l.bf16 %v22
  %v39 = vunpack.c.l.bf16 %v23
  %v40 = vunpack.c.l.bf16 %v24
  %v41 = vunpack.c.l.bf16 %v25
  %v42 = vunpack.c.l.bf16 %v26
  %v43 = vunpack.c.l.bf16 %v27
  %v44 = vunpack.c.l.bf16 %v28
  %v45 = vunpack.c.l.bf16 %v29
  %v46 = vunpack.c.l.bf16 %v30
  %v47 = vunpack.c.l.bf16 %v31
  %v48 = vunpack.c.l.bf16 %v32
  %v49 = vunpack.c.l.bf16 %v33
  %v50 = vunpack.c.l.bf16 %v34
  %v51 = vunpack.c.l.bf16 %v35
  %v52 = vunpack.c.l.bf16 %v36
  %vm53 = vcmask 523264
  %v54 = vsel %vm53, %v37, 0.0
  %55 = vadd.xlane.f32.xlu0 %v54
  %v56 = vpop.xlane.xlu0 %55
  %v57 = vsel %vm53, %v38, 0.0
  %58 = vadd.xlane.f32.xlu0 %v57
  %v59 = vpop.xlane.xlu0 %58
  %v60 = vsel %vm53, %v39, 0.0
  %61 = vadd.xlane.f32.xlu0 %v60
  %v62 = vpop.xlane.xlu0 %61
  %v63 = vsel %vm53, %v40, 0.0
  %64 = vadd.xlane.f32.xlu0 %v63
  %v65 = vpop.xlane.xlu0 %64
  %v66 = vsel %vm53, %v41, 0.0
  %67 = vadd.xlane.f32.xlu0 %v66
  %v68 = vpop.xlane.xlu0 %67
  %v69 = vsel %vm53, %v42, 0.0
  %70 = vadd.xlane.f32.xlu0 %v69
  %v71 = vpop.xlane.xlu0 %70
  %v72 = vsel %vm53, %v43, 0.0
  %73 = vadd.xlane.f32.xlu0 %v72
  %v74 = vpop.xlane.xlu0 %73
  %v75 = vsel %vm53, %v44, 0.0
  %76 = vadd.xlane.f32.xlu0 %v75
  %v77 = vpop.xlane.xlu0 %76
  %v78 = vsel %vm53, %v45, 0.0
  %79 = vadd.xlane.f32.xlu0 %v78
  %v80 = vpop.xlane.xlu0 %79
  %v81 = vsel %vm53, %v46, 0.0
  %82 = vadd.xlane.f32.xlu0 %v81
  %v83 = vpop.xlane.xlu0 %82
  %v84 = vsel %vm53, %v47, 0.0
  %85 = vadd.xlane.f32.xlu0 %v84
  %v86 = vpop.xlane.xlu0 %85
  %v87 = vsel %vm53, %v48, 0.0
  %88 = vadd.xlane.f32.xlu0 %v87
  %v89 = vpop.xlane.xlu0 %88
  %v90 = vsel %vm53, %v49, 0.0
  %91 = vadd.xlane.f32.xlu0 %v90
  %v92 = vpop.xlane.xlu0 %91
  %v93 = vsel %vm53, %v50, 0.0
  %94 = vadd.xlane.f32.xlu0 %v93
  %v95 = vpop.xlane.xlu0 %94
  %v96 = vsel %vm53, %v51, 0.0
  %97 = vadd.xlane.f32.xlu0 %v96
  %v98 = vpop.xlane.xlu0 %97
  %v99 = vsel %vm53, %v52, 0.0
  %100 = vadd.xlane.f32.xlu0 %v99
  %v101 = vpop.xlane.xlu0 %100
  %v102 = vrcp.pop 64.0
  %v103 = vmul.f32 64.0, %v102
  %v104 = vsub.f32 1.0, %v103
  %v105 = vmul.f32 %v102, %v104
  %v106 = vadd.f32 %v102, %v105
  %vm107 = vweird.f32 %v102
  %v108 = vsel %vm107, %v102, %v106
  %v109 = vmul.f32 %v56, %v108
  %v110 = vmul.f32 %v59, %v108
  %v111 = vmul.f32 %v62, %v108
  %v112 = vmul.f32 %v65, %v108
  %v113 = vmul.f32 %v68, %v108
  %v114 = vmul.f32 %v71, %v108
  %v115 = vmul.f32 %v74, %v108
  %v116 = vmul.f32 %v77, %v108
  %v117 = vmul.f32 %v80, %v108
  %v118 = vmul.f32 %v83, %v108
  %v119 = vmul.f32 %v86, %v108
  %v120 = vmul.f32 %v89, %v108
  %v121 = vmul.f32 %v92, %v108
  %v122 = vmul.f32 %v95, %v108
  %v123 = vmul.f32 %v98, %v108
  %v124 = vmul.f32 %v101, %v108
  %v125 = vsub.f32 %v37, %v109
  %v126 = vsub.f32 %v38, %v110
  %v127 = vsub.f32 %v39, %v111
  %v128 = vsub.f32 %v40, %v112
  %v129 = vsub.f32 %v41, %v113
  %v130 = vsub.f32 %v42, %v114
  %v131 = vsub.f32 %v43, %v115
  %v132 = vsub.f32 %v44, %v116
  %v133 = vsub.f32 %v45, %v117
  %v134 = vsub.f32 %v46, %v118
  %v135 = vsub.f32 %v47, %v119
  %v136 = vsub.f32 %v48, %v120
  %v137 = vsub.f32 %v49, %v121
  %v138 = vsub.f32 %v50, %v122
  %v139 = vsub.f32 %v51, %v123
  %v140 = vsub.f32 %v52, %v124
  %v141 = vmul.f32 %v125, %v125
  %v142 = vmul.f32 %v126, %v126
  %v143 = vmul.f32 %v127, %v127
  %v144 = vmul.f32 %v128, %v128
  %v145 = vmul.f32 %v129, %v129
  %v146 = vmul.f32 %v130, %v130
  %v147 = vmul.f32 %v131, %v131
  %v148 = vmul.f32 %v132, %v132
  %v149 = vmul.f32 %v133, %v133
  %v150 = vmul.f32 %v134, %v134
  %v151 = vmul.f32 %v135, %v135
  %v152 = vmul.f32 %v136, %v136
  %v153 = vmul.f32 %v137, %v137
  %v154 = vmul.f32 %v138, %v138
  %v155 = vmul.f32 %v139, %v139
  %v156 = vmul.f32 %v140, %v140
  %v157 = vsel %vm53, %v141, 0.0
  %158 = vadd.xlane.f32.xlu0 %v157
  %v159 = vpop.xlane.xlu0 %158
  %v160 = vsel %vm53, %v142, 0.0
  %161 = vadd.xlane.f32.xlu0 %v160
  %v162 = vpop.xlane.xlu0 %161
  %v163 = vsel %vm53, %v143, 0.0
  %164 = vadd.xlane.f32.xlu0 %v163
  %v165 = vpop.xlane.xlu0 %164
  %v166 = vsel %vm53, %v144, 0.0
  %167 = vadd.xlane.f32.xlu0 %v166
  %v168 = vpop.xlane.xlu0 %167
  %v169 = vsel %vm53, %v145, 0.0
  %170 = vadd.xlane.f32.xlu0 %v169
  %v171 = vpop.xlane.xlu0 %170
  %v172 = vsel %vm53, %v146, 0.0
  %173 = vadd.xlane.f32.xlu0 %v172
  %v174 = vpop.xlane.xlu0 %173
  %v175 = vsel %vm53, %v147, 0.0
  %176 = vadd.xlane.f32.xlu0 %v175
  %v177 = vpop.xlane.xlu0 %176
  %v178 = vsel %vm53, %v148, 0.0
  %179 = vadd.xlane.f32.xlu0 %v178
  %v180 = vpop.xlane.xlu0 %179
  %v181 = vsel %vm53, %v149, 0.0
  %182 = vadd.xlane.f32.xlu0 %v181
  %v183 = vpop.xlane.xlu0 %182
  %v184 = vsel %vm53, %v150, 0.0
  %185 = vadd.xlane.f32.xlu0 %v184
  %v186 = vpop.xlane.xlu0 %185
  %v187 = vsel %vm53, %v151, 0.0
  %188 = vadd.xlane.f32.xlu0 %v187
  %v189 = vpop.xlane.xlu0 %188
  %v190 = vsel %vm53, %v152, 0.0
  %191 = vadd.xlane.f32.xlu0 %v190
  %v192 = vpop.xlane.xlu0 %191
  %v193 = vsel %vm53, %v153, 0.0
  %194 = vadd.xlane.f32.xlu0 %v193
  %v195 = vpop.xlane.xlu0 %194
  %v196 = vsel %vm53, %v154, 0.0
  %197 = vadd.xlane.f32.xlu0 %v196
  %v198 = vpop.xlane.xlu0 %197
  %v199 = vsel %vm53, %v155, 0.0
  %200 = vadd.xlane.f32.xlu0 %v199
  %v201 = vpop.xlane.xlu0 %200
  %v202 = vsel %vm53, %v156, 0.0
  %203 = vadd.xlane.f32.xlu0 %v202
  %v204 = vpop.xlane.xlu0 %203
  %v205 = vmul.f32 %v159, %v108
  %v206 = vmul.f32 %v162, %v108
  %v207 = vmul.f32 %v165, %v108
  %v208 = vmul.f32 %v168, %v108
  %v209 = vmul.f32 %v171, %v108
  %v210 = vmul.f32 %v174, %v108
  %v211 = vmul.f32 %v177, %v108
  %v212 = vmul.f32 %v180, %v108
  %v213 = vmul.f32 %v183, %v108
  %v214 = vmul.f32 %v186, %v108
  %v215 = vmul.f32 %v189, %v108
  %v216 = vmul.f32 %v192, %v108
  %v217 = vmul.f32 %v195, %v108
  %v218 = vmul.f32 %v198, %v108
  %v219 = vmul.f32 %v201, %v108
  %v220 = vmul.f32 %v204, %v108
  %v221 = vadd.f32 %v205, 1e-05
  %v222 = vadd.f32 %v206, 1e-05
  %v223 = vadd.f32 %v207, 1e-05
  %v224 = vadd.f32 %v208, 1e-05
  %v225 = vadd.f32 %v209, 1e-05
  %v226 = vadd.f32 %v210, 1e-05
  %v227 = vadd.f32 %v211, 1e-05
  %v228 = vadd.f32 %v212, 1e-05
  %v229 = vadd.f32 %v213, 1e-05
  %v230 = vadd.f32 %v214, 1e-05
  %v231 = vadd.f32 %v215, 1e-05
  %v232 = vadd.f32 %v216, 1e-05
  %v233 = vadd.f32 %v217, 1e-05
  %v234 = vadd.f32 %v218, 1e-05
  %v235 = vadd.f32 %v219, 1e-05
  %v236 = vadd.f32 %v220, 1e-05
  %v237 = vrsqrt.pop %v221
  %v238 = vmul.f32 %v237, %v221
  %v239 = vmul.f32 %v238, %v237
  %v240 = vmul.f32 0.5, %v239
  %v241 = vsub.f32 1.5, %v240
  %v242 = vmul.f32 %v237, %v241
  %vm243 = vweird.f32 %v221
  %vm244 = vweird.f32 %v237
  %vm245 = vmor %vm243, %vm244
  %v246 = vsel %vm245, %v237, %v242
  %v247 = vrsqrt.pop %v222
  %v248 = vmul.f32 %v247, %v222
  %v249 = vmul.f32 %v248, %v247
  %v250 = vmul.f32 0.5, %v249
  %v251 = vsub.f32 1.5, %v250
  %v252 = vmul.f32 %v247, %v251
  %vm253 = vweird.f32 %v222
  %vm254 = vweird.f32 %v247
  %vm255 = vmor %vm253, %vm254
  %v256 = vsel %vm255, %v247, %v252
  %v257 = vrsqrt.pop %v223
  %v258 = vmul.f32 %v257, %v223
  %v259 = vmul.f32 %v258, %v257
  %v260 = vmul.f32 0.5, %v259
  %v261 = vsub.f32 1.5, %v260
  %v262 = vmul.f32 %v257, %v261
  %vm263 = vweird.f32 %v223
  %vm264 = vweird.f32 %v257
  %vm265 = vmor %vm263, %vm264
  %v266 = vsel %vm265, %v257, %v262
  %v267 = vrsqrt.pop %v224
  %v268 = vmul.f32 %v267, %v224
  %v269 = vmul.f32 %v268, %v267
  %v270 = vmul.f32 0.5, %v269
  %v271 = vsub.f32 1.5, %v270
  %v272 = vmul.f32 %v267, %v271
  %vm273 = vweird.f32 %v224
  %vm274 = vweird.f32 %v267
  %vm275 = vmor %vm273, %vm274
  %v276 = vsel %vm275, %v267, %v272
  %v277 = vrsqrt.pop %v225
  %v278 = vmul.f32 %v277, %v225
  %v279 = vmul.f32 %v278, %v277
  %v280 = vmul.f32 0.5, %v279
  %v281 = vsub.f32 1.5, %v280
  %v282 = vmul.f32 %v277, %v281
  %vm283 = vweird.f32 %v225
  %vm284 = vweird.f32 %v277
  %vm285 = vmor %vm283, %vm284
  %v286 = vsel %vm285, %v277, %v282
  %v287 = vrsqrt.pop %v226
  %v288 = vmul.f32 %v287, %v226
  %v289 = vmul.f32 %v288, %v287
  %v290 = vmul.f32 0.5, %v289
  %v291 = vsub.f32 1.5, %v290
  %v292 = vmul.f32 %v287, %v291
  %vm293 = vweird.f32 %v226
  %vm294 = vweird.f32 %v287
  %vm295 = vmor %vm293, %vm294
  %v296 = vsel %vm295, %v287, %v292
  %v297 = vrsqrt.pop %v227
  %v298 = vmul.f32 %v297, %v227
  %v299 = vmul.f32 %v298, %v297
  %v300 = vmul.f32 0.5, %v299
  %v301 = vsub.f32 1.5, %v300
  %v302 = vmul.f32 %v297, %v301
  %vm303 = vweird.f32 %v227
  %vm304 = vweird.f32 %v297
  %vm305 = vmor %vm303, %vm304
  %v306 = vsel %vm305, %v297, %v302
  %v307 = vrsqrt.pop %v228
  %v308 = vmul.f32 %v307, %v228
  %v309 = vmul.f32 %v308, %v307
  %v310 = vmul.f32 0.5, %v309
  %v311 = vsub.f32 1.5, %v310
  %v312 = vmul.f32 %v307, %v311
  %vm313 = vweird.f32 %v228
  %vm314 = vweird.f32 %v307
  %vm315 = vmor %vm313, %vm314
  %v316 = vsel %vm315, %v307, %v312
  %v317 = vrsqrt.pop %v229
  %v318 = vmul.f32 %v317, %v229
  %v319 = vmul.f32 %v318, %v317
  %v320 = vmul.f32 0.5, %v319
  %v321 = vsub.f32 1.5, %v320
  %v322 = vmul.f32 %v317, %v321
  %vm323 = vweird.f32 %v229
  %vm324 = vweird.f32 %v317
  %vm325 = vmor %vm323, %vm324
  %v326 = vsel %vm325, %v317, %v322
  %v327 = vrsqrt.pop %v230
  %v328 = vmul.f32 %v327, %v230
  %v329 = vmul.f32 %v328, %v327
  %v330 = vmul.f32 0.5, %v329
  %v331 = vsub.f32 1.5, %v330
  %v332 = vmul.f32 %v327, %v331
  %vm333 = vweird.f32 %v230
  %vm334 = vweird.f32 %v327
  %vm335 = vmor %vm333, %vm334
  %v336 = vsel %vm335, %v327, %v332
  %v337 = vrsqrt.pop %v231
  %v338 = vmul.f32 %v337, %v231
  %v339 = vmul.f32 %v338, %v337
  %v340 = vmul.f32 0.5, %v339
  %v341 = vsub.f32 1.5, %v340
  %v342 = vmul.f32 %v337, %v341
  %vm343 = vweird.f32 %v231
  %vm344 = vweird.f32 %v337
  %vm345 = vmor %vm343, %vm344
  %v346 = vsel %vm345, %v337, %v342
  %v347 = vrsqrt.pop %v232
  %v348 = vmul.f32 %v347, %v232
  %v349 = vmul.f32 %v348, %v347
  %v350 = vmul.f32 0.5, %v349
  %v351 = vsub.f32 1.5, %v350
  %v352 = vmul.f32 %v347, %v351
  %vm353 = vweird.f32 %v232
  %vm354 = vweird.f32 %v347
  %vm355 = vmor %vm353, %vm354
  %v356 = vsel %vm355, %v347, %v352
  %v357 = vrsqrt.pop %v233
  %v358 = vmul.f32 %v357, %v233
  %v359 = vmul.f32 %v358, %v357
  %v360 = vmul.f32 0.5, %v359
  %v361 = vsub.f32 1.5, %v360
  %v362 = vmul.f32 %v357, %v361
  %vm363 = vweird.f32 %v233
  %vm364 = vweird.f32 %v357
  %vm365 = vmor %vm363, %vm364
  %v366 = vsel %vm365, %v357, %v362
  %v367 = vrsqrt.pop %v234
  %v368 = vmul.f32 %v367, %v234
  %v369 = vmul.f32 %v368, %v367
  %v370 = vmul.f32 0.5, %v369
  %v371 = vsub.f32 1.5, %v370
  %v372 = vmul.f32 %v367, %v371
  %vm373 = vweird.f32 %v234
  %vm374 = vweird.f32 %v367
  %vm375 = vmor %vm373, %vm374
  %v376 = vsel %vm375, %v367, %v372
  %v377 = vrsqrt.pop %v235
  %v378 = vmul.f32 %v377, %v235
  %v379 = vmul.f32 %v378, %v377
  %v380 = vmul.f32 0.5, %v379
  %v381 = vsub.f32 1.5, %v380
  %v382 = vmul.f32 %v377, %v381
  %vm383 = vweird.f32 %v235
  %vm384 = vweird.f32 %v377
  %vm385 = vmor %vm383, %vm384
  %v386 = vsel %vm385, %v377, %v382
  %v387 = vrsqrt.pop %v236
  %v388 = vmul.f32 %v387, %v236
  %v389 = vmul.f32 %v388, %v387
  %v390 = vmul.f32 0.5, %v389
  %v391 = vsub.f32 1.5, %v390
  %v392 = vmul.f32 %v387, %v391
  %vm393 = vweird.f32 %v236
  %vm394 = vweird.f32 %v387
  %vm395 = vmor %vm393, %vm394
  %v396 = vsel %vm395, %v387, %v392
  %v397 = vmul.f32 %v125, %v246
  %v398 = vmul.f32 %v126, %v256
  %v399 = vmul.f32 %v127, %v266
  %v400 = vmul.f32 %v128, %v276
  %v401 = vmul.f32 %v129, %v286
  %v402 = vmul.f32 %v130, %v296
  %v403 = vmul.f32 %v131, %v306
  %v404 = vmul.f32 %v132, %v316
  %v405 = vmul.f32 %v133, %v326
  %v406 = vmul.f32 %v134, %v336
  %v407 = vmul.f32 %v135, %v346
  %v408 = vmul.f32 %v136, %v356
  %v409 = vmul.f32 %v137, %v366
  %v410 = vmul.f32 %v138, %v376
  %v411 = vmul.f32 %v139, %v386
  %v412 = vmul.f32 %v140, %v396
  %v413 = vld [vmem:[%s1] sm:$0x1]
  %v414 = vunpack.c.l.bf16 %v413
  %v415 = vperm.slane %v414, 0
  %v416 = vmul.f32 %v397, %v415
  %v417 = vmul.f32 %v398, %v415
  %v418 = vmul.f32 %v399, %v415
  %v419 = vmul.f32 %v400, %v415
  %v420 = vmul.f32 %v401, %v415
  %v421 = vmul.f32 %v402, %v415
  %v422 = vmul.f32 %v403, %v415
  %v423 = vmul.f32 %v404, %v415
  %v424 = vmul.f32 %v405, %v415
  %v425 = vmul.f32 %v406, %v415
  %v426 = vmul.f32 %v407, %v415
  %v427 = vmul.f32 %v408, %v415
  %v428 = vmul.f32 %v409, %v415
  %v429 = vmul.f32 %v410, %v415
  %v430 = vmul.f32 %v411, %v415
  %v431 = vmul.f32 %v412, %v415
  %v432 = vld [vmem:[%s2] sm:$0x1]
  %v433 = vunpack.c.l.bf16 %v432
  %v434 = vperm.slane %v433, 0
  %v435 = vadd.f32 %v416, %v434
  %v436 = vadd.f32 %v417, %v434
  %v437 = vadd.f32 %v418, %v434
  %v438 = vadd.f32 %v419, %v434
  %v439 = vadd.f32 %v420, %v434
  %v440 = vadd.f32 %v421, %v434
  %v441 = vadd.f32 %v422, %v434
  %v442 = vadd.f32 %v423, %v434
  %v443 = vadd.f32 %v424, %v434
  %v444 = vadd.f32 %v425, %v434
  %v445 = vadd.f32 %v426, %v434
  %v446 = vadd.f32 %v427, %v434
  %v447 = vadd.f32 %v428, %v434
  %v448 = vadd.f32 %v429, %v434
  %v449 = vadd.f32 %v430, %v434
  %v450 = vadd.f32 %v431, %v434
  %v451 = vpack.c.bf16 %v436, %v435
  %v452 = vpack.c.bf16 %v438, %v437
  %v453 = vpack.c.bf16 %v440, %v439
  %v454 = vpack.c.bf16 %v442, %v441
  %v455 = vpack.c.bf16 %v444, %v443
  %v456 = vpack.c.bf16 %v446, %v445
  %v457 = vpack.c.bf16 %v448, %v447
  %v458 = vpack.c.bf16 %v450, %v449
  %v459 = vld [vmem:[%s3] sm:$0xff]
  %v460 = vld [vmem:[%s3 + $0x8] sm:$0xff]
  %v461 = vld [vmem:[%s3 + $0x10] sm:$0xff]
  %v462 = vld [vmem:[%s3 + $0x18] sm:$0xff]
  %v463 = vld [vmem:[%s3 + $0x20] sm:$0xff]
  %v464 = vld [vmem:[%s3 + $0x28] sm:$0xff]
  %v465 = vld [vmem:[%s3 + $0x30] sm:$0xff]
  %v466 = vld [vmem:[%s3 + $0x38] sm:$0xff]
  %v467 = vld [vmem:[%s4] sm:$0x3]
  %v468 = vunpack.c.l.bf16 %v467
  %v470 = vperm.slane %v468, 0
  %v471 = vperm.slane %v468, 2
  %v474 = vperm.slane %v470, 0
  %v475 = vperm.slane %v471, 0
  %v484 = vunpack.c.l.b16 %v459
  %v485 = vunpack.c.h.b16 %v459
  %v486 = vunpack.c.l.b16 %v460
  %v487 = vunpack.c.h.b16 %v460
  %v488 = vunpack.c.l.b16 %v461
  %v489 = vunpack.c.h.b16 %v461
  %v490 = vunpack.c.l.b16 %v462
  %v491 = vunpack.c.h.b16 %v462
  %v492 = vunpack.c.l.b16 %v463
  %v493 = vunpack.c.h.b16 %v463
  %v494 = vunpack.c.l.b16 %v464
  %v495 = vunpack.c.h.b16 %v464
  %v496 = vunpack.c.l.b16 %v465
  %v497 = vunpack.c.h.b16 %v465
  %v498 = vunpack.c.l.b16 %v466
  %v499 = vunpack.c.h.b16 %v466
  %v500 = vpack.c.b16 %v486, %v484
  %v501 = vpack.c.b16 %v487, %v485
  %v502 = vpack.c.b16 %v490, %v488
  %v503 = vpack.c.b16 %v491, %v489
  %v504 = vpack.c.b16 %v494, %v492
  %v505 = vpack.c.b16 %v495, %v493
  %v506 = vpack.c.b16 %v498, %v496
  %v507 = vpack.c.b16 %v499, %v497
  %v517 = vsel %vm53, %v451, 0
  %v520 = vsel %vm53, %v452, 0
  %v523 = vsel %vm53, %v453, 0
  %v526 = vsel %vm53, %v454, 0
  %v529 = vsel %vm53, %v455, 0
  %v532 = vsel %vm53, %v456, 0
  %v535 = vsel %vm53, %v457, 0
  %v538 = vsel %vm53, %v458, 0
  %540 = vmatpush.bf16.msra.mxu0 0
  %541 = vmatpush.bf16.msra.mxu0 0
  %542 = vmatpush.bf16.msra.mxu0 0
  %543 = vmatpush.bf16.msra.mxu0 0
  %544 = vmatpush.bf16.msra.mxu0 %v506
  %545 = vmatpush.bf16.msra.mxu0 %v504
  %546 = vmatpush.bf16.msra.mxu0 %v502
  %547 = vmatpush.bf16.msra.mxu0 %v500
  %548 = vmatmul.bf16.gmra.mxu0 %v517
  %v549 = vpop.f32.mrf.mxu0
  %v550 = vadd.f32 %v474, %v549
  %v551 = vpop.f32.mrf.mxu0
  %v552 = vadd.f32 %v474, %v551
  %553 = vmatmul.bf16.gmra.mxu0 %v520
  %v554 = vpop.f32.mrf.mxu0
  %v555 = vadd.f32 %v474, %v554
  %v556 = vpop.f32.mrf.mxu0
  %v557 = vadd.f32 %v474, %v556
  %558 = vmatmul.bf16.gmra.mxu0 %v523
  %v559 = vpop.f32.mrf.mxu0
  %v560 = vadd.f32 %v474, %v559
  %v561 = vpop.f32.mrf.mxu0
  %v562 = vadd.f32 %v474, %v561
  %563 = vmatmul.bf16.gmra.mxu0 %v526
  %v564 = vpop.f32.mrf.mxu0
  %v565 = vadd.f32 %v474, %v564
  %v566 = vpop.f32.mrf.mxu0
  %v567 = vadd.f32 %v474, %v566
  %568 = vmatmul.bf16.gmra.mxu0 %v529
  %v569 = vpop.f32.mrf.mxu0
  %v570 = vadd.f32 %v474, %v569
  %v571 = vpop.f32.mrf.mxu0
  %v572 = vadd.f32 %v474, %v571
  %573 = vmatmul.bf16.gmra.mxu0 %v532
  %v574 = vpop.f32.mrf.mxu0
  %v575 = vadd.f32 %v474, %v574
  %v576 = vpop.f32.mrf.mxu0
  %v577 = vadd.f32 %v474, %v576
  %578 = vmatmul.bf16.gmra.mxu0 %v535
  %v579 = vpop.f32.mrf.mxu0
  %v580 = vadd.f32 %v474, %v579
  %v581 = vpop.f32.mrf.mxu0
  %v582 = vadd.f32 %v474, %v581
  %583 = vmatmul.bf16.gmra.mxu0 %v538
  %v584 = vpop.f32.mrf.mxu0
  %v585 = vadd.f32 %v474, %v584
  %v586 = vpop.f32.mrf.mxu0
  %v587 = vadd.f32 %v474, %v586
  %588 = vdwg.mxu0
  %589 = vmatpush.bf16.msra.mxu0 0
  %590 = vmatpush.bf16.msra.mxu0 0
  %591 = vmatpush.bf16.msra.mxu0 0
  %592 = vmatpush.bf16.msra.mxu0 0
  %593 = vmatpush.bf16.msra.mxu0 %v507
  %594 = vmatpush.bf16.msra.mxu0 %v505
  %595 = vmatpush.bf16.msra.mxu0 %v503
  %596 = vmatpush.bf16.msra.mxu0 %v501
  %597 = vmatmul.bf16.gmra.mxu0 %v517
  %v598 = vpop.f32.mrf.mxu0
  %v599 = vadd.f32 %v475, %v598
  %v600 = vpop.f32.mrf.mxu0
  %v601 = vadd.f32 %v475, %v600
  %602 = vmatmul.bf16.gmra.mxu0 %v520
  %v603 = vpop.f32.mrf.mxu0
  %v604 = vadd.f32 %v475, %v603
  %v605 = vpop.f32.mrf.mxu0
  %v606 = vadd.f32 %v475, %v605
  %607 = vmatmul.bf16.gmra.mxu0 %v523
  %v608 = vpop.f32.mrf.mxu0
  %v609 = vadd.f32 %v475, %v608
  %v610 = vpop.f32.mrf.mxu0
  %v611 = vadd.f32 %v475, %v610
  %612 = vmatmul.bf16.gmra.mxu0 %v526
  %v613 = vpop.f32.mrf.mxu0
  %v614 = vadd.f32 %v475, %v613
  %v615 = vpop.f32.mrf.mxu0
  %v616 = vadd.f32 %v475, %v615
  %617 = vmatmul.bf16.gmra.mxu0 %v529
  %v618 = vpop.f32.mrf.mxu0
  %v619 = vadd.f32 %v475, %v618
  %v620 = vpop.f32.mrf.mxu0
  %v621 = vadd.f32 %v475, %v620
  %622 = vmatmul.bf16.gmra.mxu0 %v532
  %v623 = vpop.f32.mrf.mxu0
  %v624 = vadd.f32 %v475, %v623
  %v625 = vpop.f32.mrf.mxu0
  %v626 = vadd.f32 %v475, %v625
  %627 = vmatmul.bf16.gmra.mxu0 %v535
  %v628 = vpop.f32.mrf.mxu0
  %v629 = vadd.f32 %v475, %v628
  %v630 = vpop.f32.mrf.mxu0
  %v631 = vadd.f32 %v475, %v630
  %632 = vmatmul.bf16.gmra.mxu0 %v538
  %v633 = vpop.f32.mrf.mxu0
  %v634 = vadd.f32 %v475, %v633
  %v635 = vpop.f32.mrf.mxu0
  %v636 = vadd.f32 %v475, %v635
  %637 = vdwg.mxu0
  %v638 = vlaneseq
  %v639 = vand.u32 %v638, 127
  %v640 = vadd.s32 %v639, 128
  %vm641 = vcmp.ge.s32.totalorder %v639, 192
  %vm642 = vcmp.ge.s32.totalorder %v640, 192
  %v643 = vxor.u32 %v550, 2147483648
  %v644 = vxor.u32 %v599, 2147483648
  %v645 = vxor.u32 %v552, 2147483648
  %v646 = vxor.u32 %v601, 2147483648
  %v647 = vxor.u32 %v555, 2147483648
  %v648 = vxor.u32 %v604, 2147483648
  %v649 = vxor.u32 %v557, 2147483648
  %v650 = vxor.u32 %v606, 2147483648
  %v651 = vxor.u32 %v560, 2147483648
  %v652 = vxor.u32 %v609, 2147483648
  %v653 = vxor.u32 %v562, 2147483648
  %v654 = vxor.u32 %v611, 2147483648
  %v655 = vxor.u32 %v565, 2147483648
  %v656 = vxor.u32 %v614, 2147483648
  %v657 = vxor.u32 %v567, 2147483648
  %v658 = vxor.u32 %v616, 2147483648
  %v659 = vxor.u32 %v570, 2147483648
  %v660 = vxor.u32 %v619, 2147483648
  %v661 = vxor.u32 %v572, 2147483648
  %v662 = vxor.u32 %v621, 2147483648
  %v663 = vxor.u32 %v575, 2147483648
  %v664 = vxor.u32 %v624, 2147483648
  %v665 = vxor.u32 %v577, 2147483648
  %v666 = vxor.u32 %v626, 2147483648
  %v667 = vxor.u32 %v580, 2147483648
  %v668 = vxor.u32 %v629, 2147483648
  %v669 = vxor.u32 %v582, 2147483648
  %v670 = vxor.u32 %v631, 2147483648
  %v671 = vxor.u32 %v585, 2147483648
  %v672 = vxor.u32 %v634, 2147483648
  %v673 = vxor.u32 %v587, 2147483648
  %v674 = vxor.u32 %v636, 2147483648
  %v675 = vmul.f32 %v643, 1.442695
  %v676 = vpow.pop %v675
  %v677 = vmul.f32 %v644, 1.442695
  %v678 = vpow.pop %v677
  %v679 = vmul.f32 %v645, 1.442695
  %v680 = vpow.pop %v679
  %v681 = vmul.f32 %v646, 1.442695
  %v682 = vpow.pop %v681
  %v683 = vmul.f32 %v647, 1.442695
  %v684 = vpow.pop %v683
  %v685 = vmul.f32 %v648, 1.442695
  %v686 = vpow.pop %v685
  %v687 = vmul.f32 %v649, 1.442695
  %v688 = vpow.pop %v687
  %v689 = vmul.f32 %v650, 1.442695
  %v690 = vpow.pop %v689
  %v691 = vmul.f32 %v651, 1.442695
  %v692 = vpow.pop %v691
  %v693 = vmul.f32 %v652, 1.442695
  %v694 = vpow.pop %v693
  %v695 = vmul.f32 %v653, 1.442695
  %v696 = vpow.pop %v695
  %v697 = vmul.f32 %v654, 1.442695
  %v698 = vpow.pop %v697
  %v699 = vmul.f32 %v655, 1.442695
  %v700 = vpow.pop %v699
  %v701 = vmul.f32 %v656, 1.442695
  %v702 = vpow.pop %v701
  %v703 = vmul.f32 %v657, 1.442695
  %v704 = vpow.pop %v703
  %v705 = vmul.f32 %v658, 1.442695
  %v706 = vpow.pop %v705
  %v707 = vmul.f32 %v659, 1.442695
  %v708 = vpow.pop %v707
  %v709 = vmul.f32 %v660, 1.442695
  %v710 = vpow.pop %v709
  %v711 = vmul.f32 %v661, 1.442695
  %v712 = vpow.pop %v711
  %v713 = vmul.f32 %v662, 1.442695
  %v714 = vpow.pop %v713
  %v715 = vmul.f32 %v663, 1.442695
  %v716 = vpow.pop %v715
  %v717 = vmul.f32 %v664, 1.442695
  %v718 = vpow.pop %v717
  %v719 = vmul.f32 %v665, 1.442695
  %v720 = vpow.pop %v719
  %v721 = vmul.f32 %v666, 1.442695
  %v722 = vpow.pop %v721
  %v723 = vmul.f32 %v667, 1.442695
  %v724 = vpow.pop %v723
  %v725 = vmul.f32 %v668, 1.442695
  %v726 = vpow.pop %v725
  %v727 = vmul.f32 %v669, 1.442695
  %v728 = vpow.pop %v727
  %v729 = vmul.f32 %v670, 1.442695
  %v730 = vpow.pop %v729
  %v731 = vmul.f32 %v671, 1.442695
  %v732 = vpow.pop %v731
  %v733 = vmul.f32 %v672, 1.442695
  %v734 = vpow.pop %v733
  %v735 = vmul.f32 %v673, 1.442695
  %v736 = vpow.pop %v735
  %v737 = vmul.f32 %v674, 1.442695
  %v738 = vpow.pop %v737
  %v739 = vadd.f32 %v676, 1.0
  %v740 = vadd.f32 %v678, 1.0
  %v741 = vadd.f32 %v680, 1.0
  %v742 = vadd.f32 %v682, 1.0
  %v743 = vadd.f32 %v684, 1.0
  %v744 = vadd.f32 %v686, 1.0
  %v745 = vadd.f32 %v688, 1.0
  %v746 = vadd.f32 %v690, 1.0
  %v747 = vadd.f32 %v692, 1.0
  %v748 = vadd.f32 %v694, 1.0
  %v749 = vadd.f32 %v696, 1.0
  %v750 = vadd.f32 %v698, 1.0
  %v751 = vadd.f32 %v700, 1.0
  %v752 = vadd.f32 %v702, 1.0
  %v753 = vadd.f32 %v704, 1.0
  %v754 = vadd.f32 %v706, 1.0
  %v755 = vadd.f32 %v708, 1.0
  %v756 = vadd.f32 %v710, 1.0
  %v757 = vadd.f32 %v712, 1.0
  %v758 = vadd.f32 %v714, 1.0
  %v759 = vadd.f32 %v716, 1.0
  %v760 = vadd.f32 %v718, 1.0
  %v761 = vadd.f32 %v720, 1.0
  %v762 = vadd.f32 %v722, 1.0
  %v763 = vadd.f32 %v724, 1.0
  %v764 = vadd.f32 %v726, 1.0
  %v765 = vadd.f32 %v728, 1.0
  %v766 = vadd.f32 %v730, 1.0
  %v767 = vadd.f32 %v732, 1.0
  %v768 = vadd.f32 %v734, 1.0
  %v769 = vadd.f32 %v736, 1.0
  %v770 = vadd.f32 %v738, 1.0
  %v771 = vrcp.pop %v739
  %v772 = vmul.f32 %v739, %v771
  %v773 = vsub.f32 1.0, %v772
  %v774 = vmul.f32 %v771, %v773
  %v775 = vadd.f32 %v771, %v774
  %vm776 = vweird.f32 %v739
  %vm777 = vweird.f32 %v771
  %vm778 = vmor %vm776, %vm777
  %v779 = vsel %vm778, %v771, %v775
  %v780 = vand.u32 2147483647, %v739
  %vm781 = vcmp.eq.f32.partialorder %v780, 8.507059e+37
  %v782 = vand.u32 %v739, 2147483648
  %v783 = vor.u32 1.1754944e-38, %v782
  %v784 = vsel %vm781, %v783, %v779
  %v785 = vmul.f32 1.0, %v784
  %v786 = vrcp.pop %v740
  %v787 = vmul.f32 %v740, %v786
  %v788 = vsub.f32 1.0, %v787
  %v789 = vmul.f32 %v786, %v788
  %v790 = vadd.f32 %v786, %v789
  %vm791 = vweird.f32 %v740
  %vm792 = vweird.f32 %v786
  %vm793 = vmor %vm791, %vm792
  %v794 = vsel %vm793, %v786, %v790
  %v795 = vand.u32 2147483647, %v740
  %vm796 = vcmp.eq.f32.partialorder %v795, 8.507059e+37
  %v797 = vand.u32 %v740, 2147483648
  %v798 = vor.u32 1.1754944e-38, %v797
  %v799 = vsel %vm796, %v798, %v794
  %v800 = vmul.f32 1.0, %v799
  %v801 = vrcp.pop %v741
  %v802 = vmul.f32 %v741, %v801
  %v803 = vsub.f32 1.0, %v802
  %v804 = vmul.f32 %v801, %v803
  %v805 = vadd.f32 %v801, %v804
  %vm806 = vweird.f32 %v741
  %vm807 = vweird.f32 %v801
  %vm808 = vmor %vm806, %vm807
  %v809 = vsel %vm808, %v801, %v805
  %v810 = vand.u32 2147483647, %v741
  %vm811 = vcmp.eq.f32.partialorder %v810, 8.507059e+37
  %v812 = vand.u32 %v741, 2147483648
  %v813 = vor.u32 1.1754944e-38, %v812
  %v814 = vsel %vm811, %v813, %v809
  %v815 = vmul.f32 1.0, %v814
  %v816 = vrcp.pop %v742
  %v817 = vmul.f32 %v742, %v816
  %v818 = vsub.f32 1.0, %v817
  %v819 = vmul.f32 %v816, %v818
  %v820 = vadd.f32 %v816, %v819
  %vm821 = vweird.f32 %v742
  %vm822 = vweird.f32 %v816
  %vm823 = vmor %vm821, %vm822
  %v824 = vsel %vm823, %v816, %v820
  %v825 = vand.u32 2147483647, %v742
  %vm826 = vcmp.eq.f32.partialorder %v825, 8.507059e+37
  %v827 = vand.u32 %v742, 2147483648
  %v828 = vor.u32 1.1754944e-38, %v827
  %v829 = vsel %vm826, %v828, %v824
  %v830 = vmul.f32 1.0, %v829
  %v831 = vrcp.pop %v743
  %v832 = vmul.f32 %v743, %v831
  %v833 = vsub.f32 1.0, %v832
  %v834 = vmul.f32 %v831, %v833
  %v835 = vadd.f32 %v831, %v834
  %vm836 = vweird.f32 %v743
  %vm837 = vweird.f32 %v831
  %vm838 = vmor %vm836, %vm837
  %v839 = vsel %vm838, %v831, %v835
  %v840 = vand.u32 2147483647, %v743
  %vm841 = vcmp.eq.f32.partialorder %v840, 8.507059e+37
  %v842 = vand.u32 %v743, 2147483648
  %v843 = vor.u32 1.1754944e-38, %v842
  %v844 = vsel %vm841, %v843, %v839
  %v845 = vmul.f32 1.0, %v844
  %v846 = vrcp.pop %v744
  %v847 = vmul.f32 %v744, %v846
  %v848 = vsub.f32 1.0, %v847
  %v849 = vmul.f32 %v846, %v848
  %v850 = vadd.f32 %v846, %v849
  %vm851 = vweird.f32 %v744
  %vm852 = vweird.f32 %v846
  %vm853 = vmor %vm851, %vm852
  %v854 = vsel %vm853, %v846, %v850
  %v855 = vand.u32 2147483647, %v744
  %vm856 = vcmp.eq.f32.partialorder %v855, 8.507059e+37
  %v857 = vand.u32 %v744, 2147483648
  %v858 = vor.u32 1.1754944e-38, %v857
  %v859 = vsel %vm856, %v858, %v854
  %v860 = vmul.f32 1.0, %v859
  %v861 = vrcp.pop %v745
  %v862 = vmul.f32 %v745, %v861
  %v863 = vsub.f32 1.0, %v862
  %v864 = vmul.f32 %v861, %v863
  %v865 = vadd.f32 %v861, %v864
  %vm866 = vweird.f32 %v745
  %vm867 = vweird.f32 %v861
  %vm868 = vmor %vm866, %vm867
  %v869 = vsel %vm868, %v861, %v865
  %v870 = vand.u32 2147483647, %v745
  %vm871 = vcmp.eq.f32.partialorder %v870, 8.507059e+37
  %v872 = vand.u32 %v745, 2147483648
  %v873 = vor.u32 1.1754944e-38, %v872
  %v874 = vsel %vm871, %v873, %v869
  %v875 = vmul.f32 1.0, %v874
  %v876 = vrcp.pop %v746
  %v877 = vmul.f32 %v746, %v876
  %v878 = vsub.f32 1.0, %v877
  %v879 = vmul.f32 %v876, %v878
  %v880 = vadd.f32 %v876, %v879
  %vm881 = vweird.f32 %v746
  %vm882 = vweird.f32 %v876
  %vm883 = vmor %vm881, %vm882
  %v884 = vsel %vm883, %v876, %v880
  %v885 = vand.u32 2147483647, %v746
  %vm886 = vcmp.eq.f32.partialorder %v885, 8.507059e+37
  %v887 = vand.u32 %v746, 2147483648
  %v888 = vor.u32 1.1754944e-38, %v887
  %v889 = vsel %vm886, %v888, %v884
  %v890 = vmul.f32 1.0, %v889
  %v891 = vrcp.pop %v747
  %v892 = vmul.f32 %v747, %v891
  %v893 = vsub.f32 1.0, %v892
  %v894 = vmul.f32 %v891, %v893
  %v895 = vadd.f32 %v891, %v894
  %vm896 = vweird.f32 %v747
  %vm897 = vweird.f32 %v891
  %vm898 = vmor %vm896, %vm897
  %v899 = vsel %vm898, %v891, %v895
  %v900 = vand.u32 2147483647, %v747
  %vm901 = vcmp.eq.f32.partialorder %v900, 8.507059e+37
  %v902 = vand.u32 %v747, 2147483648
  %v903 = vor.u32 1.1754944e-38, %v902
  %v904 = vsel %vm901, %v903, %v899
  %v905 = vmul.f32 1.0, %v904
  %v906 = vrcp.pop %v748
  %v907 = vmul.f32 %v748, %v906
  %v908 = vsub.f32 1.0, %v907
  %v909 = vmul.f32 %v906, %v908
  %v910 = vadd.f32 %v906, %v909
  %vm911 = vweird.f32 %v748
  %vm912 = vweird.f32 %v906
  %vm913 = vmor %vm911, %vm912
  %v914 = vsel %vm913, %v906, %v910
  %v915 = vand.u32 2147483647, %v748
  %vm916 = vcmp.eq.f32.partialorder %v915, 8.507059e+37
  %v917 = vand.u32 %v748, 2147483648
  %v918 = vor.u32 1.1754944e-38, %v917
  %v919 = vsel %vm916, %v918, %v914
  %v920 = vmul.f32 1.0, %v919
  %v921 = vrcp.pop %v749
  %v922 = vmul.f32 %v749, %v921
  %v923 = vsub.f32 1.0, %v922
  %v924 = vmul.f32 %v921, %v923
  %v925 = vadd.f32 %v921, %v924
  %vm926 = vweird.f32 %v749
  %vm927 = vweird.f32 %v921
  %vm928 = vmor %vm926, %vm927
  %v929 = vsel %vm928, %v921, %v925
  %v930 = vand.u32 2147483647, %v749
  %vm931 = vcmp.eq.f32.partialorder %v930, 8.507059e+37
  %v932 = vand.u32 %v749, 2147483648
  %v933 = vor.u32 1.1754944e-38, %v932
  %v934 = vsel %vm931, %v933, %v929
  %v935 = vmul.f32 1.0, %v934
  %v936 = vrcp.pop %v750
  %v937 = vmul.f32 %v750, %v936
  %v938 = vsub.f32 1.0, %v937
  %v939 = vmul.f32 %v936, %v938
  %v940 = vadd.f32 %v936, %v939
  %vm941 = vweird.f32 %v750
  %vm942 = vweird.f32 %v936
  %vm943 = vmor %vm941, %vm942
  %v944 = vsel %vm943, %v936, %v940
  %v945 = vand.u32 2147483647, %v750
  %vm946 = vcmp.eq.f32.partialorder %v945, 8.507059e+37
  %v947 = vand.u32 %v750, 2147483648
  %v948 = vor.u32 1.1754944e-38, %v947
  %v949 = vsel %vm946, %v948, %v944
  %v950 = vmul.f32 1.0, %v949
  %v951 = vrcp.pop %v751
  %v952 = vmul.f32 %v751, %v951
  %v953 = vsub.f32 1.0, %v952
  %v954 = vmul.f32 %v951, %v953
  %v955 = vadd.f32 %v951, %v954
  %vm956 = vweird.f32 %v751
  %vm957 = vweird.f32 %v951
  %vm958 = vmor %vm956, %vm957
  %v959 = vsel %vm958, %v951, %v955
  %v960 = vand.u32 2147483647, %v751
  %vm961 = vcmp.eq.f32.partialorder %v960, 8.507059e+37
  %v962 = vand.u32 %v751, 2147483648
  %v963 = vor.u32 1.1754944e-38, %v962
  %v964 = vsel %vm961, %v963, %v959
  %v965 = vmul.f32 1.0, %v964
  %v966 = vrcp.pop %v752
  %v967 = vmul.f32 %v752, %v966
  %v968 = vsub.f32 1.0, %v967
  %v969 = vmul.f32 %v966, %v968
  %v970 = vadd.f32 %v966, %v969
  %vm971 = vweird.f32 %v752
  %vm972 = vweird.f32 %v966
  %vm973 = vmor %vm971, %vm972
  %v974 = vsel %vm973, %v966, %v970
  %v975 = vand.u32 2147483647, %v752
  %vm976 = vcmp.eq.f32.partialorder %v975, 8.507059e+37
  %v977 = vand.u32 %v752, 2147483648
  %v978 = vor.u32 1.1754944e-38, %v977
  %v979 = vsel %vm976, %v978, %v974
  %v980 = vmul.f32 1.0, %v979
  %v981 = vrcp.pop %v753
  %v982 = vmul.f32 %v753, %v981
  %v983 = vsub.f32 1.0, %v982
  %v984 = vmul.f32 %v981, %v983
  %v985 = vadd.f32 %v981, %v984
  %vm986 = vweird.f32 %v753
  %vm987 = vweird.f32 %v981
  %vm988 = vmor %vm986, %vm987
  %v989 = vsel %vm988, %v981, %v985
  %v990 = vand.u32 2147483647, %v753
  %vm991 = vcmp.eq.f32.partialorder %v990, 8.507059e+37
  %v992 = vand.u32 %v753, 2147483648
  %v993 = vor.u32 1.1754944e-38, %v992
  %v994 = vsel %vm991, %v993, %v989
  %v995 = vmul.f32 1.0, %v994
  %v996 = vrcp.pop %v754
  %v997 = vmul.f32 %v754, %v996
  %v998 = vsub.f32 1.0, %v997
  %v999 = vmul.f32 %v996, %v998
  %v1000 = vadd.f32 %v996, %v999
  %vm1001 = vweird.f32 %v754
  %vm1002 = vweird.f32 %v996
  %vm1003 = vmor %vm1001, %vm1002
  %v1004 = vsel %vm1003, %v996, %v1000
  %v1005 = vand.u32 2147483647, %v754
  %vm1006 = vcmp.eq.f32.partialorder %v1005, 8.507059e+37
  %v1007 = vand.u32 %v754, 2147483648
  %v1008 = vor.u32 1.1754944e-38, %v1007
  %v1009 = vsel %vm1006, %v1008, %v1004
  %v1010 = vmul.f32 1.0, %v1009
  %v1011 = vrcp.pop %v755
  %v1012 = vmul.f32 %v755, %v1011
  %v1013 = vsub.f32 1.0, %v1012
  %v1014 = vmul.f32 %v1011, %v1013
  %v1015 = vadd.f32 %v1011, %v1014
  %vm1016 = vweird.f32 %v755
  %vm1017 = vweird.f32 %v1011
  %vm1018 = vmor %vm1016, %vm1017
  %v1019 = vsel %vm1018, %v1011, %v1015
  %v1020 = vand.u32 2147483647, %v755
  %vm1021 = vcmp.eq.f32.partialorder %v1020, 8.507059e+37
  %v1022 = vand.u32 %v755, 2147483648
  %v1023 = vor.u32 1.1754944e-38, %v1022
  %v1024 = vsel %vm1021, %v1023, %v1019
  %v1025 = vmul.f32 1.0, %v1024
  %v1026 = vrcp.pop %v756
  %v1027 = vmul.f32 %v756, %v1026
  %v1028 = vsub.f32 1.0, %v1027
  %v1029 = vmul.f32 %v1026, %v1028
  %v1030 = vadd.f32 %v1026, %v1029
  %vm1031 = vweird.f32 %v756
  %vm1032 = vweird.f32 %v1026
  %vm1033 = vmor %vm1031, %vm1032
  %v1034 = vsel %vm1033, %v1026, %v1030
  %v1035 = vand.u32 2147483647, %v756
  %vm1036 = vcmp.eq.f32.partialorder %v1035, 8.507059e+37
  %v1037 = vand.u32 %v756, 2147483648
  %v1038 = vor.u32 1.1754944e-38, %v1037
  %v1039 = vsel %vm1036, %v1038, %v1034
  %v1040 = vmul.f32 1.0, %v1039
  %v1041 = vrcp.pop %v757
  %v1042 = vmul.f32 %v757, %v1041
  %v1043 = vsub.f32 1.0, %v1042
  %v1044 = vmul.f32 %v1041, %v1043
  %v1045 = vadd.f32 %v1041, %v1044
  %vm1046 = vweird.f32 %v757
  %vm1047 = vweird.f32 %v1041
  %vm1048 = vmor %vm1046, %vm1047
  %v1049 = vsel %vm1048, %v1041, %v1045
  %v1050 = vand.u32 2147483647, %v757
  %vm1051 = vcmp.eq.f32.partialorder %v1050, 8.507059e+37
  %v1052 = vand.u32 %v757, 2147483648
  %v1053 = vor.u32 1.1754944e-38, %v1052
  %v1054 = vsel %vm1051, %v1053, %v1049
  %v1055 = vmul.f32 1.0, %v1054
  %v1056 = vrcp.pop %v758
  %v1057 = vmul.f32 %v758, %v1056
  %v1058 = vsub.f32 1.0, %v1057
  %v1059 = vmul.f32 %v1056, %v1058
  %v1060 = vadd.f32 %v1056, %v1059
  %vm1061 = vweird.f32 %v758
  %vm1062 = vweird.f32 %v1056
  %vm1063 = vmor %vm1061, %vm1062
  %v1064 = vsel %vm1063, %v1056, %v1060
  %v1065 = vand.u32 2147483647, %v758
  %vm1066 = vcmp.eq.f32.partialorder %v1065, 8.507059e+37
  %v1067 = vand.u32 %v758, 2147483648
  %v1068 = vor.u32 1.1754944e-38, %v1067
  %v1069 = vsel %vm1066, %v1068, %v1064
  %v1070 = vmul.f32 1.0, %v1069
  %v1071 = vrcp.pop %v759
  %v1072 = vmul.f32 %v759, %v1071
  %v1073 = vsub.f32 1.0, %v1072
  %v1074 = vmul.f32 %v1071, %v1073
  %v1075 = vadd.f32 %v1071, %v1074
  %vm1076 = vweird.f32 %v759
  %vm1077 = vweird.f32 %v1071
  %vm1078 = vmor %vm1076, %vm1077
  %v1079 = vsel %vm1078, %v1071, %v1075
  %v1080 = vand.u32 2147483647, %v759
  %vm1081 = vcmp.eq.f32.partialorder %v1080, 8.507059e+37
  %v1082 = vand.u32 %v759, 2147483648
  %v1083 = vor.u32 1.1754944e-38, %v1082
  %v1084 = vsel %vm1081, %v1083, %v1079
  %v1085 = vmul.f32 1.0, %v1084
  %v1086 = vrcp.pop %v760
  %v1087 = vmul.f32 %v760, %v1086
  %v1088 = vsub.f32 1.0, %v1087
  %v1089 = vmul.f32 %v1086, %v1088
  %v1090 = vadd.f32 %v1086, %v1089
  %vm1091 = vweird.f32 %v760
  %vm1092 = vweird.f32 %v1086
  %vm1093 = vmor %vm1091, %vm1092
  %v1094 = vsel %vm1093, %v1086, %v1090
  %v1095 = vand.u32 2147483647, %v760
  %vm1096 = vcmp.eq.f32.partialorder %v1095, 8.507059e+37
  %v1097 = vand.u32 %v760, 2147483648
  %v1098 = vor.u32 1.1754944e-38, %v1097
  %v1099 = vsel %vm1096, %v1098, %v1094
  %v1100 = vmul.f32 1.0, %v1099
  %v1101 = vrcp.pop %v761
  %v1102 = vmul.f32 %v761, %v1101
  %v1103 = vsub.f32 1.0, %v1102
  %v1104 = vmul.f32 %v1101, %v1103
  %v1105 = vadd.f32 %v1101, %v1104
  %vm1106 = vweird.f32 %v761
  %vm1107 = vweird.f32 %v1101
  %vm1108 = vmor %vm1106, %vm1107
  %v1109 = vsel %vm1108, %v1101, %v1105
  %v1110 = vand.u32 2147483647, %v761
  %vm1111 = vcmp.eq.f32.partialorder %v1110, 8.507059e+37
  %v1112 = vand.u32 %v761, 2147483648
  %v1113 = vor.u32 1.1754944e-38, %v1112
  %v1114 = vsel %vm1111, %v1113, %v1109
  %v1115 = vmul.f32 1.0, %v1114
  %v1116 = vrcp.pop %v762
  %v1117 = vmul.f32 %v762, %v1116
  %v1118 = vsub.f32 1.0, %v1117
  %v1119 = vmul.f32 %v1116, %v1118
  %v1120 = vadd.f32 %v1116, %v1119
  %vm1121 = vweird.f32 %v762
  %vm1122 = vweird.f32 %v1116
  %vm1123 = vmor %vm1121, %vm1122
  %v1124 = vsel %vm1123, %v1116, %v1120
  %v1125 = vand.u32 2147483647, %v762
  %vm1126 = vcmp.eq.f32.partialorder %v1125, 8.507059e+37
  %v1127 = vand.u32 %v762, 2147483648
  %v1128 = vor.u32 1.1754944e-38, %v1127
  %v1129 = vsel %vm1126, %v1128, %v1124
  %v1130 = vmul.f32 1.0, %v1129
  %v1131 = vrcp.pop %v763
  %v1132 = vmul.f32 %v763, %v1131
  %v1133 = vsub.f32 1.0, %v1132
  %v1134 = vmul.f32 %v1131, %v1133
  %v1135 = vadd.f32 %v1131, %v1134
  %vm1136 = vweird.f32 %v763
  %vm1137 = vweird.f32 %v1131
  %vm1138 = vmor %vm1136, %vm1137
  %v1139 = vsel %vm1138, %v1131, %v1135
  %v1140 = vand.u32 2147483647, %v763
  %vm1141 = vcmp.eq.f32.partialorder %v1140, 8.507059e+37
  %v1142 = vand.u32 %v763, 2147483648
  %v1143 = vor.u32 1.1754944e-38, %v1142
  %v1144 = vsel %vm1141, %v1143, %v1139
  %v1145 = vmul.f32 1.0, %v1144
  %v1146 = vrcp.pop %v764
  %v1147 = vmul.f32 %v764, %v1146
  %v1148 = vsub.f32 1.0, %v1147
  %v1149 = vmul.f32 %v1146, %v1148
  %v1150 = vadd.f32 %v1146, %v1149
  %vm1151 = vweird.f32 %v764
  %vm1152 = vweird.f32 %v1146
  %vm1153 = vmor %vm1151, %vm1152
  %v1154 = vsel %vm1153, %v1146, %v1150
  %v1155 = vand.u32 2147483647, %v764
  %vm1156 = vcmp.eq.f32.partialorder %v1155, 8.507059e+37
  %v1157 = vand.u32 %v764, 2147483648
  %v1158 = vor.u32 1.1754944e-38, %v1157
  %v1159 = vsel %vm1156, %v1158, %v1154
  %v1160 = vmul.f32 1.0, %v1159
  %v1161 = vrcp.pop %v765
  %v1162 = vmul.f32 %v765, %v1161
  %v1163 = vsub.f32 1.0, %v1162
  %v1164 = vmul.f32 %v1161, %v1163
  %v1165 = vadd.f32 %v1161, %v1164
  %vm1166 = vweird.f32 %v765
  %vm1167 = vweird.f32 %v1161
  %vm1168 = vmor %vm1166, %vm1167
  %v1169 = vsel %vm1168, %v1161, %v1165
  %v1170 = vand.u32 2147483647, %v765
  %vm1171 = vcmp.eq.f32.partialorder %v1170, 8.507059e+37
  %v1172 = vand.u32 %v765, 2147483648
  %v1173 = vor.u32 1.1754944e-38, %v1172
  %v1174 = vsel %vm1171, %v1173, %v1169
  %v1175 = vmul.f32 1.0, %v1174
  %v1176 = vrcp.pop %v766
  %v1177 = vmul.f32 %v766, %v1176
  %v1178 = vsub.f32 1.0, %v1177
  %v1179 = vmul.f32 %v1176, %v1178
  %v1180 = vadd.f32 %v1176, %v1179
  %vm1181 = vweird.f32 %v766
  %vm1182 = vweird.f32 %v1176
  %vm1183 = vmor %vm1181, %vm1182
  %v1184 = vsel %vm1183, %v1176, %v1180
  %v1185 = vand.u32 2147483647, %v766
  %vm1186 = vcmp.eq.f32.partialorder %v1185, 8.507059e+37
  %v1187 = vand.u32 %v766, 2147483648
  %v1188 = vor.u32 1.1754944e-38, %v1187
  %v1189 = vsel %vm1186, %v1188, %v1184
  %v1190 = vmul.f32 1.0, %v1189
  %v1191 = vrcp.pop %v767
  %v1192 = vmul.f32 %v767, %v1191
  %v1193 = vsub.f32 1.0, %v1192
  %v1194 = vmul.f32 %v1191, %v1193
  %v1195 = vadd.f32 %v1191, %v1194
  %vm1196 = vweird.f32 %v767
  %vm1197 = vweird.f32 %v1191
  %vm1198 = vmor %vm1196, %vm1197
  %v1199 = vsel %vm1198, %v1191, %v1195
  %v1200 = vand.u32 2147483647, %v767
  %vm1201 = vcmp.eq.f32.partialorder %v1200, 8.507059e+37
  %v1202 = vand.u32 %v767, 2147483648
  %v1203 = vor.u32 1.1754944e-38, %v1202
  %v1204 = vsel %vm1201, %v1203, %v1199
  %v1205 = vmul.f32 1.0, %v1204
  %v1206 = vrcp.pop %v768
  %v1207 = vmul.f32 %v768, %v1206
  %v1208 = vsub.f32 1.0, %v1207
  %v1209 = vmul.f32 %v1206, %v1208
  %v1210 = vadd.f32 %v1206, %v1209
  %vm1211 = vweird.f32 %v768
  %vm1212 = vweird.f32 %v1206
  %vm1213 = vmor %vm1211, %vm1212
  %v1214 = vsel %vm1213, %v1206, %v1210
  %v1215 = vand.u32 2147483647, %v768
  %vm1216 = vcmp.eq.f32.partialorder %v1215, 8.507059e+37
  %v1217 = vand.u32 %v768, 2147483648
  %v1218 = vor.u32 1.1754944e-38, %v1217
  %v1219 = vsel %vm1216, %v1218, %v1214
  %v1220 = vmul.f32 1.0, %v1219
  %v1221 = vrcp.pop %v769
  %v1222 = vmul.f32 %v769, %v1221
  %v1223 = vsub.f32 1.0, %v1222
  %v1224 = vmul.f32 %v1221, %v1223
  %v1225 = vadd.f32 %v1221, %v1224
  %vm1226 = vweird.f32 %v769
  %vm1227 = vweird.f32 %v1221
  %vm1228 = vmor %vm1226, %vm1227
  %v1229 = vsel %vm1228, %v1221, %v1225
  %v1230 = vand.u32 2147483647, %v769
  %vm1231 = vcmp.eq.f32.partialorder %v1230, 8.507059e+37
  %v1232 = vand.u32 %v769, 2147483648
  %v1233 = vor.u32 1.1754944e-38, %v1232
  %v1234 = vsel %vm1231, %v1233, %v1229
  %v1235 = vmul.f32 1.0, %v1234
  %v1236 = vrcp.pop %v770
  %v1237 = vmul.f32 %v770, %v1236
  %v1238 = vsub.f32 1.0, %v1237
  %v1239 = vmul.f32 %v1236, %v1238
  %v1240 = vadd.f32 %v1236, %v1239
  %vm1241 = vweird.f32 %v770
  %vm1242 = vweird.f32 %v1236
  %vm1243 = vmor %vm1241, %vm1242
  %v1244 = vsel %vm1243, %v1236, %v1240
  %v1245 = vand.u32 2147483647, %v770
  %vm1246 = vcmp.eq.f32.partialorder %v1245, 8.507059e+37
  %v1247 = vand.u32 %v770, 2147483648
  %v1248 = vor.u32 1.1754944e-38, %v1247
  %v1249 = vsel %vm1246, %v1248, %v1244
  %v1250 = vmul.f32 1.0, %v1249
  %v1251 = vsel %vm641, %v785, %v550
  %v1252 = vsel %vm642, %v800, %v599
  %v1253 = vsel %vm641, %v815, %v552
  %v1254 = vsel %vm642, %v830, %v601
  %v1255 = vsel %vm641, %v845, %v555
  %v1256 = vsel %vm642, %v860, %v604
  %v1257 = vsel %vm641, %v875, %v557
  %v1258 = vsel %vm642, %v890, %v606
  %v1259 = vsel %vm641, %v905, %v560
  %v1260 = vsel %vm642, %v920, %v609
  %v1261 = vsel %vm641, %v935, %v562
  %v1262 = vsel %vm642, %v950, %v611
  %v1263 = vsel %vm641, %v965, %v565
  %v1264 = vsel %vm642, %v980, %v614
  %v1265 = vsel %vm641, %v995, %v567
  %v1266 = vsel %vm642, %v1010, %v616
  %v1267 = vsel %vm641, %v1025, %v570
  %v1268 = vsel %vm642, %v1040, %v619
  %v1269 = vsel %vm641, %v1055, %v572
  %v1270 = vsel %vm642, %v1070, %v621
  %v1271 = vsel %vm641, %v1085, %v575
  %v1272 = vsel %vm642, %v1100, %v624
  %v1273 = vsel %vm641, %v1115, %v577
  %v1274 = vsel %vm642, %v1130, %v626
  %v1275 = vsel %vm641, %v1145, %v580
  %v1276 = vsel %vm642, %v1160, %v629
  %v1277 = vsel %vm641, %v1175, %v582
  %v1278 = vsel %vm642, %v1190, %v631
  %v1279 = vsel %vm641, %v1205, %v585
  %v1280 = vsel %vm642, %v1220, %v634
  %v1281 = vsel %vm641, %v1235, %v587
  %v1282 = vsel %vm642, %v1250, %v636
  %v1283 = vpack.c.bf16 %v1252, %v1251
  %v1284 = vpack.c.bf16 %v1254, %v1253
  %v1285 = vpack.c.bf16 %v1256, %v1255
  %v1286 = vpack.c.bf16 %v1258, %v1257
  %v1287 = vpack.c.bf16 %v1260, %v1259
  %v1288 = vpack.c.bf16 %v1262, %v1261
  %v1289 = vpack.c.bf16 %v1264, %v1263
  %v1290 = vpack.c.bf16 %v1266, %v1265
  %v1291 = vpack.c.bf16 %v1268, %v1267
  %v1292 = vpack.c.bf16 %v1270, %v1269
  %v1293 = vpack.c.bf16 %v1272, %v1271
  %v1294 = vpack.c.bf16 %v1274, %v1273
  %v1295 = vpack.c.bf16 %v1276, %v1275
  %v1296 = vpack.c.bf16 %v1278, %v1277
  %v1297 = vpack.c.bf16 %v1280, %v1279
  %v1298 = vpack.c.bf16 %v1282, %v1281
  %1299 = vst [vmem:[%s5] sm:$0xff] %v1283
  %1300 = vst [vmem:[%s5 + $0x8] sm:$0xff] %v1284
  %1301 = vst [vmem:[%s5 + $0x10] sm:$0xff] %v1285
  %1302 = vst [vmem:[%s5 + $0x18] sm:$0xff] %v1286
  %1303 = vst [vmem:[%s5 + $0x20] sm:$0xff] %v1287
  %1304 = vst [vmem:[%s5 + $0x28] sm:$0xff] %v1288
  %1305 = vst [vmem:[%s5 + $0x30] sm:$0xff] %v1289
  %1306 = vst [vmem:[%s5 + $0x38] sm:$0xff] %v1290
  %1307 = vst [vmem:[%s5 + $0x40] sm:$0xff] %v1291
  %1308 = vst [vmem:[%s5 + $0x48] sm:$0xff] %v1292
  %1309 = vst [vmem:[%s5 + $0x50] sm:$0xff] %v1293
  %1310 = vst [vmem:[%s5 + $0x58] sm:$0xff] %v1294
  %1311 = vst [vmem:[%s5 + $0x60] sm:$0xff] %v1295
  %1312 = vst [vmem:[%s5 + $0x68] sm:$0xff] %v1296
  %1313 = vst [vmem:[%s5 + $0x70] sm:$0xff] %v1297
  %1314 = vst [vmem:[%s5 + $0x78] sm:$0xff] %v1298
  // Predicated region
  $region22: #{templ_emb_forward.27} parent=0 // pred_check
    _
  $region23: #{templ_emb_forward.27} parent=0 // pred_check_branch
    %1316 = sbr.rel (0) target = $region25
  $region24: #{templ_emb_forward.27} parent=0 // pred_region
    _
  $region25: #{templ_emb_forward.27} parent=0 // pred_fallthru
    _
  // Predicated region
  $region26: #{templ_emb_forward.27} parent=0 // pred_check
    _
  $region27: #{templ_emb_forward.27} parent=0 // pred_check_branch
    %1318 = sbr.rel (0) target = $region29
  $region28: #{templ_emb_forward.27} parent=0 // pred_region
    _
  $region29: #{templ_emb_forward.27} parent=0 // pred_fallthru
    _

// kernel: templ_emb_forward.26
$region0: #{templ_emb_forward.26}
  #allocation0 [shape = 'u32[]', space=smem, size = 0x4, offset = 0x4, fixed_abs, tag = 'smem constant byte address 0x4 - core index']
  #allocation1 [shape = 'u32[72,128]{1,0:T(1,128)}', space=vmem, size = 0x9000, scoped, tag = 'internal scratch']
  %s0 = inlined_call_operand.vmem [shape: f32[2,8,1,3], index: 0, kind: input, shape index: {}]
  %s1 = inlined_call_operand.vmem [shape: f32[2,8,3], index: 1, kind: input, shape index: {}]
  %s2 = inlined_call_operand.vmem [shape: bf16[2,8,8,1], index: 2, kind: input, shape index: {}]
  %s3 = inlined_call_operand.vmem [shape: f32[1,36], index: 3, kind: input, shape index: {}]
  %s4 = inlined_call_operand.vmem [shape: bf16[36,16], index: 4, kind: input, shape index: {}]
  %s5 = inlined_call_operand.vmem [shape: bf16[1,16], index: 5, kind: input, shape index: {}]
  %s6 = inlined_call_operand.vmem [shape: bf16[16,64], index: 6, kind: input, shape index: {}]
  %s7 = inlined_call_operand.vmem [shape: bf16[1,64], index: 7, kind: input, shape index: {}]
  %s8 = inlined_call_operand.vmem [shape: bf16[2,8,8,64], index: 8, kind: output, shape index: {}]
  %s9 = sld [smem:[#allocation0]]
  $region65: #{templ_emb_forward.26} parent=0
    _
  %s11 = ssub.s32 1, %s9
  %s12 = scalar_select 0, %s11, %s9
  loop: start=0, step=1, limit=18
  $region2: #{templ_emb_forward.26} parent=0 // loop_pre_header
    _
  $region3: #{templ_emb_forward.26} parent=0 // loop_header
    %s14 = sphi 0, %s18
    %p15 = scmp.ge.s32.totalorder %s14, 18
    %s21 = sphi 0, %s33
    %s22 = sphi 0, %s29
    %s23 = sphi 0, %s21
    %s24 = sphi 0, %s22
    %s25 = sphi 0, %s23
    %s26 = sphi 0, %s24
    %s38 = sphi 0, %s40
    %s41 = sphi 0, %s38
    %s42 = sphi 0, %s41
    %s58 = sphi 0, %s42
    %s64 = sphi 0, %s66
    %s67 = sphi 0, %s64
    %s68 = sphi 0, %s67
    %s84 = sphi 0, %s68
    %s92 = sphi 0, %s94
    %s95 = sphi 0, %s92
    %s96 = sphi 0, %s95
    %s112 = sphi 0, %s96
    %s116 = sphi 0, %s116
    %s118 = sphi 0, %s116
    %s119 = sphi 0, %s118
    %s133 = sphi 0, %s119
    %s137 = sphi 0, %s137
    %s139 = sphi 0, %s137
    %s140 = sphi 0, %s139
    %s154 = sphi 0, %s140
    %s158 = sphi 0, %s158
    %s160 = sphi 0, %s158
    %s161 = sphi 0, %s160
    %s175 = sphi 0, %s161
    %s179 = sphi 0, %s179
    %s181 = sphi 0, %s179
    %s182 = sphi 0, %s181
    %s196 = sphi 0, %s182
    %s200 = sphi 0, %s200
    %s202 = sphi 0, %s200
    %s203 = sphi 0, %s202
    %s217 = sphi 0, %s203
    %s225 = sphi 0, %s227
    %s228 = sphi 0, %s225
    %s229 = sphi 0, %s228
    %s245 = sphi 0, %s229
  $region4: #{templ_emb_forward.26} parent=0 // loop_header_branch
    %17 = sbr.rel (%p15) target = $region8
  $region5: #{templ_emb_forward.26} parent=0 // loop_body
    %s19 = ssub.s32 %s14, 1
    %s20 = ssub.s32 %s14, 2
    %s27 = sadd.s32 1, %s22
    %p28 = scmp.ge.s32.totalorder %s27, 8
    %s29 = scalar_select %p28, 0, %s27
    %s30 = sadd.s32 1, %s21
    %s31 = scalar_select %p28, %s30, %s21
    %p32 = scmp.ge.s32.totalorder %s31, 2
    %s33 = scalar_select %p32, 0, %s31
    %s34 = ssub.s32 %s21, %s33
    %s35 = ssub.s32 %s22, %s29
    %s36 = sor.u32 %s34, %s35
    %p37 = scmp.eq.s32.totalorder %s36, 0
    %s39 = sadd.s32 %s38, 1
    %s40 = scalar_select %p37, %s38, %s39
    %p43 = pneg %p37
    %p44 = scmp.eq.s32.totalorder %s14, 15
    %p45 = por %p43, %p44
    %p46 = scmp.ne.s32.totalorder %s38, %s41
    %p47 = scmp.eq.s32.totalorder %s14, 0
    %p48 = por %p46, %p47
    %p49 = scmp.ne.s32.totalorder %s38, %s41
    %p50 = scmp.eq.s32.totalorder %s19, 15
    %p51 = por %p49, %p50
    %p52 = scmp.ne.s32.totalorder %s41, %s42
    %p53 = scmp.eq.s32.totalorder %s19, 0
    %p54 = por %p52, %p53
    %p55 = scmp.ne.s32.totalorder %s41, %s42
    %p56 = scmp.eq.s32.totalorder %s20, 15
    %p57 = por %p55, %p56
    %p59 = scmp.ne.s32.totalorder %s42, %s58
    %p60 = scmp.eq.s32.totalorder %s20, 0
    %p61 = por %p59, %p60
    %s62 = ssub.s32 %s21, %s33
    %p63 = scmp.eq.s32.totalorder %s62, 0
    %s65 = sadd.s32 %s64, 1
    %s66 = scalar_select %p63, %s64, %s65
    %p69 = pneg %p63
    %p70 = scmp.eq.s32.totalorder %s14, 15
    %p71 = por %p69, %p70
    %p72 = scmp.ne.s32.totalorder %s64, %s67
    %p73 = scmp.eq.s32.totalorder %s14, 0
    %p74 = por %p72, %p73
    %p75 = scmp.ne.s32.totalorder %s64, %s67
    %p76 = scmp.eq.s32.totalorder %s19, 15
    %p77 = por %p75, %p76
    %p78 = scmp.ne.s32.totalorder %s67, %s68
    %p79 = scmp.eq.s32.totalorder %s19, 0
    %p80 = por %p78, %p79
    %p81 = scmp.ne.s32.totalorder %s67, %s68
    %p82 = scmp.eq.s32.totalorder %s20, 15
    %p83 = por %p81, %p82
    %p85 = scmp.ne.s32.totalorder %s68, %s84
    %p86 = scmp.eq.s32.totalorder %s20, 0
    %p87 = por %p85, %p86
    %s88 = ssub.s32 %s21, %s33
    %s89 = ssub.s32 %s22, %s29
    %s90 = sor.u32 %s88, %s89
    %p91 = scmp.eq.s32.totalorder %s90, 0
    %s93 = sadd.s32 %s92, 1
    %s94 = scalar_select %p91, %s92, %s93
    %p97 = pneg %p91
    %p98 = scmp.eq.s32.totalorder %s14, 15
    %p99 = por %p97, %p98
    %p100 = scmp.ne.s32.totalorder %s92, %s95
    %p101 = scmp.eq.s32.totalorder %s14, 0
    %p102 = por %p100, %p101
    %p103 = scmp.ne.s32.totalorder %s92, %s95
    %p104 = scmp.eq.s32.totalorder %s19, 15
    %p105 = por %p103, %p104
    %p106 = scmp.ne.s32.totalorder %s95, %s96
    %p107 = scmp.eq.s32.totalorder %s19, 0
    %p108 = por %p106, %p107
    %p109 = scmp.ne.s32.totalorder %s95, %s96
    %p110 = scmp.eq.s32.totalorder %s20, 15
    %p111 = por %p109, %p110
    %p113 = scmp.ne.s32.totalorder %s96, %s112
    %p114 = scmp.eq.s32.totalorder %s20, 0
    %p115 = por %p113, %p114
    %s117 = sadd.s32 %s116, 1
    %p120 = scmp.eq.s32.totalorder %s14, 15
    %p121 = scmp.ne.s32.totalorder %s116, %s118
    %p122 = scmp.eq.s32.totalorder %s14, 0
    %p123 = por %p121, %p122
    %p124 = scmp.ne.s32.totalorder %s116, %s118
    %p125 = scmp.eq.s32.totalorder %s19, 15
    %p126 = por %p124, %p125
    %p127 = scmp.ne.s32.totalorder %s118, %s119
    %p128 = scmp.eq.s32.totalorder %s19, 0
    %p129 = por %p127, %p128
    %p130 = scmp.ne.s32.totalorder %s118, %s119
    %p131 = scmp.eq.s32.totalorder %s20, 15
    %p132 = por %p130, %p131
    %p134 = scmp.ne.s32.totalorder %s119, %s133
    %p135 = scmp.eq.s32.totalorder %s20, 0
    %p136 = por %p134, %p135
    %s138 = sadd.s32 %s137, 1
    %p141 = scmp.eq.s32.totalorder %s14, 15
    %p142 = scmp.ne.s32.totalorder %s137, %s139
    %p143 = scmp.eq.s32.totalorder %s14, 0
    %p144 = por %p142, %p143
    %p145 = scmp.ne.s32.totalorder %s137, %s139
    %p146 = scmp.eq.s32.totalorder %s19, 15
    %p147 = por %p145, %p146
    %p148 = scmp.ne.s32.totalorder %s139, %s140
    %p149 = scmp.eq.s32.totalorder %s19, 0
    %p150 = por %p148, %p149
    %p151 = scmp.ne.s32.totalorder %s139, %s140
    %p152 = scmp.eq.s32.totalorder %s20, 15
    %p153 = por %p151, %p152
    %p155 = scmp.ne.s32.totalorder %s140, %s154
    %p156 = scmp.eq.s32.totalorder %s20, 0
    %p157 = por %p155, %p156
    %s159 = sadd.s32 %s158, 1
    %p162 = scmp.eq.s32.totalorder %s14, 15
    %p163 = scmp.ne.s32.totalorder %s158, %s160
    %p164 = scmp.eq.s32.totalorder %s14, 0
    %p165 = por %p163, %p164
    %p166 = scmp.ne.s32.totalorder %s158, %s160
    %p167 = scmp.eq.s32.totalorder %s19, 15
    %p168 = por %p166, %p167
    %p169 = scmp.ne.s32.totalorder %s160, %s161
    %p170 = scmp.eq.s32.totalorder %s19, 0
    %p171 = por %p169, %p170
    %p172 = scmp.ne.s32.totalorder %s160, %s161
    %p173 = scmp.eq.s32.totalorder %s20, 15
    %p174 = por %p172, %p173
    %p176 = scmp.ne.s32.totalorder %s161, %s175
    %p177 = scmp.eq.s32.totalorder %s20, 0
    %p178 = por %p176, %p177
    %s180 = sadd.s32 %s179, 1
    %p183 = scmp.eq.s32.totalorder %s14, 15
    %p184 = scmp.ne.s32.totalorder %s179, %s181
    %p185 = scmp.eq.s32.totalorder %s14, 0
    %p186 = por %p184, %p185
    %p187 = scmp.ne.s32.totalorder %s179, %s181
    %p188 = scmp.eq.s32.totalorder %s19, 15
    %p189 = por %p187, %p188
    %p190 = scmp.ne.s32.totalorder %s181, %s182
    %p191 = scmp.eq.s32.totalorder %s19, 0
    %p192 = por %p190, %p191
    %p193 = scmp.ne.s32.totalorder %s181, %s182
    %p194 = scmp.eq.s32.totalorder %s20, 15
    %p195 = por %p193, %p194
    %p197 = scmp.ne.s32.totalorder %s182, %s196
    %p198 = scmp.eq.s32.totalorder %s20, 0
    %p199 = por %p197, %p198
    %s201 = sadd.s32 %s200, 1
    %p204 = scmp.eq.s32.totalorder %s14, 15
    %p205 = scmp.ne.s32.totalorder %s200, %s202
    %p206 = scmp.eq.s32.totalorder %s14, 0
    %p207 = por %p205, %p206
    %p208 = scmp.ne.s32.totalorder %s200, %s202
    %p209 = scmp.eq.s32.totalorder %s19, 15
    %p210 = por %p208, %p209
    %p211 = scmp.ne.s32.totalorder %s202, %s203
    %p212 = scmp.eq.s32.totalorder %s19, 0
    %p213 = por %p211, %p212
    %p214 = scmp.ne.s32.totalorder %s202, %s203
    %p215 = scmp.eq.s32.totalorder %s20, 15
    %p216 = por %p214, %p215
    %p218 = scmp.ne.s32.totalorder %s203, %s217
    %p219 = scmp.eq.s32.totalorder %s20, 0
    %p220 = por %p218, %p219
    %s221 = ssub.s32 %s21, %s33
    %s222 = ssub.s32 %s22, %s29
    %s223 = sor.u32 %s221, %s222
    %p224 = scmp.eq.s32.totalorder %s223, 0
    %s226 = sadd.s32 %s225, 1
    %s227 = scalar_select %p224, %s225, %s226
    %p230 = pneg %p224
    %p231 = scmp.eq.s32.totalorder %s14, 15
    %p232 = por %p230, %p231
    %p233 = scmp.ne.s32.totalorder %s225, %s228
    %p234 = scmp.eq.s32.totalorder %s14, 0
    %p235 = por %p233, %p234
    %p236 = scmp.ne.s32.totalorder %s225, %s228
    %p237 = scmp.eq.s32.totalorder %s19, 15
    %p238 = por %p236, %p237
    %p239 = scmp.ne.s32.totalorder %s228, %s229
    %p240 = scmp.eq.s32.totalorder %s19, 0
    %p241 = por %p239, %p240
    %p242 = scmp.ne.s32.totalorder %s228, %s229
    %p243 = scmp.eq.s32.totalorder %s20, 15
    %p244 = por %p242, %p243
    %p246 = scmp.ne.s32.totalorder %s229, %s245
    %p247 = scmp.eq.s32.totalorder %s20, 0
    %p248 = por %p246, %p247
    %p249 = scmp.le.s32.totalorder 1, %s14
    %p250 = scmp.lt.s32.totalorder %s14, 17
    %p251 = pnand %p249, %p250
    %p252 = pneg %p251
    // Predicated region
    $region9: #{templ_emb_forward.26} parent=5 // pred_check
      _
    $region10: #{templ_emb_forward.26} parent=5 // pred_check_branch
      %254 = sbr.rel (%p251) target = $region12
    $region11: #{templ_emb_forward.26} parent=5 // pred_region
      %s255 = ssub.s32 %s14, 1
      // Predicated region
      $region13: #{templ_emb_forward.26} parent=11 // pred_check
        %p256 = pneg %p129
      $region14: #{templ_emb_forward.26} parent=11 // pred_check_branch
        %258 = sbr.rel (%p256) target = $region16
      $region15: #{templ_emb_forward.26} parent=11 // pred_region
        _
      $region16: #{templ_emb_forward.26} parent=11 // pred_fallthru
        _
      // Predicated region
      $region17: #{templ_emb_forward.26} parent=11 // pred_check
        %p259 = pneg %p150
      $region18: #{templ_emb_forward.26} parent=11 // pred_check_branch
        %261 = sbr.rel (%p259) target = $region20
      $region19: #{templ_emb_forward.26} parent=11 // pred_region
        _
      $region20: #{templ_emb_forward.26} parent=11 // pred_fallthru
        _
      // Predicated region
      $region21: #{templ_emb_forward.26} parent=11 // pred_check
        %p262 = pneg %p171
      $region22: #{templ_emb_forward.26} parent=11 // pred_check_branch
        %264 = sbr.rel (%p262) target = $region24
      $region23: #{templ_emb_forward.26} parent=11 // pred_region
        _
      $region24: #{templ_emb_forward.26} parent=11 // pred_fallthru
        _
      // Predicated region
      $region25: #{templ_emb_forward.26} parent=11 // pred_check
        %p265 = pneg %p192
      $region26: #{templ_emb_forward.26} parent=11 // pred_check_branch
        %267 = sbr.rel (%p265) target = $region28
      $region27: #{templ_emb_forward.26} parent=11 // pred_region
        _
      $region28: #{templ_emb_forward.26} parent=11 // pred_fallthru
        _
      // Predicated region
      $region29: #{templ_emb_forward.26} parent=11 // pred_check
        %p268 = pneg %p213
      $region30: #{templ_emb_forward.26} parent=11 // pred_check_branch
        %270 = sbr.rel (%p268) target = $region32
      $region31: #{templ_emb_forward.26} parent=11 // pred_region
        _
      $region32: #{templ_emb_forward.26} parent=11 // pred_fallthru
        _
    $region12: #{templ_emb_forward.26} parent=5 // pred_fallthru
      _
    %p271 = scmp.lt.s32.totalorder %s14, 16
    // Predicated region
    $region33: #{templ_emb_forward.26} parent=5 // pred_check
      %p272 = pneg %p271
    $region34: #{templ_emb_forward.26} parent=5 // pred_check_branch
      %274 = sbr.rel (%p272) target = $region36
    $region35: #{templ_emb_forward.26} parent=5 // pred_region
      // Predicated region
      $region37: #{templ_emb_forward.26} parent=35 // pred_check
        %p275 = pneg %p48
      $region38: #{templ_emb_forward.26} parent=35 // pred_check_branch
        %277 = sbr.rel (%p275) target = $region40
      $region39: #{templ_emb_forward.26} parent=35 // pred_region
        %p278 = scmp.lt.s32.totalorder %s21, 1
        %s279 = scalar_select %p278, %s21, 1
        %p280 = scmp.lt.s32.totalorder %s22, 7
        %s281 = scalar_select %p280, %s22, 7
        %s282 = smul.addr %s279, 8
        %s283 = sadd.s32 %s281, %s282
        %s284 = scalar_lea.vmem %s0, %s283
      $region40: #{templ_emb_forward.26} parent=35 // pred_fallthru
        _
      // Predicated region
      $region41: #{templ_emb_forward.26} parent=35 // pred_check
        %p285 = pneg %p74
      $region42: #{templ_emb_forward.26} parent=35 // pred_check_branch
        %287 = sbr.rel (%p285) target = $region44
      $region43: #{templ_emb_forward.26} parent=35 // pred_region
        %p288 = scmp.lt.s32.totalorder %s21, 1
        %s289 = scalar_select %p288, %s21, 1
        %s290 = smul.addr %s289, 8
        %s291 = scalar_lea.vmem %s1, %s290
      $region44: #{templ_emb_forward.26} parent=35 // pred_fallthru
        _
      // Predicated region
      $region45: #{templ_emb_forward.26} parent=35 // pred_check
        %p292 = pneg %p102
      $region46: #{templ_emb_forward.26} parent=35 // pred_check_branch
        %294 = sbr.rel (%p292) target = $region48
      $region47: #{templ_emb_forward.26} parent=35 // pred_region
        %p295 = scmp.lt.s32.totalorder %s21, 1
        %s296 = scalar_select %p295, %s21, 1
        %p297 = scmp.lt.s32.totalorder %s22, 7
        %s298 = scalar_select %p297, %s22, 7
        %s299 = smul.addr %s296, 8
        %s300 = sadd.s32 %s298, %s299
        %s301 = smul.addr %s300, 4
        %s302 = scalar_lea.vmem %s2, %s301
      $region48: #{templ_emb_forward.26} parent=35 // pred_fallthru
        _
    $region36: #{templ_emb_forward.26} parent=5 // pred_fallthru
      _
    %p303 = scmp.le.s32.totalorder 1, %s14
    %p304 = scmp.lt.s32.totalorder %s14, 17
    %p305 = pnand %p303, %p304
    %p306 = pneg %p305
    // Predicated region
    $region49: #{templ_emb_forward.26} parent=5 // pred_check
      _
    $region50: #{templ_emb_forward.26} parent=5 // pred_check_branch
      %308 = sbr.rel (%p305) target = $region52
    $region51: #{templ_emb_forward.26} parent=5 // pred_region
      %s309 = ssub.s32 %s14, 1
      %p310 = scmp.lt.s32.totalorder %s23, 1
      %s311 = scalar_select %p310, %s23, 1
      %p312 = scmp.lt.s32.totalorder %s24, 7
      %s313 = scalar_select %p312, %s24, 7
      %s314 = smul.addr %s311, 8
      %s315 = sadd.s32 %s313, %s314
      %s316 = scalar_lea.vmem %s0, %s315
      %p317 = pneg %p54
      %p318 = pneg %p51
      %p319 = scmp.lt.s32.totalorder %s23, 1
      %s320 = scalar_select %p319, %s23, 1
      %s321 = smul.addr %s320, 8
      %s322 = scalar_lea.vmem %s1, %s321
      %p323 = pneg %p80
      %p324 = pneg %p77
      %p325 = scmp.lt.s32.totalorder %s23, 1
      %s326 = scalar_select %p325, %s23, 1
      %p327 = scmp.lt.s32.totalorder %s24, 7
      %s328 = scalar_select %p327, %s24, 7
      %s329 = smul.addr %s326, 8
      %s330 = sadd.s32 %s328, %s329
      %s331 = smul.addr %s330, 4
      %s332 = scalar_lea.vmem %s2, %s331
      %p333 = pneg %p108
      %p334 = pneg %p105
      %p335 = pneg %p129
      %p336 = pneg %p126
      %p337 = pneg %p150
      %p338 = pneg %p147
      %p339 = pneg %p171
      %p340 = pneg %p168
      %p341 = pneg %p192
      %p342 = pneg %p189
      %p343 = pneg %p213
      %p344 = pneg %p210
      %p345 = pneg %p241
      %p346 = pneg %p238
      %p347 = scmp.lt.s32.totalorder %s23, 1
      %s348 = scalar_select %p347, %s23, 1
      %p349 = scmp.lt.s32.totalorder %s24, 7
      %s350 = scalar_select %p349, %s24, 7
      %s351 = smul.addr %s348, 8
      %s352 = sadd.s32 %s350, %s351
      %s353 = smul.addr %s352, 4
      %s354 = scalar_lea.vmem %s8, %s353
      %p355 = scmp.lt.s32.totalorder %s23, 1
      %s356 = scalar_select %p355, %s23, 1
      %p357 = scmp.lt.s32.totalorder %s24, 7
      %s358 = scalar_select %p357, %s24, 7
      %s359 = smul.addr %s356, 8
      %s360 = sadd.s32 %s358, %s359
      %s361 = scalar_lea.vmem %s0, %s360
      %p362 = scmp.lt.s32.totalorder %s23, 1
      %s363 = scalar_select %p362, %s23, 1
      %s364 = smul.addr %s363, 8
      %s365 = scalar_lea.vmem %s1, %s364
      %p366 = scmp.lt.s32.totalorder %s23, 1
      %s367 = scalar_select %p366, %s23, 1
      %p368 = scmp.lt.s32.totalorder %s24, 7
      %s369 = scalar_select %p368, %s24, 7
      %s370 = smul.addr %s367, 8
      %s371 = sadd.s32 %s369, %s370
      %s372 = smul.addr %s371, 4
      %s373 = scalar_lea.vmem %s2, %s372
      %p374 = scmp.lt.s32.totalorder %s23, 1
      %s375 = scalar_select %p374, %s23, 1
      %p376 = scmp.lt.s32.totalorder %s24, 7
      %s377 = scalar_select %p376, %s24, 7
      %s378 = smul.addr %s375, 8
      %s379 = sadd.s32 %s377, %s378
      %s380 = smul.addr %s379, 4
      %s381 = scalar_lea.vmem %s8, %s380
      %v383 = vld [vmem:[%s361] sm:$0x1]
      %v384 = vld [vmem:[%s365] sm:$0xff]
      %v386 = vperm.slane %v383, 0
      %v388 = vsub.f32 %v384, %v386
      %v389 = vmul.f32 %v388, %v388
      %vm390 = vcmask 23552
      %v391 = vsel %vm390, %v389, 0.0
      %392 = vadd.xlane.f32.xlu0 %v391
      %v393 = vpop.xlane.xlu0 %392
      %v394 = vrsqrt.pop %v393
      %v395 = vmul.f32 %v394, %v393
      %v396 = vmul.f32 %v395, %v394
      %v397 = vmul.f32 0.5, %v396
      %v398 = vsub.f32 1.5, %v397
      %v399 = vmul.f32 %v394, %v398
      %v400 = vmul.f32 %v393, %v399
      %vm401 = vcmp.eq.f32.partialorder %v393, inf
      %v402 = vsel %vm401, %v393, %v400
      %vm403 = vcmp.eq.f32.partialorder %v393, 0.0
      %v404 = vand.u32 %v393, 2147483648
      %v405 = vsel %vm403, %v404, %v402
      %v406 = vld [vmem:[%s3] sm:$0x1]
      %v408 = vperm.slane %v406, 0
      %v410 = vsub.f32 %v405, %v408
      %v411 = vrcp.pop 0.5555556
      %v412 = vmul.f32 0.5555556, %v411
      %v413 = vsub.f32 1.0, %v412
      %v414 = vmul.f32 %v411, %v413
      %v415 = vadd.f32 %v411, %v414
      %vm416 = vweird.f32 %v411
      %v417 = vsel %vm416, %v411, %v415
      %v418 = vmul.f32 %v410, %v417
      %v419 = vmul.f32 %v418, %v418
      %v420 = vsub.f32 0.0, %v419
      %v421 = vmul.f32 %v420, 1.442695
      %v422 = vpow.pop %v421
      %v423 = vld [vmem:[%s373] sm:$0xf]
      %v424 = vunpack.c.l.bf16 %v423
      %426 = vset.pattern.permute.xlu0 0
      %427 = vperm.xlu0 %426, %v424
      %v428 = vpop.permute.xlu0 %427
      %v430 = vmul.f32 %v422, %v428
      %v431 = vpack.c.bf16 %v430, %v430
      %v432 = vld [vmem:[%s4] sm:$0xf]
      %v433 = vld [vmem:[%s4 + $0x4] sm:$0xf]
      %v434 = vld [vmem:[%s4 + $0x8] sm:$0xf]
      %v435 = vld [vmem:[%s4 + $0xc] sm:$0xf]
      %v436 = vld [vmem:[%s4 + $0x10] sm:$0x3]
      %v437 = vld [vmem:[%s5] sm:$0x1]
      %v438 = vunpack.c.l.bf16 %v437
      %v439 = vperm.slane %v438, 0
      %v445 = vunpack.c.l.b16 %v432
      %v446 = vunpack.c.l.b16 %v433
      %v447 = vunpack.c.l.b16 %v434
      %v448 = vunpack.c.l.b16 %v435
      %v449 = vunpack.c.l.b16 %v436
      %v450 = vpack.c.b16 %v446, %v445
      %v451 = vpack.c.b16 %v448, %v447
      %v452 = vpack.c.b16 %v449, %v449
      %vm455 = vcmask 293888
      %v457 = vsel %vm455, %v431, 0
      %vm459 = vcmask 1041408
      %v461 = vsel %vm459, %v452, 0
      %463 = vmatpush.bf16.msra.mxu0 0
      %464 = vmatpush.bf16.msra.mxu0 0
      %465 = vmatpush.bf16.msra.mxu0 0
      %466 = vmatpush.bf16.msra.mxu0 0
      %467 = vmatpush.bf16.msra.mxu0 0
      %468 = vmatpush.bf16.msra.mxu0 %v461
      %469 = vmatpush.bf16.msra.mxu0 %v451
      %470 = vmatpush.bf16.msra.mxu0 %v450
      %471 = vmatmul.bf16.gmra.mxu0 %v457
      %v472 = vpop.f32.mrf.mxu0
      %v473 = vadd.f32 %v439, %v472
      %v474 = vpop.f32.mrf.mxu0
      %475 = vdwg.mxu0
      %v476 = vmax.f32 %v473, 0.0
      %v477 = vpack.c.bf16 %v476, %v476
      %v478 = vld [vmem:[%s6] sm:$0xf]
      %v479 = vld [vmem:[%s6 + $0x4] sm:$0xf]
      %v480 = vld [vmem:[%s7] sm:$0x1]
      %v481 = vunpack.c.l.bf16 %v480
      %v482 = vperm.slane %v481, 0
      %v485 = vunpack.c.l.b16 %v478
      %v486 = vunpack.c.l.b16 %v479
      %v487 = vpack.c.b16 %v486, %v485
      %vm489 = vcmask 130048
      %v491 = vsel %vm489, %v477, 0
      %493 = vmatpush.bf16.msra.mxu0 0
      %494 = vmatpush.bf16.msra.mxu0 0
      %495 = vmatpush.bf16.msra.mxu0 0
      %496 = vmatpush.bf16.msra.mxu0 0
      %497 = vmatpush.bf16.msra.mxu0 0
      %498 = vmatpush.bf16.msra.mxu0 0
      %499 = vmatpush.bf16.msra.mxu0 0
      %500 = vmatpush.bf16.msra.mxu0 %v487
      %501 = vmatmul.bf16.gmra.mxu0 %v491
      %v502 = vpop.f32.mrf.mxu0
      %v503 = vadd.f32 %v482, %v502
      %v504 = vpop.f32.mrf.mxu0
      %505 = vdwg.mxu0
      %v506 = vpack.c.bf16 %v503, %v503
      %vm507 = vcmask 519168
      %508 = vst.msk [vmem:[%s381] sm:$0xf] %vm507, %v506
      %p509 = scmp.lt.s32.totalorder %s23, 1
      %s510 = scalar_select %p509, %s23, 1
      %p511 = scmp.lt.s32.totalorder %s24, 7
      %s512 = scalar_select %p511, %s24, 7
      %s513 = smul.addr %s510, 8
      %s514 = sadd.s32 %s512, %s513
      %s515 = smul.addr %s514, 4
      %s516 = scalar_lea.vmem %s8, %s515
      // Predicated region
      $region53: #{templ_emb_forward.26} parent=51 // pred_check
        %p517 = pneg %p238
      $region54: #{templ_emb_forward.26} parent=51 // pred_check_branch
        %519 = sbr.rel (%p517) target = $region56
      $region55: #{templ_emb_forward.26} parent=51 // pred_region
        _
      $region56: #{templ_emb_forward.26} parent=51 // pred_fallthru
        _
    $region52: #{templ_emb_forward.26} parent=5 // pred_fallthru
      _
    %p520 = scmp.le.s32.totalorder 2, %s14
    // Predicated region
    $region57: #{templ_emb_forward.26} parent=5 // pred_check
      %p521 = pneg %p520
    $region58: #{templ_emb_forward.26} parent=5 // pred_check_branch
      %523 = sbr.rel (%p521) target = $region60
    $region59: #{templ_emb_forward.26} parent=5 // pred_region
      %s524 = ssub.s32 %s14, 2
      // Predicated region
      $region61: #{templ_emb_forward.26} parent=59 // pred_check
        %p525 = pneg %p244
      $region62: #{templ_emb_forward.26} parent=59 // pred_check_branch
        %527 = sbr.rel (%p525) target = $region64
      $region63: #{templ_emb_forward.26} parent=59 // pred_region
        %p528 = scmp.lt.s32.totalorder %s25, 1
        %s529 = scalar_select %p528, %s25, 1
        %p530 = scmp.lt.s32.totalorder %s26, 7
        %s531 = scalar_select %p530, %s26, 7
        %s532 = smul.addr %s529, 8
        %s533 = sadd.s32 %s531, %s532
        %s534 = smul.addr %s533, 4
        %s535 = scalar_lea.vmem %s8, %s534
      $region64: #{templ_emb_forward.26} parent=59 // pred_fallthru
        _
    $region60: #{templ_emb_forward.26} parent=5 // pred_fallthru
      _
  $region6: #{templ_emb_forward.26} parent=0 // loop_footer
    %s18 = sadd.s32 1, %s14
  $region7: #{templ_emb_forward.26} parent=0 // loop_footer_branch
    %13 = sbr.rel target = $region3
  $region8: #{templ_emb_forward.26} parent=0 // loop_exit
    _

// kernel: templ_emb_forward.28
$region0: #{templ_emb_forward.28}
  #allocation0 [shape = 'u32[]', space=smem, size = 0x4, offset = 0x4, fixed_abs, tag = 'smem constant byte address 0x4 - core index']
  #allocation1 [shape = 'u32[72,128]{1,0:T(1,128)}', space=vmem, size = 0x9000, scoped, tag = 'internal scratch']
  %s0 = inlined_call_operand.vmem [shape: bf16[128,64], index: 0, kind: input, shape index: {}]
  %s1 = inlined_call_operand.vmem [shape: bf16[1,64], index: 1, kind: input, shape index: {}]
  %s2 = inlined_call_operand.vmem [shape: bf16[1,64], index: 2, kind: input, shape index: {}]
  %s3 = inlined_call_operand.vmem [shape: bf16[64,4], index: 3, kind: input, shape index: {}]
  %s4 = inlined_call_operand.vmem [shape: bf16[128,4], index: 4, kind: output, shape index: {}]
  %s5 = sld [smem:[#allocation0]]
  $region26: #{templ_emb_forward.28} parent=0
    _
  %s7 = ssub.s32 1, %s5
  %s8 = scalar_select 0, %s7, %s5
  // Predicated region
  $region2: #{templ_emb_forward.28} parent=0 // pred_check
    _
  $region3: #{templ_emb_forward.28} parent=0 // pred_check_branch
    %10 = sbr.rel (0) target = $region5
  $region4: #{templ_emb_forward.28} parent=0 // pred_region
    _
  $region5: #{templ_emb_forward.28} parent=0 // pred_fallthru
    _
  // Predicated region
  $region6: #{templ_emb_forward.28} parent=0 // pred_check
    _
  $region7: #{templ_emb_forward.28} parent=0 // pred_check_branch
    %12 = sbr.rel (0) target = $region9
  $region8: #{templ_emb_forward.28} parent=0 // pred_region
    _
  $region9: #{templ_emb_forward.28} parent=0 // pred_fallthru
    _
  // Predicated region
  $region10: #{templ_emb_forward.28} parent=0 // pred_check
    _
  $region11: #{templ_emb_forward.28} parent=0 // pred_check_branch
    %14 = sbr.rel (0) target = $region13
  $region12: #{templ_emb_forward.28} parent=0 // pred_region
    _
  $region13: #{templ_emb_forward.28} parent=0 // pred_fallthru
    _
  // Predicated region
  $region14: #{templ_emb_forward.28} parent=0 // pred_check
    _
  $region15: #{templ_emb_forward.28} parent=0 // pred_check_branch
    %16 = sbr.rel (0) target = $region17
  $region16: #{templ_emb_forward.28} parent=0 // pred_region
    _
  $region17: #{templ_emb_forward.28} parent=0 // pred_fallthru
    _
  %v18 = vld [vmem:[%s0] sm:$0xf]
  %v19 = vld [vmem:[%s0 + $0x4] sm:$0xf]
  %v20 = vld [vmem:[%s0 + $0x8] sm:$0xf]
  %v21 = vld [vmem:[%s0 + $0xc] sm:$0xf]
  %v22 = vld [vmem:[%s0 + $0x10] sm:$0xf]
  %v23 = vld [vmem:[%s0 + $0x14] sm:$0xf]
  %v24 = vld [vmem:[%s0 + $0x18] sm:$0xf]
  %v25 = vld [vmem:[%s0 + $0x1c] sm:$0xf]
  %v26 = vld [vmem:[%s0 + $0x20] sm:$0xf]
  %v27 = vld [vmem:[%s0 + $0x24] sm:$0xf]
  %v28 = vld [vmem:[%s0 + $0x28] sm:$0xf]
  %v29 = vld [vmem:[%s0 + $0x2c] sm:$0xf]
  %v30 = vld [vmem:[%s0 + $0x30] sm:$0xf]
  %v31 = vld [vmem:[%s0 + $0x34] sm:$0xf]
  %v32 = vld [vmem:[%s0 + $0x38] sm:$0xf]
  %v33 = vld [vmem:[%s0 + $0x3c] sm:$0xf]
  %v34 = vunpack.c.l.bf16 %v18
  %v35 = vunpack.c.l.bf16 %v19
  %v36 = vunpack.c.l.bf16 %v20
  %v37 = vunpack.c.l.bf16 %v21
  %v38 = vunpack.c.l.bf16 %v22
  %v39 = vunpack.c.l.bf16 %v23
  %v40 = vunpack.c.l.bf16 %v24
  %v41 = vunpack.c.l.bf16 %v25
  %v42 = vunpack.c.l.bf16 %v26
  %v43 = vunpack.c.l.bf16 %v27
  %v44 = vunpack.c.l.bf16 %v28
  %v45 = vunpack.c.l.bf16 %v29
  %v46 = vunpack.c.l.bf16 %v30
  %v47 = vunpack.c.l.bf16 %v31
  %v48 = vunpack.c.l.bf16 %v32
  %v49 = vunpack.c.l.bf16 %v33
  %vm50 = vcmask 523264
  %v51 = vsel %vm50, %v34, 0.0
  %52 = vadd.xlane.f32.xlu0 %v51
  %v53 = vpop.xlane.xlu0 %52
  %v54 = vsel %vm50, %v35, 0.0
  %55 = vadd.xlane.f32.xlu0 %v54
  %v56 = vpop.xlane.xlu0 %55
  %v57 = vsel %vm50, %v36, 0.0
  %58 = vadd.xlane.f32.xlu0 %v57
  %v59 = vpop.xlane.xlu0 %58
  %v60 = vsel %vm50, %v37, 0.0
  %61 = vadd.xlane.f32.xlu0 %v60
  %v62 = vpop.xlane.xlu0 %61
  %v63 = vsel %vm50, %v38, 0.0
  %64 = vadd.xlane.f32.xlu0 %v63
  %v65 = vpop.xlane.xlu0 %64
  %v66 = vsel %vm50, %v39, 0.0
  %67 = vadd.xlane.f32.xlu0 %v66
  %v68 = vpop.xlane.xlu0 %67
  %v69 = vsel %vm50, %v40, 0.0
  %70 = vadd.xlane.f32.xlu0 %v69
  %v71 = vpop.xlane.xlu0 %70
  %v72 = vsel %vm50, %v41, 0.0
  %73 = vadd.xlane.f32.xlu0 %v72
  %v74 = vpop.xlane.xlu0 %73
  %v75 = vsel %vm50, %v42, 0.0
  %76 = vadd.xlane.f32.xlu0 %v75
  %v77 = vpop.xlane.xlu0 %76
  %v78 = vsel %vm50, %v43, 0.0
  %79 = vadd.xlane.f32.xlu0 %v78
  %v80 = vpop.xlane.xlu0 %79
  %v81 = vsel %vm50, %v44, 0.0
  %82 = vadd.xlane.f32.xlu0 %v81
  %v83 = vpop.xlane.xlu0 %82
  %v84 = vsel %vm50, %v45, 0.0
  %85 = vadd.xlane.f32.xlu0 %v84
  %v86 = vpop.xlane.xlu0 %85
  %v87 = vsel %vm50, %v46, 0.0
  %88 = vadd.xlane.f32.xlu0 %v87
  %v89 = vpop.xlane.xlu0 %88
  %v90 = vsel %vm50, %v47, 0.0
  %91 = vadd.xlane.f32.xlu0 %v90
  %v92 = vpop.xlane.xlu0 %91
  %v93 = vsel %vm50, %v48, 0.0
  %94 = vadd.xlane.f32.xlu0 %v93
  %v95 = vpop.xlane.xlu0 %94
  %v96 = vsel %vm50, %v49, 0.0
  %97 = vadd.xlane.f32.xlu0 %v96
  %v98 = vpop.xlane.xlu0 %97
  %v99 = vrcp.pop 64.0
  %v100 = vmul.f32 64.0, %v99
  %v101 = vsub.f32 1.0, %v100
  %v102 = vmul.f32 %v99, %v101
  %v103 = vadd.f32 %v99, %v102
  %vm104 = vweird.f32 %v99
  %v105 = vsel %vm104, %v99, %v103
  %v106 = vmul.f32 %v53, %v105
  %v107 = vmul.f32 %v56, %v105
  %v108 = vmul.f32 %v59, %v105
  %v109 = vmul.f32 %v62, %v105
  %v110 = vmul.f32 %v65, %v105
  %v111 = vmul.f32 %v68, %v105
  %v112 = vmul.f32 %v71, %v105
  %v113 = vmul.f32 %v74, %v105
  %v114 = vmul.f32 %v77, %v105
  %v115 = vmul.f32 %v80, %v105
  %v116 = vmul.f32 %v83, %v105
  %v117 = vmul.f32 %v86, %v105
  %v118 = vmul.f32 %v89, %v105
  %v119 = vmul.f32 %v92, %v105
  %v120 = vmul.f32 %v95, %v105
  %v121 = vmul.f32 %v98, %v105
  %v122 = vsub.f32 %v34, %v106
  %v123 = vsub.f32 %v35, %v107
  %v124 = vsub.f32 %v36, %v108
  %v125 = vsub.f32 %v37, %v109
  %v126 = vsub.f32 %v38, %v110
  %v127 = vsub.f32 %v39, %v111
  %v128 = vsub.f32 %v40, %v112
  %v129 = vsub.f32 %v41, %v113
  %v130 = vsub.f32 %v42, %v114
  %v131 = vsub.f32 %v43, %v115
  %v132 = vsub.f32 %v44, %v116
  %v133 = vsub.f32 %v45, %v117
  %v134 = vsub.f32 %v46, %v118
  %v135 = vsub.f32 %v47, %v119
  %v136 = vsub.f32 %v48, %v120
  %v137 = vsub.f32 %v49, %v121
  %v138 = vmul.f32 %v122, %v122
  %v139 = vmul.f32 %v123, %v123
  %v140 = vmul.f32 %v124, %v124
  %v141 = vmul.f32 %v125, %v125
  %v142 = vmul.f32 %v126, %v126
  %v143 = vmul.f32 %v127, %v127
  %v144 = vmul.f32 %v128, %v128
  %v145 = vmul.f32 %v129, %v129
  %v146 = vmul.f32 %v130, %v130
  %v147 = vmul.f32 %v131, %v131
  %v148 = vmul.f32 %v132, %v132
  %v149 = vmul.f32 %v133, %v133
  %v150 = vmul.f32 %v134, %v134
  %v151 = vmul.f32 %v135, %v135
  %v152 = vmul.f32 %v136, %v136
  %v153 = vmul.f32 %v137, %v137
  %v154 = vsel %vm50, %v138, 0.0
  %155 = vadd.xlane.f32.xlu0 %v154
  %v156 = vpop.xlane.xlu0 %155
  %v157 = vsel %vm50, %v139, 0.0
  %158 = vadd.xlane.f32.xlu0 %v157
  %v159 = vpop.xlane.xlu0 %158
  %v160 = vsel %vm50, %v140, 0.0
  %161 = vadd.xlane.f32.xlu0 %v160
  %v162 = vpop.xlane.xlu0 %161
  %v163 = vsel %vm50, %v141, 0.0
  %164 = vadd.xlane.f32.xlu0 %v163
  %v165 = vpop.xlane.xlu0 %164
  %v166 = vsel %vm50, %v142, 0.0
  %167 = vadd.xlane.f32.xlu0 %v166
  %v168 = vpop.xlane.xlu0 %167
  %v169 = vsel %vm50, %v143, 0.0
  %170 = vadd.xlane.f32.xlu0 %v169
  %v171 = vpop.xlane.xlu0 %170
  %v172 = vsel %vm50, %v144, 0.0
  %173 = vadd.xlane.f32.xlu0 %v172
  %v174 = vpop.xlane.xlu0 %173
  %v175 = vsel %vm50, %v145, 0.0
  %176 = vadd.xlane.f32.xlu0 %v175
  %v177 = vpop.xlane.xlu0 %176
  %v178 = vsel %vm50, %v146, 0.0
  %179 = vadd.xlane.f32.xlu0 %v178
  %v180 = vpop.xlane.xlu0 %179
  %v181 = vsel %vm50, %v147, 0.0
  %182 = vadd.xlane.f32.xlu0 %v181
  %v183 = vpop.xlane.xlu0 %182
  %v184 = vsel %vm50, %v148, 0.0
  %185 = vadd.xlane.f32.xlu0 %v184
  %v186 = vpop.xlane.xlu0 %185
  %v187 = vsel %vm50, %v149, 0.0
  %188 = vadd.xlane.f32.xlu0 %v187
  %v189 = vpop.xlane.xlu0 %188
  %v190 = vsel %vm50, %v150, 0.0
  %191 = vadd.xlane.f32.xlu0 %v190
  %v192 = vpop.xlane.xlu0 %191
  %v193 = vsel %vm50, %v151, 0.0
  %194 = vadd.xlane.f32.xlu0 %v193
  %v195 = vpop.xlane.xlu0 %194
  %v196 = vsel %vm50, %v152, 0.0
  %197 = vadd.xlane.f32.xlu0 %v196
  %v198 = vpop.xlane.xlu0 %197
  %v199 = vsel %vm50, %v153, 0.0
  %200 = vadd.xlane.f32.xlu0 %v199
  %v201 = vpop.xlane.xlu0 %200
  %v202 = vmul.f32 %v156, %v105
  %v203 = vmul.f32 %v159, %v105
  %v204 = vmul.f32 %v162, %v105
  %v205 = vmul.f32 %v165, %v105
  %v206 = vmul.f32 %v168, %v105
  %v207 = vmul.f32 %v171, %v105
  %v208 = vmul.f32 %v174, %v105
  %v209 = vmul.f32 %v177, %v105
  %v210 = vmul.f32 %v180, %v105
  %v211 = vmul.f32 %v183, %v105
  %v212 = vmul.f32 %v186, %v105
  %v213 = vmul.f32 %v189, %v105
  %v214 = vmul.f32 %v192, %v105
  %v215 = vmul.f32 %v195, %v105
  %v216 = vmul.f32 %v198, %v105
  %v217 = vmul.f32 %v201, %v105
  %v218 = vadd.f32 %v202, 1e-05
  %v219 = vadd.f32 %v203, 1e-05
  %v220 = vadd.f32 %v204, 1e-05
  %v221 = vadd.f32 %v205, 1e-05
  %v222 = vadd.f32 %v206, 1e-05
  %v223 = vadd.f32 %v207, 1e-05
  %v224 = vadd.f32 %v208, 1e-05
  %v225 = vadd.f32 %v209, 1e-05
  %v226 = vadd.f32 %v210, 1e-05
  %v227 = vadd.f32 %v211, 1e-05
  %v228 = vadd.f32 %v212, 1e-05
  %v229 = vadd.f32 %v213, 1e-05
  %v230 = vadd.f32 %v214, 1e-05
  %v231 = vadd.f32 %v215, 1e-05
  %v232 = vadd.f32 %v216, 1e-05
  %v233 = vadd.f32 %v217, 1e-05
  %v234 = vrsqrt.pop %v218
  %v235 = vmul.f32 %v234, %v218
  %v236 = vmul.f32 %v235, %v234
  %v237 = vmul.f32 0.5, %v236
  %v238 = vsub.f32 1.5, %v237
  %v239 = vmul.f32 %v234, %v238
  %vm240 = vweird.f32 %v218
  %vm241 = vweird.f32 %v234
  %vm242 = vmor %vm240, %vm241
  %v243 = vsel %vm242, %v234, %v239
  %v244 = vrsqrt.pop %v219
  %v245 = vmul.f32 %v244, %v219
  %v246 = vmul.f32 %v245, %v244
  %v247 = vmul.f32 0.5, %v246
  %v248 = vsub.f32 1.5, %v247
  %v249 = vmul.f32 %v244, %v248
  %vm250 = vweird.f32 %v219
  %vm251 = vweird.f32 %v244
  %vm252 = vmor %vm250, %vm251
  %v253 = vsel %vm252, %v244, %v249
  %v254 = vrsqrt.pop %v220
  %v255 = vmul.f32 %v254, %v220
  %v256 = vmul.f32 %v255, %v254
  %v257 = vmul.f32 0.5, %v256
  %v258 = vsub.f32 1.5, %v257
  %v259 = vmul.f32 %v254, %v258
  %vm260 = vweird.f32 %v220
  %vm261 = vweird.f32 %v254
  %vm262 = vmor %vm260, %vm261
  %v263 = vsel %vm262, %v254, %v259
  %v264 = vrsqrt.pop %v221
  %v265 = vmul.f32 %v264, %v221
  %v266 = vmul.f32 %v265, %v264
  %v267 = vmul.f32 0.5, %v266
  %v268 = vsub.f32 1.5, %v267
  %v269 = vmul.f32 %v264, %v268
  %vm270 = vweird.f32 %v221
  %vm271 = vweird.f32 %v264
  %vm272 = vmor %vm270, %vm271
  %v273 = vsel %vm272, %v264, %v269
  %v274 = vrsqrt.pop %v222
  %v275 = vmul.f32 %v274, %v222
  %v276 = vmul.f32 %v275, %v274
  %v277 = vmul.f32 0.5, %v276
  %v278 = vsub.f32 1.5, %v277
  %v279 = vmul.f32 %v274, %v278
  %vm280 = vweird.f32 %v222
  %vm281 = vweird.f32 %v274
  %vm282 = vmor %vm280, %vm281
  %v283 = vsel %vm282, %v274, %v279
  %v284 = vrsqrt.pop %v223
  %v285 = vmul.f32 %v284, %v223
  %v286 = vmul.f32 %v285, %v284
  %v287 = vmul.f32 0.5, %v286
  %v288 = vsub.f32 1.5, %v287
  %v289 = vmul.f32 %v284, %v288
  %vm290 = vweird.f32 %v223
  %vm291 = vweird.f32 %v284
  %vm292 = vmor %vm290, %vm291
  %v293 = vsel %vm292, %v284, %v289
  %v294 = vrsqrt.pop %v224
  %v295 = vmul.f32 %v294, %v224
  %v296 = vmul.f32 %v295, %v294
  %v297 = vmul.f32 0.5, %v296
  %v298 = vsub.f32 1.5, %v297
  %v299 = vmul.f32 %v294, %v298
  %vm300 = vweird.f32 %v224
  %vm301 = vweird.f32 %v294
  %vm302 = vmor %vm300, %vm301
  %v303 = vsel %vm302, %v294, %v299
  %v304 = vrsqrt.pop %v225
  %v305 = vmul.f32 %v304, %v225
  %v306 = vmul.f32 %v305, %v304
  %v307 = vmul.f32 0.5, %v306
  %v308 = vsub.f32 1.5, %v307
  %v309 = vmul.f32 %v304, %v308
  %vm310 = vweird.f32 %v225
  %vm311 = vweird.f32 %v304
  %vm312 = vmor %vm310, %vm311
  %v313 = vsel %vm312, %v304, %v309
  %v314 = vrsqrt.pop %v226
  %v315 = vmul.f32 %v314, %v226
  %v316 = vmul.f32 %v315, %v314
  %v317 = vmul.f32 0.5, %v316
  %v318 = vsub.f32 1.5, %v317
  %v319 = vmul.f32 %v314, %v318
  %vm320 = vweird.f32 %v226
  %vm321 = vweird.f32 %v314
  %vm322 = vmor %vm320, %vm321
  %v323 = vsel %vm322, %v314, %v319
  %v324 = vrsqrt.pop %v227
  %v325 = vmul.f32 %v324, %v227
  %v326 = vmul.f32 %v325, %v324
  %v327 = vmul.f32 0.5, %v326
  %v328 = vsub.f32 1.5, %v327
  %v329 = vmul.f32 %v324, %v328
  %vm330 = vweird.f32 %v227
  %vm331 = vweird.f32 %v324
  %vm332 = vmor %vm330, %vm331
  %v333 = vsel %vm332, %v324, %v329
  %v334 = vrsqrt.pop %v228
  %v335 = vmul.f32 %v334, %v228
  %v336 = vmul.f32 %v335, %v334
  %v337 = vmul.f32 0.5, %v336
  %v338 = vsub.f32 1.5, %v337
  %v339 = vmul.f32 %v334, %v338
  %vm340 = vweird.f32 %v228
  %vm341 = vweird.f32 %v334
  %vm342 = vmor %vm340, %vm341
  %v343 = vsel %vm342, %v334, %v339
  %v344 = vrsqrt.pop %v229
  %v345 = vmul.f32 %v344, %v229
  %v346 = vmul.f32 %v345, %v344
  %v347 = vmul.f32 0.5, %v346
  %v348 = vsub.f32 1.5, %v347
  %v349 = vmul.f32 %v344, %v348
  %vm350 = vweird.f32 %v229
  %vm351 = vweird.f32 %v344
  %vm352 = vmor %vm350, %vm351
  %v353 = vsel %vm352, %v344, %v349
  %v354 = vrsqrt.pop %v230
  %v355 = vmul.f32 %v354, %v230
  %v356 = vmul.f32 %v355, %v354
  %v357 = vmul.f32 0.5, %v356
  %v358 = vsub.f32 1.5, %v357
  %v359 = vmul.f32 %v354, %v358
  %vm360 = vweird.f32 %v230
  %vm361 = vweird.f32 %v354
  %vm362 = vmor %vm360, %vm361
  %v363 = vsel %vm362, %v354, %v359
  %v364 = vrsqrt.pop %v231
  %v365 = vmul.f32 %v364, %v231
  %v366 = vmul.f32 %v365, %v364
  %v367 = vmul.f32 0.5, %v366
  %v368 = vsub.f32 1.5, %v367
  %v369 = vmul.f32 %v364, %v368
  %vm370 = vweird.f32 %v231
  %vm371 = vweird.f32 %v364
  %vm372 = vmor %vm370, %vm371
  %v373 = vsel %vm372, %v364, %v369
  %v374 = vrsqrt.pop %v232
  %v375 = vmul.f32 %v374, %v232
  %v376 = vmul.f32 %v375, %v374
  %v377 = vmul.f32 0.5, %v376
  %v378 = vsub.f32 1.5, %v377
  %v379 = vmul.f32 %v374, %v378
  %vm380 = vweird.f32 %v232
  %vm381 = vweird.f32 %v374
  %vm382 = vmor %vm380, %vm381
  %v383 = vsel %vm382, %v374, %v379
  %v384 = vrsqrt.pop %v233
  %v385 = vmul.f32 %v384, %v233
  %v386 = vmul.f32 %v385, %v384
  %v387 = vmul.f32 0.5, %v386
  %v388 = vsub.f32 1.5, %v387
  %v389 = vmul.f32 %v384, %v388
  %vm390 = vweird.f32 %v233
  %vm391 = vweird.f32 %v384
  %vm392 = vmor %vm390, %vm391
  %v393 = vsel %vm392, %v384, %v389
  %v394 = vmul.f32 %v122, %v243
  %v395 = vmul.f32 %v123, %v253
  %v396 = vmul.f32 %v124, %v263
  %v397 = vmul.f32 %v125, %v273
  %v398 = vmul.f32 %v126, %v283
  %v399 = vmul.f32 %v127, %v293
  %v400 = vmul.f32 %v128, %v303
  %v401 = vmul.f32 %v129, %v313
  %v402 = vmul.f32 %v130, %v323
  %v403 = vmul.f32 %v131, %v333
  %v404 = vmul.f32 %v132, %v343
  %v405 = vmul.f32 %v133, %v353
  %v406 = vmul.f32 %v134, %v363
  %v407 = vmul.f32 %v135, %v373
  %v408 = vmul.f32 %v136, %v383
  %v409 = vmul.f32 %v137, %v393
  %v410 = vld [vmem:[%s1] sm:$0x1]
  %v411 = vunpack.c.l.bf16 %v410
  %v412 = vperm.slane %v411, 0
  %v413 = vmul.f32 %v394, %v412
  %v414 = vmul.f32 %v395, %v412
  %v415 = vmul.f32 %v396, %v412
  %v416 = vmul.f32 %v397, %v412
  %v417 = vmul.f32 %v398, %v412
  %v418 = vmul.f32 %v399, %v412
  %v419 = vmul.f32 %v400, %v412
  %v420 = vmul.f32 %v401, %v412
  %v421 = vmul.f32 %v402, %v412
  %v422 = vmul.f32 %v403, %v412
  %v423 = vmul.f32 %v404, %v412
  %v424 = vmul.f32 %v405, %v412
  %v425 = vmul.f32 %v406, %v412
  %v426 = vmul.f32 %v407, %v412
  %v427 = vmul.f32 %v408, %v412
  %v428 = vmul.f32 %v409, %v412
  %v429 = vld [vmem:[%s2] sm:$0x1]
  %v430 = vunpack.c.l.bf16 %v429
  %v431 = vperm.slane %v430, 0
  %v432 = vadd.f32 %v413, %v431
  %v433 = vadd.f32 %v414, %v431
  %v434 = vadd.f32 %v415, %v431
  %v435 = vadd.f32 %v416, %v431
  %v436 = vadd.f32 %v417, %v431
  %v437 = vadd.f32 %v418, %v431
  %v438 = vadd.f32 %v419, %v431
  %v439 = vadd.f32 %v420, %v431
  %v440 = vadd.f32 %v421, %v431
  %v441 = vadd.f32 %v422, %v431
  %v442 = vadd.f32 %v423, %v431
  %v443 = vadd.f32 %v424, %v431
  %v444 = vadd.f32 %v425, %v431
  %v445 = vadd.f32 %v426, %v431
  %v446 = vadd.f32 %v427, %v431
  %v447 = vadd.f32 %v428, %v431
  %v448 = vpack.c.bf16 %v433, %v432
  %v449 = vpack.c.bf16 %v435, %v434
  %v450 = vpack.c.bf16 %v437, %v436
  %v451 = vpack.c.bf16 %v439, %v438
  %v452 = vpack.c.bf16 %v441, %v440
  %v453 = vpack.c.bf16 %v443, %v442
  %v454 = vpack.c.bf16 %v445, %v444
  %v455 = vpack.c.bf16 %v447, %v446
  %v456 = vld [vmem:[%s3] sm:$0xf]
  %v457 = vld [vmem:[%s3 + $0x4] sm:$0xf]
  %v458 = vld [vmem:[%s3 + $0x8] sm:$0xf]
  %v459 = vld [vmem:[%s3 + $0xc] sm:$0xf]
  %v460 = vld [vmem:[%s3 + $0x10] sm:$0xf]
  %v461 = vld [vmem:[%s3 + $0x14] sm:$0xf]
  %v462 = vld [vmem:[%s3 + $0x18] sm:$0xf]
  %v463 = vld [vmem:[%s3 + $0x1c] sm:$0xf]
  %v472 = vunpack.c.l.b16 %v456
  %v473 = vunpack.c.l.b16 %v457
  %v474 = vunpack.c.l.b16 %v458
  %v475 = vunpack.c.l.b16 %v459
  %v476 = vunpack.c.l.b16 %v460
  %v477 = vunpack.c.l.b16 %v461
  %v478 = vunpack.c.l.b16 %v462
  %v479 = vunpack.c.l.b16 %v463
  %v480 = vpack.c.b16 %v473, %v472
  %v481 = vpack.c.b16 %v475, %v474
  %v482 = vpack.c.b16 %v477, %v476
  %v483 = vpack.c.b16 %v479, %v478
  %v489 = vsel %vm50, %v448, 0
  %v492 = vsel %vm50, %v449, 0
  %v495 = vsel %vm50, %v450, 0
  %v498 = vsel %vm50, %v451, 0
  %v501 = vsel %vm50, %v452, 0
  %v504 = vsel %vm50, %v453, 0
  %v507 = vsel %vm50, %v454, 0
  %v510 = vsel %vm50, %v455, 0
  %512 = vmatpush.bf16.msra.mxu0 0
  %513 = vmatpush.bf16.msra.mxu0 0
  %514 = vmatpush.bf16.msra.mxu0 0
  %515 = vmatpush.bf16.msra.mxu0 0
  %516 = vmatpush.bf16.msra.mxu0 %v483
  %517 = vmatpush.bf16.msra.mxu0 %v482
  %518 = vmatpush.bf16.msra.mxu0 %v481
  %519 = vmatpush.bf16.msra.mxu0 %v480
  %520 = vmatmul.bf16.gmra.mxu0 %v489
  %v521 = vpop.f32.mrf.mxu0
  %v522 = vadd.f32 0.0, %v521
  %v523 = vpop.f32.mrf.mxu0
  %v524 = vadd.f32 0.0, %v523
  %525 = vmatmul.bf16.gmra.mxu0 %v492
  %v526 = vpop.f32.mrf.mxu0
  %v527 = vadd.f32 0.0, %v526
  %v528 = vpop.f32.mrf.mxu0
  %v529 = vadd.f32 0.0, %v528
  %530 = vmatmul.bf16.gmra.mxu0 %v495
  %v531 = vpop.f32.mrf.mxu0
  %v532 = vadd.f32 0.0, %v531
  %v533 = vpop.f32.mrf.mxu0
  %v534 = vadd.f32 0.0, %v533
  %535 = vmatmul.bf16.gmra.mxu0 %v498
  %v536 = vpop.f32.mrf.mxu0
  %v537 = vadd.f32 0.0, %v536
  %v538 = vpop.f32.mrf.mxu0
  %v539 = vadd.f32 0.0, %v538
  %540 = vmatmul.bf16.gmra.mxu0 %v501
  %v541 = vpop.f32.mrf.mxu0
  %v542 = vadd.f32 0.0, %v541
  %v543 = vpop.f32.mrf.mxu0
  %v544 = vadd.f32 0.0, %v543
  %545 = vmatmul.bf16.gmra.mxu0 %v504
  %v546 = vpop.f32.mrf.mxu0
  %v547 = vadd.f32 0.0, %v546
  %v548 = vpop.f32.mrf.mxu0
  %v549 = vadd.f32 0.0, %v548
  %550 = vmatmul.bf16.gmra.mxu0 %v507
  %v551 = vpop.f32.mrf.mxu0
  %v552 = vadd.f32 0.0, %v551
  %v553 = vpop.f32.mrf.mxu0
  %v554 = vadd.f32 0.0, %v553
  %555 = vmatmul.bf16.gmra.mxu0 %v510
  %v556 = vpop.f32.mrf.mxu0
  %v557 = vadd.f32 0.0, %v556
  %v558 = vpop.f32.mrf.mxu0
  %v559 = vadd.f32 0.0, %v558
  %560 = vdwg.mxu0
  %v561 = vpack.c.bf16 %v522, %v522
  %v562 = vpack.c.bf16 %v524, %v524
  %v563 = vpack.c.bf16 %v527, %v527
  %v564 = vpack.c.bf16 %v529, %v529
  %v565 = vpack.c.bf16 %v532, %v532
  %v566 = vpack.c.bf16 %v534, %v534
  %v567 = vpack.c.bf16 %v537, %v537
  %v568 = vpack.c.bf16 %v539, %v539
  %v569 = vpack.c.bf16 %v542, %v542
  %v570 = vpack.c.bf16 %v544, %v544
  %v571 = vpack.c.bf16 %v547, %v547
  %v572 = vpack.c.bf16 %v549, %v549
  %v573 = vpack.c.bf16 %v552, %v552
  %v574 = vpack.c.bf16 %v554, %v554
  %v575 = vpack.c.bf16 %v557, %v557
  %v576 = vpack.c.bf16 %v559, %v559
  %vm577 = vcmask 27648
  %578 = vst.msk [vmem:[%s4] sm:$0xf] %vm577, %v561
  %579 = vst.msk [vmem:[%s4 + $0x4] sm:$0xf] %vm577, %v562
  %580 = vst.msk [vmem:[%s4 + $0x8] sm:$0xf] %vm577, %v563
  %581 = vst.msk [vmem:[%s4 + $0xc] sm:$0xf] %vm577, %v564
  %582 = vst.msk [vmem:[%s4 + $0x10] sm:$0xf] %vm577, %v565
  %583 = vst.msk [vmem:[%s4 + $0x14] sm:$0xf] %vm577, %v566
  %584 = vst.msk [vmem:[%s4 + $0x18] sm:$0xf] %vm577, %v567
  %585 = vst.msk [vmem:[%s4 + $0x1c] sm:$0xf] %vm577, %v568
  %586 = vst.msk [vmem:[%s4 + $0x20] sm:$0xf] %vm577, %v569
  %587 = vst.msk [vmem:[%s4 + $0x24] sm:$0xf] %vm577, %v570
  %588 = vst.msk [vmem:[%s4 + $0x28] sm:$0xf] %vm577, %v571
  %589 = vst.msk [vmem:[%s4 + $0x2c] sm:$0xf] %vm577, %v572
  %590 = vst.msk [vmem:[%s4 + $0x30] sm:$0xf] %vm577, %v573
  %591 = vst.msk [vmem:[%s4 + $0x34] sm:$0xf] %vm577, %v574
  %592 = vst.msk [vmem:[%s4 + $0x38] sm:$0xf] %vm577, %v575
  %593 = vst.msk [vmem:[%s4 + $0x3c] sm:$0xf] %vm577, %v576
  // Predicated region
  $region18: #{templ_emb_forward.28} parent=0 // pred_check
    _
  $region19: #{templ_emb_forward.28} parent=0 // pred_check_branch
    %595 = sbr.rel (0) target = $region21
  $region20: #{templ_emb_forward.28} parent=0 // pred_region
    _
  $region21: #{templ_emb_forward.28} parent=0 // pred_fallthru
    _
  // Predicated region
  $region22: #{templ_emb_forward.28} parent=0 // pred_check
    _
  $region23: #{templ_emb_forward.28} parent=0 // pred_check_branch
    %597 = sbr.rel (0) target = $region25
  $region24: #{templ_emb_forward.28} parent=0 // pred_region
    _
  $region25: #{templ_emb_forward.28} parent=0 // pred_fallthru
    _

// kernel: templ_emb_forward.29
$region0: #{templ_emb_forward.29}
  #allocation0 [shape = 'u32[]', space=smem, size = 0x4, offset = 0x4, fixed_abs, tag = 'smem constant byte address 0x4 - core index']
  #allocation1 [shape = 'u32[72,128]{1,0:T(1,128)}', space=vmem, size = 0x9000, scoped, tag = 'internal scratch']
  %s0 = inlined_call_operand.vmem [shape: bf16[128,64], index: 0, kind: input, shape index: {}]
  %s1 = inlined_call_operand.vmem [shape: bf16[128,64], index: 1, kind: input, shape index: {}]
  %s2 = inlined_call_operand.vmem [shape: bf16[64,64], index: 2, kind: input, shape index: {}]
  %s3 = inlined_call_operand.vmem [shape: bf16[1,64], index: 3, kind: input, shape index: {}]
  %s4 = inlined_call_operand.vmem [shape: bf16[128,64], index: 4, kind: output, shape index: {}]
  %s5 = sld [smem:[#allocation0]]
  $region26: #{templ_emb_forward.29} parent=0
    _
  %s7 = ssub.s32 1, %s5
  %s8 = scalar_select 0, %s7, %s5
  // Predicated region
  $region2: #{templ_emb_forward.29} parent=0 // pred_check
    _
  $region3: #{templ_emb_forward.29} parent=0 // pred_check_branch
    %10 = sbr.rel (0) target = $region5
  $region4: #{templ_emb_forward.29} parent=0 // pred_region
    _
  $region5: #{templ_emb_forward.29} parent=0 // pred_fallthru
    _
  // Predicated region
  $region6: #{templ_emb_forward.29} parent=0 // pred_check
    _
  $region7: #{templ_emb_forward.29} parent=0 // pred_check_branch
    %12 = sbr.rel (0) target = $region9
  $region8: #{templ_emb_forward.29} parent=0 // pred_region
    _
  $region9: #{templ_emb_forward.29} parent=0 // pred_fallthru
    _
  // Predicated region
  $region10: #{templ_emb_forward.29} parent=0 // pred_check
    _
  $region11: #{templ_emb_forward.29} parent=0 // pred_check_branch
    %14 = sbr.rel (0) target = $region13
  $region12: #{templ_emb_forward.29} parent=0 // pred_region
    _
  $region13: #{templ_emb_forward.29} parent=0 // pred_fallthru
    _
  // Predicated region
  $region14: #{templ_emb_forward.29} parent=0 // pred_check
    _
  $region15: #{templ_emb_forward.29} parent=0 // pred_check_branch
    %16 = sbr.rel (0) target = $region17
  $region16: #{templ_emb_forward.29} parent=0 // pred_region
    _
  $region17: #{templ_emb_forward.29} parent=0 // pred_fallthru
    _
  %v18 = vld [vmem:[%s0] sm:$0xf]
  %v19 = vld [vmem:[%s0 + $0x4] sm:$0xf]
  %v20 = vld [vmem:[%s0 + $0x8] sm:$0xf]
  %v21 = vld [vmem:[%s0 + $0xc] sm:$0xf]
  %v22 = vld [vmem:[%s0 + $0x10] sm:$0xf]
  %v23 = vld [vmem:[%s0 + $0x14] sm:$0xf]
  %v24 = vld [vmem:[%s0 + $0x18] sm:$0xf]
  %v25 = vld [vmem:[%s0 + $0x1c] sm:$0xf]
  %v26 = vld [vmem:[%s0 + $0x20] sm:$0xf]
  %v27 = vld [vmem:[%s0 + $0x24] sm:$0xf]
  %v28 = vld [vmem:[%s0 + $0x28] sm:$0xf]
  %v29 = vld [vmem:[%s0 + $0x2c] sm:$0xf]
  %v30 = vld [vmem:[%s0 + $0x30] sm:$0xf]
  %v31 = vld [vmem:[%s0 + $0x34] sm:$0xf]
  %v32 = vld [vmem:[%s0 + $0x38] sm:$0xf]
  %v33 = vld [vmem:[%s0 + $0x3c] sm:$0xf]
  %v34 = vunpack.c.l.bf16 %v18
  %v35 = vunpack.c.l.bf16 %v19
  %v36 = vunpack.c.l.bf16 %v20
  %v37 = vunpack.c.l.bf16 %v21
  %v38 = vunpack.c.l.bf16 %v22
  %v39 = vunpack.c.l.bf16 %v23
  %v40 = vunpack.c.l.bf16 %v24
  %v41 = vunpack.c.l.bf16 %v25
  %v42 = vunpack.c.l.bf16 %v26
  %v43 = vunpack.c.l.bf16 %v27
  %v44 = vunpack.c.l.bf16 %v28
  %v45 = vunpack.c.l.bf16 %v29
  %v46 = vunpack.c.l.bf16 %v30
  %v47 = vunpack.c.l.bf16 %v31
  %v48 = vunpack.c.l.bf16 %v32
  %v49 = vunpack.c.l.bf16 %v33
  %v50 = vld [vmem:[%s1] sm:$0xf]
  %v51 = vld [vmem:[%s1 + $0x4] sm:$0xf]
  %v52 = vld [vmem:[%s1 + $0x8] sm:$0xf]
  %v53 = vld [vmem:[%s1 + $0xc] sm:$0xf]
  %v54 = vld [vmem:[%s1 + $0x10] sm:$0xf]
  %v55 = vld [vmem:[%s1 + $0x14] sm:$0xf]
  %v56 = vld [vmem:[%s1 + $0x18] sm:$0xf]
  %v57 = vld [vmem:[%s1 + $0x1c] sm:$0xf]
  %v58 = vld [vmem:[%s1 + $0x20] sm:$0xf]
  %v59 = vld [vmem:[%s1 + $0x24] sm:$0xf]
  %v60 = vld [vmem:[%s1 + $0x28] sm:$0xf]
  %v61 = vld [vmem:[%s1 + $0x2c] sm:$0xf]
  %v62 = vld [vmem:[%s1 + $0x30] sm:$0xf]
  %v63 = vld [vmem:[%s1 + $0x34] sm:$0xf]
  %v64 = vld [vmem:[%s1 + $0x38] sm:$0xf]
  %v65 = vld [vmem:[%s1 + $0x3c] sm:$0xf]
  %v66 = vunpack.c.l.bf16 %v50
  %v67 = vunpack.c.l.bf16 %v51
  %v68 = vunpack.c.l.bf16 %v52
  %v69 = vunpack.c.l.bf16 %v53
  %v70 = vunpack.c.l.bf16 %v54
  %v71 = vunpack.c.l.bf16 %v55
  %v72 = vunpack.c.l.bf16 %v56
  %v73 = vunpack.c.l.bf16 %v57
  %v74 = vunpack.c.l.bf16 %v58
  %v75 = vunpack.c.l.bf16 %v59
  %v76 = vunpack.c.l.bf16 %v60
  %v77 = vunpack.c.l.bf16 %v61
  %v78 = vunpack.c.l.bf16 %v62
  %v79 = vunpack.c.l.bf16 %v63
  %v80 = vunpack.c.l.bf16 %v64
  %v81 = vunpack.c.l.bf16 %v65
  %v82 = vmul.f32 %v34, %v66
  %v83 = vmul.f32 %v35, %v67
  %v84 = vmul.f32 %v36, %v68
  %v85 = vmul.f32 %v37, %v69
  %v86 = vmul.f32 %v38, %v70
  %v87 = vmul.f32 %v39, %v71
  %v88 = vmul.f32 %v40, %v72
  %v89 = vmul.f32 %v41, %v73
  %v90 = vmul.f32 %v42, %v74
  %v91 = vmul.f32 %v43, %v75
  %v92 = vmul.f32 %v44, %v76
  %v93 = vmul.f32 %v45, %v77
  %v94 = vmul.f32 %v46, %v78
  %v95 = vmul.f32 %v47, %v79
  %v96 = vmul.f32 %v48, %v80
  %v97 = vmul.f32 %v49, %v81
  %v98 = vpack.c.bf16 %v83, %v82
  %v99 = vpack.c.bf16 %v85, %v84
  %v100 = vpack.c.bf16 %v87, %v86
  %v101 = vpack.c.bf16 %v89, %v88
  %v102 = vpack.c.bf16 %v91, %v90
  %v103 = vpack.c.bf16 %v93, %v92
  %v104 = vpack.c.bf16 %v95, %v94
  %v105 = vpack.c.bf16 %v97, %v96
  %v106 = vld [vmem:[%s2] sm:$0xf]
  %v107 = vld [vmem:[%s2 + $0x4] sm:$0xf]
  %v108 = vld [vmem:[%s2 + $0x8] sm:$0xf]
  %v109 = vld [vmem:[%s2 + $0xc] sm:$0xf]
  %v110 = vld [vmem:[%s2 + $0x10] sm:$0xf]
  %v111 = vld [vmem:[%s2 + $0x14] sm:$0xf]
  %v112 = vld [vmem:[%s2 + $0x18] sm:$0xf]
  %v113 = vld [vmem:[%s2 + $0x1c] sm:$0xf]
  %v114 = vld [vmem:[%s3] sm:$0x1]
  %v115 = vunpack.c.l.bf16 %v114
  %v116 = vperm.slane %v115, 0
  %v125 = vunpack.c.l.b16 %v106
  %v126 = vunpack.c.l.b16 %v107
  %v127 = vunpack.c.l.b16 %v108
  %v128 = vunpack.c.l.b16 %v109
  %v129 = vunpack.c.l.b16 %v110
  %v130 = vunpack.c.l.b16 %v111
  %v131 = vunpack.c.l.b16 %v112
  %v132 = vunpack.c.l.b16 %v113
  %v133 = vpack.c.b16 %v126, %v125
  %v134 = vpack.c.b16 %v128, %v127
  %v135 = vpack.c.b16 %v130, %v129
  %v136 = vpack.c.b16 %v132, %v131
  %vm141 = vcmask 523264
  %v143 = vsel %vm141, %v98, 0
  %v146 = vsel %vm141, %v99, 0
  %v149 = vsel %vm141, %v100, 0
  %v152 = vsel %vm141, %v101, 0
  %v155 = vsel %vm141, %v102, 0
  %v158 = vsel %vm141, %v103, 0
  %v161 = vsel %vm141, %v104, 0
  %v164 = vsel %vm141, %v105, 0
  %166 = vmatpush.bf16.msra.mxu0 0
  %167 = vmatpush.bf16.msra.mxu0 0
  %168 = vmatpush.bf16.msra.mxu0 0
  %169 = vmatpush.bf16.msra.mxu0 0
  %170 = vmatpush.bf16.msra.mxu0 %v136
  %171 = vmatpush.bf16.msra.mxu0 %v135
  %172 = vmatpush.bf16.msra.mxu0 %v134
  %173 = vmatpush.bf16.msra.mxu0 %v133
  %174 = vmatmul.bf16.gmra.mxu0 %v143
  %v175 = vpop.f32.mrf.mxu0
  %v176 = vadd.f32 %v116, %v175
  %v177 = vpop.f32.mrf.mxu0
  %v178 = vadd.f32 %v116, %v177
  %179 = vmatmul.bf16.gmra.mxu0 %v146
  %v180 = vpop.f32.mrf.mxu0
  %v181 = vadd.f32 %v116, %v180
  %v182 = vpop.f32.mrf.mxu0
  %v183 = vadd.f32 %v116, %v182
  %184 = vmatmul.bf16.gmra.mxu0 %v149
  %v185 = vpop.f32.mrf.mxu0
  %v186 = vadd.f32 %v116, %v185
  %v187 = vpop.f32.mrf.mxu0
  %v188 = vadd.f32 %v116, %v187
  %189 = vmatmul.bf16.gmra.mxu0 %v152
  %v190 = vpop.f32.mrf.mxu0
  %v191 = vadd.f32 %v116, %v190
  %v192 = vpop.f32.mrf.mxu0
  %v193 = vadd.f32 %v116, %v192
  %194 = vmatmul.bf16.gmra.mxu0 %v155
  %v195 = vpop.f32.mrf.mxu0
  %v196 = vadd.f32 %v116, %v195
  %v197 = vpop.f32.mrf.mxu0
  %v198 = vadd.f32 %v116, %v197
  %199 = vmatmul.bf16.gmra.mxu0 %v158
  %v200 = vpop.f32.mrf.mxu0
  %v201 = vadd.f32 %v116, %v200
  %v202 = vpop.f32.mrf.mxu0
  %v203 = vadd.f32 %v116, %v202
  %204 = vmatmul.bf16.gmra.mxu0 %v161
  %v205 = vpop.f32.mrf.mxu0
  %v206 = vadd.f32 %v116, %v205
  %v207 = vpop.f32.mrf.mxu0
  %v208 = vadd.f32 %v116, %v207
  %209 = vmatmul.bf16.gmra.mxu0 %v164
  %v210 = vpop.f32.mrf.mxu0
  %v211 = vadd.f32 %v116, %v210
  %v212 = vpop.f32.mrf.mxu0
  %v213 = vadd.f32 %v116, %v212
  %214 = vdwg.mxu0
  %v215 = vpack.c.bf16 %v176, %v176
  %v216 = vpack.c.bf16 %v178, %v178
  %v217 = vpack.c.bf16 %v181, %v181
  %v218 = vpack.c.bf16 %v183, %v183
  %v219 = vpack.c.bf16 %v186, %v186
  %v220 = vpack.c.bf16 %v188, %v188
  %v221 = vpack.c.bf16 %v191, %v191
  %v222 = vpack.c.bf16 %v193, %v193
  %v223 = vpack.c.bf16 %v196, %v196
  %v224 = vpack.c.bf16 %v198, %v198
  %v225 = vpack.c.bf16 %v201, %v201
  %v226 = vpack.c.bf16 %v203, %v203
  %v227 = vpack.c.bf16 %v206, %v206
  %v228 = vpack.c.bf16 %v208, %v208
  %v229 = vpack.c.bf16 %v211, %v211
  %v230 = vpack.c.bf16 %v213, %v213
  %vm231 = vcmask 519168
  %232 = vst.msk [vmem:[%s4] sm:$0xf] %vm231, %v215
  %233 = vst.msk [vmem:[%s4 + $0x4] sm:$0xf] %vm231, %v216
  %234 = vst.msk [vmem:[%s4 + $0x8] sm:$0xf] %vm231, %v217
  %235 = vst.msk [vmem:[%s4 + $0xc] sm:$0xf] %vm231, %v218
  %236 = vst.msk [vmem:[%s4 + $0x10] sm:$0xf] %vm231, %v219
  %237 = vst.msk [vmem:[%s4 + $0x14] sm:$0xf] %vm231, %v220
  %238 = vst.msk [vmem:[%s4 + $0x18] sm:$0xf] %vm231, %v221
  %239 = vst.msk [vmem:[%s4 + $0x1c] sm:$0xf] %vm231, %v222
  %240 = vst.msk [vmem:[%s4 + $0x20] sm:$0xf] %vm231, %v223
  %241 = vst.msk [vmem:[%s4 + $0x24] sm:$0xf] %vm231, %v224
  %242 = vst.msk [vmem:[%s4 + $0x28] sm:$0xf] %vm231, %v225
  %243 = vst.msk [vmem:[%s4 + $0x2c] sm:$0xf] %vm231, %v226
  %244 = vst.msk [vmem:[%s4 + $0x30] sm:$0xf] %vm231, %v227
  %245 = vst.msk [vmem:[%s4 + $0x34] sm:$0xf] %vm231, %v228
  %246 = vst.msk [vmem:[%s4 + $0x38] sm:$0xf] %vm231, %v229
  %247 = vst.msk [vmem:[%s4 + $0x3c] sm:$0xf] %vm231, %v230
  // Predicated region
  $region18: #{templ_emb_forward.29} parent=0 // pred_check
    _
  $region19: #{templ_emb_forward.29} parent=0 // pred_check_branch
    %249 = sbr.rel (0) target = $region21
  $region20: #{templ_emb_forward.29} parent=0 // pred_region
    _
  $region21: #{templ_emb_forward.29} parent=0 // pred_fallthru
    _
  // Predicated region
  $region22: #{templ_emb_forward.29} parent=0 // pred_check
    _
  $region23: #{templ_emb_forward.29} parent=0 // pred_check_branch
    %251 = sbr.rel (0) target = $region25
  $region24: #{templ_emb_forward.29} parent=0 // pred_region
    _
  $region25: #{templ_emb_forward.29} parent=0 // pred_fallthru
    _

// kernel: templ_emb_forward.34
$region0: #{templ_emb_forward.34}
  #allocation0 [shape = 'u32[]', space=smem, size = 0x4, offset = 0x4, fixed_abs, tag = 'smem constant byte address 0x4 - core index']
  #allocation1 [shape = 'u32[72,128]{1,0:T(1,128)}', space=vmem, size = 0x9000, scoped, tag = 'internal scratch']
  %s0 = inlined_call_operand.vmem [shape: bf16[128,128], index: 0, kind: input, shape index: {}]
  %s1 = inlined_call_operand.vmem [shape: bf16[128,64], index: 1, kind: input, shape index: {}]
  %s2 = inlined_call_operand.vmem [shape: bf16[1,64], index: 2, kind: input, shape index: {}]
  %s3 = inlined_call_operand.vmem [shape: bf16[128,64], index: 3, kind: output, shape index: {}]
  %s4 = sld [smem:[#allocation0]]
  $region22: #{templ_emb_forward.34} parent=0
    _
  %s6 = ssub.s32 1, %s4
  %s7 = scalar_select 0, %s6, %s4
  // Predicated region
  $region2: #{templ_emb_forward.34} parent=0 // pred_check
    _
  $region3: #{templ_emb_forward.34} parent=0 // pred_check_branch
    %9 = sbr.rel (0) target = $region5
  $region4: #{templ_emb_forward.34} parent=0 // pred_region
    _
  $region5: #{templ_emb_forward.34} parent=0 // pred_fallthru
    _
  // Predicated region
  $region6: #{templ_emb_forward.34} parent=0 // pred_check
    _
  $region7: #{templ_emb_forward.34} parent=0 // pred_check_branch
    %11 = sbr.rel (0) target = $region9
  $region8: #{templ_emb_forward.34} parent=0 // pred_region
    _
  $region9: #{templ_emb_forward.34} parent=0 // pred_fallthru
    _
  // Predicated region
  $region10: #{templ_emb_forward.34} parent=0 // pred_check
    _
  $region11: #{templ_emb_forward.34} parent=0 // pred_check_branch
    %13 = sbr.rel (0) target = $region13
  $region12: #{templ_emb_forward.34} parent=0 // pred_region
    _
  $region13: #{templ_emb_forward.34} parent=0 // pred_fallthru
    _
  %v14 = vld [vmem:[%s0] sm:$0xf]
  %v15 = vld [vmem:[%s0 + $0x4] sm:$0xf]
  %v16 = vld [vmem:[%s0 + $0x8] sm:$0xf]
  %v17 = vld [vmem:[%s0 + $0xc] sm:$0xf]
  %v18 = vld [vmem:[%s0 + $0x10] sm:$0xf]
  %v19 = vld [vmem:[%s0 + $0x14] sm:$0xf]
  %v20 = vld [vmem:[%s0 + $0x18] sm:$0xf]
  %v21 = vld [vmem:[%s0 + $0x1c] sm:$0xf]
  %v22 = vld [vmem:[%s0 + $0x20] sm:$0xf]
  %v23 = vld [vmem:[%s0 + $0x24] sm:$0xf]
  %v24 = vld [vmem:[%s0 + $0x28] sm:$0xf]
  %v25 = vld [vmem:[%s0 + $0x2c] sm:$0xf]
  %v26 = vld [vmem:[%s0 + $0x30] sm:$0xf]
  %v27 = vld [vmem:[%s0 + $0x34] sm:$0xf]
  %v28 = vld [vmem:[%s0 + $0x38] sm:$0xf]
  %v29 = vld [vmem:[%s0 + $0x3c] sm:$0xf]
  %v30 = vld [vmem:[%s1] sm:$0xf]
  %v31 = vld [vmem:[%s1 + $0x4] sm:$0xf]
  %v32 = vld [vmem:[%s1 + $0x8] sm:$0xf]
  %v33 = vld [vmem:[%s1 + $0xc] sm:$0xf]
  %v34 = vld [vmem:[%s1 + $0x10] sm:$0xf]
  %v35 = vld [vmem:[%s1 + $0x14] sm:$0xf]
  %v36 = vld [vmem:[%s1 + $0x18] sm:$0xf]
  %v37 = vld [vmem:[%s1 + $0x1c] sm:$0xf]
  %v38 = vld [vmem:[%s1 + $0x20] sm:$0xf]
  %v39 = vld [vmem:[%s1 + $0x24] sm:$0xf]
  %v40 = vld [vmem:[%s1 + $0x28] sm:$0xf]
  %v41 = vld [vmem:[%s1 + $0x2c] sm:$0xf]
  %v42 = vld [vmem:[%s1 + $0x30] sm:$0xf]
  %v43 = vld [vmem:[%s1 + $0x34] sm:$0xf]
  %v44 = vld [vmem:[%s1 + $0x38] sm:$0xf]
  %v45 = vld [vmem:[%s1 + $0x3c] sm:$0xf]
  %v46 = vld [vmem:[%s2] sm:$0x1]
  %v47 = vunpack.c.l.bf16 %v46
  %v48 = vperm.slane %v47, 0
  %v65 = vunpack.c.l.b16 %v14
  %v66 = vunpack.c.l.b16 %v15
  %v67 = vunpack.c.l.b16 %v16
  %v68 = vunpack.c.l.b16 %v17
  %v69 = vunpack.c.l.b16 %v18
  %v70 = vunpack.c.l.b16 %v19
  %v71 = vunpack.c.l.b16 %v20
  %v72 = vunpack.c.l.b16 %v21
  %v73 = vunpack.c.l.b16 %v22
  %v74 = vunpack.c.l.b16 %v23
  %v75 = vunpack.c.l.b16 %v24
  %v76 = vunpack.c.l.b16 %v25
  %v77 = vunpack.c.l.b16 %v26
  %v78 = vunpack.c.l.b16 %v27
  %v79 = vunpack.c.l.b16 %v28
  %v80 = vunpack.c.l.b16 %v29
  %v81 = vpack.c.b16 %v66, %v65
  %v82 = vpack.c.b16 %v68, %v67
  %v83 = vpack.c.b16 %v70, %v69
  %v84 = vpack.c.b16 %v72, %v71
  %v85 = vpack.c.b16 %v74, %v73
  %v86 = vpack.c.b16 %v76, %v75
  %v87 = vpack.c.b16 %v78, %v77
  %v88 = vpack.c.b16 %v80, %v79
  %v113 = vunpack.c.l.b16 %v30
  %v114 = vunpack.c.l.b16 %v31
  %v115 = vunpack.c.l.b16 %v32
  %v116 = vunpack.c.l.b16 %v33
  %v117 = vunpack.c.l.b16 %v34
  %v118 = vunpack.c.l.b16 %v35
  %v119 = vunpack.c.l.b16 %v36
  %v120 = vunpack.c.l.b16 %v37
  %v121 = vunpack.c.l.b16 %v38
  %v122 = vunpack.c.l.b16 %v39
  %v123 = vunpack.c.l.b16 %v40
  %v124 = vunpack.c.l.b16 %v41
  %v125 = vunpack.c.l.b16 %v42
  %v126 = vunpack.c.l.b16 %v43
  %v127 = vunpack.c.l.b16 %v44
  %v128 = vunpack.c.l.b16 %v45
  %v129 = vpack.c.b16 %v114, %v113
  %v130 = vpack.c.b16 %v116, %v115
  %v131 = vpack.c.b16 %v118, %v117
  %v132 = vpack.c.b16 %v120, %v119
  %v133 = vpack.c.b16 %v122, %v121
  %v134 = vpack.c.b16 %v124, %v123
  %v135 = vpack.c.b16 %v126, %v125
  %v136 = vpack.c.b16 %v128, %v127
  %145 = vmatpush.bf16.msra.mxu0 %v136
  %146 = vmatpush.bf16.msra.mxu0 %v135
  %147 = vmatpush.bf16.msra.mxu0 %v134
  %148 = vmatpush.bf16.msra.mxu0 %v133
  %149 = vmatpush.bf16.msra.mxu0 %v132
  %150 = vmatpush.bf16.msra.mxu0 %v131
  %151 = vmatpush.bf16.msra.mxu0 %v130
  %152 = vmatpush.bf16.msra.mxu0 %v129
  %153 = vmatmul.bf16.gmra.mxu0 %v81
  %v154 = vpop.f32.mrf.mxu0
  %v155 = vadd.f32 %v48, %v154
  %v156 = vpop.f32.mrf.mxu0
  %v157 = vadd.f32 %v48, %v156
  %158 = vmatmul.bf16.gmra.mxu0 %v82
  %v159 = vpop.f32.mrf.mxu0
  %v160 = vadd.f32 %v48, %v159
  %v161 = vpop.f32.mrf.mxu0
  %v162 = vadd.f32 %v48, %v161
  %163 = vmatmul.bf16.gmra.mxu0 %v83
  %v164 = vpop.f32.mrf.mxu0
  %v165 = vadd.f32 %v48, %v164
  %v166 = vpop.f32.mrf.mxu0
  %v167 = vadd.f32 %v48, %v166
  %168 = vmatmul.bf16.gmra.mxu0 %v84
  %v169 = vpop.f32.mrf.mxu0
  %v170 = vadd.f32 %v48, %v169
  %v171 = vpop.f32.mrf.mxu0
  %v172 = vadd.f32 %v48, %v171
  %173 = vmatmul.bf16.gmra.mxu0 %v85
  %v174 = vpop.f32.mrf.mxu0
  %v175 = vadd.f32 %v48, %v174
  %v176 = vpop.f32.mrf.mxu0
  %v177 = vadd.f32 %v48, %v176
  %178 = vmatmul.bf16.gmra.mxu0 %v86
  %v179 = vpop.f32.mrf.mxu0
  %v180 = vadd.f32 %v48, %v179
  %v181 = vpop.f32.mrf.mxu0
  %v182 = vadd.f32 %v48, %v181
  %183 = vmatmul.bf16.gmra.mxu0 %v87
  %v184 = vpop.f32.mrf.mxu0
  %v185 = vadd.f32 %v48, %v184
  %v186 = vpop.f32.mrf.mxu0
  %v187 = vadd.f32 %v48, %v186
  %188 = vmatmul.bf16.gmra.mxu0 %v88
  %v189 = vpop.f32.mrf.mxu0
  %v190 = vadd.f32 %v48, %v189
  %v191 = vpop.f32.mrf.mxu0
  %v192 = vadd.f32 %v48, %v191
  %193 = vdwg.mxu0
  %v194 = vpack.c.bf16 %v155, %v155
  %v195 = vpack.c.bf16 %v157, %v157
  %v196 = vpack.c.bf16 %v160, %v160
  %v197 = vpack.c.bf16 %v162, %v162
  %v198 = vpack.c.bf16 %v165, %v165
  %v199 = vpack.c.bf16 %v167, %v167
  %v200 = vpack.c.bf16 %v170, %v170
  %v201 = vpack.c.bf16 %v172, %v172
  %v202 = vpack.c.bf16 %v175, %v175
  %v203 = vpack.c.bf16 %v177, %v177
  %v204 = vpack.c.bf16 %v180, %v180
  %v205 = vpack.c.bf16 %v182, %v182
  %v206 = vpack.c.bf16 %v185, %v185
  %v207 = vpack.c.bf16 %v187, %v187
  %v208 = vpack.c.bf16 %v190, %v190
  %v209 = vpack.c.bf16 %v192, %v192
  %vm210 = vcmask 519168
  %211 = vst.msk [vmem:[%s3] sm:$0xf] %vm210, %v194
  %212 = vst.msk [vmem:[%s3 + $0x4] sm:$0xf] %vm210, %v195
  %213 = vst.msk [vmem:[%s3 + $0x8] sm:$0xf] %vm210, %v196
  %214 = vst.msk [vmem:[%s3 + $0xc] sm:$0xf] %vm210, %v197
  %215 = vst.msk [vmem:[%s3 + $0x10] sm:$0xf] %vm210, %v198
  %216 = vst.msk [vmem:[%s3 + $0x14] sm:$0xf] %vm210, %v199
  %217 = vst.msk [vmem:[%s3 + $0x18] sm:$0xf] %vm210, %v200
  %218 = vst.msk [vmem:[%s3 + $0x1c] sm:$0xf] %vm210, %v201
  %219 = vst.msk [vmem:[%s3 + $0x20] sm:$0xf] %vm210, %v202
  %220 = vst.msk [vmem:[%s3 + $0x24] sm:$0xf] %vm210, %v203
  %221 = vst.msk [vmem:[%s3 + $0x28] sm:$0xf] %vm210, %v204
  %222 = vst.msk [vmem:[%s3 + $0x2c] sm:$0xf] %vm210, %v205
  %223 = vst.msk [vmem:[%s3 + $0x30] sm:$0xf] %vm210, %v206
  %224 = vst.msk [vmem:[%s3 + $0x34] sm:$0xf] %vm210, %v207
  %225 = vst.msk [vmem:[%s3 + $0x38] sm:$0xf] %vm210, %v208
  %226 = vst.msk [vmem:[%s3 + $0x3c] sm:$0xf] %vm210, %v209
  // Predicated region
  $region14: #{templ_emb_forward.34} parent=0 // pred_check
    _
  $region15: #{templ_emb_forward.34} parent=0 // pred_check_branch
    %228 = sbr.rel (0) target = $region17
  $region16: #{templ_emb_forward.34} parent=0 // pred_region
    _
  $region17: #{templ_emb_forward.34} parent=0 // pred_fallthru
    _
  // Predicated region
  $region18: #{templ_emb_forward.34} parent=0 // pred_check
    _
  $region19: #{templ_emb_forward.34} parent=0 // pred_check_branch
    %230 = sbr.rel (0) target = $region21
  $region20: #{templ_emb_forward.34} parent=0 // pred_region
    _
  $region21: #{templ_emb_forward.34} parent=0 // pred_fallthru
    _

// kernel: templ_emb_forward.33
$region0: #{templ_emb_forward.33}
  #allocation0 [shape = 'u32[]', space=smem, size = 0x4, offset = 0x4, fixed_abs, tag = 'smem constant byte address 0x4 - core index']
  #allocation1 [shape = 'u32[72,128]{1,0:T(1,128)}', space=vmem, size = 0x9000, scoped, tag = 'internal scratch']
  %s0 = inlined_call_operand.vmem [shape: bf16[128,64], index: 0, kind: input, shape index: {}]
  %s1 = inlined_call_operand.vmem [shape: bf16[1,64], index: 1, kind: input, shape index: {}]
  %s2 = inlined_call_operand.vmem [shape: bf16[1,64], index: 2, kind: input, shape index: {}]
  %s3 = inlined_call_operand.vmem [shape: bf16[64,128], index: 3, kind: input, shape index: {}]
  %s4 = inlined_call_operand.vmem [shape: bf16[1,128], index: 4, kind: input, shape index: {}]
  %s5 = inlined_call_operand.vmem [shape: bf16[128,128], index: 5, kind: output, shape index: {}]
  %s6 = sld [smem:[#allocation0]]
  $region30: #{templ_emb_forward.33} parent=0
    _
  %s8 = ssub.s32 1, %s6
  %s9 = scalar_select 0, %s8, %s6
  // Predicated region
  $region2: #{templ_emb_forward.33} parent=0 // pred_check
    _
  $region3: #{templ_emb_forward.33} parent=0 // pred_check_branch
    %11 = sbr.rel (0) target = $region5
  $region4: #{templ_emb_forward.33} parent=0 // pred_region
    _
  $region5: #{templ_emb_forward.33} parent=0 // pred_fallthru
    _
  // Predicated region
  $region6: #{templ_emb_forward.33} parent=0 // pred_check
    _
  $region7: #{templ_emb_forward.33} parent=0 // pred_check_branch
    %13 = sbr.rel (0) target = $region9
  $region8: #{templ_emb_forward.33} parent=0 // pred_region
    _
  $region9: #{templ_emb_forward.33} parent=0 // pred_fallthru
    _
  // Predicated region
  $region10: #{templ_emb_forward.33} parent=0 // pred_check
    _
  $region11: #{templ_emb_forward.33} parent=0 // pred_check_branch
    %15 = sbr.rel (0) target = $region13
  $region12: #{templ_emb_forward.33} parent=0 // pred_region
    _
  $region13: #{templ_emb_forward.33} parent=0 // pred_fallthru
    _
  // Predicated region
  $region14: #{templ_emb_forward.33} parent=0 // pred_check
    _
  $region15: #{templ_emb_forward.33} parent=0 // pred_check_branch
    %17 = sbr.rel (0) target = $region17
  $region16: #{templ_emb_forward.33} parent=0 // pred_region
    _
  $region17: #{templ_emb_forward.33} parent=0 // pred_fallthru
    _
  // Predicated region
  $region18: #{templ_emb_forward.33} parent=0 // pred_check
    _
  $region19: #{templ_emb_forward.33} parent=0 // pred_check_branch
    %19 = sbr.rel (0) target = $region21
  $region20: #{templ_emb_forward.33} parent=0 // pred_region
    _
  $region21: #{templ_emb_forward.33} parent=0 // pred_fallthru
    _
  %v21 = vld [vmem:[%s0] sm:$0xf]
  %v22 = vld [vmem:[%s0 + $0x4] sm:$0xf]
  %v23 = vld [vmem:[%s0 + $0x8] sm:$0xf]
  %v24 = vld [vmem:[%s0 + $0xc] sm:$0xf]
  %v25 = vld [vmem:[%s0 + $0x10] sm:$0xf]
  %v26 = vld [vmem:[%s0 + $0x14] sm:$0xf]
  %v27 = vld [vmem:[%s0 + $0x18] sm:$0xf]
  %v28 = vld [vmem:[%s0 + $0x1c] sm:$0xf]
  %v29 = vld [vmem:[%s0 + $0x20] sm:$0xf]
  %v30 = vld [vmem:[%s0 + $0x24] sm:$0xf]
  %v31 = vld [vmem:[%s0 + $0x28] sm:$0xf]
  %v32 = vld [vmem:[%s0 + $0x2c] sm:$0xf]
  %v33 = vld [vmem:[%s0 + $0x30] sm:$0xf]
  %v34 = vld [vmem:[%s0 + $0x34] sm:$0xf]
  %v35 = vld [vmem:[%s0 + $0x38] sm:$0xf]
  %v36 = vld [vmem:[%s0 + $0x3c] sm:$0xf]
  %v37 = vunpack.c.l.bf16 %v21
  %v38 = vunpack.c.l.bf16 %v22
  %v39 = vunpack.c.l.bf16 %v23
  %v40 = vunpack.c.l.bf16 %v24
  %v41 = vunpack.c.l.bf16 %v25
  %v42 = vunpack.c.l.bf16 %v26
  %v43 = vunpack.c.l.bf16 %v27
  %v44 = vunpack.c.l.bf16 %v28
  %v45 = vunpack.c.l.bf16 %v29
  %v46 = vunpack.c.l.bf16 %v30
  %v47 = vunpack.c.l.bf16 %v31
  %v48 = vunpack.c.l.bf16 %v32
  %v49 = vunpack.c.l.bf16 %v33
  %v50 = vunpack.c.l.bf16 %v34
  %v51 = vunpack.c.l.bf16 %v35
  %v52 = vunpack.c.l.bf16 %v36
  %vm53 = vcmask 523264
  %v54 = vsel %vm53, %v37, 0.0
  %55 = vadd.xlane.f32.xlu0 %v54
  %v56 = vpop.xlane.xlu0 %55
  %v57 = vsel %vm53, %v38, 0.0
  %58 = vadd.xlane.f32.xlu0 %v57
  %v59 = vpop.xlane.xlu0 %58
  %v60 = vsel %vm53, %v39, 0.0
  %61 = vadd.xlane.f32.xlu0 %v60
  %v62 = vpop.xlane.xlu0 %61
  %v63 = vsel %vm53, %v40, 0.0
  %64 = vadd.xlane.f32.xlu0 %v63
  %v65 = vpop.xlane.xlu0 %64
  %v66 = vsel %vm53, %v41, 0.0
  %67 = vadd.xlane.f32.xlu0 %v66
  %v68 = vpop.xlane.xlu0 %67
  %v69 = vsel %vm53, %v42, 0.0
  %70 = vadd.xlane.f32.xlu0 %v69
  %v71 = vpop.xlane.xlu0 %70
  %v72 = vsel %vm53, %v43, 0.0
  %73 = vadd.xlane.f32.xlu0 %v72
  %v74 = vpop.xlane.xlu0 %73
  %v75 = vsel %vm53, %v44, 0.0
  %76 = vadd.xlane.f32.xlu0 %v75
  %v77 = vpop.xlane.xlu0 %76
  %v78 = vsel %vm53, %v45, 0.0
  %79 = vadd.xlane.f32.xlu0 %v78
  %v80 = vpop.xlane.xlu0 %79
  %v81 = vsel %vm53, %v46, 0.0
  %82 = vadd.xlane.f32.xlu0 %v81
  %v83 = vpop.xlane.xlu0 %82
  %v84 = vsel %vm53, %v47, 0.0
  %85 = vadd.xlane.f32.xlu0 %v84
  %v86 = vpop.xlane.xlu0 %85
  %v87 = vsel %vm53, %v48, 0.0
  %88 = vadd.xlane.f32.xlu0 %v87
  %v89 = vpop.xlane.xlu0 %88
  %v90 = vsel %vm53, %v49, 0.0
  %91 = vadd.xlane.f32.xlu0 %v90
  %v92 = vpop.xlane.xlu0 %91
  %v93 = vsel %vm53, %v50, 0.0
  %94 = vadd.xlane.f32.xlu0 %v93
  %v95 = vpop.xlane.xlu0 %94
  %v96 = vsel %vm53, %v51, 0.0
  %97 = vadd.xlane.f32.xlu0 %v96
  %v98 = vpop.xlane.xlu0 %97
  %v99 = vsel %vm53, %v52, 0.0
  %100 = vadd.xlane.f32.xlu0 %v99
  %v101 = vpop.xlane.xlu0 %100
  %v102 = vrcp.pop 64.0
  %v103 = vmul.f32 64.0, %v102
  %v104 = vsub.f32 1.0, %v103
  %v105 = vmul.f32 %v102, %v104
  %v106 = vadd.f32 %v102, %v105
  %vm107 = vweird.f32 %v102
  %v108 = vsel %vm107, %v102, %v106
  %v109 = vmul.f32 %v56, %v108
  %v110 = vmul.f32 %v59, %v108
  %v111 = vmul.f32 %v62, %v108
  %v112 = vmul.f32 %v65, %v108
  %v113 = vmul.f32 %v68, %v108
  %v114 = vmul.f32 %v71, %v108
  %v115 = vmul.f32 %v74, %v108
  %v116 = vmul.f32 %v77, %v108
  %v117 = vmul.f32 %v80, %v108
  %v118 = vmul.f32 %v83, %v108
  %v119 = vmul.f32 %v86, %v108
  %v120 = vmul.f32 %v89, %v108
  %v121 = vmul.f32 %v92, %v108
  %v122 = vmul.f32 %v95, %v108
  %v123 = vmul.f32 %v98, %v108
  %v124 = vmul.f32 %v101, %v108
  %v125 = vsub.f32 %v37, %v109
  %v126 = vsub.f32 %v38, %v110
  %v127 = vsub.f32 %v39, %v111
  %v128 = vsub.f32 %v40, %v112
  %v129 = vsub.f32 %v41, %v113
  %v130 = vsub.f32 %v42, %v114
  %v131 = vsub.f32 %v43, %v115
  %v132 = vsub.f32 %v44, %v116
  %v133 = vsub.f32 %v45, %v117
  %v134 = vsub.f32 %v46, %v118
  %v135 = vsub.f32 %v47, %v119
  %v136 = vsub.f32 %v48, %v120
  %v137 = vsub.f32 %v49, %v121
  %v138 = vsub.f32 %v50, %v122
  %v139 = vsub.f32 %v51, %v123
  %v140 = vsub.f32 %v52, %v124
  %v141 = vmul.f32 %v125, %v125
  %v142 = vmul.f32 %v126, %v126
  %v143 = vmul.f32 %v127, %v127
  %v144 = vmul.f32 %v128, %v128
  %v145 = vmul.f32 %v129, %v129
  %v146 = vmul.f32 %v130, %v130
  %v147 = vmul.f32 %v131, %v131
  %v148 = vmul.f32 %v132, %v132
  %v149 = vmul.f32 %v133, %v133
  %v150 = vmul.f32 %v134, %v134
  %v151 = vmul.f32 %v135, %v135
  %v152 = vmul.f32 %v136, %v136
  %v153 = vmul.f32 %v137, %v137
  %v154 = vmul.f32 %v138, %v138
  %v155 = vmul.f32 %v139, %v139
  %v156 = vmul.f32 %v140, %v140
  %v157 = vsel %vm53, %v141, 0.0
  %158 = vadd.xlane.f32.xlu0 %v157
  %v159 = vpop.xlane.xlu0 %158
  %v160 = vsel %vm53, %v142, 0.0
  %161 = vadd.xlane.f32.xlu0 %v160
  %v162 = vpop.xlane.xlu0 %161
  %v163 = vsel %vm53, %v143, 0.0
  %164 = vadd.xlane.f32.xlu0 %v163
  %v165 = vpop.xlane.xlu0 %164
  %v166 = vsel %vm53, %v144, 0.0
  %167 = vadd.xlane.f32.xlu0 %v166
  %v168 = vpop.xlane.xlu0 %167
  %v169 = vsel %vm53, %v145, 0.0
  %170 = vadd.xlane.f32.xlu0 %v169
  %v171 = vpop.xlane.xlu0 %170
  %v172 = vsel %vm53, %v146, 0.0
  %173 = vadd.xlane.f32.xlu0 %v172
  %v174 = vpop.xlane.xlu0 %173
  %v175 = vsel %vm53, %v147, 0.0
  %176 = vadd.xlane.f32.xlu0 %v175
  %v177 = vpop.xlane.xlu0 %176
  %v178 = vsel %vm53, %v148, 0.0
  %179 = vadd.xlane.f32.xlu0 %v178
  %v180 = vpop.xlane.xlu0 %179
  %v181 = vsel %vm53, %v149, 0.0
  %182 = vadd.xlane.f32.xlu0 %v181
  %v183 = vpop.xlane.xlu0 %182
  %v184 = vsel %vm53, %v150, 0.0
  %185 = vadd.xlane.f32.xlu0 %v184
  %v186 = vpop.xlane.xlu0 %185
  %v187 = vsel %vm53, %v151, 0.0
  %188 = vadd.xlane.f32.xlu0 %v187
  %v189 = vpop.xlane.xlu0 %188
  %v190 = vsel %vm53, %v152, 0.0
  %191 = vadd.xlane.f32.xlu0 %v190
  %v192 = vpop.xlane.xlu0 %191
  %v193 = vsel %vm53, %v153, 0.0
  %194 = vadd.xlane.f32.xlu0 %v193
  %v195 = vpop.xlane.xlu0 %194
  %v196 = vsel %vm53, %v154, 0.0
  %197 = vadd.xlane.f32.xlu0 %v196
  %v198 = vpop.xlane.xlu0 %197
  %v199 = vsel %vm53, %v155, 0.0
  %200 = vadd.xlane.f32.xlu0 %v199
  %v201 = vpop.xlane.xlu0 %200
  %v202 = vsel %vm53, %v156, 0.0
  %203 = vadd.xlane.f32.xlu0 %v202
  %v204 = vpop.xlane.xlu0 %203
  %v205 = vmul.f32 %v159, %v108
  %v206 = vmul.f32 %v162, %v108
  %v207 = vmul.f32 %v165, %v108
  %v208 = vmul.f32 %v168, %v108
  %v209 = vmul.f32 %v171, %v108
  %v210 = vmul.f32 %v174, %v108
  %v211 = vmul.f32 %v177, %v108
  %v212 = vmul.f32 %v180, %v108
  %v213 = vmul.f32 %v183, %v108
  %v214 = vmul.f32 %v186, %v108
  %v215 = vmul.f32 %v189, %v108
  %v216 = vmul.f32 %v192, %v108
  %v217 = vmul.f32 %v195, %v108
  %v218 = vmul.f32 %v198, %v108
  %v219 = vmul.f32 %v201, %v108
  %v220 = vmul.f32 %v204, %v108
  %v221 = vadd.f32 %v205, 1e-05
  %v222 = vadd.f32 %v206, 1e-05
  %v223 = vadd.f32 %v207, 1e-05
  %v224 = vadd.f32 %v208, 1e-05
  %v225 = vadd.f32 %v209, 1e-05
  %v226 = vadd.f32 %v210, 1e-05
  %v227 = vadd.f32 %v211, 1e-05
  %v228 = vadd.f32 %v212, 1e-05
  %v229 = vadd.f32 %v213, 1e-05
  %v230 = vadd.f32 %v214, 1e-05
  %v231 = vadd.f32 %v215, 1e-05
  %v232 = vadd.f32 %v216, 1e-05
  %v233 = vadd.f32 %v217, 1e-05
  %v234 = vadd.f32 %v218, 1e-05
  %v235 = vadd.f32 %v219, 1e-05
  %v236 = vadd.f32 %v220, 1e-05
  %v237 = vrsqrt.pop %v221
  %v238 = vmul.f32 %v237, %v221
  %v239 = vmul.f32 %v238, %v237
  %v240 = vmul.f32 0.5, %v239
  %v241 = vsub.f32 1.5, %v240
  %v242 = vmul.f32 %v237, %v241
  %vm243 = vweird.f32 %v221
  %vm244 = vweird.f32 %v237
  %vm245 = vmor %vm243, %vm244
  %v246 = vsel %vm245, %v237, %v242
  %v247 = vrsqrt.pop %v222
  %v248 = vmul.f32 %v247, %v222
  %v249 = vmul.f32 %v248, %v247
  %v250 = vmul.f32 0.5, %v249
  %v251 = vsub.f32 1.5, %v250
  %v252 = vmul.f32 %v247, %v251
  %vm253 = vweird.f32 %v222
  %vm254 = vweird.f32 %v247
  %vm255 = vmor %vm253, %vm254
  %v256 = vsel %vm255, %v247, %v252
  %v257 = vrsqrt.pop %v223
  %v258 = vmul.f32 %v257, %v223
  %v259 = vmul.f32 %v258, %v257
  %v260 = vmul.f32 0.5, %v259
  %v261 = vsub.f32 1.5, %v260
  %v262 = vmul.f32 %v257, %v261
  %vm263 = vweird.f32 %v223
  %vm264 = vweird.f32 %v257
  %vm265 = vmor %vm263, %vm264
  %v266 = vsel %vm265, %v257, %v262
  %v267 = vrsqrt.pop %v224
  %v268 = vmul.f32 %v267, %v224
  %v269 = vmul.f32 %v268, %v267
  %v270 = vmul.f32 0.5, %v269
  %v271 = vsub.f32 1.5, %v270
  %v272 = vmul.f32 %v267, %v271
  %vm273 = vweird.f32 %v224
  %vm274 = vweird.f32 %v267
  %vm275 = vmor %vm273, %vm274
  %v276 = vsel %vm275, %v267, %v272
  %v277 = vrsqrt.pop %v225
  %v278 = vmul.f32 %v277, %v225
  %v279 = vmul.f32 %v278, %v277
  %v280 = vmul.f32 0.5, %v279
  %v281 = vsub.f32 1.5, %v280
  %v282 = vmul.f32 %v277, %v281
  %vm283 = vweird.f32 %v225
  %vm284 = vweird.f32 %v277
  %vm285 = vmor %vm283, %vm284
  %v286 = vsel %vm285, %v277, %v282
  %v287 = vrsqrt.pop %v226
  %v288 = vmul.f32 %v287, %v226
  %v289 = vmul.f32 %v288, %v287
  %v290 = vmul.f32 0.5, %v289
  %v291 = vsub.f32 1.5, %v290
  %v292 = vmul.f32 %v287, %v291
  %vm293 = vweird.f32 %v226
  %vm294 = vweird.f32 %v287
  %vm295 = vmor %vm293, %vm294
  %v296 = vsel %vm295, %v287, %v292
  %v297 = vrsqrt.pop %v227
  %v298 = vmul.f32 %v297, %v227
  %v299 = vmul.f32 %v298, %v297
  %v300 = vmul.f32 0.5, %v299
  %v301 = vsub.f32 1.5, %v300
  %v302 = vmul.f32 %v297, %v301
  %vm303 = vweird.f32 %v227
  %vm304 = vweird.f32 %v297
  %vm305 = vmor %vm303, %vm304
  %v306 = vsel %vm305, %v297, %v302
  %v307 = vrsqrt.pop %v228
  %v308 = vmul.f32 %v307, %v228
  %v309 = vmul.f32 %v308, %v307
  %v310 = vmul.f32 0.5, %v309
  %v311 = vsub.f32 1.5, %v310
  %v312 = vmul.f32 %v307, %v311
  %vm313 = vweird.f32 %v228
  %vm314 = vweird.f32 %v307
  %vm315 = vmor %vm313, %vm314
  %v316 = vsel %vm315, %v307, %v312
  %v317 = vrsqrt.pop %v229
  %v318 = vmul.f32 %v317, %v229
  %v319 = vmul.f32 %v318, %v317
  %v320 = vmul.f32 0.5, %v319
  %v321 = vsub.f32 1.5, %v320
  %v322 = vmul.f32 %v317, %v321
  %vm323 = vweird.f32 %v229
  %vm324 = vweird.f32 %v317
  %vm325 = vmor %vm323, %vm324
  %v326 = vsel %vm325, %v317, %v322
  %v327 = vrsqrt.pop %v230
  %v328 = vmul.f32 %v327, %v230
  %v329 = vmul.f32 %v328, %v327
  %v330 = vmul.f32 0.5, %v329
  %v331 = vsub.f32 1.5, %v330
  %v332 = vmul.f32 %v327, %v331
  %vm333 = vweird.f32 %v230
  %vm334 = vweird.f32 %v327
  %vm335 = vmor %vm333, %vm334
  %v336 = vsel %vm335, %v327, %v332
  %v337 = vrsqrt.pop %v231
  %v338 = vmul.f32 %v337, %v231
  %v339 = vmul.f32 %v338, %v337
  %v340 = vmul.f32 0.5, %v339
  %v341 = vsub.f32 1.5, %v340
  %v342 = vmul.f32 %v337, %v341
  %vm343 = vweird.f32 %v231
  %vm344 = vweird.f32 %v337
  %vm345 = vmor %vm343, %vm344
  %v346 = vsel %vm345, %v337, %v342
  %v347 = vrsqrt.pop %v232
  %v348 = vmul.f32 %v347, %v232
  %v349 = vmul.f32 %v348, %v347
  %v350 = vmul.f32 0.5, %v349
  %v351 = vsub.f32 1.5, %v350
  %v352 = vmul.f32 %v347, %v351
  %vm353 = vweird.f32 %v232
  %vm354 = vweird.f32 %v347
  %vm355 = vmor %vm353, %vm354
  %v356 = vsel %vm355, %v347, %v352
  %v357 = vrsqrt.pop %v233
  %v358 = vmul.f32 %v357, %v233
  %v359 = vmul.f32 %v358, %v357
  %v360 = vmul.f32 0.5, %v359
  %v361 = vsub.f32 1.5, %v360
  %v362 = vmul.f32 %v357, %v361
  %vm363 = vweird.f32 %v233
  %vm364 = vweird.f32 %v357
  %vm365 = vmor %vm363, %vm364
  %v366 = vsel %vm365, %v357, %v362
  %v367 = vrsqrt.pop %v234
  %v368 = vmul.f32 %v367, %v234
  %v369 = vmul.f32 %v368, %v367
  %v370 = vmul.f32 0.5, %v369
  %v371 = vsub.f32 1.5, %v370
  %v372 = vmul.f32 %v367, %v371
  %vm373 = vweird.f32 %v234
  %vm374 = vweird.f32 %v367
  %vm375 = vmor %vm373, %vm374
  %v376 = vsel %vm375, %v367, %v372
  %v377 = vrsqrt.pop %v235
  %v378 = vmul.f32 %v377, %v235
  %v379 = vmul.f32 %v378, %v377
  %v380 = vmul.f32 0.5, %v379
  %v381 = vsub.f32 1.5, %v380
  %v382 = vmul.f32 %v377, %v381
  %vm383 = vweird.f32 %v235
  %vm384 = vweird.f32 %v377
  %vm385 = vmor %vm383, %vm384
  %v386 = vsel %vm385, %v377, %v382
  %v387 = vrsqrt.pop %v236
  %v388 = vmul.f32 %v387, %v236
  %v389 = vmul.f32 %v388, %v387
  %v390 = vmul.f32 0.5, %v389
  %v391 = vsub.f32 1.5, %v390
  %v392 = vmul.f32 %v387, %v391
  %vm393 = vweird.f32 %v236
  %vm394 = vweird.f32 %v387
  %vm395 = vmor %vm393, %vm394
  %v396 = vsel %vm395, %v387, %v392
  %v397 = vmul.f32 %v125, %v246
  %v398 = vmul.f32 %v126, %v256
  %v399 = vmul.f32 %v127, %v266
  %v400 = vmul.f32 %v128, %v276
  %v401 = vmul.f32 %v129, %v286
  %v402 = vmul.f32 %v130, %v296
  %v403 = vmul.f32 %v131, %v306
  %v404 = vmul.f32 %v132, %v316
  %v405 = vmul.f32 %v133, %v326
  %v406 = vmul.f32 %v134, %v336
  %v407 = vmul.f32 %v135, %v346
  %v408 = vmul.f32 %v136, %v356
  %v409 = vmul.f32 %v137, %v366
  %v410 = vmul.f32 %v138, %v376
  %v411 = vmul.f32 %v139, %v386
  %v412 = vmul.f32 %v140, %v396
  %v413 = vld [vmem:[%s1] sm:$0x1]
  %v414 = vunpack.c.l.bf16 %v413
  %v415 = vperm.slane %v414, 0
  %v416 = vmul.f32 %v397, %v415
  %v417 = vmul.f32 %v398, %v415
  %v418 = vmul.f32 %v399, %v415
  %v419 = vmul.f32 %v400, %v415
  %v420 = vmul.f32 %v401, %v415
  %v421 = vmul.f32 %v402, %v415
  %v422 = vmul.f32 %v403, %v415
  %v423 = vmul.f32 %v404, %v415
  %v424 = vmul.f32 %v405, %v415
  %v425 = vmul.f32 %v406, %v415
  %v426 = vmul.f32 %v407, %v415
  %v427 = vmul.f32 %v408, %v415
  %v428 = vmul.f32 %v409, %v415
  %v429 = vmul.f32 %v410, %v415
  %v430 = vmul.f32 %v411, %v415
  %v431 = vmul.f32 %v412, %v415
  %v432 = vld [vmem:[%s2] sm:$0x1]
  %v433 = vunpack.c.l.bf16 %v432
  %v434 = vperm.slane %v433, 0
  %v435 = vadd.f32 %v416, %v434
  %v436 = vadd.f32 %v417, %v434
  %v437 = vadd.f32 %v418, %v434
  %v438 = vadd.f32 %v419, %v434
  %v439 = vadd.f32 %v420, %v434
  %v440 = vadd.f32 %v421, %v434
  %v441 = vadd.f32 %v422, %v434
  %v442 = vadd.f32 %v423, %v434
  %v443 = vadd.f32 %v424, %v434
  %v444 = vadd.f32 %v425, %v434
  %v445 = vadd.f32 %v426, %v434
  %v446 = vadd.f32 %v427, %v434
  %v447 = vadd.f32 %v428, %v434
  %v448 = vadd.f32 %v429, %v434
  %v449 = vadd.f32 %v430, %v434
  %v450 = vadd.f32 %v431, %v434
  %v451 = vpack.c.bf16 %v436, %v435
  %v452 = vpack.c.bf16 %v438, %v437
  %v453 = vpack.c.bf16 %v440, %v439
  %v454 = vpack.c.bf16 %v442, %v441
  %v455 = vpack.c.bf16 %v444, %v443
  %v456 = vpack.c.bf16 %v446, %v445
  %v457 = vpack.c.bf16 %v448, %v447
  %v458 = vpack.c.bf16 %v450, %v449
  %v459 = vld [vmem:[%s3] sm:$0xf]
  %v460 = vld [vmem:[%s3 + $0x4] sm:$0xf]
  %v461 = vld [vmem:[%s3 + $0x8] sm:$0xf]
  %v462 = vld [vmem:[%s3 + $0xc] sm:$0xf]
  %v463 = vld [vmem:[%s3 + $0x10] sm:$0xf]
  %v464 = vld [vmem:[%s3 + $0x14] sm:$0xf]
  %v465 = vld [vmem:[%s3 + $0x18] sm:$0xf]
  %v466 = vld [vmem:[%s3 + $0x1c] sm:$0xf]
  %v467 = vld [vmem:[%s4] sm:$0x1]
  %v468 = vunpack.c.l.bf16 %v467
  %v469 = vperm.slane %v468, 0
  %v478 = vunpack.c.l.b16 %v459
  %v479 = vunpack.c.l.b16 %v460
  %v480 = vunpack.c.l.b16 %v461
  %v481 = vunpack.c.l.b16 %v462
  %v482 = vunpack.c.l.b16 %v463
  %v483 = vunpack.c.l.b16 %v464
  %v484 = vunpack.c.l.b16 %v465
  %v485 = vunpack.c.l.b16 %v466
  %v486 = vpack.c.b16 %v479, %v478
  %v487 = vpack.c.b16 %v481, %v480
  %v488 = vpack.c.b16 %v483, %v482
  %v489 = vpack.c.b16 %v485, %v484
  %v495 = vsel %vm53, %v451, 0
  %v498 = vsel %vm53, %v452, 0
  %v501 = vsel %vm53, %v453, 0
  %v504 = vsel %vm53, %v454, 0
  %v507 = vsel %vm53, %v455, 0
  %v510 = vsel %vm53, %v456, 0
  %v513 = vsel %vm53, %v457, 0
  %v516 = vsel %vm53, %v458, 0
  %518 = vmatpush.bf16.msra.mxu0 0
  %519 = vmatpush.bf16.msra.mxu0 0
  %520 = vmatpush.bf16.msra.mxu0 0
  %521 = vmatpush.bf16.msra.mxu0 0
  %522 = vmatpush.bf16.msra.mxu0 %v489
  %523 = vmatpush.bf16.msra.mxu0 %v488
  %524 = vmatpush.bf16.msra.mxu0 %v487
  %525 = vmatpush.bf16.msra.mxu0 %v486
  %526 = vmatmul.bf16.gmra.mxu0 %v495
  %v527 = vpop.f32.mrf.mxu0
  %v528 = vadd.f32 %v469, %v527
  %v529 = vpop.f32.mrf.mxu0
  %v530 = vadd.f32 %v469, %v529
  %531 = vmatmul.bf16.gmra.mxu0 %v498
  %v532 = vpop.f32.mrf.mxu0
  %v533 = vadd.f32 %v469, %v532
  %v534 = vpop.f32.mrf.mxu0
  %v535 = vadd.f32 %v469, %v534
  %536 = vmatmul.bf16.gmra.mxu0 %v501
  %v537 = vpop.f32.mrf.mxu0
  %v538 = vadd.f32 %v469, %v537
  %v539 = vpop.f32.mrf.mxu0
  %v540 = vadd.f32 %v469, %v539
  %541 = vmatmul.bf16.gmra.mxu0 %v504
  %v542 = vpop.f32.mrf.mxu0
  %v543 = vadd.f32 %v469, %v542
  %v544 = vpop.f32.mrf.mxu0
  %v545 = vadd.f32 %v469, %v544
  %546 = vmatmul.bf16.gmra.mxu0 %v507
  %v547 = vpop.f32.mrf.mxu0
  %v548 = vadd.f32 %v469, %v547
  %v549 = vpop.f32.mrf.mxu0
  %v550 = vadd.f32 %v469, %v549
  %551 = vmatmul.bf16.gmra.mxu0 %v510
  %v552 = vpop.f32.mrf.mxu0
  %v553 = vadd.f32 %v469, %v552
  %v554 = vpop.f32.mrf.mxu0
  %v555 = vadd.f32 %v469, %v554
  %556 = vmatmul.bf16.gmra.mxu0 %v513
  %v557 = vpop.f32.mrf.mxu0
  %v558 = vadd.f32 %v469, %v557
  %v559 = vpop.f32.mrf.mxu0
  %v560 = vadd.f32 %v469, %v559
  %561 = vmatmul.bf16.gmra.mxu0 %v516
  %v562 = vpop.f32.mrf.mxu0
  %v563 = vadd.f32 %v469, %v562
  %v564 = vpop.f32.mrf.mxu0
  %v565 = vadd.f32 %v469, %v564
  %566 = vdwg.mxu0
  %v567 = vmax.f32 %v528, 0.0
  %v568 = vmax.f32 %v530, 0.0
  %v569 = vmax.f32 %v533, 0.0
  %v570 = vmax.f32 %v535, 0.0
  %v571 = vmax.f32 %v538, 0.0
  %v572 = vmax.f32 %v540, 0.0
  %v573 = vmax.f32 %v543, 0.0
  %v574 = vmax.f32 %v545, 0.0
  %v575 = vmax.f32 %v548, 0.0
  %v576 = vmax.f32 %v550, 0.0
  %v577 = vmax.f32 %v553, 0.0
  %v578 = vmax.f32 %v555, 0.0
  %v579 = vmax.f32 %v558, 0.0
  %v580 = vmax.f32 %v560, 0.0
  %v581 = vmax.f32 %v563, 0.0
  %v582 = vmax.f32 %v565, 0.0
  %v583 = vpack.c.bf16 %v567, %v567
  %v584 = vpack.c.bf16 %v568, %v568
  %v585 = vpack.c.bf16 %v569, %v569
  %v586 = vpack.c.bf16 %v570, %v570
  %v587 = vpack.c.bf16 %v571, %v571
  %v588 = vpack.c.bf16 %v572, %v572
  %v589 = vpack.c.bf16 %v573, %v573
  %v590 = vpack.c.bf16 %v574, %v574
  %v591 = vpack.c.bf16 %v575, %v575
  %v592 = vpack.c.bf16 %v576, %v576
  %v593 = vpack.c.bf16 %v577, %v577
  %v594 = vpack.c.bf16 %v578, %v578
  %v595 = vpack.c.bf16 %v579, %v579
  %v596 = vpack.c.bf16 %v580, %v580
  %v597 = vpack.c.bf16 %v581, %v581
  %v598 = vpack.c.bf16 %v582, %v582
  %599 = vst [vmem:[%s5] sm:$0xf] %v583
  %600 = vst [vmem:[%s5 + $0x4] sm:$0xf] %v584
  %601 = vst [vmem:[%s5 + $0x8] sm:$0xf] %v585
  %602 = vst [vmem:[%s5 + $0xc] sm:$0xf] %v586
  %603 = vst [vmem:[%s5 + $0x10] sm:$0xf] %v587
  %604 = vst [vmem:[%s5 + $0x14] sm:$0xf] %v588
  %605 = vst [vmem:[%s5 + $0x18] sm:$0xf] %v589
  %606 = vst [vmem:[%s5 + $0x1c] sm:$0xf] %v590
  %607 = vst [vmem:[%s5 + $0x20] sm:$0xf] %v591
  %608 = vst [vmem:[%s5 + $0x24] sm:$0xf] %v592
  %609 = vst [vmem:[%s5 + $0x28] sm:$0xf] %v593
  %610 = vst [vmem:[%s5 + $0x2c] sm:$0xf] %v594
  %611 = vst [vmem:[%s5 + $0x30] sm:$0xf] %v595
  %612 = vst [vmem:[%s5 + $0x34] sm:$0xf] %v596
  %613 = vst [vmem:[%s5 + $0x38] sm:$0xf] %v597
  %614 = vst [vmem:[%s5 + $0x3c] sm:$0xf] %v598
  // Predicated region
  $region22: #{templ_emb_forward.33} parent=0 // pred_check
    _
  $region23: #{templ_emb_forward.33} parent=0 // pred_check_branch
    %616 = sbr.rel (0) target = $region25
  $region24: #{templ_emb_forward.33} parent=0 // pred_region
    _
  $region25: #{templ_emb_forward.33} parent=0 // pred_fallthru
    _
  // Predicated region
  $region26: #{templ_emb_forward.33} parent=0 // pred_check
    _
  $region27: #{templ_emb_forward.33} parent=0 // pred_check_branch
    %618 = sbr.rel (0) target = $region29
  $region28: #{templ_emb_forward.33} parent=0 // pred_region
    _
  $region29: #{templ_emb_forward.33} parent=0 // pred_fallthru
    _

// kernel: templ_emb_forward.44
$region0: #{templ_emb_forward.44}
  #allocation0 [shape = 'u32[]', space=smem, size = 0x4, offset = 0x4, fixed_abs, tag = 'smem constant byte address 0x4 - core index']
  #allocation1 [shape = 'u32[72,128]{1,0:T(1,128)}', space=vmem, size = 0x9000, scoped, tag = 'internal scratch']
  %s0 = inlined_call_operand.vmem [shape: bf16[128,64], index: 0, kind: input, shape index: {}]
  %s1 = inlined_call_operand.vmem [shape: bf16[1,64], index: 1, kind: input, shape index: {}]
  %s2 = inlined_call_operand.vmem [shape: bf16[1,64], index: 2, kind: input, shape index: {}]
  %s3 = inlined_call_operand.vmem [shape: bf16[128,64], index: 3, kind: output, shape index: {}]
  %s4 = sld [smem:[#allocation0]]
  $region22: #{templ_emb_forward.44} parent=0
    _
  %s6 = ssub.s32 1, %s4
  %s7 = scalar_select 0, %s6, %s4
  // Predicated region
  $region2: #{templ_emb_forward.44} parent=0 // pred_check
    _
  $region3: #{templ_emb_forward.44} parent=0 // pred_check_branch
    %9 = sbr.rel (0) target = $region5
  $region4: #{templ_emb_forward.44} parent=0 // pred_region
    _
  $region5: #{templ_emb_forward.44} parent=0 // pred_fallthru
    _
  // Predicated region
  $region6: #{templ_emb_forward.44} parent=0 // pred_check
    _
  $region7: #{templ_emb_forward.44} parent=0 // pred_check_branch
    %11 = sbr.rel (0) target = $region9
  $region8: #{templ_emb_forward.44} parent=0 // pred_region
    _
  $region9: #{templ_emb_forward.44} parent=0 // pred_fallthru
    _
  // Predicated region
  $region10: #{templ_emb_forward.44} parent=0 // pred_check
    _
  $region11: #{templ_emb_forward.44} parent=0 // pred_check_branch
    %13 = sbr.rel (0) target = $region13
  $region12: #{templ_emb_forward.44} parent=0 // pred_region
    _
  $region13: #{templ_emb_forward.44} parent=0 // pred_fallthru
    _
  %v14 = vld [vmem:[%s0] sm:$0xf]
  %v15 = vld [vmem:[%s0 + $0x4] sm:$0xf]
  %v16 = vld [vmem:[%s0 + $0x8] sm:$0xf]
  %v17 = vld [vmem:[%s0 + $0xc] sm:$0xf]
  %v18 = vld [vmem:[%s0 + $0x10] sm:$0xf]
  %v19 = vld [vmem:[%s0 + $0x14] sm:$0xf]
  %v20 = vld [vmem:[%s0 + $0x18] sm:$0xf]
  %v21 = vld [vmem:[%s0 + $0x1c] sm:$0xf]
  %v22 = vld [vmem:[%s0 + $0x20] sm:$0xf]
  %v23 = vld [vmem:[%s0 + $0x24] sm:$0xf]
  %v24 = vld [vmem:[%s0 + $0x28] sm:$0xf]
  %v25 = vld [vmem:[%s0 + $0x2c] sm:$0xf]
  %v26 = vld [vmem:[%s0 + $0x30] sm:$0xf]
  %v27 = vld [vmem:[%s0 + $0x34] sm:$0xf]
  %v28 = vld [vmem:[%s0 + $0x38] sm:$0xf]
  %v29 = vld [vmem:[%s0 + $0x3c] sm:$0xf]
  %v30 = vunpack.c.l.bf16 %v14
  %v31 = vunpack.c.l.bf16 %v15
  %v32 = vunpack.c.l.bf16 %v16
  %v33 = vunpack.c.l.bf16 %v17
  %v34 = vunpack.c.l.bf16 %v18
  %v35 = vunpack.c.l.bf16 %v19
  %v36 = vunpack.c.l.bf16 %v20
  %v37 = vunpack.c.l.bf16 %v21
  %v38 = vunpack.c.l.bf16 %v22
  %v39 = vunpack.c.l.bf16 %v23
  %v40 = vunpack.c.l.bf16 %v24
  %v41 = vunpack.c.l.bf16 %v25
  %v42 = vunpack.c.l.bf16 %v26
  %v43 = vunpack.c.l.bf16 %v27
  %v44 = vunpack.c.l.bf16 %v28
  %v45 = vunpack.c.l.bf16 %v29
  %vm46 = vcmask 523264
  %v47 = vsel %vm46, %v30, 0.0
  %48 = vadd.xlane.f32.xlu0 %v47
  %v49 = vpop.xlane.xlu0 %48
  %v50 = vsel %vm46, %v31, 0.0
  %51 = vadd.xlane.f32.xlu0 %v50
  %v52 = vpop.xlane.xlu0 %51
  %v53 = vsel %vm46, %v32, 0.0
  %54 = vadd.xlane.f32.xlu0 %v53
  %v55 = vpop.xlane.xlu0 %54
  %v56 = vsel %vm46, %v33, 0.0
  %57 = vadd.xlane.f32.xlu0 %v56
  %v58 = vpop.xlane.xlu0 %57
  %v59 = vsel %vm46, %v34, 0.0
  %60 = vadd.xlane.f32.xlu0 %v59
  %v61 = vpop.xlane.xlu0 %60
  %v62 = vsel %vm46, %v35, 0.0
  %63 = vadd.xlane.f32.xlu0 %v62
  %v64 = vpop.xlane.xlu0 %63
  %v65 = vsel %vm46, %v36, 0.0
  %66 = vadd.xlane.f32.xlu0 %v65
  %v67 = vpop.xlane.xlu0 %66
  %v68 = vsel %vm46, %v37, 0.0
  %69 = vadd.xlane.f32.xlu0 %v68
  %v70 = vpop.xlane.xlu0 %69
  %v71 = vsel %vm46, %v38, 0.0
  %72 = vadd.xlane.f32.xlu0 %v71
  %v73 = vpop.xlane.xlu0 %72
  %v74 = vsel %vm46, %v39, 0.0
  %75 = vadd.xlane.f32.xlu0 %v74
  %v76 = vpop.xlane.xlu0 %75
  %v77 = vsel %vm46, %v40, 0.0
  %78 = vadd.xlane.f32.xlu0 %v77
  %v79 = vpop.xlane.xlu0 %78
  %v80 = vsel %vm46, %v41, 0.0
  %81 = vadd.xlane.f32.xlu0 %v80
  %v82 = vpop.xlane.xlu0 %81
  %v83 = vsel %vm46, %v42, 0.0
  %84 = vadd.xlane.f32.xlu0 %v83
  %v85 = vpop.xlane.xlu0 %84
  %v86 = vsel %vm46, %v43, 0.0
  %87 = vadd.xlane.f32.xlu0 %v86
  %v88 = vpop.xlane.xlu0 %87
  %v89 = vsel %vm46, %v44, 0.0
  %90 = vadd.xlane.f32.xlu0 %v89
  %v91 = vpop.xlane.xlu0 %90
  %v92 = vsel %vm46, %v45, 0.0
  %93 = vadd.xlane.f32.xlu0 %v92
  %v94 = vpop.xlane.xlu0 %93
  %v95 = vrcp.pop 64.0
  %v96 = vmul.f32 64.0, %v95
  %v97 = vsub.f32 1.0, %v96
  %v98 = vmul.f32 %v95, %v97
  %v99 = vadd.f32 %v95, %v98
  %vm100 = vweird.f32 %v95
  %v101 = vsel %vm100, %v95, %v99
  %v102 = vmul.f32 %v49, %v101
  %v103 = vmul.f32 %v52, %v101
  %v104 = vmul.f32 %v55, %v101
  %v105 = vmul.f32 %v58, %v101
  %v106 = vmul.f32 %v61, %v101
  %v107 = vmul.f32 %v64, %v101
  %v108 = vmul.f32 %v67, %v101
  %v109 = vmul.f32 %v70, %v101
  %v110 = vmul.f32 %v73, %v101
  %v111 = vmul.f32 %v76, %v101
  %v112 = vmul.f32 %v79, %v101
  %v113 = vmul.f32 %v82, %v101
  %v114 = vmul.f32 %v85, %v101
  %v115 = vmul.f32 %v88, %v101
  %v116 = vmul.f32 %v91, %v101
  %v117 = vmul.f32 %v94, %v101
  %v118 = vsub.f32 %v30, %v102
  %v119 = vsub.f32 %v31, %v103
  %v120 = vsub.f32 %v32, %v104
  %v121 = vsub.f32 %v33, %v105
  %v122 = vsub.f32 %v34, %v106
  %v123 = vsub.f32 %v35, %v107
  %v124 = vsub.f32 %v36, %v108
  %v125 = vsub.f32 %v37, %v109
  %v126 = vsub.f32 %v38, %v110
  %v127 = vsub.f32 %v39, %v111
  %v128 = vsub.f32 %v40, %v112
  %v129 = vsub.f32 %v41, %v113
  %v130 = vsub.f32 %v42, %v114
  %v131 = vsub.f32 %v43, %v115
  %v132 = vsub.f32 %v44, %v116
  %v133 = vsub.f32 %v45, %v117
  %v134 = vmul.f32 %v118, %v118
  %v135 = vmul.f32 %v119, %v119
  %v136 = vmul.f32 %v120, %v120
  %v137 = vmul.f32 %v121, %v121
  %v138 = vmul.f32 %v122, %v122
  %v139 = vmul.f32 %v123, %v123
  %v140 = vmul.f32 %v124, %v124
  %v141 = vmul.f32 %v125, %v125
  %v142 = vmul.f32 %v126, %v126
  %v143 = vmul.f32 %v127, %v127
  %v144 = vmul.f32 %v128, %v128
  %v145 = vmul.f32 %v129, %v129
  %v146 = vmul.f32 %v130, %v130
  %v147 = vmul.f32 %v131, %v131
  %v148 = vmul.f32 %v132, %v132
  %v149 = vmul.f32 %v133, %v133
  %v150 = vsel %vm46, %v134, 0.0
  %151 = vadd.xlane.f32.xlu0 %v150
  %v152 = vpop.xlane.xlu0 %151
  %v153 = vsel %vm46, %v135, 0.0
  %154 = vadd.xlane.f32.xlu0 %v153
  %v155 = vpop.xlane.xlu0 %154
  %v156 = vsel %vm46, %v136, 0.0
  %157 = vadd.xlane.f32.xlu0 %v156
  %v158 = vpop.xlane.xlu0 %157
  %v159 = vsel %vm46, %v137, 0.0
  %160 = vadd.xlane.f32.xlu0 %v159
  %v161 = vpop.xlane.xlu0 %160
  %v162 = vsel %vm46, %v138, 0.0
  %163 = vadd.xlane.f32.xlu0 %v162
  %v164 = vpop.xlane.xlu0 %163
  %v165 = vsel %vm46, %v139, 0.0
  %166 = vadd.xlane.f32.xlu0 %v165
  %v167 = vpop.xlane.xlu0 %166
  %v168 = vsel %vm46, %v140, 0.0
  %169 = vadd.xlane.f32.xlu0 %v168
  %v170 = vpop.xlane.xlu0 %169
  %v171 = vsel %vm46, %v141, 0.0
  %172 = vadd.xlane.f32.xlu0 %v171
  %v173 = vpop.xlane.xlu0 %172
  %v174 = vsel %vm46, %v142, 0.0
  %175 = vadd.xlane.f32.xlu0 %v174
  %v176 = vpop.xlane.xlu0 %175
  %v177 = vsel %vm46, %v143, 0.0
  %178 = vadd.xlane.f32.xlu0 %v177
  %v179 = vpop.xlane.xlu0 %178
  %v180 = vsel %vm46, %v144, 0.0
  %181 = vadd.xlane.f32.xlu0 %v180
  %v182 = vpop.xlane.xlu0 %181
  %v183 = vsel %vm46, %v145, 0.0
  %184 = vadd.xlane.f32.xlu0 %v183
  %v185 = vpop.xlane.xlu0 %184
  %v186 = vsel %vm46, %v146, 0.0
  %187 = vadd.xlane.f32.xlu0 %v186
  %v188 = vpop.xlane.xlu0 %187
  %v189 = vsel %vm46, %v147, 0.0
  %190 = vadd.xlane.f32.xlu0 %v189
  %v191 = vpop.xlane.xlu0 %190
  %v192 = vsel %vm46, %v148, 0.0
  %193 = vadd.xlane.f32.xlu0 %v192
  %v194 = vpop.xlane.xlu0 %193
  %v195 = vsel %vm46, %v149, 0.0
  %196 = vadd.xlane.f32.xlu0 %v195
  %v197 = vpop.xlane.xlu0 %196
  %v198 = vmul.f32 %v152, %v101
  %v199 = vmul.f32 %v155, %v101
  %v200 = vmul.f32 %v158, %v101
  %v201 = vmul.f32 %v161, %v101
  %v202 = vmul.f32 %v164, %v101
  %v203 = vmul.f32 %v167, %v101
  %v204 = vmul.f32 %v170, %v101
  %v205 = vmul.f32 %v173, %v101
  %v206 = vmul.f32 %v176, %v101
  %v207 = vmul.f32 %v179, %v101
  %v208 = vmul.f32 %v182, %v101
  %v209 = vmul.f32 %v185, %v101
  %v210 = vmul.f32 %v188, %v101
  %v211 = vmul.f32 %v191, %v101
  %v212 = vmul.f32 %v194, %v101
  %v213 = vmul.f32 %v197, %v101
  %v214 = vadd.f32 %v198, 1e-05
  %v215 = vadd.f32 %v199, 1e-05
  %v216 = vadd.f32 %v200, 1e-05
  %v217 = vadd.f32 %v201, 1e-05
  %v218 = vadd.f32 %v202, 1e-05
  %v219 = vadd.f32 %v203, 1e-05
  %v220 = vadd.f32 %v204, 1e-05
  %v221 = vadd.f32 %v205, 1e-05
  %v222 = vadd.f32 %v206, 1e-05
  %v223 = vadd.f32 %v207, 1e-05
  %v224 = vadd.f32 %v208, 1e-05
  %v225 = vadd.f32 %v209, 1e-05
  %v226 = vadd.f32 %v210, 1e-05
  %v227 = vadd.f32 %v211, 1e-05
  %v228 = vadd.f32 %v212, 1e-05
  %v229 = vadd.f32 %v213, 1e-05
  %v230 = vrsqrt.pop %v214
  %v231 = vmul.f32 %v230, %v214
  %v232 = vmul.f32 %v231, %v230
  %v233 = vmul.f32 0.5, %v232
  %v234 = vsub.f32 1.5, %v233
  %v235 = vmul.f32 %v230, %v234
  %vm236 = vweird.f32 %v214
  %vm237 = vweird.f32 %v230
  %vm238 = vmor %vm236, %vm237
  %v239 = vsel %vm238, %v230, %v235
  %v240 = vrsqrt.pop %v215
  %v241 = vmul.f32 %v240, %v215
  %v242 = vmul.f32 %v241, %v240
  %v243 = vmul.f32 0.5, %v242
  %v244 = vsub.f32 1.5, %v243
  %v245 = vmul.f32 %v240, %v244
  %vm246 = vweird.f32 %v215
  %vm247 = vweird.f32 %v240
  %vm248 = vmor %vm246, %vm247
  %v249 = vsel %vm248, %v240, %v245
  %v250 = vrsqrt.pop %v216
  %v251 = vmul.f32 %v250, %v216
  %v252 = vmul.f32 %v251, %v250
  %v253 = vmul.f32 0.5, %v252
  %v254 = vsub.f32 1.5, %v253
  %v255 = vmul.f32 %v250, %v254
  %vm256 = vweird.f32 %v216
  %vm257 = vweird.f32 %v250
  %vm258 = vmor %vm256, %vm257
  %v259 = vsel %vm258, %v250, %v255
  %v260 = vrsqrt.pop %v217
  %v261 = vmul.f32 %v260, %v217
  %v262 = vmul.f32 %v261, %v260
  %v263 = vmul.f32 0.5, %v262
  %v264 = vsub.f32 1.5, %v263
  %v265 = vmul.f32 %v260, %v264
  %vm266 = vweird.f32 %v217
  %vm267 = vweird.f32 %v260
  %vm268 = vmor %vm266, %vm267
  %v269 = vsel %vm268, %v260, %v265
  %v270 = vrsqrt.pop %v218
  %v271 = vmul.f32 %v270, %v218
  %v272 = vmul.f32 %v271, %v270
  %v273 = vmul.f32 0.5, %v272
  %v274 = vsub.f32 1.5, %v273
  %v275 = vmul.f32 %v270, %v274
  %vm276 = vweird.f32 %v218
  %vm277 = vweird.f32 %v270
  %vm278 = vmor %vm276, %vm277
  %v279 = vsel %vm278, %v270, %v275
  %v280 = vrsqrt.pop %v219
  %v281 = vmul.f32 %v280, %v219
  %v282 = vmul.f32 %v281, %v280
  %v283 = vmul.f32 0.5, %v282
  %v284 = vsub.f32 1.5, %v283
  %v285 = vmul.f32 %v280, %v284
  %vm286 = vweird.f32 %v219
  %vm287 = vweird.f32 %v280
  %vm288 = vmor %vm286, %vm287
  %v289 = vsel %vm288, %v280, %v285
  %v290 = vrsqrt.pop %v220
  %v291 = vmul.f32 %v290, %v220
  %v292 = vmul.f32 %v291, %v290
  %v293 = vmul.f32 0.5, %v292
  %v294 = vsub.f32 1.5, %v293
  %v295 = vmul.f32 %v290, %v294
  %vm296 = vweird.f32 %v220
  %vm297 = vweird.f32 %v290
  %vm298 = vmor %vm296, %vm297
  %v299 = vsel %vm298, %v290, %v295
  %v300 = vrsqrt.pop %v221
  %v301 = vmul.f32 %v300, %v221
  %v302 = vmul.f32 %v301, %v300
  %v303 = vmul.f32 0.5, %v302
  %v304 = vsub.f32 1.5, %v303
  %v305 = vmul.f32 %v300, %v304
  %vm306 = vweird.f32 %v221
  %vm307 = vweird.f32 %v300
  %vm308 = vmor %vm306, %vm307
  %v309 = vsel %vm308, %v300, %v305
  %v310 = vrsqrt.pop %v222
  %v311 = vmul.f32 %v310, %v222
  %v312 = vmul.f32 %v311, %v310
  %v313 = vmul.f32 0.5, %v312
  %v314 = vsub.f32 1.5, %v313
  %v315 = vmul.f32 %v310, %v314
  %vm316 = vweird.f32 %v222
  %vm317 = vweird.f32 %v310
  %vm318 = vmor %vm316, %vm317
  %v319 = vsel %vm318, %v310, %v315
  %v320 = vrsqrt.pop %v223
  %v321 = vmul.f32 %v320, %v223
  %v322 = vmul.f32 %v321, %v320
  %v323 = vmul.f32 0.5, %v322
  %v324 = vsub.f32 1.5, %v323
  %v325 = vmul.f32 %v320, %v324
  %vm326 = vweird.f32 %v223
  %vm327 = vweird.f32 %v320
  %vm328 = vmor %vm326, %vm327
  %v329 = vsel %vm328, %v320, %v325
  %v330 = vrsqrt.pop %v224
  %v331 = vmul.f32 %v330, %v224
  %v332 = vmul.f32 %v331, %v330
  %v333 = vmul.f32 0.5, %v332
  %v334 = vsub.f32 1.5, %v333
  %v335 = vmul.f32 %v330, %v334
  %vm336 = vweird.f32 %v224
  %vm337 = vweird.f32 %v330
  %vm338 = vmor %vm336, %vm337
  %v339 = vsel %vm338, %v330, %v335
  %v340 = vrsqrt.pop %v225
  %v341 = vmul.f32 %v340, %v225
  %v342 = vmul.f32 %v341, %v340
  %v343 = vmul.f32 0.5, %v342
  %v344 = vsub.f32 1.5, %v343
  %v345 = vmul.f32 %v340, %v344
  %vm346 = vweird.f32 %v225
  %vm347 = vweird.f32 %v340
  %vm348 = vmor %vm346, %vm347
  %v349 = vsel %vm348, %v340, %v345
  %v350 = vrsqrt.pop %v226
  %v351 = vmul.f32 %v350, %v226
  %v352 = vmul.f32 %v351, %v350
  %v353 = vmul.f32 0.5, %v352
  %v354 = vsub.f32 1.5, %v353
  %v355 = vmul.f32 %v350, %v354
  %vm356 = vweird.f32 %v226
  %vm357 = vweird.f32 %v350
  %vm358 = vmor %vm356, %vm357
  %v359 = vsel %vm358, %v350, %v355
  %v360 = vrsqrt.pop %v227
  %v361 = vmul.f32 %v360, %v227
  %v362 = vmul.f32 %v361, %v360
  %v363 = vmul.f32 0.5, %v362
  %v364 = vsub.f32 1.5, %v363
  %v365 = vmul.f32 %v360, %v364
  %vm366 = vweird.f32 %v227
  %vm367 = vweird.f32 %v360
  %vm368 = vmor %vm366, %vm367
  %v369 = vsel %vm368, %v360, %v365
  %v370 = vrsqrt.pop %v228
  %v371 = vmul.f32 %v370, %v228
  %v372 = vmul.f32 %v371, %v370
  %v373 = vmul.f32 0.5, %v372
  %v374 = vsub.f32 1.5, %v373
  %v375 = vmul.f32 %v370, %v374
  %vm376 = vweird.f32 %v228
  %vm377 = vweird.f32 %v370
  %vm378 = vmor %vm376, %vm377
  %v379 = vsel %vm378, %v370, %v375
  %v380 = vrsqrt.pop %v229
  %v381 = vmul.f32 %v380, %v229
  %v382 = vmul.f32 %v381, %v380
  %v383 = vmul.f32 0.5, %v382
  %v384 = vsub.f32 1.5, %v383
  %v385 = vmul.f32 %v380, %v384
  %vm386 = vweird.f32 %v229
  %vm387 = vweird.f32 %v380
  %vm388 = vmor %vm386, %vm387
  %v389 = vsel %vm388, %v380, %v385
  %v390 = vmul.f32 %v118, %v239
  %v391 = vmul.f32 %v119, %v249
  %v392 = vmul.f32 %v120, %v259
  %v393 = vmul.f32 %v121, %v269
  %v394 = vmul.f32 %v122, %v279
  %v395 = vmul.f32 %v123, %v289
  %v396 = vmul.f32 %v124, %v299
  %v397 = vmul.f32 %v125, %v309
  %v398 = vmul.f32 %v126, %v319
  %v399 = vmul.f32 %v127, %v329
  %v400 = vmul.f32 %v128, %v339
  %v401 = vmul.f32 %v129, %v349
  %v402 = vmul.f32 %v130, %v359
  %v403 = vmul.f32 %v131, %v369
  %v404 = vmul.f32 %v132, %v379
  %v405 = vmul.f32 %v133, %v389
  %v406 = vld [vmem:[%s1] sm:$0x1]
  %v407 = vunpack.c.l.bf16 %v406
  %v408 = vperm.slane %v407, 0
  %v409 = vmul.f32 %v390, %v408
  %v410 = vmul.f32 %v391, %v408
  %v411 = vmul.f32 %v392, %v408
  %v412 = vmul.f32 %v393, %v408
  %v413 = vmul.f32 %v394, %v408
  %v414 = vmul.f32 %v395, %v408
  %v415 = vmul.f32 %v396, %v408
  %v416 = vmul.f32 %v397, %v408
  %v417 = vmul.f32 %v398, %v408
  %v418 = vmul.f32 %v399, %v408
  %v419 = vmul.f32 %v400, %v408
  %v420 = vmul.f32 %v401, %v408
  %v421 = vmul.f32 %v402, %v408
  %v422 = vmul.f32 %v403, %v408
  %v423 = vmul.f32 %v404, %v408
  %v424 = vmul.f32 %v405, %v408
  %v425 = vld [vmem:[%s2] sm:$0x1]
  %v426 = vunpack.c.l.bf16 %v425
  %v427 = vperm.slane %v426, 0
  %v428 = vadd.f32 %v409, %v427
  %v429 = vadd.f32 %v410, %v427
  %v430 = vadd.f32 %v411, %v427
  %v431 = vadd.f32 %v412, %v427
  %v432 = vadd.f32 %v413, %v427
  %v433 = vadd.f32 %v414, %v427
  %v434 = vadd.f32 %v415, %v427
  %v435 = vadd.f32 %v416, %v427
  %v436 = vadd.f32 %v417, %v427
  %v437 = vadd.f32 %v418, %v427
  %v438 = vadd.f32 %v419, %v427
  %v439 = vadd.f32 %v420, %v427
  %v440 = vadd.f32 %v421, %v427
  %v441 = vadd.f32 %v422, %v427
  %v442 = vadd.f32 %v423, %v427
  %v443 = vadd.f32 %v424, %v427
  %v444 = vpack.c.bf16 %v428, %v428
  %v445 = vpack.c.bf16 %v429, %v429
  %v446 = vpack.c.bf16 %v430, %v430
  %v447 = vpack.c.bf16 %v431, %v431
  %v448 = vpack.c.bf16 %v432, %v432
  %v449 = vpack.c.bf16 %v433, %v433
  %v450 = vpack.c.bf16 %v434, %v434
  %v451 = vpack.c.bf16 %v435, %v435
  %v452 = vpack.c.bf16 %v436, %v436
  %v453 = vpack.c.bf16 %v437, %v437
  %v454 = vpack.c.bf16 %v438, %v438
  %v455 = vpack.c.bf16 %v439, %v439
  %v456 = vpack.c.bf16 %v440, %v440
  %v457 = vpack.c.bf16 %v441, %v441
  %v458 = vpack.c.bf16 %v442, %v442
  %v459 = vpack.c.bf16 %v443, %v443
  %vm460 = vcmask 519168
  %461 = vst.msk [vmem:[%s3] sm:$0xf] %vm460, %v444
  %462 = vst.msk [vmem:[%s3 + $0x4] sm:$0xf] %vm460, %v445
  %463 = vst.msk [vmem:[%s3 + $0x8] sm:$0xf] %vm460, %v446
  %464 = vst.msk [vmem:[%s3 + $0xc] sm:$0xf] %vm460, %v447
  %465 = vst.msk [vmem:[%s3 + $0x10] sm:$0xf] %vm460, %v448
  %466 = vst.msk [vmem:[%s3 + $0x14] sm:$0xf] %vm460, %v449
  %467 = vst.msk [vmem:[%s3 + $0x18] sm:$0xf] %vm460, %v450
  %468 = vst.msk [vmem:[%s3 + $0x1c] sm:$0xf] %vm460, %v451
  %469 = vst.msk [vmem:[%s3 + $0x20] sm:$0xf] %vm460, %v452
  %470 = vst.msk [vmem:[%s3 + $0x24] sm:$0xf] %vm460, %v453
  %471 = vst.msk [vmem:[%s3 + $0x28] sm:$0xf] %vm460, %v454
  %472 = vst.msk [vmem:[%s3 + $0x2c] sm:$0xf] %vm460, %v455
  %473 = vst.msk [vmem:[%s3 + $0x30] sm:$0xf] %vm460, %v456
  %474 = vst.msk [vmem:[%s3 + $0x34] sm:$0xf] %vm460, %v457
  %475 = vst.msk [vmem:[%s3 + $0x38] sm:$0xf] %vm460, %v458
  %476 = vst.msk [vmem:[%s3 + $0x3c] sm:$0xf] %vm460, %v459
  // Predicated region
  $region14: #{templ_emb_forward.44} parent=0 // pred_check
    _
  $region15: #{templ_emb_forward.44} parent=0 // pred_check_branch
    %478 = sbr.rel (0) target = $region17
  $region16: #{templ_emb_forward.44} parent=0 // pred_region
    _
  $region17: #{templ_emb_forward.44} parent=0 // pred_fallthru
    _
  // Predicated region
  $region18: #{templ_emb_forward.44} parent=0 // pred_check
    _
  $region19: #{templ_emb_forward.44} parent=0 // pred_check_branch
    %480 = sbr.rel (0) target = $region21
  $region20: #{templ_emb_forward.44} parent=0 // pred_region
    _
  $region21: #{templ_emb_forward.44} parent=0 // pred_fallthru
    _

// kernel: templ_emb_forward.45
$region0: #{templ_emb_forward.45}
  #allocation0 [shape = 'u32[]', space=smem, size = 0x4, offset = 0x4, fixed_abs, tag = 'smem constant byte address 0x4 - core index']
  #allocation1 [shape = 'u32[72,128]{1,0:T(1,128)}', space=vmem, size = 0x9000, scoped, tag = 'internal scratch']
  %s0 = inlined_call_operand.vmem [shape: bf16[16,62], index: 0, kind: input, shape index: {}]
  %s1 = inlined_call_operand.vmem [shape: bf16[62,64], index: 1, kind: input, shape index: {}]
  %s2 = inlined_call_operand.vmem [shape: bf16[1,64], index: 2, kind: input, shape index: {}]
  %s3 = inlined_call_operand.vmem [shape: bf16[16,64], index: 3, kind: output, shape index: {}]
  %s4 = sld [smem:[#allocation0]]
  $region22: #{templ_emb_forward.45} parent=0
    _
  %s6 = ssub.s32 1, %s4
  %s7 = scalar_select 0, %s6, %s4
  // Predicated region
  $region2: #{templ_emb_forward.45} parent=0 // pred_check
    _
  $region3: #{templ_emb_forward.45} parent=0 // pred_check_branch
    %9 = sbr.rel (0) target = $region5
  $region4: #{templ_emb_forward.45} parent=0 // pred_region
    _
  $region5: #{templ_emb_forward.45} parent=0 // pred_fallthru
    _
  // Predicated region
  $region6: #{templ_emb_forward.45} parent=0 // pred_check
    _
  $region7: #{templ_emb_forward.45} parent=0 // pred_check_branch
    %11 = sbr.rel (0) target = $region9
  $region8: #{templ_emb_forward.45} parent=0 // pred_region
    _
  $region9: #{templ_emb_forward.45} parent=0 // pred_fallthru
    _
  // Predicated region
  $region10: #{templ_emb_forward.45} parent=0 // pred_check
    _
  $region11: #{templ_emb_forward.45} parent=0 // pred_check_branch
    %13 = sbr.rel (0) target = $region13
  $region12: #{templ_emb_forward.45} parent=0 // pred_region
    _
  $region13: #{templ_emb_forward.45} parent=0 // pred_fallthru
    _
  %v15 = vld [vmem:[%s0] sm:$0xf]
  %v16 = vld [vmem:[%s0 + $0x4] sm:$0xf]
  %v17 = vld [vmem:[%s1] sm:$0xf]
  %v18 = vld [vmem:[%s1 + $0x4] sm:$0xf]
  %v19 = vld [vmem:[%s1 + $0x8] sm:$0xf]
  %v20 = vld [vmem:[%s1 + $0xc] sm:$0xf]
  %v21 = vld [vmem:[%s1 + $0x10] sm:$0xf]
  %v22 = vld [vmem:[%s1 + $0x14] sm:$0xf]
  %v23 = vld [vmem:[%s1 + $0x18] sm:$0xf]
  %v24 = vld [vmem:[%s1 + $0x1c] sm:$0x7]
  %v25 = vld [vmem:[%s2] sm:$0x1]
  %v26 = vunpack.c.l.bf16 %v25
  %v27 = vperm.slane %v26, 0
  %v30 = vunpack.c.l.b16 %v15
  %v31 = vunpack.c.l.b16 %v16
  %v32 = vpack.c.b16 %v31, %v30
  %v41 = vunpack.c.l.b16 %v17
  %v42 = vunpack.c.l.b16 %v18
  %v43 = vunpack.c.l.b16 %v19
  %v44 = vunpack.c.l.b16 %v20
  %v45 = vunpack.c.l.b16 %v21
  %v46 = vunpack.c.l.b16 %v22
  %v47 = vunpack.c.l.b16 %v23
  %v48 = vunpack.c.l.b16 %v24
  %v49 = vpack.c.b16 %v42, %v41
  %v50 = vpack.c.b16 %v44, %v43
  %v51 = vpack.c.b16 %v46, %v45
  %v52 = vpack.c.b16 %v48, %v47
  %vm56 = vcmask 506880
  %v58 = vsel %vm56, %v32, 0
  %vm60 = vcmask 1046528
  %v62 = vsel %vm60, %v52, 0
  %64 = vmatpush.bf16.msra.mxu0 0
  %65 = vmatpush.bf16.msra.mxu0 0
  %66 = vmatpush.bf16.msra.mxu0 0
  %67 = vmatpush.bf16.msra.mxu0 0
  %68 = vmatpush.bf16.msra.mxu0 %v62
  %69 = vmatpush.bf16.msra.mxu0 %v51
  %70 = vmatpush.bf16.msra.mxu0 %v50
  %71 = vmatpush.bf16.msra.mxu0 %v49
  %72 = vmatmul.bf16.gmra.mxu0 %v58
  %v73 = vpop.f32.mrf.mxu0
  %v74 = vadd.f32 %v27, %v73
  %v75 = vpop.f32.mrf.mxu0
  %v76 = vadd.f32 %v27, %v75
  %77 = vdwg.mxu0
  %v78 = vpack.c.bf16 %v74, %v74
  %v79 = vpack.c.bf16 %v76, %v76
  %vm80 = vcmask 519168
  %81 = vst.msk [vmem:[%s3] sm:$0xf] %vm80, %v78
  %82 = vst.msk [vmem:[%s3 + $0x4] sm:$0xf] %vm80, %v79
  // Predicated region
  $region14: #{templ_emb_forward.45} parent=0 // pred_check
    _
  $region15: #{templ_emb_forward.45} parent=0 // pred_check_branch
    %84 = sbr.rel (0) target = $region17
  $region16: #{templ_emb_forward.45} parent=0 // pred_region
    _
  $region17: #{templ_emb_forward.45} parent=0 // pred_fallthru
    _
  // Predicated region
  $region18: #{templ_emb_forward.45} parent=0 // pred_check
    _
  $region19: #{templ_emb_forward.45} parent=0 // pred_check_branch
    %86 = sbr.rel (0) target = $region21
  $region20: #{templ_emb_forward.45} parent=0 // pred_region
    _
  $region21: #{templ_emb_forward.45} parent=0 // pred_fallthru
    _

// kernel: templ_emb_forward.47
$region0: #{templ_emb_forward.47}
  #allocation0 [shape = 'u32[]', space=smem, size = 0x4, offset = 0x4, fixed_abs, tag = 'smem constant byte address 0x4 - core index']
  #allocation1 [shape = 'u32[72,128]{1,0:T(1,128)}', space=vmem, size = 0x9000, scoped, tag = 'internal scratch']
  %s0 = inlined_call_operand.vmem [shape: bf16[64,128], index: 0, kind: input, shape index: {}]
  %s1 = inlined_call_operand.vmem [shape: bf16[64,128], index: 1, kind: input, shape index: {}]
  %s2 = inlined_call_operand.vmem [shape: bf16[128,64], index: 2, kind: input, shape index: {}]
  %s3 = inlined_call_operand.vmem [shape: bf16[128,128], index: 3, kind: input, shape index: {}]
  %s4 = inlined_call_operand.vmem [shape: bf16[128,128], index: 4, kind: input, shape index: {}]
  %s5 = inlined_call_operand.vmem [shape: f32[64,4], index: 5, kind: input, shape index: {}]
  %s6 = inlined_call_operand.vmem [shape: f32[4,64], index: 6, kind: input, shape index: {}]
  %s7 = inlined_call_operand.vmem [shape: bf16[64,128], index: 7, kind: input, shape index: {}]
  %s8 = inlined_call_operand.vmem [shape: bf16[1,128], index: 8, kind: input, shape index: {}]
  %s9 = inlined_call_operand.vmem [shape: f32[64,128], index: 9, kind: output, shape index: {}]
  %s10 = sld [smem:[#allocation0]]
  $region46: #{templ_emb_forward.47} parent=0
    _
  %s12 = ssub.s32 1, %s10
  %s13 = scalar_select 0, %s12, %s10
  // Predicated region
  $region2: #{templ_emb_forward.47} parent=0 // pred_check
    _
  $region3: #{templ_emb_forward.47} parent=0 // pred_check_branch
    %15 = sbr.rel (0) target = $region5
  $region4: #{templ_emb_forward.47} parent=0 // pred_region
    _
  $region5: #{templ_emb_forward.47} parent=0 // pred_fallthru
    _
  // Predicated region
  $region6: #{templ_emb_forward.47} parent=0 // pred_check
    _
  $region7: #{templ_emb_forward.47} parent=0 // pred_check_branch
    %17 = sbr.rel (0) target = $region9
  $region8: #{templ_emb_forward.47} parent=0 // pred_region
    _
  $region9: #{templ_emb_forward.47} parent=0 // pred_fallthru
    _
  // Predicated region
  $region10: #{templ_emb_forward.47} parent=0 // pred_check
    _
  $region11: #{templ_emb_forward.47} parent=0 // pred_check_branch
    %19 = sbr.rel (0) target = $region13
  $region12: #{templ_emb_forward.47} parent=0 // pred_region
    _
  $region13: #{templ_emb_forward.47} parent=0 // pred_fallthru
    _
  // Predicated region
  $region14: #{templ_emb_forward.47} parent=0 // pred_check
    _
  $region15: #{templ_emb_forward.47} parent=0 // pred_check_branch
    %21 = sbr.rel (0) target = $region17
  $region16: #{templ_emb_forward.47} parent=0 // pred_region
    _
  $region17: #{templ_emb_forward.47} parent=0 // pred_fallthru
    _
  // Predicated region
  $region18: #{templ_emb_forward.47} parent=0 // pred_check
    _
  $region19: #{templ_emb_forward.47} parent=0 // pred_check_branch
    %23 = sbr.rel (0) target = $region21
  $region20: #{templ_emb_forward.47} parent=0 // pred_region
    _
  $region21: #{templ_emb_forward.47} parent=0 // pred_fallthru
    _
  // Predicated region
  $region22: #{templ_emb_forward.47} parent=0 // pred_check
    _
  $region23: #{templ_emb_forward.47} parent=0 // pred_check_branch
    %25 = sbr.rel (0) target = $region25
  $region24: #{templ_emb_forward.47} parent=0 // pred_region
    _
  $region25: #{templ_emb_forward.47} parent=0 // pred_fallthru
    _
  // Predicated region
  $region26: #{templ_emb_forward.47} parent=0 // pred_check
    _
  $region27: #{templ_emb_forward.47} parent=0 // pred_check_branch
    %27 = sbr.rel (0) target = $region29
  $region28: #{templ_emb_forward.47} parent=0 // pred_region
    _
  $region29: #{templ_emb_forward.47} parent=0 // pred_fallthru
    _
  // Predicated region
  $region30: #{templ_emb_forward.47} parent=0 // pred_check
    _
  $region31: #{templ_emb_forward.47} parent=0 // pred_check_branch
    %29 = sbr.rel (0) target = $region33
  $region32: #{templ_emb_forward.47} parent=0 // pred_region
    _
  $region33: #{templ_emb_forward.47} parent=0 // pred_fallthru
    _
  // Predicated region
  $region34: #{templ_emb_forward.47} parent=0 // pred_check
    _
  $region35: #{templ_emb_forward.47} parent=0 // pred_check_branch
    %31 = sbr.rel (0) target = $region37
  $region36: #{templ_emb_forward.47} parent=0 // pred_region
    _
  $region37: #{templ_emb_forward.47} parent=0 // pred_fallthru
    _
  %v33 = vld [vmem:[%s0] sm:$0xf]
  %v34 = vld [vmem:[%s0 + $0x4] sm:$0xf]
  %v35 = vld [vmem:[%s0 + $0x8] sm:$0xf]
  %v36 = vld [vmem:[%s0 + $0xc] sm:$0xf]
  %v37 = vld [vmem:[%s0 + $0x10] sm:$0xf]
  %v38 = vld [vmem:[%s0 + $0x14] sm:$0xf]
  %v39 = vld [vmem:[%s0 + $0x18] sm:$0xf]
  %v40 = vld [vmem:[%s0 + $0x1c] sm:$0xf]
  %v41 = vld [vmem:[%s2] sm:$0xf]
  %v42 = vld [vmem:[%s2 + $0x4] sm:$0xf]
  %v43 = vld [vmem:[%s2 + $0x8] sm:$0xf]
  %v44 = vld [vmem:[%s2 + $0xc] sm:$0xf]
  %v45 = vld [vmem:[%s2 + $0x10] sm:$0xf]
  %v46 = vld [vmem:[%s2 + $0x14] sm:$0xf]
  %v47 = vld [vmem:[%s2 + $0x18] sm:$0xf]
  %v48 = vld [vmem:[%s2 + $0x1c] sm:$0xf]
  %v49 = vld [vmem:[%s2 + $0x20] sm:$0xf]
  %v50 = vld [vmem:[%s2 + $0x24] sm:$0xf]
  %v51 = vld [vmem:[%s2 + $0x28] sm:$0xf]
  %v52 = vld [vmem:[%s2 + $0x2c] sm:$0xf]
  %v53 = vld [vmem:[%s2 + $0x30] sm:$0xf]
  %v54 = vld [vmem:[%s2 + $0x34] sm:$0xf]
  %v55 = vld [vmem:[%s2 + $0x38] sm:$0xf]
  %v56 = vld [vmem:[%s2 + $0x3c] sm:$0xf]
  %v65 = vunpack.c.l.b16 %v33
  %v66 = vunpack.c.l.b16 %v34
  %v67 = vunpack.c.l.b16 %v35
  %v68 = vunpack.c.l.b16 %v36
  %v69 = vunpack.c.l.b16 %v37
  %v70 = vunpack.c.l.b16 %v38
  %v71 = vunpack.c.l.b16 %v39
  %v72 = vunpack.c.l.b16 %v40
  %v73 = vpack.c.b16 %v66, %v65
  %v74 = vpack.c.b16 %v68, %v67
  %v75 = vpack.c.b16 %v70, %v69
  %v76 = vpack.c.b16 %v72, %v71
  %v97 = vunpack.c.l.b16 %v41
  %v98 = vunpack.c.l.b16 %v42
  %v99 = vunpack.c.l.b16 %v43
  %v100 = vunpack.c.l.b16 %v44
  %v101 = vunpack.c.l.b16 %v45
  %v102 = vunpack.c.l.b16 %v46
  %v103 = vunpack.c.l.b16 %v47
  %v104 = vunpack.c.l.b16 %v48
  %v105 = vunpack.c.l.b16 %v49
  %v106 = vunpack.c.l.b16 %v50
  %v107 = vunpack.c.l.b16 %v51
  %v108 = vunpack.c.l.b16 %v52
  %v109 = vunpack.c.l.b16 %v53
  %v110 = vunpack.c.l.b16 %v54
  %v111 = vunpack.c.l.b16 %v55
  %v112 = vunpack.c.l.b16 %v56
  %v113 = vpack.c.b16 %v98, %v97
  %v114 = vpack.c.b16 %v100, %v99
  %v115 = vpack.c.b16 %v102, %v101
  %v116 = vpack.c.b16 %v104, %v103
  %v117 = vpack.c.b16 %v106, %v105
  %v118 = vpack.c.b16 %v108, %v107
  %v119 = vpack.c.b16 %v110, %v109
  %v120 = vpack.c.b16 %v112, %v111
  %129 = vmatpush.bf16.msra.mxu0 %v120
  %130 = vmatpush.bf16.msra.mxu0 %v119
  %131 = vmatpush.bf16.msra.mxu0 %v118
  %132 = vmatpush.bf16.msra.mxu0 %v117
  %133 = vmatpush.bf16.msra.mxu0 %v116
  %134 = vmatpush.bf16.msra.mxu0 %v115
  %135 = vmatpush.bf16.msra.mxu0 %v114
  %136 = vmatpush.bf16.msra.mxu0 %v113
  %137 = vmatmul.bf16.gmra.mxu0 %v73
  %v138 = vpop.f32.mrf.mxu0
  %v139 = vadd.f32 0.0, %v138
  %v140 = vpop.f32.mrf.mxu0
  %v141 = vadd.f32 0.0, %v140
  %142 = vmatmul.bf16.gmra.mxu0 %v74
  %v143 = vpop.f32.mrf.mxu0
  %v144 = vadd.f32 0.0, %v143
  %v145 = vpop.f32.mrf.mxu0
  %v146 = vadd.f32 0.0, %v145
  %147 = vmatmul.bf16.gmra.mxu0 %v75
  %v148 = vpop.f32.mrf.mxu0
  %v149 = vadd.f32 0.0, %v148
  %v150 = vpop.f32.mrf.mxu0
  %v151 = vadd.f32 0.0, %v150
  %152 = vmatmul.bf16.gmra.mxu0 %v76
  %v153 = vpop.f32.mrf.mxu0
  %v154 = vadd.f32 0.0, %v153
  %v155 = vpop.f32.mrf.mxu0
  %v156 = vadd.f32 0.0, %v155
  %157 = vdwg.mxu0
  %v158 = vmul.f32 %v139, 0.25
  %v159 = vmul.f32 %v141, 0.25
  %v160 = vmul.f32 %v144, 0.25
  %v161 = vmul.f32 %v146, 0.25
  %v162 = vmul.f32 %v149, 0.25
  %v163 = vmul.f32 %v151, 0.25
  %v164 = vmul.f32 %v154, 0.25
  %v165 = vmul.f32 %v156, 0.25
  %v166 = vld [vmem:[%s1] sm:$0xf]
  %v167 = vld [vmem:[%s1 + $0x4] sm:$0xf]
  %v168 = vld [vmem:[%s1 + $0x8] sm:$0xf]
  %v169 = vld [vmem:[%s1 + $0xc] sm:$0xf]
  %v170 = vld [vmem:[%s1 + $0x10] sm:$0xf]
  %v171 = vld [vmem:[%s1 + $0x14] sm:$0xf]
  %v172 = vld [vmem:[%s1 + $0x18] sm:$0xf]
  %v173 = vld [vmem:[%s1 + $0x1c] sm:$0xf]
  %v174 = vld [vmem:[%s3] sm:$0xf]
  %v175 = vld [vmem:[%s3 + $0x4] sm:$0xf]
  %v176 = vld [vmem:[%s3 + $0x8] sm:$0xf]
  %v177 = vld [vmem:[%s3 + $0xc] sm:$0xf]
  %v178 = vld [vmem:[%s3 + $0x10] sm:$0xf]
  %v179 = vld [vmem:[%s3 + $0x14] sm:$0xf]
  %v180 = vld [vmem:[%s3 + $0x18] sm:$0xf]
  %v181 = vld [vmem:[%s3 + $0x1c] sm:$0xf]
  %v182 = vld [vmem:[%s3 + $0x20] sm:$0xf]
  %v183 = vld [vmem:[%s3 + $0x24] sm:$0xf]
  %v184 = vld [vmem:[%s3 + $0x28] sm:$0xf]
  %v185 = vld [vmem:[%s3 + $0x2c] sm:$0xf]
  %v186 = vld [vmem:[%s3 + $0x30] sm:$0xf]
  %v187 = vld [vmem:[%s3 + $0x34] sm:$0xf]
  %v188 = vld [vmem:[%s3 + $0x38] sm:$0xf]
  %v189 = vld [vmem:[%s3 + $0x3c] sm:$0xf]
  %v198 = vunpack.c.l.b16 %v166
  %v199 = vunpack.c.l.b16 %v167
  %v200 = vunpack.c.l.b16 %v168
  %v201 = vunpack.c.l.b16 %v169
  %v202 = vunpack.c.l.b16 %v170
  %v203 = vunpack.c.l.b16 %v171
  %v204 = vunpack.c.l.b16 %v172
  %v205 = vunpack.c.l.b16 %v173
  %v206 = vpack.c.b16 %v199, %v198
  %v207 = vpack.c.b16 %v201, %v200
  %v208 = vpack.c.b16 %v203, %v202
  %v209 = vpack.c.b16 %v205, %v204
  %v230 = vunpack.c.l.b16 %v174
  %v231 = vunpack.c.l.b16 %v175
  %v232 = vunpack.c.l.b16 %v176
  %v233 = vunpack.c.l.b16 %v177
  %v234 = vunpack.c.l.b16 %v178
  %v235 = vunpack.c.l.b16 %v179
  %v236 = vunpack.c.l.b16 %v180
  %v237 = vunpack.c.l.b16 %v181
  %v238 = vunpack.c.l.b16 %v182
  %v239 = vunpack.c.l.b16 %v183
  %v240 = vunpack.c.l.b16 %v184
  %v241 = vunpack.c.l.b16 %v185
  %v242 = vunpack.c.l.b16 %v186
  %v243 = vunpack.c.l.b16 %v187
  %v244 = vunpack.c.l.b16 %v188
  %v245 = vunpack.c.l.b16 %v189
  %v246 = vpack.c.b16 %v231, %v230
  %v247 = vpack.c.b16 %v233, %v232
  %v248 = vpack.c.b16 %v235, %v234
  %v249 = vpack.c.b16 %v237, %v236
  %v250 = vpack.c.b16 %v239, %v238
  %v251 = vpack.c.b16 %v241, %v240
  %v252 = vpack.c.b16 %v243, %v242
  %v253 = vpack.c.b16 %v245, %v244
  %262 = vmatpush.bf16.msra.mxu0 %v253
  %263 = vmatpush.bf16.msra.mxu0 %v252
  %264 = vmatpush.bf16.msra.mxu0 %v251
  %265 = vmatpush.bf16.msra.mxu0 %v250
  %266 = vmatpush.bf16.msra.mxu0 %v249
  %267 = vmatpush.bf16.msra.mxu0 %v248
  %268 = vmatpush.bf16.msra.mxu0 %v247
  %269 = vmatpush.bf16.msra.mxu0 %v246
  %270 = vmatmul.bf16.gmra.mxu0 %v206
  %v271 = vpop.f32.mrf.mxu0
  %v272 = vadd.f32 0.0, %v271
  %v273 = vpop.f32.mrf.mxu0
  %v274 = vadd.f32 0.0, %v273
  %275 = vmatmul.bf16.gmra.mxu0 %v207
  %v276 = vpop.f32.mrf.mxu0
  %v277 = vadd.f32 0.0, %v276
  %v278 = vpop.f32.mrf.mxu0
  %v279 = vadd.f32 0.0, %v278
  %280 = vmatmul.bf16.gmra.mxu0 %v208
  %v281 = vpop.f32.mrf.mxu0
  %v282 = vadd.f32 0.0, %v281
  %v283 = vpop.f32.mrf.mxu0
  %v284 = vadd.f32 0.0, %v283
  %285 = vmatmul.bf16.gmra.mxu0 %v209
  %v286 = vpop.f32.mrf.mxu0
  %v287 = vadd.f32 0.0, %v286
  %v288 = vpop.f32.mrf.mxu0
  %v289 = vadd.f32 0.0, %v288
  %290 = vdwg.mxu0
  %v291 = vld [vmem:[%s4] sm:$0xf]
  %v292 = vld [vmem:[%s4 + $0x4] sm:$0xf]
  %v293 = vld [vmem:[%s4 + $0x8] sm:$0xf]
  %v294 = vld [vmem:[%s4 + $0xc] sm:$0xf]
  %v295 = vld [vmem:[%s4 + $0x10] sm:$0xf]
  %v296 = vld [vmem:[%s4 + $0x14] sm:$0xf]
  %v297 = vld [vmem:[%s4 + $0x18] sm:$0xf]
  %v298 = vld [vmem:[%s4 + $0x1c] sm:$0xf]
  %v299 = vld [vmem:[%s4 + $0x20] sm:$0xf]
  %v300 = vld [vmem:[%s4 + $0x24] sm:$0xf]
  %v301 = vld [vmem:[%s4 + $0x28] sm:$0xf]
  %v302 = vld [vmem:[%s4 + $0x2c] sm:$0xf]
  %v303 = vld [vmem:[%s4 + $0x30] sm:$0xf]
  %v304 = vld [vmem:[%s4 + $0x34] sm:$0xf]
  %v305 = vld [vmem:[%s4 + $0x38] sm:$0xf]
  %v306 = vld [vmem:[%s4 + $0x3c] sm:$0xf]
  %v323 = vunpack.c.l.b16 %v291
  %v324 = vunpack.c.l.b16 %v292
  %v325 = vunpack.c.l.b16 %v293
  %v326 = vunpack.c.l.b16 %v294
  %v327 = vunpack.c.l.b16 %v295
  %v328 = vunpack.c.l.b16 %v296
  %v329 = vunpack.c.l.b16 %v297
  %v330 = vunpack.c.l.b16 %v298
  %v331 = vunpack.c.l.b16 %v299
  %v332 = vunpack.c.l.b16 %v300
  %v333 = vunpack.c.l.b16 %v301
  %v334 = vunpack.c.l.b16 %v302
  %v335 = vunpack.c.l.b16 %v303
  %v336 = vunpack.c.l.b16 %v304
  %v337 = vunpack.c.l.b16 %v305
  %v338 = vunpack.c.l.b16 %v306
  %v339 = vpack.c.b16 %v324, %v323
  %v340 = vpack.c.b16 %v326, %v325
  %v341 = vpack.c.b16 %v328, %v327
  %v342 = vpack.c.b16 %v330, %v329
  %v343 = vpack.c.b16 %v332, %v331
  %v344 = vpack.c.b16 %v334, %v333
  %v345 = vpack.c.b16 %v336, %v335
  %v346 = vpack.c.b16 %v338, %v337
  %355 = vmatpush.bf16.msra.mxu0 %v346
  %356 = vmatpush.bf16.msra.mxu0 %v345
  %357 = vmatpush.bf16.msra.mxu0 %v344
  %358 = vmatpush.bf16.msra.mxu0 %v343
  %359 = vmatpush.bf16.msra.mxu0 %v342
  %360 = vmatpush.bf16.msra.mxu0 %v341
  %361 = vmatpush.bf16.msra.mxu0 %v340
  %362 = vmatpush.bf16.msra.mxu0 %v339
  %363 = vmatmul.bf16.gmra.mxu0 %v206
  %v364 = vpop.f32.mrf.mxu0
  %v365 = vadd.f32 0.0, %v364
  %v366 = vpop.f32.mrf.mxu0
  %v367 = vadd.f32 0.0, %v366
  %368 = vmatmul.bf16.gmra.mxu0 %v207
  %v369 = vpop.f32.mrf.mxu0
  %v370 = vadd.f32 0.0, %v369
  %v371 = vpop.f32.mrf.mxu0
  %v372 = vadd.f32 0.0, %v371
  %373 = vmatmul.bf16.gmra.mxu0 %v208
  %v374 = vpop.f32.mrf.mxu0
  %v375 = vadd.f32 0.0, %v374
  %v376 = vpop.f32.mrf.mxu0
  %v377 = vadd.f32 0.0, %v376
  %378 = vmatmul.bf16.gmra.mxu0 %v209
  %v379 = vpop.f32.mrf.mxu0
  %v380 = vadd.f32 0.0, %v379
  %v381 = vpop.f32.mrf.mxu0
  %v382 = vadd.f32 0.0, %v381
  %383 = vdwg.mxu0
  %v384 = vmul.f32 %v158, %v272
  %v385 = vmul.f32 %v159, %v274
  %v386 = vmul.f32 %v160, %v277
  %v387 = vmul.f32 %v161, %v279
  %v388 = vmul.f32 %v162, %v282
  %v389 = vmul.f32 %v163, %v284
  %v390 = vmul.f32 %v164, %v287
  %v391 = vmul.f32 %v165, %v289
  %v392 = vld [vmem:[%s5] sm:$0xff]
  %v393 = vld [vmem:[%s5 + $0x8] sm:$0xff]
  %v394 = vld [vmem:[%s5 + $0x10] sm:$0xff]
  %v395 = vld [vmem:[%s5 + $0x18] sm:$0xff]
  %v396 = vld [vmem:[%s5 + $0x20] sm:$0xff]
  %v397 = vld [vmem:[%s5 + $0x28] sm:$0xff]
  %v398 = vld [vmem:[%s5 + $0x30] sm:$0xff]
  %v399 = vld [vmem:[%s5 + $0x38] sm:$0xff]
  %vm400 = vcmask 523264
  %v402 = vsel %vm400, %v384, 0
  %v405 = vsel %vm400, %v385, 0
  %v408 = vsel %vm400, %v386, 0
  %v411 = vsel %vm400, %v387, 0
  %v414 = vsel %vm400, %v388, 0
  %v417 = vsel %vm400, %v389, 0
  %v420 = vsel %vm400, %v390, 0
  %v423 = vsel %vm400, %v391, 0
  %425 = vmatpush.msra.mxu0 0.0
  %426 = vmatpush.msra.mxu0 0.0
  %427 = vmatpush.msra.mxu0 0.0
  %428 = vmatpush.msra.mxu0 0.0
  %429 = vmatpush.msra.mxu0 0.0
  %430 = vmatpush.msra.mxu0 0.0
  %431 = vmatpush.msra.mxu0 0.0
  %432 = vmatpush.msra.mxu0 0.0
  %433 = vmatpush.msra.mxu0 %v399
  %434 = vmatpush.msra.mxu0 %v398
  %435 = vmatpush.msra.mxu0 %v397
  %436 = vmatpush.msra.mxu0 %v396
  %437 = vmatpush.msra.mxu0 %v395
  %438 = vmatpush.msra.mxu0 %v394
  %439 = vmatpush.msra.mxu0 %v393
  %440 = vmatpush.msra.mxu0 %v392
  %441 = vmatmul.f32.gmra.mxu0 %v402
  %v442 = vpop.f32.mrf.mxu0
  %v443 = vadd.f32 0.0, %v442
  %444 = vmatmul.f32.gmra.mxu0 %v405
  %v445 = vpop.f32.mrf.mxu0
  %v446 = vadd.f32 0.0, %v445
  %447 = vmatmul.f32.gmra.mxu0 %v408
  %v448 = vpop.f32.mrf.mxu0
  %v449 = vadd.f32 0.0, %v448
  %450 = vmatmul.f32.gmra.mxu0 %v411
  %v451 = vpop.f32.mrf.mxu0
  %v452 = vadd.f32 0.0, %v451
  %453 = vmatmul.f32.gmra.mxu0 %v414
  %v454 = vpop.f32.mrf.mxu0
  %v455 = vadd.f32 0.0, %v454
  %456 = vmatmul.f32.gmra.mxu0 %v417
  %v457 = vpop.f32.mrf.mxu0
  %v458 = vadd.f32 0.0, %v457
  %459 = vmatmul.f32.gmra.mxu0 %v420
  %v460 = vpop.f32.mrf.mxu0
  %v461 = vadd.f32 0.0, %v460
  %462 = vmatmul.f32.gmra.mxu0 %v423
  %v463 = vpop.f32.mrf.mxu0
  %v464 = vadd.f32 0.0, %v463
  %465 = vdwg.mxu0
  %474 = vrot.lane.b32.xlu0 %v272, 64
  %v475 = vpop.permute.xlu0 %474
  %476 = vrot.lane.b32.xlu0 %v274, 64
  %v477 = vpop.permute.xlu0 %476
  %478 = vrot.lane.b32.xlu0 %v277, 64
  %v479 = vpop.permute.xlu0 %478
  %480 = vrot.lane.b32.xlu0 %v279, 64
  %v481 = vpop.permute.xlu0 %480
  %482 = vrot.lane.b32.xlu0 %v282, 64
  %v483 = vpop.permute.xlu0 %482
  %484 = vrot.lane.b32.xlu0 %v284, 64
  %v485 = vpop.permute.xlu0 %484
  %486 = vrot.lane.b32.xlu0 %v287, 64
  %v487 = vpop.permute.xlu0 %486
  %488 = vrot.lane.b32.xlu0 %v289, 64
  %v489 = vpop.permute.xlu0 %488
  %v498 = vmul.f32 %v158, %v475
  %v499 = vmul.f32 %v159, %v477
  %v500 = vmul.f32 %v160, %v479
  %v501 = vmul.f32 %v161, %v481
  %v502 = vmul.f32 %v162, %v483
  %v503 = vmul.f32 %v163, %v485
  %v504 = vmul.f32 %v164, %v487
  %v505 = vmul.f32 %v165, %v489
  %v507 = vsel %vm400, %v498, 0
  %v510 = vsel %vm400, %v499, 0
  %v513 = vsel %vm400, %v500, 0
  %v516 = vsel %vm400, %v501, 0
  %v519 = vsel %vm400, %v502, 0
  %v522 = vsel %vm400, %v503, 0
  %v525 = vsel %vm400, %v504, 0
  %v528 = vsel %vm400, %v505, 0
  %530 = vmatpush.msra.mxu0 0.0
  %531 = vmatpush.msra.mxu0 0.0
  %532 = vmatpush.msra.mxu0 0.0
  %533 = vmatpush.msra.mxu0 0.0
  %534 = vmatpush.msra.mxu0 0.0
  %535 = vmatpush.msra.mxu0 0.0
  %536 = vmatpush.msra.mxu0 0.0
  %537 = vmatpush.msra.mxu0 0.0
  %538 = vmatpush.msra.mxu0 %v399
  %539 = vmatpush.msra.mxu0 %v398
  %540 = vmatpush.msra.mxu0 %v397
  %541 = vmatpush.msra.mxu0 %v396
  %542 = vmatpush.msra.mxu0 %v395
  %543 = vmatpush.msra.mxu0 %v394
  %544 = vmatpush.msra.mxu0 %v393
  %545 = vmatpush.msra.mxu0 %v392
  %546 = vmatmul.f32.gmra.mxu0 %v507
  %v547 = vpop.f32.mrf.mxu0
  %v548 = vadd.f32 0.0, %v547
  %549 = vmatmul.f32.gmra.mxu0 %v510
  %v550 = vpop.f32.mrf.mxu0
  %v551 = vadd.f32 0.0, %v550
  %552 = vmatmul.f32.gmra.mxu0 %v513
  %v553 = vpop.f32.mrf.mxu0
  %v554 = vadd.f32 0.0, %v553
  %555 = vmatmul.f32.gmra.mxu0 %v516
  %v556 = vpop.f32.mrf.mxu0
  %v557 = vadd.f32 0.0, %v556
  %558 = vmatmul.f32.gmra.mxu0 %v519
  %v559 = vpop.f32.mrf.mxu0
  %v560 = vadd.f32 0.0, %v559
  %561 = vmatmul.f32.gmra.mxu0 %v522
  %v562 = vpop.f32.mrf.mxu0
  %v563 = vadd.f32 0.0, %v562
  %564 = vmatmul.f32.gmra.mxu0 %v525
  %v565 = vpop.f32.mrf.mxu0
  %v566 = vadd.f32 0.0, %v565
  %567 = vmatmul.f32.gmra.mxu0 %v528
  %v568 = vpop.f32.mrf.mxu0
  %v569 = vadd.f32 0.0, %v568
  %570 = vdwg.mxu0
  %v571 = vmax.f32 %v443, %v548
  %v572 = vmax.f32 %v446, %v551
  %v573 = vmax.f32 %v449, %v554
  %v574 = vmax.f32 %v452, %v557
  %v575 = vmax.f32 %v455, %v560
  %v576 = vmax.f32 %v458, %v563
  %v577 = vmax.f32 %v461, %v566
  %v578 = vmax.f32 %v464, %v569
  %v579 = vsub.f32 %v443, %v571
  %v580 = vsub.f32 %v446, %v572
  %v581 = vsub.f32 %v449, %v573
  %v582 = vsub.f32 %v452, %v574
  %v583 = vsub.f32 %v455, %v575
  %v584 = vsub.f32 %v458, %v576
  %v585 = vsub.f32 %v461, %v577
  %v586 = vsub.f32 %v464, %v578
  %v587 = vmul.f32 %v579, 1.442695
  %v588 = vpow.pop %v587
  %v589 = vmul.f32 %v580, 1.442695
  %v590 = vpow.pop %v589
  %v591 = vmul.f32 %v581, 1.442695
  %v592 = vpow.pop %v591
  %v593 = vmul.f32 %v582, 1.442695
  %v594 = vpow.pop %v593
  %v595 = vmul.f32 %v583, 1.442695
  %v596 = vpow.pop %v595
  %v597 = vmul.f32 %v584, 1.442695
  %v598 = vpow.pop %v597
  %v599 = vmul.f32 %v585, 1.442695
  %v600 = vpow.pop %v599
  %v601 = vmul.f32 %v586, 1.442695
  %v602 = vpow.pop %v601
  %v603 = vsub.f32 %v548, %v571
  %v604 = vsub.f32 %v551, %v572
  %v605 = vsub.f32 %v554, %v573
  %v606 = vsub.f32 %v557, %v574
  %v607 = vsub.f32 %v560, %v575
  %v608 = vsub.f32 %v563, %v576
  %v609 = vsub.f32 %v566, %v577
  %v610 = vsub.f32 %v569, %v578
  %v611 = vmul.f32 %v603, 1.442695
  %v612 = vpow.pop %v611
  %v613 = vmul.f32 %v604, 1.442695
  %v614 = vpow.pop %v613
  %v615 = vmul.f32 %v605, 1.442695
  %v616 = vpow.pop %v615
  %v617 = vmul.f32 %v606, 1.442695
  %v618 = vpow.pop %v617
  %v619 = vmul.f32 %v607, 1.442695
  %v620 = vpow.pop %v619
  %v621 = vmul.f32 %v608, 1.442695
  %v622 = vpow.pop %v621
  %v623 = vmul.f32 %v609, 1.442695
  %v624 = vpow.pop %v623
  %v625 = vmul.f32 %v610, 1.442695
  %v626 = vpow.pop %v625
  %v627 = vadd.f32 %v588, %v612
  %v628 = vadd.f32 %v590, %v614
  %v629 = vadd.f32 %v592, %v616
  %v630 = vadd.f32 %v594, %v618
  %v631 = vadd.f32 %v596, %v620
  %v632 = vadd.f32 %v598, %v622
  %v633 = vadd.f32 %v600, %v624
  %v634 = vadd.f32 %v602, %v626
  %v635 = vrcp.pop %v627
  %v636 = vmul.f32 %v627, %v635
  %v637 = vsub.f32 1.0, %v636
  %v638 = vmul.f32 %v635, %v637
  %v639 = vadd.f32 %v635, %v638
  %vm640 = vweird.f32 %v627
  %vm641 = vweird.f32 %v635
  %vm642 = vmor %vm640, %vm641
  %v643 = vsel %vm642, %v635, %v639
  %v644 = vand.u32 2147483647, %v627
  %vm645 = vcmp.eq.f32.partialorder %v644, 8.507059e+37
  %v646 = vand.u32 %v627, 2147483648
  %v647 = vor.u32 1.1754944e-38, %v646
  %v648 = vsel %vm645, %v647, %v643
  %v649 = vmul.f32 1.0, %v648
  %v650 = vrcp.pop %v628
  %v651 = vmul.f32 %v628, %v650
  %v652 = vsub.f32 1.0, %v651
  %v653 = vmul.f32 %v650, %v652
  %v654 = vadd.f32 %v650, %v653
  %vm655 = vweird.f32 %v628
  %vm656 = vweird.f32 %v650
  %vm657 = vmor %vm655, %vm656
  %v658 = vsel %vm657, %v650, %v654
  %v659 = vand.u32 2147483647, %v628
  %vm660 = vcmp.eq.f32.partialorder %v659, 8.507059e+37
  %v661 = vand.u32 %v628, 2147483648
  %v662 = vor.u32 1.1754944e-38, %v661
  %v663 = vsel %vm660, %v662, %v658
  %v664 = vmul.f32 1.0, %v663
  %v665 = vrcp.pop %v629
  %v666 = vmul.f32 %v629, %v665
  %v667 = vsub.f32 1.0, %v666
  %v668 = vmul.f32 %v665, %v667
  %v669 = vadd.f32 %v665, %v668
  %vm670 = vweird.f32 %v629
  %vm671 = vweird.f32 %v665
  %vm672 = vmor %vm670, %vm671
  %v673 = vsel %vm672, %v665, %v669
  %v674 = vand.u32 2147483647, %v629
  %vm675 = vcmp.eq.f32.partialorder %v674, 8.507059e+37
  %v676 = vand.u32 %v629, 2147483648
  %v677 = vor.u32 1.1754944e-38, %v676
  %v678 = vsel %vm675, %v677, %v673
  %v679 = vmul.f32 1.0, %v678
  %v680 = vrcp.pop %v630
  %v681 = vmul.f32 %v630, %v680
  %v682 = vsub.f32 1.0, %v681
  %v683 = vmul.f32 %v680, %v682
  %v684 = vadd.f32 %v680, %v683
  %vm685 = vweird.f32 %v630
  %vm686 = vweird.f32 %v680
  %vm687 = vmor %vm685, %vm686
  %v688 = vsel %vm687, %v680, %v684
  %v689 = vand.u32 2147483647, %v630
  %vm690 = vcmp.eq.f32.partialorder %v689, 8.507059e+37
  %v691 = vand.u32 %v630, 2147483648
  %v692 = vor.u32 1.1754944e-38, %v691
  %v693 = vsel %vm690, %v692, %v688
  %v694 = vmul.f32 1.0, %v693
  %v695 = vrcp.pop %v631
  %v696 = vmul.f32 %v631, %v695
  %v697 = vsub.f32 1.0, %v696
  %v698 = vmul.f32 %v695, %v697
  %v699 = vadd.f32 %v695, %v698
  %vm700 = vweird.f32 %v631
  %vm701 = vweird.f32 %v695
  %vm702 = vmor %vm700, %vm701
  %v703 = vsel %vm702, %v695, %v699
  %v704 = vand.u32 2147483647, %v631
  %vm705 = vcmp.eq.f32.partialorder %v704, 8.507059e+37
  %v706 = vand.u32 %v631, 2147483648
  %v707 = vor.u32 1.1754944e-38, %v706
  %v708 = vsel %vm705, %v707, %v703
  %v709 = vmul.f32 1.0, %v708
  %v710 = vrcp.pop %v632
  %v711 = vmul.f32 %v632, %v710
  %v712 = vsub.f32 1.0, %v711
  %v713 = vmul.f32 %v710, %v712
  %v714 = vadd.f32 %v710, %v713
  %vm715 = vweird.f32 %v632
  %vm716 = vweird.f32 %v710
  %vm717 = vmor %vm715, %vm716
  %v718 = vsel %vm717, %v710, %v714
  %v719 = vand.u32 2147483647, %v632
  %vm720 = vcmp.eq.f32.partialorder %v719, 8.507059e+37
  %v721 = vand.u32 %v632, 2147483648
  %v722 = vor.u32 1.1754944e-38, %v721
  %v723 = vsel %vm720, %v722, %v718
  %v724 = vmul.f32 1.0, %v723
  %v725 = vrcp.pop %v633
  %v726 = vmul.f32 %v633, %v725
  %v727 = vsub.f32 1.0, %v726
  %v728 = vmul.f32 %v725, %v727
  %v729 = vadd.f32 %v725, %v728
  %vm730 = vweird.f32 %v633
  %vm731 = vweird.f32 %v725
  %vm732 = vmor %vm730, %vm731
  %v733 = vsel %vm732, %v725, %v729
  %v734 = vand.u32 2147483647, %v633
  %vm735 = vcmp.eq.f32.partialorder %v734, 8.507059e+37
  %v736 = vand.u32 %v633, 2147483648
  %v737 = vor.u32 1.1754944e-38, %v736
  %v738 = vsel %vm735, %v737, %v733
  %v739 = vmul.f32 1.0, %v738
  %v740 = vrcp.pop %v634
  %v741 = vmul.f32 %v634, %v740
  %v742 = vsub.f32 1.0, %v741
  %v743 = vmul.f32 %v740, %v742
  %v744 = vadd.f32 %v740, %v743
  %vm745 = vweird.f32 %v634
  %vm746 = vweird.f32 %v740
  %vm747 = vmor %vm745, %vm746
  %v748 = vsel %vm747, %v740, %v744
  %v749 = vand.u32 2147483647, %v634
  %vm750 = vcmp.eq.f32.partialorder %v749, 8.507059e+37
  %v751 = vand.u32 %v634, 2147483648
  %v752 = vor.u32 1.1754944e-38, %v751
  %v753 = vsel %vm750, %v752, %v748
  %v754 = vmul.f32 1.0, %v753
  %v755 = vmul.f32 %v588, %v649
  %v756 = vmul.f32 %v590, %v664
  %v757 = vmul.f32 %v592, %v679
  %v758 = vmul.f32 %v594, %v694
  %v759 = vmul.f32 %v596, %v709
  %v760 = vmul.f32 %v598, %v724
  %v761 = vmul.f32 %v600, %v739
  %v762 = vmul.f32 %v602, %v754
  %v763 = vld [vmem:[%s6] sm:$0xf]
  %vm764 = vcmask 31744
  %v766 = vsel %vm764, %v755, 0
  %v769 = vsel %vm764, %v756, 0
  %v772 = vsel %vm764, %v757, 0
  %v775 = vsel %vm764, %v758, 0
  %v778 = vsel %vm764, %v759, 0
  %v781 = vsel %vm764, %v760, 0
  %v784 = vsel %vm764, %v761, 0
  %v787 = vsel %vm764, %v762, 0
  %vm789 = vcmask 1043456
  %v791 = vsel %vm789, %v763, 0
  %793 = vmatpush.msra.mxu0 0.0
  %794 = vmatpush.msra.mxu0 0.0
  %795 = vmatpush.msra.mxu0 0.0
  %796 = vmatpush.msra.mxu0 0.0
  %797 = vmatpush.msra.mxu0 0.0
  %798 = vmatpush.msra.mxu0 0.0
  %799 = vmatpush.msra.mxu0 0.0
  %800 = vmatpush.msra.mxu0 0.0
  %801 = vmatpush.msra.mxu0 0.0
  %802 = vmatpush.msra.mxu0 0.0
  %803 = vmatpush.msra.mxu0 0.0
  %804 = vmatpush.msra.mxu0 0.0
  %805 = vmatpush.msra.mxu0 0.0
  %806 = vmatpush.msra.mxu0 0.0
  %807 = vmatpush.msra.mxu0 0.0
  %808 = vmatpush.msra.mxu0 %v791
  %809 = vmatmul.f32.gmra.mxu0 %v766
  %v810 = vpop.f32.mrf.mxu0
  %v811 = vadd.f32 0.0, %v810
  %812 = vmatmul.f32.gmra.mxu0 %v769
  %v813 = vpop.f32.mrf.mxu0
  %v814 = vadd.f32 0.0, %v813
  %815 = vmatmul.f32.gmra.mxu0 %v772
  %v816 = vpop.f32.mrf.mxu0
  %v817 = vadd.f32 0.0, %v816
  %818 = vmatmul.f32.gmra.mxu0 %v775
  %v819 = vpop.f32.mrf.mxu0
  %v820 = vadd.f32 0.0, %v819
  %821 = vmatmul.f32.gmra.mxu0 %v778
  %v822 = vpop.f32.mrf.mxu0
  %v823 = vadd.f32 0.0, %v822
  %824 = vmatmul.f32.gmra.mxu0 %v781
  %v825 = vpop.f32.mrf.mxu0
  %v826 = vadd.f32 0.0, %v825
  %827 = vmatmul.f32.gmra.mxu0 %v784
  %v828 = vpop.f32.mrf.mxu0
  %v829 = vadd.f32 0.0, %v828
  %830 = vmatmul.f32.gmra.mxu0 %v787
  %v831 = vpop.f32.mrf.mxu0
  %v832 = vadd.f32 0.0, %v831
  %833 = vdwg.mxu0
  %v834 = vmul.f32 %v811, %v365
  %v835 = vmul.f32 %v814, %v367
  %v836 = vmul.f32 %v817, %v370
  %v837 = vmul.f32 %v820, %v372
  %v838 = vmul.f32 %v823, %v375
  %v839 = vmul.f32 %v826, %v377
  %v840 = vmul.f32 %v829, %v380
  %v841 = vmul.f32 %v832, %v382
  %v842 = vmul.f32 %v612, %v649
  %v843 = vmul.f32 %v614, %v664
  %v844 = vmul.f32 %v616, %v679
  %v845 = vmul.f32 %v618, %v694
  %v846 = vmul.f32 %v620, %v709
  %v847 = vmul.f32 %v622, %v724
  %v848 = vmul.f32 %v624, %v739
  %v849 = vmul.f32 %v626, %v754
  %v851 = vsel %vm764, %v842, 0
  %v854 = vsel %vm764, %v843, 0
  %v857 = vsel %vm764, %v844, 0
  %v860 = vsel %vm764, %v845, 0
  %v863 = vsel %vm764, %v846, 0
  %v866 = vsel %vm764, %v847, 0
  %v869 = vsel %vm764, %v848, 0
  %v872 = vsel %vm764, %v849, 0
  %874 = vmatpush.msra.mxu0 0.0
  %875 = vmatpush.msra.mxu0 0.0
  %876 = vmatpush.msra.mxu0 0.0
  %877 = vmatpush.msra.mxu0 0.0
  %878 = vmatpush.msra.mxu0 0.0
  %879 = vmatpush.msra.mxu0 0.0
  %880 = vmatpush.msra.mxu0 0.0
  %881 = vmatpush.msra.mxu0 0.0
  %882 = vmatpush.msra.mxu0 0.0
  %883 = vmatpush.msra.mxu0 0.0
  %884 = vmatpush.msra.mxu0 0.0
  %885 = vmatpush.msra.mxu0 0.0
  %886 = vmatpush.msra.mxu0 0.0
  %887 = vmatpush.msra.mxu0 0.0
  %888 = vmatpush.msra.mxu0 0.0
  %889 = vmatpush.msra.mxu0 %v791
  %890 = vmatmul.f32.gmra.mxu0 %v851
  %v891 = vpop.f32.mrf.mxu0
  %v892 = vadd.f32 0.0, %v891
  %893 = vmatmul.f32.gmra.mxu0 %v854
  %v894 = vpop.f32.mrf.mxu0
  %v895 = vadd.f32 0.0, %v894
  %896 = vmatmul.f32.gmra.mxu0 %v857
  %v897 = vpop.f32.mrf.mxu0
  %v898 = vadd.f32 0.0, %v897
  %899 = vmatmul.f32.gmra.mxu0 %v860
  %v900 = vpop.f32.mrf.mxu0
  %v901 = vadd.f32 0.0, %v900
  %902 = vmatmul.f32.gmra.mxu0 %v863
  %v903 = vpop.f32.mrf.mxu0
  %v904 = vadd.f32 0.0, %v903
  %905 = vmatmul.f32.gmra.mxu0 %v866
  %v906 = vpop.f32.mrf.mxu0
  %v907 = vadd.f32 0.0, %v906
  %908 = vmatmul.f32.gmra.mxu0 %v869
  %v909 = vpop.f32.mrf.mxu0
  %v910 = vadd.f32 0.0, %v909
  %911 = vmatmul.f32.gmra.mxu0 %v872
  %v912 = vpop.f32.mrf.mxu0
  %v913 = vadd.f32 0.0, %v912
  %914 = vdwg.mxu0
  %923 = vrot.lane.b32.xlu0 %v365, 64
  %v924 = vpop.permute.xlu0 %923
  %925 = vrot.lane.b32.xlu0 %v367, 64
  %v926 = vpop.permute.xlu0 %925
  %927 = vrot.lane.b32.xlu0 %v370, 64
  %v928 = vpop.permute.xlu0 %927
  %929 = vrot.lane.b32.xlu0 %v372, 64
  %v930 = vpop.permute.xlu0 %929
  %931 = vrot.lane.b32.xlu0 %v375, 64
  %v932 = vpop.permute.xlu0 %931
  %933 = vrot.lane.b32.xlu0 %v377, 64
  %v934 = vpop.permute.xlu0 %933
  %935 = vrot.lane.b32.xlu0 %v380, 64
  %v936 = vpop.permute.xlu0 %935
  %937 = vrot.lane.b32.xlu0 %v382, 64
  %v938 = vpop.permute.xlu0 %937
  %v947 = vmul.f32 %v892, %v924
  %v948 = vmul.f32 %v895, %v926
  %v949 = vmul.f32 %v898, %v928
  %v950 = vmul.f32 %v901, %v930
  %v951 = vmul.f32 %v904, %v932
  %v952 = vmul.f32 %v907, %v934
  %v953 = vmul.f32 %v910, %v936
  %v954 = vmul.f32 %v913, %v938
  %v955 = vadd.f32 %v834, %v947
  %v956 = vadd.f32 %v835, %v948
  %v957 = vadd.f32 %v836, %v949
  %v958 = vadd.f32 %v837, %v950
  %v959 = vadd.f32 %v838, %v951
  %v960 = vadd.f32 %v839, %v952
  %v961 = vadd.f32 %v840, %v953
  %v962 = vadd.f32 %v841, %v954
  %v963 = vpack.c.bf16 %v956, %v955
  %v964 = vpack.c.bf16 %v958, %v957
  %v965 = vpack.c.bf16 %v960, %v959
  %v966 = vpack.c.bf16 %v962, %v961
  %v967 = vld [vmem:[%s7] sm:$0xf]
  %v968 = vld [vmem:[%s7 + $0x4] sm:$0xf]
  %v969 = vld [vmem:[%s7 + $0x8] sm:$0xf]
  %v970 = vld [vmem:[%s7 + $0xc] sm:$0xf]
  %v971 = vld [vmem:[%s7 + $0x10] sm:$0xf]
  %v972 = vld [vmem:[%s7 + $0x14] sm:$0xf]
  %v973 = vld [vmem:[%s7 + $0x18] sm:$0xf]
  %v974 = vld [vmem:[%s7 + $0x1c] sm:$0xf]
  %v975 = vld [vmem:[%s8] sm:$0x1]
  %v976 = vunpack.c.l.bf16 %v975
  %v977 = vperm.slane %v976, 0
  %v986 = vunpack.c.l.b16 %v967
  %v987 = vunpack.c.l.b16 %v968
  %v988 = vunpack.c.l.b16 %v969
  %v989 = vunpack.c.l.b16 %v970
  %v990 = vunpack.c.l.b16 %v971
  %v991 = vunpack.c.l.b16 %v972
  %v992 = vunpack.c.l.b16 %v973
  %v993 = vunpack.c.l.b16 %v974
  %v994 = vpack.c.b16 %v987, %v986
  %v995 = vpack.c.b16 %v989, %v988
  %v996 = vpack.c.b16 %v991, %v990
  %v997 = vpack.c.b16 %v993, %v992
  %v1003 = vsel %vm400, %v963, 0
  %v1006 = vsel %vm400, %v964, 0
  %v1009 = vsel %vm400, %v965, 0
  %v1012 = vsel %vm400, %v966, 0
  %1014 = vmatpush.bf16.msra.mxu0 0
  %1015 = vmatpush.bf16.msra.mxu0 0
  %1016 = vmatpush.bf16.msra.mxu0 0
  %1017 = vmatpush.bf16.msra.mxu0 0
  %1018 = vmatpush.bf16.msra.mxu0 %v997
  %1019 = vmatpush.bf16.msra.mxu0 %v996
  %1020 = vmatpush.bf16.msra.mxu0 %v995
  %1021 = vmatpush.bf16.msra.mxu0 %v994
  %1022 = vmatmul.bf16.gmra.mxu0 %v1003
  %v1023 = vpop.f32.mrf.mxu0
  %v1024 = vadd.f32 %v977, %v1023
  %v1025 = vpop.f32.mrf.mxu0
  %v1026 = vadd.f32 %v977, %v1025
  %1027 = vmatmul.bf16.gmra.mxu0 %v1006
  %v1028 = vpop.f32.mrf.mxu0
  %v1029 = vadd.f32 %v977, %v1028
  %v1030 = vpop.f32.mrf.mxu0
  %v1031 = vadd.f32 %v977, %v1030
  %1032 = vmatmul.bf16.gmra.mxu0 %v1009
  %v1033 = vpop.f32.mrf.mxu0
  %v1034 = vadd.f32 %v977, %v1033
  %v1035 = vpop.f32.mrf.mxu0
  %v1036 = vadd.f32 %v977, %v1035
  %1037 = vmatmul.bf16.gmra.mxu0 %v1012
  %v1038 = vpop.f32.mrf.mxu0
  %v1039 = vadd.f32 %v977, %v1038
  %v1040 = vpop.f32.mrf.mxu0
  %v1041 = vadd.f32 %v977, %v1040
  %1042 = vdwg.mxu0
  %1043 = vst [vmem:[%s9] sm:$0xff] %v1024
  %1044 = vst [vmem:[%s9 + $0x8] sm:$0xff] %v1026
  %1045 = vst [vmem:[%s9 + $0x10] sm:$0xff] %v1029
  %1046 = vst [vmem:[%s9 + $0x18] sm:$0xff] %v1031
  %1047 = vst [vmem:[%s9 + $0x20] sm:$0xff] %v1034
  %1048 = vst [vmem:[%s9 + $0x28] sm:$0xff] %v1036
  %1049 = vst [vmem:[%s9 + $0x30] sm:$0xff] %v1039
  %1050 = vst [vmem:[%s9 + $0x38] sm:$0xff] %v1041
  // Predicated region
  $region38: #{templ_emb_forward.47} parent=0 // pred_check
    _
  $region39: #{templ_emb_forward.47} parent=0 // pred_check_branch
    %1052 = sbr.rel (0) target = $region41
  $region40: #{templ_emb_forward.47} parent=0 // pred_region
    _
  $region41: #{templ_emb_forward.47} parent=0 // pred_fallthru
    _
  // Predicated region
  $region42: #{templ_emb_forward.47} parent=0 // pred_check
    _
  $region43: #{templ_emb_forward.47} parent=0 // pred_check_branch
    %1054 = sbr.rel (0) target = $region45
  $region44: #{templ_emb_forward.47} parent=0 // pred_region
    _
  $region45: #{templ_emb_forward.47} parent=0 // pred_fallthru
    _

// kernel: templ_emb_forward.46
$region0: #{templ_emb_forward.46}
  #allocation0 [shape = 'u32[]', space=smem, size = 0x4, offset = 0x4, fixed_abs, tag = 'smem constant byte address 0x4 - core index']
  #allocation1 [shape = 'u32[72,128]{1,0:T(1,128)}', space=vmem, size = 0x9000, scoped, tag = 'internal scratch']
  %s0 = inlined_call_operand.vmem [shape: bf16[8,32], index: 0, kind: input, shape index: {}]
  %s1 = inlined_call_operand.vmem [shape: bf16[8,128], index: 1, kind: input, shape index: {}]
  %s2 = inlined_call_operand.vmem [shape: bf16[32,64], index: 2, kind: input, shape index: {}]
  %s3 = inlined_call_operand.vmem [shape: bf16[128,128], index: 3, kind: input, shape index: {}]
  %s4 = inlined_call_operand.vmem [shape: bf16[128,128], index: 4, kind: input, shape index: {}]
  %s5 = inlined_call_operand.vmem [shape: f32[64,4], index: 5, kind: input, shape index: {}]
  %s6 = inlined_call_operand.vmem [shape: f32[4,64], index: 6, kind: input, shape index: {}]
  %s7 = inlined_call_operand.vmem [shape: bf16[64,32], index: 7, kind: input, shape index: {}]
  %s8 = inlined_call_operand.vmem [shape: bf16[1,32], index: 8, kind: input, shape index: {}]
  %s9 = inlined_call_operand.vmem [shape: f32[8,32], index: 9, kind: output, shape index: {}]
  %s10 = sld [smem:[#allocation0]]
  $region46: #{templ_emb_forward.46} parent=0
    _
  %s12 = ssub.s32 1, %s10
  %s13 = scalar_select 0, %s12, %s10
  // Predicated region
  $region2: #{templ_emb_forward.46} parent=0 // pred_check
    _
  $region3: #{templ_emb_forward.46} parent=0 // pred_check_branch
    %15 = sbr.rel (0) target = $region5
  $region4: #{templ_emb_forward.46} parent=0 // pred_region
    _
  $region5: #{templ_emb_forward.46} parent=0 // pred_fallthru
    _
  // Predicated region
  $region6: #{templ_emb_forward.46} parent=0 // pred_check
    _
  $region7: #{templ_emb_forward.46} parent=0 // pred_check_branch
    %17 = sbr.rel (0) target = $region9
  $region8: #{templ_emb_forward.46} parent=0 // pred_region
    _
  $region9: #{templ_emb_forward.46} parent=0 // pred_fallthru
    _
  // Predicated region
  $region10: #{templ_emb_forward.46} parent=0 // pred_check
    _
  $region11: #{templ_emb_forward.46} parent=0 // pred_check_branch
    %19 = sbr.rel (0) target = $region13
  $region12: #{templ_emb_forward.46} parent=0 // pred_region
    _
  $region13: #{templ_emb_forward.46} parent=0 // pred_fallthru
    _
  // Predicated region
  $region14: #{templ_emb_forward.46} parent=0 // pred_check
    _
  $region15: #{templ_emb_forward.46} parent=0 // pred_check_branch
    %21 = sbr.rel (0) target = $region17
  $region16: #{templ_emb_forward.46} parent=0 // pred_region
    _
  $region17: #{templ_emb_forward.46} parent=0 // pred_fallthru
    _
  // Predicated region
  $region18: #{templ_emb_forward.46} parent=0 // pred_check
    _
  $region19: #{templ_emb_forward.46} parent=0 // pred_check_branch
    %23 = sbr.rel (0) target = $region21
  $region20: #{templ_emb_forward.46} parent=0 // pred_region
    _
  $region21: #{templ_emb_forward.46} parent=0 // pred_fallthru
    _
  // Predicated region
  $region22: #{templ_emb_forward.46} parent=0 // pred_check
    _
  $region23: #{templ_emb_forward.46} parent=0 // pred_check_branch
    %25 = sbr.rel (0) target = $region25
  $region24: #{templ_emb_forward.46} parent=0 // pred_region
    _
  $region25: #{templ_emb_forward.46} parent=0 // pred_fallthru
    _
  // Predicated region
  $region26: #{templ_emb_forward.46} parent=0 // pred_check
    _
  $region27: #{templ_emb_forward.46} parent=0 // pred_check_branch
    %27 = sbr.rel (0) target = $region29
  $region28: #{templ_emb_forward.46} parent=0 // pred_region
    _
  $region29: #{templ_emb_forward.46} parent=0 // pred_fallthru
    _
  // Predicated region
  $region30: #{templ_emb_forward.46} parent=0 // pred_check
    _
  $region31: #{templ_emb_forward.46} parent=0 // pred_check_branch
    %29 = sbr.rel (0) target = $region33
  $region32: #{templ_emb_forward.46} parent=0 // pred_region
    _
  $region33: #{templ_emb_forward.46} parent=0 // pred_fallthru
    _
  // Predicated region
  $region34: #{templ_emb_forward.46} parent=0 // pred_check
    _
  $region35: #{templ_emb_forward.46} parent=0 // pred_check_branch
    %31 = sbr.rel (0) target = $region37
  $region36: #{templ_emb_forward.46} parent=0 // pred_region
    _
  $region37: #{templ_emb_forward.46} parent=0 // pred_fallthru
    _
  %v33 = vld [vmem:[%s0] sm:$0xf]
  %v34 = vld [vmem:[%s2] sm:$0xf]
  %v35 = vld [vmem:[%s2 + $0x4] sm:$0xf]
  %v36 = vld [vmem:[%s2 + $0x8] sm:$0xf]
  %v37 = vld [vmem:[%s2 + $0xc] sm:$0xf]
  %v42 = vunpack.c.l.b16 %v34
  %v43 = vunpack.c.l.b16 %v35
  %v44 = vunpack.c.l.b16 %v36
  %v45 = vunpack.c.l.b16 %v37
  %v46 = vpack.c.b16 %v43, %v42
  %v47 = vpack.c.b16 %v45, %v44
  %vm50 = vcmask 261120
  %v52 = vsel %vm50, %v33, 0
  %54 = vmatpush.bf16.msra.mxu0 0
  %55 = vmatpush.bf16.msra.mxu0 0
  %56 = vmatpush.bf16.msra.mxu0 0
  %57 = vmatpush.bf16.msra.mxu0 0
  %58 = vmatpush.bf16.msra.mxu0 0
  %59 = vmatpush.bf16.msra.mxu0 0
  %60 = vmatpush.bf16.msra.mxu0 %v47
  %61 = vmatpush.bf16.msra.mxu0 %v46
  %62 = vmatmul.bf16.gmra.mxu0 %v52
  %v63 = vpop.f32.mrf.mxu0
  %v64 = vadd.f32 0.0, %v63
  %v65 = vpop.f32.mrf.mxu0
  %66 = vdwg.mxu0
  %v67 = vmul.f32 %v64, 0.25
  %v68 = vld [vmem:[%s1] sm:$0xf]
  %v69 = vld [vmem:[%s3] sm:$0xf]
  %v70 = vld [vmem:[%s3 + $0x4] sm:$0xf]
  %v71 = vld [vmem:[%s3 + $0x8] sm:$0xf]
  %v72 = vld [vmem:[%s3 + $0xc] sm:$0xf]
  %v73 = vld [vmem:[%s3 + $0x10] sm:$0xf]
  %v74 = vld [vmem:[%s3 + $0x14] sm:$0xf]
  %v75 = vld [vmem:[%s3 + $0x18] sm:$0xf]
  %v76 = vld [vmem:[%s3 + $0x1c] sm:$0xf]
  %v77 = vld [vmem:[%s3 + $0x20] sm:$0xf]
  %v78 = vld [vmem:[%s3 + $0x24] sm:$0xf]
  %v79 = vld [vmem:[%s3 + $0x28] sm:$0xf]
  %v80 = vld [vmem:[%s3 + $0x2c] sm:$0xf]
  %v81 = vld [vmem:[%s3 + $0x30] sm:$0xf]
  %v82 = vld [vmem:[%s3 + $0x34] sm:$0xf]
  %v83 = vld [vmem:[%s3 + $0x38] sm:$0xf]
  %v84 = vld [vmem:[%s3 + $0x3c] sm:$0xf]
  %v101 = vunpack.c.l.b16 %v69
  %v102 = vunpack.c.l.b16 %v70
  %v103 = vunpack.c.l.b16 %v71
  %v104 = vunpack.c.l.b16 %v72
  %v105 = vunpack.c.l.b16 %v73
  %v106 = vunpack.c.l.b16 %v74
  %v107 = vunpack.c.l.b16 %v75
  %v108 = vunpack.c.l.b16 %v76
  %v109 = vunpack.c.l.b16 %v77
  %v110 = vunpack.c.l.b16 %v78
  %v111 = vunpack.c.l.b16 %v79
  %v112 = vunpack.c.l.b16 %v80
  %v113 = vunpack.c.l.b16 %v81
  %v114 = vunpack.c.l.b16 %v82
  %v115 = vunpack.c.l.b16 %v83
  %v116 = vunpack.c.l.b16 %v84
  %v117 = vpack.c.b16 %v102, %v101
  %v118 = vpack.c.b16 %v104, %v103
  %v119 = vpack.c.b16 %v106, %v105
  %v120 = vpack.c.b16 %v108, %v107
  %v121 = vpack.c.b16 %v110, %v109
  %v122 = vpack.c.b16 %v112, %v111
  %v123 = vpack.c.b16 %v114, %v113
  %v124 = vpack.c.b16 %v116, %v115
  %133 = vmatpush.bf16.msra.mxu0 %v124
  %134 = vmatpush.bf16.msra.mxu0 %v123
  %135 = vmatpush.bf16.msra.mxu0 %v122
  %136 = vmatpush.bf16.msra.mxu0 %v121
  %137 = vmatpush.bf16.msra.mxu0 %v120
  %138 = vmatpush.bf16.msra.mxu0 %v119
  %139 = vmatpush.bf16.msra.mxu0 %v118
  %140 = vmatpush.bf16.msra.mxu0 %v117
  %141 = vmatmul.bf16.gmra.mxu0 %v68
  %v142 = vpop.f32.mrf.mxu0
  %v143 = vadd.f32 0.0, %v142
  %v144 = vpop.f32.mrf.mxu0
  %145 = vdwg.mxu0
  %v146 = vld [vmem:[%s4] sm:$0xf]
  %v147 = vld [vmem:[%s4 + $0x4] sm:$0xf]
  %v148 = vld [vmem:[%s4 + $0x8] sm:$0xf]
  %v149 = vld [vmem:[%s4 + $0xc] sm:$0xf]
  %v150 = vld [vmem:[%s4 + $0x10] sm:$0xf]
  %v151 = vld [vmem:[%s4 + $0x14] sm:$0xf]
  %v152 = vld [vmem:[%s4 + $0x18] sm:$0xf]
  %v153 = vld [vmem:[%s4 + $0x1c] sm:$0xf]
  %v154 = vld [vmem:[%s4 + $0x20] sm:$0xf]
  %v155 = vld [vmem:[%s4 + $0x24] sm:$0xf]
  %v156 = vld [vmem:[%s4 + $0x28] sm:$0xf]
  %v157 = vld [vmem:[%s4 + $0x2c] sm:$0xf]
  %v158 = vld [vmem:[%s4 + $0x30] sm:$0xf]
  %v159 = vld [vmem:[%s4 + $0x34] sm:$0xf]
  %v160 = vld [vmem:[%s4 + $0x38] sm:$0xf]
  %v161 = vld [vmem:[%s4 + $0x3c] sm:$0xf]
  %v178 = vunpack.c.l.b16 %v146
  %v179 = vunpack.c.l.b16 %v147
  %v180 = vunpack.c.l.b16 %v148
  %v181 = vunpack.c.l.b16 %v149
  %v182 = vunpack.c.l.b16 %v150
  %v183 = vunpack.c.l.b16 %v151
  %v184 = vunpack.c.l.b16 %v152
  %v185 = vunpack.c.l.b16 %v153
  %v186 = vunpack.c.l.b16 %v154
  %v187 = vunpack.c.l.b16 %v155
  %v188 = vunpack.c.l.b16 %v156
  %v189 = vunpack.c.l.b16 %v157
  %v190 = vunpack.c.l.b16 %v158
  %v191 = vunpack.c.l.b16 %v159
  %v192 = vunpack.c.l.b16 %v160
  %v193 = vunpack.c.l.b16 %v161
  %v194 = vpack.c.b16 %v179, %v178
  %v195 = vpack.c.b16 %v181, %v180
  %v196 = vpack.c.b16 %v183, %v182
  %v197 = vpack.c.b16 %v185, %v184
  %v198 = vpack.c.b16 %v187, %v186
  %v199 = vpack.c.b16 %v189, %v188
  %v200 = vpack.c.b16 %v191, %v190
  %v201 = vpack.c.b16 %v193, %v192
  %210 = vmatpush.bf16.msra.mxu0 %v201
  %211 = vmatpush.bf16.msra.mxu0 %v200
  %212 = vmatpush.bf16.msra.mxu0 %v199
  %213 = vmatpush.bf16.msra.mxu0 %v198
  %214 = vmatpush.bf16.msra.mxu0 %v197
  %215 = vmatpush.bf16.msra.mxu0 %v196
  %216 = vmatpush.bf16.msra.mxu0 %v195
  %217 = vmatpush.bf16.msra.mxu0 %v194
  %218 = vmatmul.bf16.gmra.mxu0 %v68
  %v219 = vpop.f32.mrf.mxu0
  %v220 = vadd.f32 0.0, %v219
  %v221 = vpop.f32.mrf.mxu0
  %222 = vdwg.mxu0
  %v223 = vmul.f32 %v67, %v143
  %v224 = vld [vmem:[%s5] sm:$0xff]
  %v225 = vld [vmem:[%s5 + $0x8] sm:$0xff]
  %v226 = vld [vmem:[%s5 + $0x10] sm:$0xff]
  %v227 = vld [vmem:[%s5 + $0x18] sm:$0xff]
  %v228 = vld [vmem:[%s5 + $0x20] sm:$0xff]
  %v229 = vld [vmem:[%s5 + $0x28] sm:$0xff]
  %v230 = vld [vmem:[%s5 + $0x30] sm:$0xff]
  %v231 = vld [vmem:[%s5 + $0x38] sm:$0xff]
  %vm232 = vcmask 523264
  %v234 = vsel %vm232, %v223, 0
  %236 = vmatpush.msra.mxu0 0.0
  %237 = vmatpush.msra.mxu0 0.0
  %238 = vmatpush.msra.mxu0 0.0
  %239 = vmatpush.msra.mxu0 0.0
  %240 = vmatpush.msra.mxu0 0.0
  %241 = vmatpush.msra.mxu0 0.0
  %242 = vmatpush.msra.mxu0 0.0
  %243 = vmatpush.msra.mxu0 0.0
  %244 = vmatpush.msra.mxu0 %v231
  %245 = vmatpush.msra.mxu0 %v230
  %246 = vmatpush.msra.mxu0 %v229
  %247 = vmatpush.msra.mxu0 %v228
  %248 = vmatpush.msra.mxu0 %v227
  %249 = vmatpush.msra.mxu0 %v226
  %250 = vmatpush.msra.mxu0 %v225
  %251 = vmatpush.msra.mxu0 %v224
  %252 = vmatmul.f32.gmra.mxu0 %v234
  %v253 = vpop.f32.mrf.mxu0
  %v254 = vadd.f32 0.0, %v253
  %255 = vdwg.mxu0
  %257 = vrot.lane.b32.xlu0 %v143, 64
  %v258 = vpop.permute.xlu0 %257
  %v260 = vmul.f32 %v67, %v258
  %v262 = vsel %vm232, %v260, 0
  %264 = vmatpush.msra.mxu0 0.0
  %265 = vmatpush.msra.mxu0 0.0
  %266 = vmatpush.msra.mxu0 0.0
  %267 = vmatpush.msra.mxu0 0.0
  %268 = vmatpush.msra.mxu0 0.0
  %269 = vmatpush.msra.mxu0 0.0
  %270 = vmatpush.msra.mxu0 0.0
  %271 = vmatpush.msra.mxu0 0.0
  %272 = vmatpush.msra.mxu0 %v231
  %273 = vmatpush.msra.mxu0 %v230
  %274 = vmatpush.msra.mxu0 %v229
  %275 = vmatpush.msra.mxu0 %v228
  %276 = vmatpush.msra.mxu0 %v227
  %277 = vmatpush.msra.mxu0 %v226
  %278 = vmatpush.msra.mxu0 %v225
  %279 = vmatpush.msra.mxu0 %v224
  %280 = vmatmul.f32.gmra.mxu0 %v262
  %v281 = vpop.f32.mrf.mxu0
  %v282 = vadd.f32 0.0, %v281
  %283 = vdwg.mxu0
  %v284 = vmax.f32 %v254, %v282
  %v285 = vsub.f32 %v254, %v284
  %v286 = vmul.f32 %v285, 1.442695
  %v287 = vpow.pop %v286
  %v288 = vsub.f32 %v282, %v284
  %v289 = vmul.f32 %v288, 1.442695
  %v290 = vpow.pop %v289
  %v291 = vadd.f32 %v287, %v290
  %v292 = vrcp.pop %v291
  %v293 = vmul.f32 %v291, %v292
  %v294 = vsub.f32 1.0, %v293
  %v295 = vmul.f32 %v292, %v294
  %v296 = vadd.f32 %v292, %v295
  %vm297 = vweird.f32 %v291
  %vm298 = vweird.f32 %v292
  %vm299 = vmor %vm297, %vm298
  %v300 = vsel %vm299, %v292, %v296
  %v301 = vand.u32 2147483647, %v291
  %vm302 = vcmp.eq.f32.partialorder %v301, 8.507059e+37
  %v303 = vand.u32 %v291, 2147483648
  %v304 = vor.u32 1.1754944e-38, %v303
  %v305 = vsel %vm302, %v304, %v300
  %v306 = vmul.f32 1.0, %v305
  %v307 = vmul.f32 %v287, %v306
  %v308 = vld [vmem:[%s6] sm:$0xf]
  %vm309 = vcmask 31744
  %v311 = vsel %vm309, %v307, 0
  %vm313 = vcmask 1043456
  %v315 = vsel %vm313, %v308, 0
  %317 = vmatpush.msra.mxu0 0.0
  %318 = vmatpush.msra.mxu0 0.0
  %319 = vmatpush.msra.mxu0 0.0
  %320 = vmatpush.msra.mxu0 0.0
  %321 = vmatpush.msra.mxu0 0.0
  %322 = vmatpush.msra.mxu0 0.0
  %323 = vmatpush.msra.mxu0 0.0
  %324 = vmatpush.msra.mxu0 0.0
  %325 = vmatpush.msra.mxu0 0.0
  %326 = vmatpush.msra.mxu0 0.0
  %327 = vmatpush.msra.mxu0 0.0
  %328 = vmatpush.msra.mxu0 0.0
  %329 = vmatpush.msra.mxu0 0.0
  %330 = vmatpush.msra.mxu0 0.0
  %331 = vmatpush.msra.mxu0 0.0
  %332 = vmatpush.msra.mxu0 %v315
  %333 = vmatmul.f32.gmra.mxu0 %v311
  %v334 = vpop.f32.mrf.mxu0
  %v335 = vadd.f32 0.0, %v334
  %336 = vdwg.mxu0
  %v337 = vmul.f32 %v335, %v220
  %v338 = vmul.f32 %v290, %v306
  %v340 = vsel %vm309, %v338, 0
  %342 = vmatpush.msra.mxu0 0.0
  %343 = vmatpush.msra.mxu0 0.0
  %344 = vmatpush.msra.mxu0 0.0
  %345 = vmatpush.msra.mxu0 0.0
  %346 = vmatpush.msra.mxu0 0.0
  %347 = vmatpush.msra.mxu0 0.0
  %348 = vmatpush.msra.mxu0 0.0
  %349 = vmatpush.msra.mxu0 0.0
  %350 = vmatpush.msra.mxu0 0.0
  %351 = vmatpush.msra.mxu0 0.0
  %352 = vmatpush.msra.mxu0 0.0
  %353 = vmatpush.msra.mxu0 0.0
  %354 = vmatpush.msra.mxu0 0.0
  %355 = vmatpush.msra.mxu0 0.0
  %356 = vmatpush.msra.mxu0 0.0
  %357 = vmatpush.msra.mxu0 %v315
  %358 = vmatmul.f32.gmra.mxu0 %v340
  %v359 = vpop.f32.mrf.mxu0
  %v360 = vadd.f32 0.0, %v359
  %361 = vdwg.mxu0
  %363 = vrot.lane.b32.xlu0 %v220, 64
  %v364 = vpop.permute.xlu0 %363
  %v366 = vmul.f32 %v360, %v364
  %v367 = vadd.f32 %v337, %v366
  %v368 = vpack.c.bf16 %v367, %v367
  %v369 = vld [vmem:[%s7] sm:$0xf]
  %v370 = vld [vmem:[%s7 + $0x4] sm:$0xf]
  %v371 = vld [vmem:[%s7 + $0x8] sm:$0xf]
  %v372 = vld [vmem:[%s7 + $0xc] sm:$0xf]
  %v373 = vld [vmem:[%s7 + $0x10] sm:$0xf]
  %v374 = vld [vmem:[%s7 + $0x14] sm:$0xf]
  %v375 = vld [vmem:[%s7 + $0x18] sm:$0xf]
  %v376 = vld [vmem:[%s7 + $0x1c] sm:$0xf]
  %v377 = vld [vmem:[%s8] sm:$0x1]
  %v378 = vunpack.c.l.bf16 %v377
  %v379 = vperm.slane %v378, 0
  %v388 = vunpack.c.l.b16 %v369
  %v389 = vunpack.c.l.b16 %v370
  %v390 = vunpack.c.l.b16 %v371
  %v391 = vunpack.c.l.b16 %v372
  %v392 = vunpack.c.l.b16 %v373
  %v393 = vunpack.c.l.b16 %v374
  %v394 = vunpack.c.l.b16 %v375
  %v395 = vunpack.c.l.b16 %v376
  %v396 = vpack.c.b16 %v389, %v388
  %v397 = vpack.c.b16 %v391, %v390
  %v398 = vpack.c.b16 %v393, %v392
  %v399 = vpack.c.b16 %v395, %v394
  %v405 = vsel %vm232, %v368, 0
  %407 = vmatpush.bf16.msra.mxu0 0
  %408 = vmatpush.bf16.msra.mxu0 0
  %409 = vmatpush.bf16.msra.mxu0 0
  %410 = vmatpush.bf16.msra.mxu0 0
  %411 = vmatpush.bf16.msra.mxu0 %v399
  %412 = vmatpush.bf16.msra.mxu0 %v398
  %413 = vmatpush.bf16.msra.mxu0 %v397
  %414 = vmatpush.bf16.msra.mxu0 %v396
  %415 = vmatmul.bf16.gmra.mxu0 %v405
  %v416 = vpop.f32.mrf.mxu0
  %v417 = vadd.f32 %v379, %v416
  %v418 = vpop.f32.mrf.mxu0
  %419 = vdwg.mxu0
  %420 = vst.msk [vmem:[%s9] sm:$0xff] %vm50, %v417
  // Predicated region
  $region38: #{templ_emb_forward.46} parent=0 // pred_check
    _
  $region39: #{templ_emb_forward.46} parent=0 // pred_check_branch
    %422 = sbr.rel (0) target = $region41
  $region40: #{templ_emb_forward.46} parent=0 // pred_region
    _
  $region41: #{templ_emb_forward.46} parent=0 // pred_fallthru
    _
  // Predicated region
  $region42: #{templ_emb_forward.46} parent=0 // pred_check
    _
  $region43: #{templ_emb_forward.46} parent=0 // pred_check_branch
    %424 = sbr.rel (0) target = $region45
  $region44: #{templ_emb_forward.46} parent=0 // pred_region
    _
  $region45: #{templ_emb_forward.46} parent=0 // pred_fallthru
    _

</llo_original>
